<compile_context>
chip_gen: v7x
topology: tpu7x:2x2x1
jax: 0.10.0
libtpu: 0.0.40
codegen_flags: <defaults>
</compile_context>

<pallas_src>
import jax
import jax.numpy as jnp
from jax import lax
from jax.experimental import pallas as pl
from jax.experimental.pallas import tpu as pltpu

# ----------------- small configuration consistent with the module -----------------
B = 4              # batch size (PyTorch treats the 2-D [B, 2H] transformer input as an
                   # UNBATCHED sequence of length B -> attention across batch items)
H = 64             # hidden_size
D = 2 * H          # d_model of attention / transformer blocks (= 128)
NH = 8             # num_heads
HD = D // NH       # head dim (= 16)
FF = 4 * H         # dim_feedforward
FC2_OUT = 32       # analogue of the hard-coded nn.Linear(768, 256)
NC = 2             # num_classes
LN_EPS = 1e-5
SCALE = 1.0 / float(HD) ** 0.5
NEG = -1e30        # additive mask value (finite, f32 only)
WDT = jnp.bfloat16  # storage dtype of weight matrices / MXU input dtype

assert B & (B - 1) == 0, "top-level mask uses i & (B-1); B must be a power of two"

# dot_general dimension numbers
DN_BATCH = (((2,), (1,)), ((0,), (0,)))   # [b,m,k] x [b,k,n] -> [b,m,n]
DN_QK = (((2,), (2,)), ((0,), (0,)))      # [h,m,d] x [h,n,d] -> [h,m,n]
DN_PV = (((2,), (1,)), ((0,), (0,)))      # [h,m,n] x [h,n,d] -> [h,m,d]


# ----------------------------- in-kernel helpers ----------------------------------
def _layer_norm(x, g, b):
    m = jnp.mean(x, axis=-1, keepdims=True)
    c = x - m
    v = jnp.mean(c * c, axis=-1, keepdims=True)
    return c * lax.rsqrt(v + LN_EPS) * g + b


def _attn_core(qkv, mask):
    """Scaled-dot-product attention core (weight-free part).

    qkv: [L, 3D] f32 (lanes [Q | K | V], head h at lanes h*HD within each block).
    mask: additive [L, L] f32.  Returns the head-merged context [L, D] f32
    (ready for the single fused out-projection matmul)."""
    q = jnp.stack([qkv[:, h * HD:(h + 1) * HD] for h in range(NH)], axis=0) * SCALE       # [NH,L,HD]
    k = jnp.stack([qkv[:, D + h * HD:D + (h + 1) * HD] for h in range(NH)], axis=0)
    v = jnp.stack([qkv[:, 2 * D + h * HD:2 * D + (h + 1) * HD] for h in range(NH)], axis=0)
    s = lax.dot_general(q.astype(WDT), k.astype(WDT), DN_QK,
                        preferred_element_type=jnp.float32) + mask                        # [NH,L,L]
    s = s - jnp.max(s, axis=-1, keepdims=True)
    p = jnp.exp(s)
    p = p * pl.reciprocal(jnp.sum(p, axis=-1, keepdims=True), approx=True)
    o = lax.dot_general(p.astype(WDT), v.astype(WDT), DN_PV,
                        preferred_element_type=jnp.float32)                               # [NH,L,HD]
    return jnp.concatenate([o[h] for h in range(NH)], axis=-1)                            # [L, D]


def _enc_pair(x, inw, inb, outw, outb, l1w, l1b, l2w, l2b, n1w, n1b, n2w, n2b, mask):
    """One post-norm TransformerEncoderLayer applied to BOTH branches at once.

    x: [2, S, D] f32 (branch 0 = gated {claim_true; claim_false}, branch 1 = {claim_analyse; pad}).
    Matrix weights: [2, ...] bf16; biases / LN params: [2, 1, ...] f32; mask: [S, S] f32."""
    qkv = lax.dot_general(x.astype(WDT), inw, DN_BATCH,
                          preferred_element_type=jnp.float32) + inb                       # [2,S,3D]
    sa = jnp.stack([_attn_core(qkv[0], mask), _attn_core(qkv[1], mask)], axis=0)          # [2,S,D]
    sa = lax.dot_general(sa.astype(WDT), outw, DN_BATCH,
                         preferred_element_type=jnp.float32) + outb
    x = _layer_norm(x + sa, n1w, n1b)
    h = lax.dot_general(x.astype(WDT), l1w, DN_BATCH, preferred_element_type=jnp.float32) + l1b
    h = jnp.maximum(h, 0.0)
    ff = lax.dot_general(h.astype(WDT), l2w, DN_BATCH, preferred_element_type=jnp.float32) + l2b
    return _layer_norm(x + ff, n2w, n2b)


# ----------------------------------- kernel ---------------------------------------
def _kernel(
    # activations
    ctcf_ref, ca_ref,
    # gate MLP
    mlp_w1_ref, mlp_b1_ref, mlp_w2_ref, mlp_b2_ref,
    # encoder layer-pair 0 (eagerly DMA'd to VMEM)
    t0_inw_ref, t0_inb_ref, t0_outw_ref, t0_outb_ref,
    t0_l1w_ref, t0_l1b_ref, t0_l2w_ref, t0_l2b_ref,
    t0_n1w_ref, t0_n1b_ref, t0_n2w_ref, t0_n2b_ref,
    # encoder layer-pair 1 biases / norms (tiny -> eager)
    t1_inb_ref, t1_outb_ref, t1_l1b_ref, t1_l2b_ref,
    t1_n1w_ref, t1_n1b_ref, t1_n2w_ref, t1_n2b_ref,
    # top attention + fc biases (tiny -> eager)
    a_inb_ref, a_outb_ref, fc1_b_ref, fc2_b_ref, fc3_b_ref,
    # late-stage weight matrices, left in HBM (memory_space=pl.ANY), prefetched manually
    t1_inw_hbm, t1_outw_hbm, t1_l1w_hbm, t1_l2w_hbm,
    a_inw_hbm, a_outw_hbm, fc1_w_hbm, fc2_w_hbm, fc3_w_hbm,
    # packed output [B, 4] = [logits(2) | w_t | w_f]
    out_ref,
    # scratch: VMEM landing buffers for prefetched weights + DMA semaphores
    t1_inw_s, t1_outw_s, t1_l1w_s, t1_l2w_s,
    a_inw_s, a_outw_s, fc1_w_s, fc2_w_s, fc3_w_s,
    dma_sem,
):
    S = 2 * B

    # --- 0) kick off the late-weight prefetch; overlaps with gate MLP + encoder pair 0 ---
    copies = [
        pltpu.make_async_copy(t1_inw_hbm, t1_inw_s, dma_sem.at[0]),
        pltpu.make_async_copy(t1_outw_hbm, t1_outw_s, dma_sem.at[1]),
        pltpu.make_async_copy(t1_l1w_hbm, t1_l1w_s, dma_sem.at[2]),
        pltpu.make_async_copy(t1_l2w_hbm, t1_l2w_s, dma_sem.at[3]),
        pltpu.make_async_copy(a_inw_hbm, a_inw_s, dma_sem.at[4]),
        pltpu.make_async_copy(a_outw_hbm, a_outw_s, dma_sem.at[5]),
        pltpu.make_async_copy(fc1_w_hbm, fc1_w_s, dma_sem.at[6]),
        pltpu.make_async_copy(fc2_w_hbm, fc2_w_s, dma_sem.at[7]),
        pltpu.make_async_copy(fc3_w_hbm, fc3_w_s, dma_sem.at[8]),
    ]
    for c in copies:
        c.start()

    ctcf = ctcf_ref[...]       # [2B, D] rows: [claim|true] x B then [claim|false] x B
    ca = ca_ref[...]           # [2B, D] rows: [claim|analyse] x B then zero padding x B

    # --- masks built in-kernel (iota + compare), f32 ------------------------------------
    # encoder mask: rows {0..B-1} and {B..2B-1} are two independent length-B sequences.
    ii = lax.broadcasted_iota(jnp.int32, (S, S), 0)
    jj = lax.broadcasted_iota(jnp.int32, (S, S), 1)
    same = ((ii < B) & (jj < B)) | ((ii >= B) & (jj >= B))
    mask_enc = jnp.where(same, 0.0, NEG).astype(jnp.float32)
    # top-level mask: rows [analyse_b | true_b | false_b] -> same batch item iff i%B == j%B.
    i3 = lax.broadcasted_iota(jnp.int32, (3 * B, 3 * B), 0)
    j3 = lax.broadcasted_iota(jnp.int32, (3 * B, 3 * B), 1)
    mask_top = jnp.where((i3 & (B - 1)) == (j3 & (B - 1)), 0.0, NEG).astype(jnp.float32)

    # --- gate MLP + sigmoid for both branches at once ([2B, 2H]) ------------------------
    g = jnp.dot(ctcf.astype(WDT), mlp_w1_ref[...],
                preferred_element_type=jnp.float32) + mlp_b1_ref[...]
    g = jnp.maximum(g, 0.0)
    gates = jax.nn.sigmoid(
        jnp.dot(g.astype(WDT), mlp_w2_ref[...],
                preferred_element_type=jnp.float32) + mlp_b2_ref[...])          # [2B, 1] f32

    # --- branch-batched encoder: branch 0 = gated {ct;cf} (self.transformer),
    #     branch 1 = {ca; pad} (self.transformer_c) -----------------------------------
    x = jnp.stack([gates * ctcf, ca], axis=0)                                    # [2, S, D]

    x = _enc_pair(x, t0_inw_ref[...], t0_inb_ref[...], t0_outw_ref[...], t0_outb_ref[...],
                  t0_l1w_ref[...], t0_l1b_ref[...], t0_l2w_ref[...], t0_l2b_ref[...],
                  t0_n1w_ref[...], t0_n1b_ref[...], t0_n2w_ref[...], t0_n2b_ref[...],
                  mask_enc)

    for c in copies[:4]:                       # layer-pair-1 weights needed now
        c.wait()
    x = _enc_pair(x, t1_inw_s[...], t1_inb_ref[...], t1_outw_s[...], t1_outb_ref[...],
                  t1_l1w_s[...], t1_l1b_ref[...], t1_l2w_s[...], t1_l2b_ref[...],
                  t1_n1w_ref[...], t1_n1b_ref[...], t1_n2w_ref[...], t1_n2b_ref[...],
                  mask_enc)

    x_tf = x[0]                                # [2B, D]: rows 0..B-1 true, B..2B-1 false
    x_a = x[1][0:B]                            # [B, D] (padding rows discarded)
    x_top = jnp.concatenate([x_a, x_tf], axis=0)                                 # [3B, D]

    # --- top-level nn.MultiheadAttention over stacked 3-token "sequences" ---------------
    for c in copies[4:6]:
        c.wait()
    qkv_top = jnp.dot(x_top.astype(WDT), a_inw_s[...],
                      preferred_element_type=jnp.float32) + a_inb_ref[...]       # [3B, 3D]
    att = _attn_core(qkv_top, mask_top)                                          # [3B, D]
    att = jnp.dot(att.astype(WDT), a_outw_s[...],
                  preferred_element_type=jnp.float32) + a_outb_ref[...]          # [3B, D]

    # --- torch.flatten(attn, 1) (order analyse|true|false) + fc1/fc2/relu/fc3 -----------
    for c in copies[6:]:
        c.wait()
    flat = jnp.concatenate([att[0:B], att[B:2 * B], att[2 * B:3 * B]], axis=1)   # [B, 3D]
    h1 = jnp.dot(flat.astype(WDT), fc1_w_s[...],
                 preferred_element_type=jnp.float32) + fc1_b_ref[...]            # [B, H]
    h2 = jnp.dot(h1.astype(WDT), fc2_w_s[...],
                 preferred_element_type=jnp.float32) + fc2_b_ref[...]            # [B, 32]
    h2 = jnp.maximum(h2, 0.0)                  # relu only after fc2 (as in reference)
    logits = jnp.dot(h2.astype(WDT), fc3_w_s[...],
                     preferred_element_type=jnp.float32) + fc3_b_ref[...]        # [B, NC]

    # single packed lane store: [logit0, logit1, w_t, w_f]
    out_ref[...] = jnp.concatenate([logits, gates[0:B], gates[B:2 * B]], axis=1)


# ------------------------------- parameters ---------------------------------------
def make_params(key):
    """Parameters in PyTorch [out, in] convention (as the module would own them)."""
    kit = iter(jax.random.split(key, 64))

    def w(shape, scale=0.05):
        return scale * jax.random.normal(next(kit), shape, dtype=jnp.float32)

    p = {}
    # MLP: Linear(2H, H) -> ReLU -> Linear(H, 1)
    p["mlp_w1"], p["mlp_b1"] = w((H, 2 * H)), w((H,))
    p["mlp_w2"], p["mlp_b2"] = w((1, H)), w((1,))
    # 4 TransformerEncoderLayers: 0,1 -> transformer ; 2,3 -> transformer_c
    p["t_inw"], p["t_inb"] = w((4, 3 * D, D)), w((4, 3 * D))
    p["t_outw"], p["t_outb"] = w((4, D, D)), w((4, D))
    p["t_l1w"], p["t_l1b"] = w((4, FF, D)), w((4, FF))
    p["t_l2w"], p["t_l2b"] = w((4, D, FF)), w((4, D))
    p["t_n1w"], p["t_n1b"] = jnp.ones((4, D), jnp.float32), jnp.zeros((4, D), jnp.float32)
    p["t_n2w"], p["t_n2b"] = jnp.ones((4, D), jnp.float32), jnp.zeros((4, D), jnp.float32)
    # top-level nn.MultiheadAttention(embed_dim=2H, num_heads=NH)
    p["a_inw"], p["a_inb"] = w((3 * D, D)), w((3 * D,))
    p["a_outw"], p["a_outb"] = w((D, D)), w((D,))
    # fc1 / fc2 / fc3
    p["fc1_w"], p["fc1_b"] = w((H, 6 * H)), w((H,))
    p["fc2_w"], p["fc2_b"] = w((FC2_OUT, H)), w((FC2_OUT,))
    p["fc3_w"], p["fc3_b"] = w((NC, FC2_OUT)), w((NC,))
    return p


def prepare_params(p):
    """One-time conversion to kernel layout: [in,out] weight matrices (kept unsplit /
    lane-dense, stored bf16), per-branch-pair stacking [2,...] of the encoder layers
    (pair l = (transformer[l], transformer_c[l])), and f32 row biases / LN params."""
    tT = lambda x: jnp.swapaxes(x, -1, -2)
    row = lambda x: x.reshape(1, -1).astype(jnp.float32)
    wt = lambda x: x.astype(WDT)

    kp = {
        "mlp_w1": wt(tT(p["mlp_w1"])), "mlp_b1": row(p["mlp_b1"]),
        "mlp_w2": wt(tT(p["mlp_w2"])), "mlp_b2": row(p["mlp_b2"]),
        "a_inw": wt(tT(p["a_inw"])), "a_inb": row(p["a_inb"]),
        "a_outw": wt(tT(p["a_outw"])), "a_outb": row(p["a_outb"]),
        "fc1_w": wt(tT(p["fc1_w"])), "fc1_b": row(p["fc1_b"]),
        "fc2_w": wt(tT(p["fc2_w"])), "fc2_b": row(p["fc2_b"]),
        "fc3_w": wt(tT(p["fc3_w"])), "fc3_b": row(p["fc3_b"]),
    }
    for l in range(2):
        i0, i1 = l, 2 + l        # (transformer[l], transformer_c[l])
        pair_m = lambda a: wt(jnp.stack([tT(a[i0]), tT(a[i1])], axis=0))
        pair_v = lambda a, n: jnp.stack([a[i0], a[i1]], axis=0).reshape(2, 1, n).astype(jnp.float32)
        kp[f"t{l}_inw"] = pair_m(p["t_inw"])           # [2, D, 3D] bf16
        kp[f"t{l}_inb"] = pair_v(p["t_inb"], 3 * D)    # [2, 1, 3D] f32
        kp[f"t{l}_outw"] = pair_m(p["t_outw"])         # [2, D, D]
        kp[f"t{l}_outb"] = pair_v(p["t_outb"], D)
        kp[f"t{l}_l1w"] = pair_m(p["t_l1w"])           # [2, D, FF]
        kp[f"t{l}_l1b"] = pair_v(p["t_l1b"], FF)
        kp[f"t{l}_l2w"] = pair_m(p["t_l2w"])           # [2, FF, D]
        kp[f"t{l}_l2b"] = pair_v(p["t_l2b"], D)
        kp[f"t{l}_n1w"] = pair_v(p["t_n1w"], D)
        kp[f"t{l}_n1b"] = pair_v(p["t_n1b"], D)
        kp[f"t{l}_n2w"] = pair_v(p["t_n2w"], D)
        kp[f"t{l}_n2b"] = pair_v(p["t_n2b"], D)
    return kp


# ----------------------------------- wrapper ---------------------------------------
def forward(claim_emb, analyse_emb, true_emb, false_emb, kp):
    # lane / row concats done in XLA, outside the kernel
    ct = jnp.concatenate([claim_emb, true_emb], axis=1)      # [B, 2H]
    cf = jnp.concatenate([claim_emb, false_emb], axis=1)     # [B, 2H]
    ca = jnp.concatenate([claim_emb, analyse_emb], axis=1)   # [B, 2H]
    ctcf = jnp.concatenate([ct, cf], axis=0)                 # [2B, 2H]
    ca_pad = jnp.concatenate([ca, jnp.zeros((B, D), jnp.float32)], axis=0)   # [2B, 2H]

    eager = (
        ctcf, ca_pad,
        kp["mlp_w1"], kp["mlp_b1"], kp["mlp_w2"], kp["mlp_b2"],
        kp["t0_inw"], kp["t0_inb"], kp["t0_outw"], kp["t0_outb"],
        kp["t0_l1w"], kp["t0_l1b"], kp["t0_l2w"], kp["t0_l2b"],
        kp["t0_n1w"], kp["t0_n1b"], kp["t0_n2w"], kp["t0_n2b"],
        kp["t1_inb"], kp["t1_outb"], kp["t1_l1b"], kp["t1_l2b"],
        kp["t1_n1w"], kp["t1_n1b"], kp["t1_n2w"], kp["t1_n2b"],
        kp["a_inb"], kp["a_outb"], kp["fc1_b"], kp["fc2_b"], kp["fc3_b"],
    )
    late = (
        kp["t1_inw"], kp["t1_outw"], kp["t1_l1w"], kp["t1_l2w"],
        kp["a_inw"], kp["a_outw"], kp["fc1_w"], kp["fc2_w"], kp["fc3_w"],
    )
    args = eager + late

    vmem = pl.BlockSpec(memory_space=pltpu.MemorySpace.VMEM)
    hbm = pl.BlockSpec(memory_space=pl.ANY)
    in_specs = [vmem] * len(eager) + [hbm] * len(late)

    scratch_shapes = [
        pltpu.VMEM((2, D, 3 * D), WDT),      # t1_inw
        pltpu.VMEM((2, D, D), WDT),          # t1_outw
        pltpu.VMEM((2, D, FF), WDT),         # t1_l1w
        pltpu.VMEM((2, FF, D), WDT),         # t1_l2w
        pltpu.VMEM((D, 3 * D), WDT),         # a_inw
        pltpu.VMEM((D, D), WDT),             # a_outw
        pltpu.VMEM((3 * D, H), WDT),         # fc1_w
        pltpu.VMEM((H, FC2_OUT), WDT),       # fc2_w
        pltpu.VMEM((FC2_OUT, NC), WDT),      # fc3_w
        pltpu.SemaphoreType.DMA((9,)),
    ]

    packed = pl.pallas_call(
        _kernel,
        out_shape=jax.ShapeDtypeStruct((B, NC + 2), jnp.float32),
        in_specs=in_specs,
        out_specs=vmem,
        scratch_shapes=scratch_shapes,
    )(*args)

    logits = packed[:, 0:NC]
    w_t = packed[:, NC:NC + 1]
    w_f = packed[:, NC + 1:NC + 2]
    return logits, w_t, w_f


if __name__ == "__main__":
    key = jax.random.PRNGKey(0)
    k1, k2, k3, k4, kparam = jax.random.split(key, 5)
    claim_emb = jax.random.normal(k1, (B, H), jnp.float32)
    analyse_emb = jax.random.normal(k2, (B, H), jnp.float32)
    true_emb = jax.random.normal(k3, (B, H), jnp.float32)
    false_emb = jax.random.normal(k4, (B, H), jnp.float32)
    kparams = prepare_params(make_params(kparam))   # one-time layout conversion

    logits, w_t, w_f = jax.jit(forward)(claim_emb, analyse_emb, true_emb, false_emb, kparams)
    jax.block_until_ready((logits, w_t, w_f))

    assert logits.shape == (B, NC)
    assert w_t.shape == (B, 1) and w_f.shape == (B, 1)
    assert bool(jnp.all(jnp.isfinite(logits)))
    assert bool(jnp.all(jnp.isfinite(w_t))) and bool(jnp.all(jnp.isfinite(w_f)))
    print("KERNEL_OK")
</pallas_src>

<mosaic_0001>
module attributes {stable_mosaic.version = 11 : i64} {
  func.func @_kernel(%arg0: memref<8x128xf32, #tpu.memory_space<vmem>>, %arg1: memref<8x128xf32, #tpu.memory_space<vmem>>, %arg2: memref<128x64xbf16, #tpu.memory_space<vmem>>, %arg3: memref<1x64xf32, #tpu.memory_space<vmem>>, %arg4: memref<64x1xbf16, #tpu.memory_space<vmem>>, %arg5: memref<1x1xf32, #tpu.memory_space<vmem>>, %arg6: memref<2x128x384xbf16, #tpu.memory_space<vmem>>, %arg7: memref<2x1x384xf32, #tpu.memory_space<vmem>>, %arg8: memref<2x128x128xbf16, #tpu.memory_space<vmem>>, %arg9: memref<2x1x128xf32, #tpu.memory_space<vmem>>, %arg10: memref<2x128x256xbf16, #tpu.memory_space<vmem>>, %arg11: memref<2x1x256xf32, #tpu.memory_space<vmem>>, %arg12: memref<2x256x128xbf16, #tpu.memory_space<vmem>>, %arg13: memref<2x1x128xf32, #tpu.memory_space<vmem>>, %arg14: memref<2x1x128xf32, #tpu.memory_space<vmem>>, %arg15: memref<2x1x128xf32, #tpu.memory_space<vmem>>, %arg16: memref<2x1x128xf32, #tpu.memory_space<vmem>>, %arg17: memref<2x1x128xf32, #tpu.memory_space<vmem>>, %arg18: memref<2x1x384xf32, #tpu.memory_space<vmem>>, %arg19: memref<2x1x128xf32, #tpu.memory_space<vmem>>, %arg20: memref<2x1x256xf32, #tpu.memory_space<vmem>>, %arg21: memref<2x1x128xf32, #tpu.memory_space<vmem>>, %arg22: memref<2x1x128xf32, #tpu.memory_space<vmem>>, %arg23: memref<2x1x128xf32, #tpu.memory_space<vmem>>, %arg24: memref<2x1x128xf32, #tpu.memory_space<vmem>>, %arg25: memref<2x1x128xf32, #tpu.memory_space<vmem>>, %arg26: memref<1x384xf32, #tpu.memory_space<vmem>>, %arg27: memref<1x128xf32, #tpu.memory_space<vmem>>, %arg28: memref<1x64xf32, #tpu.memory_space<vmem>>, %arg29: memref<1x32xf32, #tpu.memory_space<vmem>>, %arg30: memref<1x2xf32, #tpu.memory_space<vmem>>, %arg31: memref<2x128x384xbf16, #tpu.memory_space<any>>, %arg32: memref<2x128x128xbf16, #tpu.memory_space<any>>, %arg33: memref<2x128x256xbf16, #tpu.memory_space<any>>, %arg34: memref<2x256x128xbf16, #tpu.memory_space<any>>, %arg35: memref<128x384xbf16, #tpu.memory_space<any>>, %arg36: memref<128x128xbf16, #tpu.memory_space<any>>, %arg37: memref<384x64xbf16, #tpu.memory_space<any>>, %arg38: memref<64x32xbf16, #tpu.memory_space<any>>, %arg39: memref<32x2xbf16, #tpu.memory_space<any>>, %arg40: memref<4x4xf32, #tpu.memory_space<vmem>>, %arg41: memref<2x128x384xbf16, #tpu.memory_space<vmem>>, %arg42: memref<2x128x128xbf16, #tpu.memory_space<vmem>>, %arg43: memref<2x128x256xbf16, #tpu.memory_space<vmem>>, %arg44: memref<2x256x128xbf16, #tpu.memory_space<vmem>>, %arg45: memref<128x384xbf16, #tpu.memory_space<vmem>>, %arg46: memref<128x128xbf16, #tpu.memory_space<vmem>>, %arg47: memref<384x64xbf16, #tpu.memory_space<vmem>>, %arg48: memref<64x32xbf16, #tpu.memory_space<vmem>>, %arg49: memref<32x2xbf16, #tpu.memory_space<vmem>>, %arg50: memref<9x!tpu.dma_semaphore, #tpu.memory_space<semaphore_mem>>) attributes {dimension_semantics = [], scalar_prefetch = 0 : i64, scratch_operands = 10 : i64, tpu.core_type = #tpu.core_type<tc>} {
    %c0_i32 = arith.constant 0 : i32
    %0 = tpu.memref_slice %arg50[%c0_i32] : memref<9x!tpu.dma_semaphore, #tpu.memory_space<semaphore_mem>> -> memref<1x!tpu.dma_semaphore, #tpu.memory_space<semaphore_mem>>
    %1 = tpu.memref_squeeze %0 : memref<1x!tpu.dma_semaphore, #tpu.memory_space<semaphore_mem>> -> memref<!tpu.dma_semaphore, #tpu.memory_space<semaphore_mem>>
    tpu.enqueue_dma source(%arg31 : memref<2x128x384xbf16, #tpu.memory_space<any>>) target(%arg41 : memref<2x128x384xbf16, #tpu.memory_space<vmem>>) target_semaphore(%1 : memref<!tpu.dma_semaphore, #tpu.memory_space<semaphore_mem>>)
    %c1_i32 = arith.constant 1 : i32
    %2 = tpu.memref_slice %arg50[%c1_i32] : memref<9x!tpu.dma_semaphore, #tpu.memory_space<semaphore_mem>> -> memref<1x!tpu.dma_semaphore, #tpu.memory_space<semaphore_mem>>
    %3 = tpu.memref_squeeze %2 : memref<1x!tpu.dma_semaphore, #tpu.memory_space<semaphore_mem>> -> memref<!tpu.dma_semaphore, #tpu.memory_space<semaphore_mem>>
    tpu.enqueue_dma source(%arg32 : memref<2x128x128xbf16, #tpu.memory_space<any>>) target(%arg42 : memref<2x128x128xbf16, #tpu.memory_space<vmem>>) target_semaphore(%3 : memref<!tpu.dma_semaphore, #tpu.memory_space<semaphore_mem>>)
    %c2_i32 = arith.constant 2 : i32
    %4 = tpu.memref_slice %arg50[%c2_i32] : memref<9x!tpu.dma_semaphore, #tpu.memory_space<semaphore_mem>> -> memref<1x!tpu.dma_semaphore, #tpu.memory_space<semaphore_mem>>
    %5 = tpu.memref_squeeze %4 : memref<1x!tpu.dma_semaphore, #tpu.memory_space<semaphore_mem>> -> memref<!tpu.dma_semaphore, #tpu.memory_space<semaphore_mem>>
    tpu.enqueue_dma source(%arg33 : memref<2x128x256xbf16, #tpu.memory_space<any>>) target(%arg43 : memref<2x128x256xbf16, #tpu.memory_space<vmem>>) target_semaphore(%5 : memref<!tpu.dma_semaphore, #tpu.memory_space<semaphore_mem>>)
    %c3_i32 = arith.constant 3 : i32
    %6 = tpu.memref_slice %arg50[%c3_i32] : memref<9x!tpu.dma_semaphore, #tpu.memory_space<semaphore_mem>> -> memref<1x!tpu.dma_semaphore, #tpu.memory_space<semaphore_mem>>
    %7 = tpu.memref_squeeze %6 : memref<1x!tpu.dma_semaphore, #tpu.memory_space<semaphore_mem>> -> memref<!tpu.dma_semaphore, #tpu.memory_space<semaphore_mem>>
    tpu.enqueue_dma source(%arg34 : memref<2x256x128xbf16, #tpu.memory_space<any>>) target(%arg44 : memref<2x256x128xbf16, #tpu.memory_space<vmem>>) target_semaphore(%7 : memref<!tpu.dma_semaphore, #tpu.memory_space<semaphore_mem>>)
    %c4_i32 = arith.constant 4 : i32
    %8 = tpu.memref_slice %arg50[%c4_i32] : memref<9x!tpu.dma_semaphore, #tpu.memory_space<semaphore_mem>> -> memref<1x!tpu.dma_semaphore, #tpu.memory_space<semaphore_mem>>
    %9 = tpu.memref_squeeze %8 : memref<1x!tpu.dma_semaphore, #tpu.memory_space<semaphore_mem>> -> memref<!tpu.dma_semaphore, #tpu.memory_space<semaphore_mem>>
    tpu.enqueue_dma source(%arg35 : memref<128x384xbf16, #tpu.memory_space<any>>) target(%arg45 : memref<128x384xbf16, #tpu.memory_space<vmem>>) target_semaphore(%9 : memref<!tpu.dma_semaphore, #tpu.memory_space<semaphore_mem>>)
    %c5_i32 = arith.constant 5 : i32
    %10 = tpu.memref_slice %arg50[%c5_i32] : memref<9x!tpu.dma_semaphore, #tpu.memory_space<semaphore_mem>> -> memref<1x!tpu.dma_semaphore, #tpu.memory_space<semaphore_mem>>
    %11 = tpu.memref_squeeze %10 : memref<1x!tpu.dma_semaphore, #tpu.memory_space<semaphore_mem>> -> memref<!tpu.dma_semaphore, #tpu.memory_space<semaphore_mem>>
    tpu.enqueue_dma source(%arg36 : memref<128x128xbf16, #tpu.memory_space<any>>) target(%arg46 : memref<128x128xbf16, #tpu.memory_space<vmem>>) target_semaphore(%11 : memref<!tpu.dma_semaphore, #tpu.memory_space<semaphore_mem>>)
    %c6_i32 = arith.constant 6 : i32
    %12 = tpu.memref_slice %arg50[%c6_i32] : memref<9x!tpu.dma_semaphore, #tpu.memory_space<semaphore_mem>> -> memref<1x!tpu.dma_semaphore, #tpu.memory_space<semaphore_mem>>
    %13 = tpu.memref_squeeze %12 : memref<1x!tpu.dma_semaphore, #tpu.memory_space<semaphore_mem>> -> memref<!tpu.dma_semaphore, #tpu.memory_space<semaphore_mem>>
    tpu.enqueue_dma source(%arg37 : memref<384x64xbf16, #tpu.memory_space<any>>) target(%arg47 : memref<384x64xbf16, #tpu.memory_space<vmem>>) target_semaphore(%13 : memref<!tpu.dma_semaphore, #tpu.memory_space<semaphore_mem>>)
    %c7_i32 = arith.constant 7 : i32
    %14 = tpu.memref_slice %arg50[%c7_i32] : memref<9x!tpu.dma_semaphore, #tpu.memory_space<semaphore_mem>> -> memref<1x!tpu.dma_semaphore, #tpu.memory_space<semaphore_mem>>
    %15 = tpu.memref_squeeze %14 : memref<1x!tpu.dma_semaphore, #tpu.memory_space<semaphore_mem>> -> memref<!tpu.dma_semaphore, #tpu.memory_space<semaphore_mem>>
    tpu.enqueue_dma source(%arg38 : memref<64x32xbf16, #tpu.memory_space<any>>) target(%arg48 : memref<64x32xbf16, #tpu.memory_space<vmem>>) target_semaphore(%15 : memref<!tpu.dma_semaphore, #tpu.memory_space<semaphore_mem>>)
    %c8_i32 = arith.constant 8 : i32
    %16 = tpu.memref_slice %arg50[%c8_i32] : memref<9x!tpu.dma_semaphore, #tpu.memory_space<semaphore_mem>> -> memref<1x!tpu.dma_semaphore, #tpu.memory_space<semaphore_mem>>
    %17 = tpu.memref_squeeze %16 : memref<1x!tpu.dma_semaphore, #tpu.memory_space<semaphore_mem>> -> memref<!tpu.dma_semaphore, #tpu.memory_space<semaphore_mem>>
    tpu.enqueue_dma source(%arg39 : memref<32x2xbf16, #tpu.memory_space<any>>) target(%arg49 : memref<32x2xbf16, #tpu.memory_space<vmem>>) target_semaphore(%17 : memref<!tpu.dma_semaphore, #tpu.memory_space<semaphore_mem>>)
    %c0 = arith.constant 0 : index
    %c0_0 = arith.constant 0 : index
    %18 = vector.load %arg0[%c0, %c0_0] : memref<8x128xf32, #tpu.memory_space<vmem>>, vector<8x128xf32>
    %c0_1 = arith.constant 0 : index
    %c0_2 = arith.constant 0 : index
    %19 = vector.load %arg1[%c0_1, %c0_2] : memref<8x128xf32, #tpu.memory_space<vmem>>, vector<8x128xf32>
    %20 = tpu.iota {dimensions = array<i32: 0>} : vector<8x8xi32>
    %21 = tpu.iota {dimensions = array<i32: 1>} : vector<8x8xi32>
    %c4_i32_3 = arith.constant 4 : i32
    %22 = vector.broadcast %c4_i32_3 : i32 to vector<8x8xi32>
    %23 = arith.cmpi slt, %20, %22 : vector<8x8xi32>
    %c4_i32_4 = arith.constant 4 : i32
    %24 = vector.broadcast %c4_i32_4 : i32 to vector<8x8xi32>
    %25 = arith.cmpi slt, %21, %24 : vector<8x8xi32>
    %26 = arith.andi %23, %25 : vector<8x8xi1>
    %c4_i32_5 = arith.constant 4 : i32
    %27 = vector.broadcast %c4_i32_5 : i32 to vector<8x8xi32>
    %28 = arith.cmpi sge, %20, %27 : vector<8x8xi32>
    %c4_i32_6 = arith.constant 4 : i32
    %29 = vector.broadcast %c4_i32_6 : i32 to vector<8x8xi32>
    %30 = arith.cmpi sge, %21, %29 : vector<8x8xi32>
    %31 = arith.andi %28, %30 : vector<8x8xi1>
    %32 = arith.ori %26, %31 : vector<8x8xi1>
    %cst = arith.constant 0.000000e+00 : f32
    %cst_7 = arith.constant -1.000000e+30 : f32
    %33 = vector.broadcast %cst : f32 to vector<8x8xf32>
    %34 = vector.broadcast %cst_7 : f32 to vector<8x8xf32>
    %35 = arith.select %32, %33, %34 : vector<8x8xi1>, vector<8x8xf32>
    %36 = tpu.iota {dimensions = array<i32: 0>} : vector<12x12xi32>
    %37 = tpu.iota {dimensions = array<i32: 1>} : vector<12x12xi32>
    %c3_i32_8 = arith.constant 3 : i32
    %38 = vector.broadcast %c3_i32_8 : i32 to vector<12x12xi32>
    %39 = arith.andi %36, %38 : vector<12x12xi32>
    %c3_i32_9 = arith.constant 3 : i32
    %40 = vector.broadcast %c3_i32_9 : i32 to vector<12x12xi32>
    %41 = arith.andi %37, %40 : vector<12x12xi32>
    %42 = arith.cmpi eq, %39, %41 : vector<12x12xi32>
    %cst_10 = arith.constant 0.000000e+00 : f32
    %cst_11 = arith.constant -1.000000e+30 : f32
    %43 = vector.broadcast %cst_10 : f32 to vector<12x12xf32>
    %44 = vector.broadcast %cst_11 : f32 to vector<12x12xf32>
    %45 = arith.select %42, %43, %44 : vector<12x12xi1>, vector<12x12xf32>
    %46 = arith.truncf %18 : vector<8x128xf32> to vector<8x128xbf16>
    %c0_12 = arith.constant 0 : index
    %c0_13 = arith.constant 0 : index
    %47 = vector.load %arg2[%c0_12, %c0_13] : memref<128x64xbf16, #tpu.memory_space<vmem>>, vector<128x64xbf16>
    %cst_14 = arith.constant dense<0.000000e+00> : vector<8x64xf32>
    %48 = tpu.matmul %46, %47, %cst_14 {dimension_numbers = #tpu.dot_dimension_numbers<[1], [0], [0], [1], [0, 0, 1, 1], [], []>} : vector<8x128xbf16>, vector<128x64xbf16>, vector<8x64xf32> -> vector<8x64xf32>
    %c0_15 = arith.constant 0 : index
    %c0_16 = arith.constant 0 : index
    %49 = vector.load %arg3[%c0_15, %c0_16] : memref<1x64xf32, #tpu.memory_space<vmem>>, vector<1x64xf32>
    %50 = vector.broadcast %49 : vector<1x64xf32> to vector<8x64xf32>
    %51 = arith.addf %48, %50 : vector<8x64xf32>
    %cst_17 = arith.constant 0.000000e+00 : f32
    %52 = vector.broadcast %cst_17 : f32 to vector<8x64xf32>
    %53 = arith.maximumf %51, %52 : vector<8x64xf32>
    %54 = arith.truncf %53 : vector<8x64xf32> to vector<8x64xbf16>
    %c0_18 = arith.constant 0 : index
    %c0_19 = arith.constant 0 : index
    %55 = vector.load %arg4[%c0_18, %c0_19] : memref<64x1xbf16, #tpu.memory_space<vmem>>, vector<64x1xbf16>
    %cst_20 = arith.constant dense<0.000000e+00> : vector<8x1xf32>
    %56 = tpu.matmul %54, %55, %cst_20 {dimension_numbers = #tpu.dot_dimension_numbers<[1], [0], [0], [1], [0, 0, 1, 1], [], []>} : vector<8x64xbf16>, vector<64x1xbf16>, vector<8x1xf32> -> vector<8x1xf32>
    %c0_21 = arith.constant 0 : index
    %c0_22 = arith.constant 0 : index
    %57 = vector.load %arg5[%c0_21, %c0_22] : memref<1x1xf32, #tpu.memory_space<vmem>>, vector<1x1xf32>
    %58 = vector.broadcast %57 : vector<1x1xf32> to vector<8x1xf32>
    %59 = arith.addf %56, %58 : vector<8x1xf32>
    %60 = arith.negf %59 : vector<8x1xf32>
    %61 = math.exp %60 : vector<8x1xf32>
    %cst_23 = arith.constant 1.000000e+00 : f32
    %62 = vector.broadcast %cst_23 : f32 to vector<8x1xf32>
    %63 = arith.addf %62, %61 : vector<8x1xf32>
    %64 = arith.divf %62, %63 : vector<8x1xf32>
    %65 = vector.broadcast %64 : vector<8x1xf32> to vector<8x128xf32>
    %66 = arith.mulf %65, %18 : vector<8x128xf32>
    %67 = vector.shape_cast %66 : vector<8x128xf32> to vector<1x8x128xf32>
    %68 = vector.shape_cast %19 : vector<8x128xf32> to vector<1x8x128xf32>
    %69 = tpu.concatenate %67, %68 in 0 : vector<1x8x128xf32>, vector<1x8x128xf32> -> vector<2x8x128xf32>
    %c0_24 = arith.constant 0 : index
    %c0_25 = arith.constant 0 : index
    %c0_26 = arith.constant 0 : index
    %70 = vector.load %arg6[%c0_24, %c0_25, %c0_26] : memref<2x128x384xbf16, #tpu.memory_space<vmem>>, vector<2x128x384xbf16>
    %c0_27 = arith.constant 0 : index
    %c0_28 = arith.constant 0 : index
    %c0_29 = arith.constant 0 : index
    %71 = vector.load %arg7[%c0_27, %c0_28, %c0_29] : memref<2x1x384xf32, #tpu.memory_space<vmem>>, vector<2x1x384xf32>
    %c0_30 = arith.constant 0 : index
    %c0_31 = arith.constant 0 : index
    %c0_32 = arith.constant 0 : index
    %72 = vector.load %arg8[%c0_30, %c0_31, %c0_32] : memref<2x128x128xbf16, #tpu.memory_space<vmem>>, vector<2x128x128xbf16>
    %c0_33 = arith.constant 0 : index
    %c0_34 = arith.constant 0 : index
    %c0_35 = arith.constant 0 : index
    %73 = vector.load %arg9[%c0_33, %c0_34, %c0_35] : memref<2x1x128xf32, #tpu.memory_space<vmem>>, vector<2x1x128xf32>
    %c0_36 = arith.constant 0 : index
    %c0_37 = arith.constant 0 : index
    %c0_38 = arith.constant 0 : index
    %74 = vector.load %arg10[%c0_36, %c0_37, %c0_38] : memref<2x128x256xbf16, #tpu.memory_space<vmem>>, vector<2x128x256xbf16>
    %c0_39 = arith.constant 0 : index
    %c0_40 = arith.constant 0 : index
    %c0_41 = arith.constant 0 : index
    %75 = vector.load %arg11[%c0_39, %c0_40, %c0_41] : memref<2x1x256xf32, #tpu.memory_space<vmem>>, vector<2x1x256xf32>
    %c0_42 = arith.constant 0 : index
    %c0_43 = arith.constant 0 : index
    %c0_44 = arith.constant 0 : index
    %76 = vector.load %arg12[%c0_42, %c0_43, %c0_44] : memref<2x256x128xbf16, #tpu.memory_space<vmem>>, vector<2x256x128xbf16>
    %c0_45 = arith.constant 0 : index
    %c0_46 = arith.constant 0 : index
    %c0_47 = arith.constant 0 : index
    %77 = vector.load %arg13[%c0_45, %c0_46, %c0_47] : memref<2x1x128xf32, #tpu.memory_space<vmem>>, vector<2x1x128xf32>
    %c0_48 = arith.constant 0 : index
    %c0_49 = arith.constant 0 : index
    %c0_50 = arith.constant 0 : index
    %78 = vector.load %arg14[%c0_48, %c0_49, %c0_50] : memref<2x1x128xf32, #tpu.memory_space<vmem>>, vector<2x1x128xf32>
    %c0_51 = arith.constant 0 : index
    %c0_52 = arith.constant 0 : index
    %c0_53 = arith.constant 0 : index
    %79 = vector.load %arg15[%c0_51, %c0_52, %c0_53] : memref<2x1x128xf32, #tpu.memory_space<vmem>>, vector<2x1x128xf32>
    %c0_54 = arith.constant 0 : index
    %c0_55 = arith.constant 0 : index
    %c0_56 = arith.constant 0 : index
    %80 = vector.load %arg16[%c0_54, %c0_55, %c0_56] : memref<2x1x128xf32, #tpu.memory_space<vmem>>, vector<2x1x128xf32>
    %c0_57 = arith.constant 0 : index
    %c0_58 = arith.constant 0 : index
    %c0_59 = arith.constant 0 : index
    %81 = vector.load %arg17[%c0_57, %c0_58, %c0_59] : memref<2x1x128xf32, #tpu.memory_space<vmem>>, vector<2x1x128xf32>
    %82 = arith.truncf %69 : vector<2x8x128xf32> to vector<2x8x128xbf16>
    %cst_60 = arith.constant dense<0.000000e+00> : vector<2x8x384xf32>
    %83 = tpu.matmul %82, %70, %cst_60 {dimension_numbers = #tpu.dot_dimension_numbers<[2], [1], [1], [2], [0, 0, 0, 1, 1, 2], [0], [0]>} : vector<2x8x128xbf16>, vector<2x128x384xbf16>, vector<2x8x384xf32> -> vector<2x8x384xf32>
    %84 = vector.broadcast %71 : vector<2x1x384xf32> to vector<2x8x384xf32>
    %85 = arith.addf %83, %84 : vector<2x8x384xf32>
    %86 = vector.extract_strided_slice %85 {offsets = [0, 0, 0], sizes = [1, 8, 384], strides = [1, 1, 1]} : vector<2x8x384xf32> to vector<1x8x384xf32>
    %87 = vector.shape_cast %86 : vector<1x8x384xf32> to vector<8x384xf32>
    %88 = vector.extract_strided_slice %87 {offsets = [0, 0], sizes = [8, 16], strides = [1, 1]} : vector<8x384xf32> to vector<8x16xf32>
    %89 = vector.extract_strided_slice %87 {offsets = [0, 16], sizes = [8, 16], strides = [1, 1]} : vector<8x384xf32> to vector<8x16xf32>
    %90 = vector.extract_strided_slice %87 {offsets = [0, 32], sizes = [8, 16], strides = [1, 1]} : vector<8x384xf32> to vector<8x16xf32>
    %91 = vector.extract_strided_slice %87 {offsets = [0, 48], sizes = [8, 16], strides = [1, 1]} : vector<8x384xf32> to vector<8x16xf32>
    %92 = vector.extract_strided_slice %87 {offsets = [0, 64], sizes = [8, 16], strides = [1, 1]} : vector<8x384xf32> to vector<8x16xf32>
    %93 = vector.extract_strided_slice %87 {offsets = [0, 80], sizes = [8, 16], strides = [1, 1]} : vector<8x384xf32> to vector<8x16xf32>
    %94 = vector.extract_strided_slice %87 {offsets = [0, 96], sizes = [8, 16], strides = [1, 1]} : vector<8x384xf32> to vector<8x16xf32>
    %95 = vector.extract_strided_slice %87 {offsets = [0, 112], sizes = [8, 16], strides = [1, 1]} : vector<8x384xf32> to vector<8x16xf32>
    %96 = vector.shape_cast %88 : vector<8x16xf32> to vector<1x8x16xf32>
    %97 = vector.shape_cast %89 : vector<8x16xf32> to vector<1x8x16xf32>
    %98 = vector.shape_cast %90 : vector<8x16xf32> to vector<1x8x16xf32>
    %99 = vector.shape_cast %91 : vector<8x16xf32> to vector<1x8x16xf32>
    %100 = vector.shape_cast %92 : vector<8x16xf32> to vector<1x8x16xf32>
    %101 = vector.shape_cast %93 : vector<8x16xf32> to vector<1x8x16xf32>
    %102 = vector.shape_cast %94 : vector<8x16xf32> to vector<1x8x16xf32>
    %103 = vector.shape_cast %95 : vector<8x16xf32> to vector<1x8x16xf32>
    %104 = tpu.concatenate %96, %97, %98, %99, %100, %101, %102, %103 in 0 : vector<1x8x16xf32>, vector<1x8x16xf32>, vector<1x8x16xf32>, vector<1x8x16xf32>, vector<1x8x16xf32>, vector<1x8x16xf32>, vector<1x8x16xf32>, vector<1x8x16xf32> -> vector<8x8x16xf32>
    %cst_61 = arith.constant 2.500000e-01 : f32
    %105 = vector.broadcast %cst_61 : f32 to vector<8x8x16xf32>
    %106 = arith.mulf %104, %105 : vector<8x8x16xf32>
    %107 = vector.extract_strided_slice %87 {offsets = [0, 128], sizes = [8, 16], strides = [1, 1]} : vector<8x384xf32> to vector<8x16xf32>
    %108 = vector.extract_strided_slice %87 {offsets = [0, 144], sizes = [8, 16], strides = [1, 1]} : vector<8x384xf32> to vector<8x16xf32>
    %109 = vector.extract_strided_slice %87 {offsets = [0, 160], sizes = [8, 16], strides = [1, 1]} : vector<8x384xf32> to vector<8x16xf32>
    %110 = vector.extract_strided_slice %87 {offsets = [0, 176], sizes = [8, 16], strides = [1, 1]} : vector<8x384xf32> to vector<8x16xf32>
    %111 = vector.extract_strided_slice %87 {offsets = [0, 192], sizes = [8, 16], strides = [1, 1]} : vector<8x384xf32> to vector<8x16xf32>
    %112 = vector.extract_strided_slice %87 {offsets = [0, 208], sizes = [8, 16], strides = [1, 1]} : vector<8x384xf32> to vector<8x16xf32>
    %113 = vector.extract_strided_slice %87 {offsets = [0, 224], sizes = [8, 16], strides = [1, 1]} : vector<8x384xf32> to vector<8x16xf32>
    %114 = vector.extract_strided_slice %87 {offsets = [0, 240], sizes = [8, 16], strides = [1, 1]} : vector<8x384xf32> to vector<8x16xf32>
    %115 = vector.shape_cast %107 : vector<8x16xf32> to vector<1x8x16xf32>
    %116 = vector.shape_cast %108 : vector<8x16xf32> to vector<1x8x16xf32>
    %117 = vector.shape_cast %109 : vector<8x16xf32> to vector<1x8x16xf32>
    %118 = vector.shape_cast %110 : vector<8x16xf32> to vector<1x8x16xf32>
    %119 = vector.shape_cast %111 : vector<8x16xf32> to vector<1x8x16xf32>
    %120 = vector.shape_cast %112 : vector<8x16xf32> to vector<1x8x16xf32>
    %121 = vector.shape_cast %113 : vector<8x16xf32> to vector<1x8x16xf32>
    %122 = vector.shape_cast %114 : vector<8x16xf32> to vector<1x8x16xf32>
    %123 = tpu.concatenate %115, %116, %117, %118, %119, %120, %121, %122 in 0 : vector<1x8x16xf32>, vector<1x8x16xf32>, vector<1x8x16xf32>, vector<1x8x16xf32>, vector<1x8x16xf32>, vector<1x8x16xf32>, vector<1x8x16xf32>, vector<1x8x16xf32> -> vector<8x8x16xf32>
    %124 = vector.extract_strided_slice %87 {offsets = [0, 256], sizes = [8, 16], strides = [1, 1]} : vector<8x384xf32> to vector<8x16xf32>
    %125 = vector.extract_strided_slice %87 {offsets = [0, 272], sizes = [8, 16], strides = [1, 1]} : vector<8x384xf32> to vector<8x16xf32>
    %126 = vector.extract_strided_slice %87 {offsets = [0, 288], sizes = [8, 16], strides = [1, 1]} : vector<8x384xf32> to vector<8x16xf32>
    %127 = vector.extract_strided_slice %87 {offsets = [0, 304], sizes = [8, 16], strides = [1, 1]} : vector<8x384xf32> to vector<8x16xf32>
    %128 = vector.extract_strided_slice %87 {offsets = [0, 320], sizes = [8, 16], strides = [1, 1]} : vector<8x384xf32> to vector<8x16xf32>
    %129 = vector.extract_strided_slice %87 {offsets = [0, 336], sizes = [8, 16], strides = [1, 1]} : vector<8x384xf32> to vector<8x16xf32>
    %130 = vector.extract_strided_slice %87 {offsets = [0, 352], sizes = [8, 16], strides = [1, 1]} : vector<8x384xf32> to vector<8x16xf32>
    %131 = vector.extract_strided_slice %87 {offsets = [0, 368], sizes = [8, 16], strides = [1, 1]} : vector<8x384xf32> to vector<8x16xf32>
    %132 = vector.shape_cast %124 : vector<8x16xf32> to vector<1x8x16xf32>
    %133 = vector.shape_cast %125 : vector<8x16xf32> to vector<1x8x16xf32>
    %134 = vector.shape_cast %126 : vector<8x16xf32> to vector<1x8x16xf32>
    %135 = vector.shape_cast %127 : vector<8x16xf32> to vector<1x8x16xf32>
    %136 = vector.shape_cast %128 : vector<8x16xf32> to vector<1x8x16xf32>
    %137 = vector.shape_cast %129 : vector<8x16xf32> to vector<1x8x16xf32>
    %138 = vector.shape_cast %130 : vector<8x16xf32> to vector<1x8x16xf32>
    %139 = vector.shape_cast %131 : vector<8x16xf32> to vector<1x8x16xf32>
    %140 = tpu.concatenate %132, %133, %134, %135, %136, %137, %138, %139 in 0 : vector<1x8x16xf32>, vector<1x8x16xf32>, vector<1x8x16xf32>, vector<1x8x16xf32>, vector<1x8x16xf32>, vector<1x8x16xf32>, vector<1x8x16xf32>, vector<1x8x16xf32> -> vector<8x8x16xf32>
    %141 = arith.truncf %106 : vector<8x8x16xf32> to vector<8x8x16xbf16>
    %142 = arith.truncf %123 : vector<8x8x16xf32> to vector<8x8x16xbf16>
    %cst_62 = arith.constant dense<0.000000e+00> : vector<8x8x8xf32>
    %143 = tpu.matmul %141, %142, %cst_62 {dimension_numbers = #tpu.dot_dimension_numbers<[2], [2], [1], [1], [0, 0, 0, 1, 1, 1], [0], [0]>} : vector<8x8x16xbf16>, vector<8x8x16xbf16>, vector<8x8x8xf32> -> vector<8x8x8xf32>
    %144 = vector.shape_cast %35 : vector<8x8xf32> to vector<1x8x8xf32>
    %145 = vector.broadcast %144 : vector<1x8x8xf32> to vector<8x8x8xf32>
    %146 = arith.addf %143, %145 : vector<8x8x8xf32>
    %cst_63 = arith.constant dense<0xFF800000> : vector<8x8xf32>
    %147 = vector.multi_reduction <maximumf>, %146, %cst_63 [2] : vector<8x8x8xf32> to vector<8x8xf32>
    %148 = vector.shape_cast %147 : vector<8x8xf32> to vector<8x8x1xf32>
    %149 = vector.broadcast %148 : vector<8x8x1xf32> to vector<8x8x8xf32>
    %150 = arith.subf %146, %149 : vector<8x8x8xf32>
    %151 = math.exp %150 : vector<8x8x8xf32>
    %cst_64 = arith.constant dense<0.000000e+00> : vector<8x8xf32>
    %152 = vector.multi_reduction <add>, %151, %cst_64 [2] : vector<8x8x8xf32> to vector<8x8xf32>
    %153 = vector.shape_cast %152 : vector<8x8xf32> to vector<8x8x1xf32>
    %154 = tpu.reciprocal %153 {approx = true} : vector<8x8x1xf32> -> vector<8x8x1xf32>
    %155 = vector.broadcast %154 : vector<8x8x1xf32> to vector<8x8x8xf32>
    %156 = arith.mulf %151, %155 : vector<8x8x8xf32>
    %157 = arith.truncf %156 : vector<8x8x8xf32> to vector<8x8x8xbf16>
    %158 = arith.truncf %140 : vector<8x8x16xf32> to vector<8x8x16xbf16>
    %cst_65 = arith.constant dense<0.000000e+00> : vector<8x8x16xf32>
    %159 = tpu.matmul %157, %158, %cst_65 {dimension_numbers = #tpu.dot_dimension_numbers<[2], [1], [1], [2], [0, 0, 0, 1, 1, 2], [0], [0]>} : vector<8x8x8xbf16>, vector<8x8x16xbf16>, vector<8x8x16xf32> -> vector<8x8x16xf32>
    %160 = vector.extract_strided_slice %159 {offsets = [0, 0, 0], sizes = [1, 8, 16], strides = [1, 1, 1]} : vector<8x8x16xf32> to vector<1x8x16xf32>
    %161 = vector.shape_cast %160 : vector<1x8x16xf32> to vector<8x16xf32>
    %162 = vector.extract_strided_slice %159 {offsets = [1, 0, 0], sizes = [1, 8, 16], strides = [1, 1, 1]} : vector<8x8x16xf32> to vector<1x8x16xf32>
    %163 = vector.shape_cast %162 : vector<1x8x16xf32> to vector<8x16xf32>
    %164 = vector.extract_strided_slice %159 {offsets = [2, 0, 0], sizes = [1, 8, 16], strides = [1, 1, 1]} : vector<8x8x16xf32> to vector<1x8x16xf32>
    %165 = vector.shape_cast %164 : vector<1x8x16xf32> to vector<8x16xf32>
    %166 = vector.extract_strided_slice %159 {offsets = [3, 0, 0], sizes = [1, 8, 16], strides = [1, 1, 1]} : vector<8x8x16xf32> to vector<1x8x16xf32>
    %167 = vector.shape_cast %166 : vector<1x8x16xf32> to vector<8x16xf32>
    %168 = vector.extract_strided_slice %159 {offsets = [4, 0, 0], sizes = [1, 8, 16], strides = [1, 1, 1]} : vector<8x8x16xf32> to vector<1x8x16xf32>
    %169 = vector.shape_cast %168 : vector<1x8x16xf32> to vector<8x16xf32>
    %170 = vector.extract_strided_slice %159 {offsets = [5, 0, 0], sizes = [1, 8, 16], strides = [1, 1, 1]} : vector<8x8x16xf32> to vector<1x8x16xf32>
    %171 = vector.shape_cast %170 : vector<1x8x16xf32> to vector<8x16xf32>
    %172 = vector.extract_strided_slice %159 {offsets = [6, 0, 0], sizes = [1, 8, 16], strides = [1, 1, 1]} : vector<8x8x16xf32> to vector<1x8x16xf32>
    %173 = vector.shape_cast %172 : vector<1x8x16xf32> to vector<8x16xf32>
    %174 = vector.extract_strided_slice %159 {offsets = [7, 0, 0], sizes = [1, 8, 16], strides = [1, 1, 1]} : vector<8x8x16xf32> to vector<1x8x16xf32>
    %175 = vector.shape_cast %174 : vector<1x8x16xf32> to vector<8x16xf32>
    %176 = tpu.concatenate %161, %163, %165, %167, %169, %171, %173, %175 in 1 : vector<8x16xf32>, vector<8x16xf32>, vector<8x16xf32>, vector<8x16xf32>, vector<8x16xf32>, vector<8x16xf32>, vector<8x16xf32>, vector<8x16xf32> -> vector<8x128xf32>
    %177 = vector.extract_strided_slice %85 {offsets = [1, 0, 0], sizes = [1, 8, 384], strides = [1, 1, 1]} : vector<2x8x384xf32> to vector<1x8x384xf32>
    %178 = vector.shape_cast %177 : vector<1x8x384xf32> to vector<8x384xf32>
    %179 = vector.extract_strided_slice %178 {offsets = [0, 0], sizes = [8, 16], strides = [1, 1]} : vector<8x384xf32> to vector<8x16xf32>
    %180 = vector.extract_strided_slice %178 {offsets = [0, 16], sizes = [8, 16], strides = [1, 1]} : vector<8x384xf32> to vector<8x16xf32>
    %181 = vector.extract_strided_slice %178 {offsets = [0, 32], sizes = [8, 16], strides = [1, 1]} : vector<8x384xf32> to vector<8x16xf32>
    %182 = vector.extract_strided_slice %178 {offsets = [0, 48], sizes = [8, 16], strides = [1, 1]} : vector<8x384xf32> to vector<8x16xf32>
    %183 = vector.extract_strided_slice %178 {offsets = [0, 64], sizes = [8, 16], strides = [1, 1]} : vector<8x384xf32> to vector<8x16xf32>
    %184 = vector.extract_strided_slice %178 {offsets = [0, 80], sizes = [8, 16], strides = [1, 1]} : vector<8x384xf32> to vector<8x16xf32>
    %185 = vector.extract_strided_slice %178 {offsets = [0, 96], sizes = [8, 16], strides = [1, 1]} : vector<8x384xf32> to vector<8x16xf32>
    %186 = vector.extract_strided_slice %178 {offsets = [0, 112], sizes = [8, 16], strides = [1, 1]} : vector<8x384xf32> to vector<8x16xf32>
    %187 = vector.shape_cast %179 : vector<8x16xf32> to vector<1x8x16xf32>
    %188 = vector.shape_cast %180 : vector<8x16xf32> to vector<1x8x16xf32>
    %189 = vector.shape_cast %181 : vector<8x16xf32> to vector<1x8x16xf32>
    %190 = vector.shape_cast %182 : vector<8x16xf32> to vector<1x8x16xf32>
    %191 = vector.shape_cast %183 : vector<8x16xf32> to vector<1x8x16xf32>
    %192 = vector.shape_cast %184 : vector<8x16xf32> to vector<1x8x16xf32>
    %193 = vector.shape_cast %185 : vector<8x16xf32> to vector<1x8x16xf32>
    %194 = vector.shape_cast %186 : vector<8x16xf32> to vector<1x8x16xf32>
    %195 = tpu.concatenate %187, %188, %189, %190, %191, %192, %193, %194 in 0 : vector<1x8x16xf32>, vector<1x8x16xf32>, vector<1x8x16xf32>, vector<1x8x16xf32>, vector<1x8x16xf32>, vector<1x8x16xf32>, vector<1x8x16xf32>, vector<1x8x16xf32> -> vector<8x8x16xf32>
    %cst_66 = arith.constant 2.500000e-01 : f32
    %196 = vector.broadcast %cst_66 : f32 to vector<8x8x16xf32>
    %197 = arith.mulf %195, %196 : vector<8x8x16xf32>
    %198 = vector.extract_strided_slice %178 {offsets = [0, 128], sizes = [8, 16], strides = [1, 1]} : vector<8x384xf32> to vector<8x16xf32>
    %199 = vector.extract_strided_slice %178 {offsets = [0, 144], sizes = [8, 16], strides = [1, 1]} : vector<8x384xf32> to vector<8x16xf32>
    %200 = vector.extract_strided_slice %178 {offsets = [0, 160], sizes = [8, 16], strides = [1, 1]} : vector<8x384xf32> to vector<8x16xf32>
    %201 = vector.extract_strided_slice %178 {offsets = [0, 176], sizes = [8, 16], strides = [1, 1]} : vector<8x384xf32> to vector<8x16xf32>
    %202 = vector.extract_strided_slice %178 {offsets = [0, 192], sizes = [8, 16], strides = [1, 1]} : vector<8x384xf32> to vector<8x16xf32>
    %203 = vector.extract_strided_slice %178 {offsets = [0, 208], sizes = [8, 16], strides = [1, 1]} : vector<8x384xf32> to vector<8x16xf32>
    %204 = vector.extract_strided_slice %178 {offsets = [0, 224], sizes = [8, 16], strides = [1, 1]} : vector<8x384xf32> to vector<8x16xf32>
    %205 = vector.extract_strided_slice %178 {offsets = [0, 240], sizes = [8, 16], strides = [1, 1]} : vector<8x384xf32> to vector<8x16xf32>
    %206 = vector.shape_cast %198 : vector<8x16xf32> to vector<1x8x16xf32>
    %207 = vector.shape_cast %199 : vector<8x16xf32> to vector<1x8x16xf32>
    %208 = vector.shape_cast %200 : vector<8x16xf32> to vector<1x8x16xf32>
    %209 = vector.shape_cast %201 : vector<8x16xf32> to vector<1x8x16xf32>
    %210 = vector.shape_cast %202 : vector<8x16xf32> to vector<1x8x16xf32>
    %211 = vector.shape_cast %203 : vector<8x16xf32> to vector<1x8x16xf32>
    %212 = vector.shape_cast %204 : vector<8x16xf32> to vector<1x8x16xf32>
    %213 = vector.shape_cast %205 : vector<8x16xf32> to vector<1x8x16xf32>
    %214 = tpu.concatenate %206, %207, %208, %209, %210, %211, %212, %213 in 0 : vector<1x8x16xf32>, vector<1x8x16xf32>, vector<1x8x16xf32>, vector<1x8x16xf32>, vector<1x8x16xf32>, vector<1x8x16xf32>, vector<1x8x16xf32>, vector<1x8x16xf32> -> vector<8x8x16xf32>
    %215 = vector.extract_strided_slice %178 {offsets = [0, 256], sizes = [8, 16], strides = [1, 1]} : vector<8x384xf32> to vector<8x16xf32>
    %216 = vector.extract_strided_slice %178 {offsets = [0, 272], sizes = [8, 16], strides = [1, 1]} : vector<8x384xf32> to vector<8x16xf32>
    %217 = vector.extract_strided_slice %178 {offsets = [0, 288], sizes = [8, 16], strides = [1, 1]} : vector<8x384xf32> to vector<8x16xf32>
    %218 = vector.extract_strided_slice %178 {offsets = [0, 304], sizes = [8, 16], strides = [1, 1]} : vector<8x384xf32> to vector<8x16xf32>
    %219 = vector.extract_strided_slice %178 {offsets = [0, 320], sizes = [8, 16], strides = [1, 1]} : vector<8x384xf32> to vector<8x16xf32>
    %220 = vector.extract_strided_slice %178 {offsets = [0, 336], sizes = [8, 16], strides = [1, 1]} : vector<8x384xf32> to vector<8x16xf32>
    %221 = vector.extract_strided_slice %178 {offsets = [0, 352], sizes = [8, 16], strides = [1, 1]} : vector<8x384xf32> to vector<8x16xf32>
    %222 = vector.extract_strided_slice %178 {offsets = [0, 368], sizes = [8, 16], strides = [1, 1]} : vector<8x384xf32> to vector<8x16xf32>
    %223 = vector.shape_cast %215 : vector<8x16xf32> to vector<1x8x16xf32>
    %224 = vector.shape_cast %216 : vector<8x16xf32> to vector<1x8x16xf32>
    %225 = vector.shape_cast %217 : vector<8x16xf32> to vector<1x8x16xf32>
    %226 = vector.shape_cast %218 : vector<8x16xf32> to vector<1x8x16xf32>
    %227 = vector.shape_cast %219 : vector<8x16xf32> to vector<1x8x16xf32>
    %228 = vector.shape_cast %220 : vector<8x16xf32> to vector<1x8x16xf32>
    %229 = vector.shape_cast %221 : vector<8x16xf32> to vector<1x8x16xf32>
    %230 = vector.shape_cast %222 : vector<8x16xf32> to vector<1x8x16xf32>
    %231 = tpu.concatenate %223, %224, %225, %226, %227, %228, %229, %230 in 0 : vector<1x8x16xf32>, vector<1x8x16xf32>, vector<1x8x16xf32>, vector<1x8x16xf32>, vector<1x8x16xf32>, vector<1x8x16xf32>, vector<1x8x16xf32>, vector<1x8x16xf32> -> vector<8x8x16xf32>
    %232 = arith.truncf %197 : vector<8x8x16xf32> to vector<8x8x16xbf16>
    %233 = arith.truncf %214 : vector<8x8x16xf32> to vector<8x8x16xbf16>
    %cst_67 = arith.constant dense<0.000000e+00> : vector<8x8x8xf32>
    %234 = tpu.matmul %232, %233, %cst_67 {dimension_numbers = #tpu.dot_dimension_numbers<[2], [2], [1], [1], [0, 0, 0, 1, 1, 1], [0], [0]>} : vector<8x8x16xbf16>, vector<8x8x16xbf16>, vector<8x8x8xf32> -> vector<8x8x8xf32>
    %235 = vector.shape_cast %35 : vector<8x8xf32> to vector<1x8x8xf32>
    %236 = vector.broadcast %235 : vector<1x8x8xf32> to vector<8x8x8xf32>
    %237 = arith.addf %234, %236 : vector<8x8x8xf32>
    %cst_68 = arith.constant dense<0xFF800000> : vector<8x8xf32>
    %238 = vector.multi_reduction <maximumf>, %237, %cst_68 [2] : vector<8x8x8xf32> to vector<8x8xf32>
    %239 = vector.shape_cast %238 : vector<8x8xf32> to vector<8x8x1xf32>
    %240 = vector.broadcast %239 : vector<8x8x1xf32> to vector<8x8x8xf32>
    %241 = arith.subf %237, %240 : vector<8x8x8xf32>
    %242 = math.exp %241 : vector<8x8x8xf32>
    %cst_69 = arith.constant dense<0.000000e+00> : vector<8x8xf32>
    %243 = vector.multi_reduction <add>, %242, %cst_69 [2] : vector<8x8x8xf32> to vector<8x8xf32>
    %244 = vector.shape_cast %243 : vector<8x8xf32> to vector<8x8x1xf32>
    %245 = tpu.reciprocal %244 {approx = true} : vector<8x8x1xf32> -> vector<8x8x1xf32>
    %246 = vector.broadcast %245 : vector<8x8x1xf32> to vector<8x8x8xf32>
    %247 = arith.mulf %242, %246 : vector<8x8x8xf32>
    %248 = arith.truncf %247 : vector<8x8x8xf32> to vector<8x8x8xbf16>
    %249 = arith.truncf %231 : vector<8x8x16xf32> to vector<8x8x16xbf16>
    %cst_70 = arith.constant dense<0.000000e+00> : vector<8x8x16xf32>
    %250 = tpu.matmul %248, %249, %cst_70 {dimension_numbers = #tpu.dot_dimension_numbers<[2], [1], [1], [2], [0, 0, 0, 1, 1, 2], [0], [0]>} : vector<8x8x8xbf16>, vector<8x8x16xbf16>, vector<8x8x16xf32> -> vector<8x8x16xf32>
    %251 = vector.extract_strided_slice %250 {offsets = [0, 0, 0], sizes = [1, 8, 16], strides = [1, 1, 1]} : vector<8x8x16xf32> to vector<1x8x16xf32>
    %252 = vector.shape_cast %251 : vector<1x8x16xf32> to vector<8x16xf32>
    %253 = vector.extract_strided_slice %250 {offsets = [1, 0, 0], sizes = [1, 8, 16], strides = [1, 1, 1]} : vector<8x8x16xf32> to vector<1x8x16xf32>
    %254 = vector.shape_cast %253 : vector<1x8x16xf32> to vector<8x16xf32>
    %255 = vector.extract_strided_slice %250 {offsets = [2, 0, 0], sizes = [1, 8, 16], strides = [1, 1, 1]} : vector<8x8x16xf32> to vector<1x8x16xf32>
    %256 = vector.shape_cast %255 : vector<1x8x16xf32> to vector<8x16xf32>
    %257 = vector.extract_strided_slice %250 {offsets = [3, 0, 0], sizes = [1, 8, 16], strides = [1, 1, 1]} : vector<8x8x16xf32> to vector<1x8x16xf32>
    %258 = vector.shape_cast %257 : vector<1x8x16xf32> to vector<8x16xf32>
    %259 = vector.extract_strided_slice %250 {offsets = [4, 0, 0], sizes = [1, 8, 16], strides = [1, 1, 1]} : vector<8x8x16xf32> to vector<1x8x16xf32>
    %260 = vector.shape_cast %259 : vector<1x8x16xf32> to vector<8x16xf32>
    %261 = vector.extract_strided_slice %250 {offsets = [5, 0, 0], sizes = [1, 8, 16], strides = [1, 1, 1]} : vector<8x8x16xf32> to vector<1x8x16xf32>
    %262 = vector.shape_cast %261 : vector<1x8x16xf32> to vector<8x16xf32>
    %263 = vector.extract_strided_slice %250 {offsets = [6, 0, 0], sizes = [1, 8, 16], strides = [1, 1, 1]} : vector<8x8x16xf32> to vector<1x8x16xf32>
    %264 = vector.shape_cast %263 : vector<1x8x16xf32> to vector<8x16xf32>
    %265 = vector.extract_strided_slice %250 {offsets = [7, 0, 0], sizes = [1, 8, 16], strides = [1, 1, 1]} : vector<8x8x16xf32> to vector<1x8x16xf32>
    %266 = vector.shape_cast %265 : vector<1x8x16xf32> to vector<8x16xf32>
    %267 = tpu.concatenate %252, %254, %256, %258, %260, %262, %264, %266 in 1 : vector<8x16xf32>, vector<8x16xf32>, vector<8x16xf32>, vector<8x16xf32>, vector<8x16xf32>, vector<8x16xf32>, vector<8x16xf32>, vector<8x16xf32> -> vector<8x128xf32>
    %268 = vector.shape_cast %176 : vector<8x128xf32> to vector<1x8x128xf32>
    %269 = vector.shape_cast %267 : vector<8x128xf32> to vector<1x8x128xf32>
    %270 = tpu.concatenate %268, %269 in 0 : vector<1x8x128xf32>, vector<1x8x128xf32> -> vector<2x8x128xf32>
    %271 = arith.truncf %270 : vector<2x8x128xf32> to vector<2x8x128xbf16>
    %cst_71 = arith.constant dense<0.000000e+00> : vector<2x8x128xf32>
    %272 = tpu.matmul %271, %72, %cst_71 {dimension_numbers = #tpu.dot_dimension_numbers<[2], [1], [1], [2], [0, 0, 0, 1, 1, 2], [0], [0]>} : vector<2x8x128xbf16>, vector<2x128x128xbf16>, vector<2x8x128xf32> -> vector<2x8x128xf32>
    %273 = vector.broadcast %73 : vector<2x1x128xf32> to vector<2x8x128xf32>
    %274 = arith.addf %272, %273 : vector<2x8x128xf32>
    %275 = arith.addf %69, %274 : vector<2x8x128xf32>
    %cst_72 = arith.constant dense<0.000000e+00> : vector<2x8xf32>
    %276 = vector.multi_reduction <add>, %275, %cst_72 [2] : vector<2x8x128xf32> to vector<2x8xf32>
    %277 = vector.shape_cast %276 : vector<2x8xf32> to vector<2x8x1xf32>
    %cst_73 = arith.constant 1.280000e+02 : f32
    %278 = vector.broadcast %cst_73 : f32 to vector<2x8x1xf32>
    %279 = arith.divf %277, %278 : vector<2x8x1xf32>
    %280 = vector.broadcast %279 : vector<2x8x1xf32> to vector<2x8x128xf32>
    %281 = arith.subf %275, %280 : vector<2x8x128xf32>
    %282 = arith.mulf %281, %281 : vector<2x8x128xf32>
    %cst_74 = arith.constant dense<0.000000e+00> : vector<2x8xf32>
    %283 = vector.multi_reduction <add>, %282, %cst_74 [2] : vector<2x8x128xf32> to vector<2x8xf32>
    %284 = vector.shape_cast %283 : vector<2x8xf32> to vector<2x8x1xf32>
    %cst_75 = arith.constant 1.280000e+02 : f32
    %285 = vector.broadcast %cst_75 : f32 to vector<2x8x1xf32>
    %286 = arith.divf %284, %285 : vector<2x8x1xf32>
    %cst_76 = arith.constant 9.99999974E-6 : f32
    %287 = vector.broadcast %cst_76 : f32 to vector<2x8x1xf32>
    %288 = arith.addf %286, %287 : vector<2x8x1xf32>
    %289 = math.rsqrt %288 : vector<2x8x1xf32>
    %290 = vector.broadcast %289 : vector<2x8x1xf32> to vector<2x8x128xf32>
    %291 = arith.mulf %281, %290 : vector<2x8x128xf32>
    %292 = vector.broadcast %78 : vector<2x1x128xf32> to vector<2x8x128xf32>
    %293 = arith.mulf %291, %292 : vector<2x8x128xf32>
    %294 = vector.broadcast %79 : vector<2x1x128xf32> to vector<2x8x128xf32>
    %295 = arith.addf %293, %294 : vector<2x8x128xf32>
    %296 = arith.truncf %295 : vector<2x8x128xf32> to vector<2x8x128xbf16>
    %cst_77 = arith.constant dense<0.000000e+00> : vector<2x8x256xf32>
    %297 = tpu.matmul %296, %74, %cst_77 {dimension_numbers = #tpu.dot_dimension_numbers<[2], [1], [1], [2], [0, 0, 0, 1, 1, 2], [0], [0]>} : vector<2x8x128xbf16>, vector<2x128x256xbf16>, vector<2x8x256xf32> -> vector<2x8x256xf32>
    %298 = vector.broadcast %75 : vector<2x1x256xf32> to vector<2x8x256xf32>
    %299 = arith.addf %297, %298 : vector<2x8x256xf32>
    %cst_78 = arith.constant 0.000000e+00 : f32
    %300 = vector.broadcast %cst_78 : f32 to vector<2x8x256xf32>
    %301 = arith.maximumf %299, %300 : vector<2x8x256xf32>
    %302 = arith.truncf %301 : vector<2x8x256xf32> to vector<2x8x256xbf16>
    %cst_79 = arith.constant dense<0.000000e+00> : vector<2x8x128xf32>
    %303 = tpu.matmul %302, %76, %cst_79 {dimension_numbers = #tpu.dot_dimension_numbers<[2], [1], [1], [2], [0, 0, 0, 1, 1, 2], [0], [0]>} : vector<2x8x256xbf16>, vector<2x256x128xbf16>, vector<2x8x128xf32> -> vector<2x8x128xf32>
    %304 = vector.broadcast %77 : vector<2x1x128xf32> to vector<2x8x128xf32>
    %305 = arith.addf %303, %304 : vector<2x8x128xf32>
    %306 = arith.addf %295, %305 : vector<2x8x128xf32>
    %cst_80 = arith.constant dense<0.000000e+00> : vector<2x8xf32>
    %307 = vector.multi_reduction <add>, %306, %cst_80 [2] : vector<2x8x128xf32> to vector<2x8xf32>
    %308 = vector.shape_cast %307 : vector<2x8xf32> to vector<2x8x1xf32>
    %cst_81 = arith.constant 1.280000e+02 : f32
    %309 = vector.broadcast %cst_81 : f32 to vector<2x8x1xf32>
    %310 = arith.divf %308, %309 : vector<2x8x1xf32>
    %311 = vector.broadcast %310 : vector<2x8x1xf32> to vector<2x8x128xf32>
    %312 = arith.subf %306, %311 : vector<2x8x128xf32>
    %313 = arith.mulf %312, %312 : vector<2x8x128xf32>
    %cst_82 = arith.constant dense<0.000000e+00> : vector<2x8xf32>
    %314 = vector.multi_reduction <add>, %313, %cst_82 [2] : vector<2x8x128xf32> to vector<2x8xf32>
    %315 = vector.shape_cast %314 : vector<2x8xf32> to vector<2x8x1xf32>
    %cst_83 = arith.constant 1.280000e+02 : f32
    %316 = vector.broadcast %cst_83 : f32 to vector<2x8x1xf32>
    %317 = arith.divf %315, %316 : vector<2x8x1xf32>
    %cst_84 = arith.constant 9.99999974E-6 : f32
    %318 = vector.broadcast %cst_84 : f32 to vector<2x8x1xf32>
    %319 = arith.addf %317, %318 : vector<2x8x1xf32>
    %320 = math.rsqrt %319 : vector<2x8x1xf32>
    %321 = vector.broadcast %320 : vector<2x8x1xf32> to vector<2x8x128xf32>
    %322 = arith.mulf %312, %321 : vector<2x8x128xf32>
    %323 = vector.broadcast %80 : vector<2x1x128xf32> to vector<2x8x128xf32>
    %324 = arith.mulf %322, %323 : vector<2x8x128xf32>
    %325 = vector.broadcast %81 : vector<2x1x128xf32> to vector<2x8x128xf32>
    %326 = arith.addf %324, %325 : vector<2x8x128xf32>
    %c0_i32_85 = arith.constant 0 : i32
    %327 = tpu.memref_slice %arg50[%c0_i32_85] : memref<9x!tpu.dma_semaphore, #tpu.memory_space<semaphore_mem>> -> memref<1x!tpu.dma_semaphore, #tpu.memory_space<semaphore_mem>>
    %328 = tpu.memref_squeeze %327 : memref<1x!tpu.dma_semaphore, #tpu.memory_space<semaphore_mem>> -> memref<!tpu.dma_semaphore, #tpu.memory_space<semaphore_mem>>
    tpu.wait_dma2 semaphore(%328 : memref<!tpu.dma_semaphore, #tpu.memory_space<semaphore_mem>>) src(%arg31 : memref<2x128x384xbf16, #tpu.memory_space<any>>) dst(%arg41 : memref<2x128x384xbf16, #tpu.memory_space<vmem>>)
    %c1_i32_86 = arith.constant 1 : i32
    %329 = tpu.memref_slice %arg50[%c1_i32_86] : memref<9x!tpu.dma_semaphore, #tpu.memory_space<semaphore_mem>> -> memref<1x!tpu.dma_semaphore, #tpu.memory_space<semaphore_mem>>
    %330 = tpu.memref_squeeze %329 : memref<1x!tpu.dma_semaphore, #tpu.memory_space<semaphore_mem>> -> memref<!tpu.dma_semaphore, #tpu.memory_space<semaphore_mem>>
    tpu.wait_dma2 semaphore(%330 : memref<!tpu.dma_semaphore, #tpu.memory_space<semaphore_mem>>) src(%arg32 : memref<2x128x128xbf16, #tpu.memory_space<any>>) dst(%arg42 : memref<2x128x128xbf16, #tpu.memory_space<vmem>>)
    %c2_i32_87 = arith.constant 2 : i32
    %331 = tpu.memref_slice %arg50[%c2_i32_87] : memref<9x!tpu.dma_semaphore, #tpu.memory_space<semaphore_mem>> -> memref<1x!tpu.dma_semaphore, #tpu.memory_space<semaphore_mem>>
    %332 = tpu.memref_squeeze %331 : memref<1x!tpu.dma_semaphore, #tpu.memory_space<semaphore_mem>> -> memref<!tpu.dma_semaphore, #tpu.memory_space<semaphore_mem>>
    tpu.wait_dma2 semaphore(%332 : memref<!tpu.dma_semaphore, #tpu.memory_space<semaphore_mem>>) src(%arg33 : memref<2x128x256xbf16, #tpu.memory_space<any>>) dst(%arg43 : memref<2x128x256xbf16, #tpu.memory_space<vmem>>)
    %c3_i32_88 = arith.constant 3 : i32
    %333 = tpu.memref_slice %arg50[%c3_i32_88] : memref<9x!tpu.dma_semaphore, #tpu.memory_space<semaphore_mem>> -> memref<1x!tpu.dma_semaphore, #tpu.memory_space<semaphore_mem>>
    %334 = tpu.memref_squeeze %333 : memref<1x!tpu.dma_semaphore, #tpu.memory_space<semaphore_mem>> -> memref<!tpu.dma_semaphore, #tpu.memory_space<semaphore_mem>>
    tpu.wait_dma2 semaphore(%334 : memref<!tpu.dma_semaphore, #tpu.memory_space<semaphore_mem>>) src(%arg34 : memref<2x256x128xbf16, #tpu.memory_space<any>>) dst(%arg44 : memref<2x256x128xbf16, #tpu.memory_space<vmem>>)
    %c0_89 = arith.constant 0 : index
    %c0_90 = arith.constant 0 : index
    %c0_91 = arith.constant 0 : index
    %335 = vector.load %arg41[%c0_89, %c0_90, %c0_91] : memref<2x128x384xbf16, #tpu.memory_space<vmem>>, vector<2x128x384xbf16>
    %c0_92 = arith.constant 0 : index
    %c0_93 = arith.constant 0 : index
    %c0_94 = arith.constant 0 : index
    %336 = vector.load %arg18[%c0_92, %c0_93, %c0_94] : memref<2x1x384xf32, #tpu.memory_space<vmem>>, vector<2x1x384xf32>
    %c0_95 = arith.constant 0 : index
    %c0_96 = arith.constant 0 : index
    %c0_97 = arith.constant 0 : index
    %337 = vector.load %arg42[%c0_95, %c0_96, %c0_97] : memref<2x128x128xbf16, #tpu.memory_space<vmem>>, vector<2x128x128xbf16>
    %c0_98 = arith.constant 0 : index
    %c0_99 = arith.constant 0 : index
    %c0_100 = arith.constant 0 : index
    %338 = vector.load %arg19[%c0_98, %c0_99, %c0_100] : memref<2x1x128xf32, #tpu.memory_space<vmem>>, vector<2x1x128xf32>
    %c0_101 = arith.constant 0 : index
    %c0_102 = arith.constant 0 : index
    %c0_103 = arith.constant 0 : index
    %339 = vector.load %arg43[%c0_101, %c0_102, %c0_103] : memref<2x128x256xbf16, #tpu.memory_space<vmem>>, vector<2x128x256xbf16>
    %c0_104 = arith.constant 0 : index
    %c0_105 = arith.constant 0 : index
    %c0_106 = arith.constant 0 : index
    %340 = vector.load %arg20[%c0_104, %c0_105, %c0_106] : memref<2x1x256xf32, #tpu.memory_space<vmem>>, vector<2x1x256xf32>
    %c0_107 = arith.constant 0 : index
    %c0_108 = arith.constant 0 : index
    %c0_109 = arith.constant 0 : index
    %341 = vector.load %arg44[%c0_107, %c0_108, %c0_109] : memref<2x256x128xbf16, #tpu.memory_space<vmem>>, vector<2x256x128xbf16>
    %c0_110 = arith.constant 0 : index
    %c0_111 = arith.constant 0 : index
    %c0_112 = arith.constant 0 : index
    %342 = vector.load %arg21[%c0_110, %c0_111, %c0_112] : memref<2x1x128xf32, #tpu.memory_space<vmem>>, vector<2x1x128xf32>
    %c0_113 = arith.constant 0 : index
    %c0_114 = arith.constant 0 : index
    %c0_115 = arith.constant 0 : index
    %343 = vector.load %arg22[%c0_113, %c0_114, %c0_115] : memref<2x1x128xf32, #tpu.memory_space<vmem>>, vector<2x1x128xf32>
    %c0_116 = arith.constant 0 : index
    %c0_117 = arith.constant 0 : index
    %c0_118 = arith.constant 0 : index
    %344 = vector.load %arg23[%c0_116, %c0_117, %c0_118] : memref<2x1x128xf32, #tpu.memory_space<vmem>>, vector<2x1x128xf32>
    %c0_119 = arith.constant 0 : index
    %c0_120 = arith.constant 0 : index
    %c0_121 = arith.constant 0 : index
    %345 = vector.load %arg24[%c0_119, %c0_120, %c0_121] : memref<2x1x128xf32, #tpu.memory_space<vmem>>, vector<2x1x128xf32>
    %c0_122 = arith.constant 0 : index
    %c0_123 = arith.constant 0 : index
    %c0_124 = arith.constant 0 : index
    %346 = vector.load %arg25[%c0_122, %c0_123, %c0_124] : memref<2x1x128xf32, #tpu.memory_space<vmem>>, vector<2x1x128xf32>
    %347 = arith.truncf %326 : vector<2x8x128xf32> to vector<2x8x128xbf16>
    %cst_125 = arith.constant dense<0.000000e+00> : vector<2x8x384xf32>
    %348 = tpu.matmul %347, %335, %cst_125 {dimension_numbers = #tpu.dot_dimension_numbers<[2], [1], [1], [2], [0, 0, 0, 1, 1, 2], [0], [0]>} : vector<2x8x128xbf16>, vector<2x128x384xbf16>, vector<2x8x384xf32> -> vector<2x8x384xf32>
    %349 = vector.broadcast %336 : vector<2x1x384xf32> to vector<2x8x384xf32>
    %350 = arith.addf %348, %349 : vector<2x8x384xf32>
    %351 = vector.extract_strided_slice %350 {offsets = [0, 0, 0], sizes = [1, 8, 384], strides = [1, 1, 1]} : vector<2x8x384xf32> to vector<1x8x384xf32>
    %352 = vector.shape_cast %351 : vector<1x8x384xf32> to vector<8x384xf32>
    %353 = vector.extract_strided_slice %352 {offsets = [0, 0], sizes = [8, 16], strides = [1, 1]} : vector<8x384xf32> to vector<8x16xf32>
    %354 = vector.extract_strided_slice %352 {offsets = [0, 16], sizes = [8, 16], strides = [1, 1]} : vector<8x384xf32> to vector<8x16xf32>
    %355 = vector.extract_strided_slice %352 {offsets = [0, 32], sizes = [8, 16], strides = [1, 1]} : vector<8x384xf32> to vector<8x16xf32>
    %356 = vector.extract_strided_slice %352 {offsets = [0, 48], sizes = [8, 16], strides = [1, 1]} : vector<8x384xf32> to vector<8x16xf32>
    %357 = vector.extract_strided_slice %352 {offsets = [0, 64], sizes = [8, 16], strides = [1, 1]} : vector<8x384xf32> to vector<8x16xf32>
    %358 = vector.extract_strided_slice %352 {offsets = [0, 80], sizes = [8, 16], strides = [1, 1]} : vector<8x384xf32> to vector<8x16xf32>
    %359 = vector.extract_strided_slice %352 {offsets = [0, 96], sizes = [8, 16], strides = [1, 1]} : vector<8x384xf32> to vector<8x16xf32>
    %360 = vector.extract_strided_slice %352 {offsets = [0, 112], sizes = [8, 16], strides = [1, 1]} : vector<8x384xf32> to vector<8x16xf32>
    %361 = vector.shape_cast %353 : vector<8x16xf32> to vector<1x8x16xf32>
    %362 = vector.shape_cast %354 : vector<8x16xf32> to vector<1x8x16xf32>
    %363 = vector.shape_cast %355 : vector<8x16xf32> to vector<1x8x16xf32>
    %364 = vector.shape_cast %356 : vector<8x16xf32> to vector<1x8x16xf32>
    %365 = vector.shape_cast %357 : vector<8x16xf32> to vector<1x8x16xf32>
    %366 = vector.shape_cast %358 : vector<8x16xf32> to vector<1x8x16xf32>
    %367 = vector.shape_cast %359 : vector<8x16xf32> to vector<1x8x16xf32>
    %368 = vector.shape_cast %360 : vector<8x16xf32> to vector<1x8x16xf32>
    %369 = tpu.concatenate %361, %362, %363, %364, %365, %366, %367, %368 in 0 : vector<1x8x16xf32>, vector<1x8x16xf32>, vector<1x8x16xf32>, vector<1x8x16xf32>, vector<1x8x16xf32>, vector<1x8x16xf32>, vector<1x8x16xf32>, vector<1x8x16xf32> -> vector<8x8x16xf32>
    %cst_126 = arith.constant 2.500000e-01 : f32
    %370 = vector.broadcast %cst_126 : f32 to vector<8x8x16xf32>
    %371 = arith.mulf %369, %370 : vector<8x8x16xf32>
    %372 = vector.extract_strided_slice %352 {offsets = [0, 128], sizes = [8, 16], strides = [1, 1]} : vector<8x384xf32> to vector<8x16xf32>
    %373 = vector.extract_strided_slice %352 {offsets = [0, 144], sizes = [8, 16], strides = [1, 1]} : vector<8x384xf32> to vector<8x16xf32>
    %374 = vector.extract_strided_slice %352 {offsets = [0, 160], sizes = [8, 16], strides = [1, 1]} : vector<8x384xf32> to vector<8x16xf32>
    %375 = vector.extract_strided_slice %352 {offsets = [0, 176], sizes = [8, 16], strides = [1, 1]} : vector<8x384xf32> to vector<8x16xf32>
    %376 = vector.extract_strided_slice %352 {offsets = [0, 192], sizes = [8, 16], strides = [1, 1]} : vector<8x384xf32> to vector<8x16xf32>
    %377 = vector.extract_strided_slice %352 {offsets = [0, 208], sizes = [8, 16], strides = [1, 1]} : vector<8x384xf32> to vector<8x16xf32>
    %378 = vector.extract_strided_slice %352 {offsets = [0, 224], sizes = [8, 16], strides = [1, 1]} : vector<8x384xf32> to vector<8x16xf32>
    %379 = vector.extract_strided_slice %352 {offsets = [0, 240], sizes = [8, 16], strides = [1, 1]} : vector<8x384xf32> to vector<8x16xf32>
    %380 = vector.shape_cast %372 : vector<8x16xf32> to vector<1x8x16xf32>
    %381 = vector.shape_cast %373 : vector<8x16xf32> to vector<1x8x16xf32>
    %382 = vector.shape_cast %374 : vector<8x16xf32> to vector<1x8x16xf32>
    %383 = vector.shape_cast %375 : vector<8x16xf32> to vector<1x8x16xf32>
    %384 = vector.shape_cast %376 : vector<8x16xf32> to vector<1x8x16xf32>
    %385 = vector.shape_cast %377 : vector<8x16xf32> to vector<1x8x16xf32>
    %386 = vector.shape_cast %378 : vector<8x16xf32> to vector<1x8x16xf32>
    %387 = vector.shape_cast %379 : vector<8x16xf32> to vector<1x8x16xf32>
    %388 = tpu.concatenate %380, %381, %382, %383, %384, %385, %386, %387 in 0 : vector<1x8x16xf32>, vector<1x8x16xf32>, vector<1x8x16xf32>, vector<1x8x16xf32>, vector<1x8x16xf32>, vector<1x8x16xf32>, vector<1x8x16xf32>, vector<1x8x16xf32> -> vector<8x8x16xf32>
    %389 = vector.extract_strided_slice %352 {offsets = [0, 256], sizes = [8, 16], strides = [1, 1]} : vector<8x384xf32> to vector<8x16xf32>
    %390 = vector.extract_strided_slice %352 {offsets = [0, 272], sizes = [8, 16], strides = [1, 1]} : vector<8x384xf32> to vector<8x16xf32>
    %391 = vector.extract_strided_slice %352 {offsets = [0, 288], sizes = [8, 16], strides = [1, 1]} : vector<8x384xf32> to vector<8x16xf32>
    %392 = vector.extract_strided_slice %352 {offsets = [0, 304], sizes = [8, 16], strides = [1, 1]} : vector<8x384xf32> to vector<8x16xf32>
    %393 = vector.extract_strided_slice %352 {offsets = [0, 320], sizes = [8, 16], strides = [1, 1]} : vector<8x384xf32> to vector<8x16xf32>
    %394 = vector.extract_strided_slice %352 {offsets = [0, 336], sizes = [8, 16], strides = [1, 1]} : vector<8x384xf32> to vector<8x16xf32>
    %395 = vector.extract_strided_slice %352 {offsets = [0, 352], sizes = [8, 16], strides = [1, 1]} : vector<8x384xf32> to vector<8x16xf32>
    %396 = vector.extract_strided_slice %352 {offsets = [0, 368], sizes = [8, 16], strides = [1, 1]} : vector<8x384xf32> to vector<8x16xf32>
    %397 = vector.shape_cast %389 : vector<8x16xf32> to vector<1x8x16xf32>
    %398 = vector.shape_cast %390 : vector<8x16xf32> to vector<1x8x16xf32>
    %399 = vector.shape_cast %391 : vector<8x16xf32> to vector<1x8x16xf32>
    %400 = vector.shape_cast %392 : vector<8x16xf32> to vector<1x8x16xf32>
    %401 = vector.shape_cast %393 : vector<8x16xf32> to vector<1x8x16xf32>
    %402 = vector.shape_cast %394 : vector<8x16xf32> to vector<1x8x16xf32>
    %403 = vector.shape_cast %395 : vector<8x16xf32> to vector<1x8x16xf32>
    %404 = vector.shape_cast %396 : vector<8x16xf32> to vector<1x8x16xf32>
    %405 = tpu.concatenate %397, %398, %399, %400, %401, %402, %403, %404 in 0 : vector<1x8x16xf32>, vector<1x8x16xf32>, vector<1x8x16xf32>, vector<1x8x16xf32>, vector<1x8x16xf32>, vector<1x8x16xf32>, vector<1x8x16xf32>, vector<1x8x16xf32> -> vector<8x8x16xf32>
    %406 = arith.truncf %371 : vector<8x8x16xf32> to vector<8x8x16xbf16>
    %407 = arith.truncf %388 : vector<8x8x16xf32> to vector<8x8x16xbf16>
    %cst_127 = arith.constant dense<0.000000e+00> : vector<8x8x8xf32>
    %408 = tpu.matmul %406, %407, %cst_127 {dimension_numbers = #tpu.dot_dimension_numbers<[2], [2], [1], [1], [0, 0, 0, 1, 1, 1], [0], [0]>} : vector<8x8x16xbf16>, vector<8x8x16xbf16>, vector<8x8x8xf32> -> vector<8x8x8xf32>
    %409 = vector.shape_cast %35 : vector<8x8xf32> to vector<1x8x8xf32>
    %410 = vector.broadcast %409 : vector<1x8x8xf32> to vector<8x8x8xf32>
    %411 = arith.addf %408, %410 : vector<8x8x8xf32>
    %cst_128 = arith.constant dense<0xFF800000> : vector<8x8xf32>
    %412 = vector.multi_reduction <maximumf>, %411, %cst_128 [2] : vector<8x8x8xf32> to vector<8x8xf32>
    %413 = vector.shape_cast %412 : vector<8x8xf32> to vector<8x8x1xf32>
    %414 = vector.broadcast %413 : vector<8x8x1xf32> to vector<8x8x8xf32>
    %415 = arith.subf %411, %414 : vector<8x8x8xf32>
    %416 = math.exp %415 : vector<8x8x8xf32>
    %cst_129 = arith.constant dense<0.000000e+00> : vector<8x8xf32>
    %417 = vector.multi_reduction <add>, %416, %cst_129 [2] : vector<8x8x8xf32> to vector<8x8xf32>
    %418 = vector.shape_cast %417 : vector<8x8xf32> to vector<8x8x1xf32>
    %419 = tpu.reciprocal %418 {approx = true} : vector<8x8x1xf32> -> vector<8x8x1xf32>
    %420 = vector.broadcast %419 : vector<8x8x1xf32> to vector<8x8x8xf32>
    %421 = arith.mulf %416, %420 : vector<8x8x8xf32>
    %422 = arith.truncf %421 : vector<8x8x8xf32> to vector<8x8x8xbf16>
    %423 = arith.truncf %405 : vector<8x8x16xf32> to vector<8x8x16xbf16>
    %cst_130 = arith.constant dense<0.000000e+00> : vector<8x8x16xf32>
    %424 = tpu.matmul %422, %423, %cst_130 {dimension_numbers = #tpu.dot_dimension_numbers<[2], [1], [1], [2], [0, 0, 0, 1, 1, 2], [0], [0]>} : vector<8x8x8xbf16>, vector<8x8x16xbf16>, vector<8x8x16xf32> -> vector<8x8x16xf32>
    %425 = vector.extract_strided_slice %424 {offsets = [0, 0, 0], sizes = [1, 8, 16], strides = [1, 1, 1]} : vector<8x8x16xf32> to vector<1x8x16xf32>
    %426 = vector.shape_cast %425 : vector<1x8x16xf32> to vector<8x16xf32>
    %427 = vector.extract_strided_slice %424 {offsets = [1, 0, 0], sizes = [1, 8, 16], strides = [1, 1, 1]} : vector<8x8x16xf32> to vector<1x8x16xf32>
    %428 = vector.shape_cast %427 : vector<1x8x16xf32> to vector<8x16xf32>
    %429 = vector.extract_strided_slice %424 {offsets = [2, 0, 0], sizes = [1, 8, 16], strides = [1, 1, 1]} : vector<8x8x16xf32> to vector<1x8x16xf32>
    %430 = vector.shape_cast %429 : vector<1x8x16xf32> to vector<8x16xf32>
    %431 = vector.extract_strided_slice %424 {offsets = [3, 0, 0], sizes = [1, 8, 16], strides = [1, 1, 1]} : vector<8x8x16xf32> to vector<1x8x16xf32>
    %432 = vector.shape_cast %431 : vector<1x8x16xf32> to vector<8x16xf32>
    %433 = vector.extract_strided_slice %424 {offsets = [4, 0, 0], sizes = [1, 8, 16], strides = [1, 1, 1]} : vector<8x8x16xf32> to vector<1x8x16xf32>
    %434 = vector.shape_cast %433 : vector<1x8x16xf32> to vector<8x16xf32>
    %435 = vector.extract_strided_slice %424 {offsets = [5, 0, 0], sizes = [1, 8, 16], strides = [1, 1, 1]} : vector<8x8x16xf32> to vector<1x8x16xf32>
    %436 = vector.shape_cast %435 : vector<1x8x16xf32> to vector<8x16xf32>
    %437 = vector.extract_strided_slice %424 {offsets = [6, 0, 0], sizes = [1, 8, 16], strides = [1, 1, 1]} : vector<8x8x16xf32> to vector<1x8x16xf32>
    %438 = vector.shape_cast %437 : vector<1x8x16xf32> to vector<8x16xf32>
    %439 = vector.extract_strided_slice %424 {offsets = [7, 0, 0], sizes = [1, 8, 16], strides = [1, 1, 1]} : vector<8x8x16xf32> to vector<1x8x16xf32>
    %440 = vector.shape_cast %439 : vector<1x8x16xf32> to vector<8x16xf32>
    %441 = tpu.concatenate %426, %428, %430, %432, %434, %436, %438, %440 in 1 : vector<8x16xf32>, vector<8x16xf32>, vector<8x16xf32>, vector<8x16xf32>, vector<8x16xf32>, vector<8x16xf32>, vector<8x16xf32>, vector<8x16xf32> -> vector<8x128xf32>
    %442 = vector.extract_strided_slice %350 {offsets = [1, 0, 0], sizes = [1, 8, 384], strides = [1, 1, 1]} : vector<2x8x384xf32> to vector<1x8x384xf32>
    %443 = vector.shape_cast %442 : vector<1x8x384xf32> to vector<8x384xf32>
    %444 = vector.extract_strided_slice %443 {offsets = [0, 0], sizes = [8, 16], strides = [1, 1]} : vector<8x384xf32> to vector<8x16xf32>
    %445 = vector.extract_strided_slice %443 {offsets = [0, 16], sizes = [8, 16], strides = [1, 1]} : vector<8x384xf32> to vector<8x16xf32>
    %446 = vector.extract_strided_slice %443 {offsets = [0, 32], sizes = [8, 16], strides = [1, 1]} : vector<8x384xf32> to vector<8x16xf32>
    %447 = vector.extract_strided_slice %443 {offsets = [0, 48], sizes = [8, 16], strides = [1, 1]} : vector<8x384xf32> to vector<8x16xf32>
    %448 = vector.extract_strided_slice %443 {offsets = [0, 64], sizes = [8, 16], strides = [1, 1]} : vector<8x384xf32> to vector<8x16xf32>
    %449 = vector.extract_strided_slice %443 {offsets = [0, 80], sizes = [8, 16], strides = [1, 1]} : vector<8x384xf32> to vector<8x16xf32>
    %450 = vector.extract_strided_slice %443 {offsets = [0, 96], sizes = [8, 16], strides = [1, 1]} : vector<8x384xf32> to vector<8x16xf32>
    %451 = vector.extract_strided_slice %443 {offsets = [0, 112], sizes = [8, 16], strides = [1, 1]} : vector<8x384xf32> to vector<8x16xf32>
    %452 = vector.shape_cast %444 : vector<8x16xf32> to vector<1x8x16xf32>
    %453 = vector.shape_cast %445 : vector<8x16xf32> to vector<1x8x16xf32>
    %454 = vector.shape_cast %446 : vector<8x16xf32> to vector<1x8x16xf32>
    %455 = vector.shape_cast %447 : vector<8x16xf32> to vector<1x8x16xf32>
    %456 = vector.shape_cast %448 : vector<8x16xf32> to vector<1x8x16xf32>
    %457 = vector.shape_cast %449 : vector<8x16xf32> to vector<1x8x16xf32>
    %458 = vector.shape_cast %450 : vector<8x16xf32> to vector<1x8x16xf32>
    %459 = vector.shape_cast %451 : vector<8x16xf32> to vector<1x8x16xf32>
    %460 = tpu.concatenate %452, %453, %454, %455, %456, %457, %458, %459 in 0 : vector<1x8x16xf32>, vector<1x8x16xf32>, vector<1x8x16xf32>, vector<1x8x16xf32>, vector<1x8x16xf32>, vector<1x8x16xf32>, vector<1x8x16xf32>, vector<1x8x16xf32> -> vector<8x8x16xf32>
    %cst_131 = arith.constant 2.500000e-01 : f32
    %461 = vector.broadcast %cst_131 : f32 to vector<8x8x16xf32>
    %462 = arith.mulf %460, %461 : vector<8x8x16xf32>
    %463 = vector.extract_strided_slice %443 {offsets = [0, 128], sizes = [8, 16], strides = [1, 1]} : vector<8x384xf32> to vector<8x16xf32>
    %464 = vector.extract_strided_slice %443 {offsets = [0, 144], sizes = [8, 16], strides = [1, 1]} : vector<8x384xf32> to vector<8x16xf32>
    %465 = vector.extract_strided_slice %443 {offsets = [0, 160], sizes = [8, 16], strides = [1, 1]} : vector<8x384xf32> to vector<8x16xf32>
    %466 = vector.extract_strided_slice %443 {offsets = [0, 176], sizes = [8, 16], strides = [1, 1]} : vector<8x384xf32> to vector<8x16xf32>
    %467 = vector.extract_strided_slice %443 {offsets = [0, 192], sizes = [8, 16], strides = [1, 1]} : vector<8x384xf32> to vector<8x16xf32>
    %468 = vector.extract_strided_slice %443 {offsets = [0, 208], sizes = [8, 16], strides = [1, 1]} : vector<8x384xf32> to vector<8x16xf32>
    %469 = vector.extract_strided_slice %443 {offsets = [0, 224], sizes = [8, 16], strides = [1, 1]} : vector<8x384xf32> to vector<8x16xf32>
    %470 = vector.extract_strided_slice %443 {offsets = [0, 240], sizes = [8, 16], strides = [1, 1]} : vector<8x384xf32> to vector<8x16xf32>
    %471 = vector.shape_cast %463 : vector<8x16xf32> to vector<1x8x16xf32>
    %472 = vector.shape_cast %464 : vector<8x16xf32> to vector<1x8x16xf32>
    %473 = vector.shape_cast %465 : vector<8x16xf32> to vector<1x8x16xf32>
    %474 = vector.shape_cast %466 : vector<8x16xf32> to vector<1x8x16xf32>
    %475 = vector.shape_cast %467 : vector<8x16xf32> to vector<1x8x16xf32>
    %476 = vector.shape_cast %468 : vector<8x16xf32> to vector<1x8x16xf32>
    %477 = vector.shape_cast %469 : vector<8x16xf32> to vector<1x8x16xf32>
    %478 = vector.shape_cast %470 : vector<8x16xf32> to vector<1x8x16xf32>
    %479 = tpu.concatenate %471, %472, %473, %474, %475, %476, %477, %478 in 0 : vector<1x8x16xf32>, vector<1x8x16xf32>, vector<1x8x16xf32>, vector<1x8x16xf32>, vector<1x8x16xf32>, vector<1x8x16xf32>, vector<1x8x16xf32>, vector<1x8x16xf32> -> vector<8x8x16xf32>
    %480 = vector.extract_strided_slice %443 {offsets = [0, 256], sizes = [8, 16], strides = [1, 1]} : vector<8x384xf32> to vector<8x16xf32>
    %481 = vector.extract_strided_slice %443 {offsets = [0, 272], sizes = [8, 16], strides = [1, 1]} : vector<8x384xf32> to vector<8x16xf32>
    %482 = vector.extract_strided_slice %443 {offsets = [0, 288], sizes = [8, 16], strides = [1, 1]} : vector<8x384xf32> to vector<8x16xf32>
    %483 = vector.extract_strided_slice %443 {offsets = [0, 304], sizes = [8, 16], strides = [1, 1]} : vector<8x384xf32> to vector<8x16xf32>
    %484 = vector.extract_strided_slice %443 {offsets = [0, 320], sizes = [8, 16], strides = [1, 1]} : vector<8x384xf32> to vector<8x16xf32>
    %485 = vector.extract_strided_slice %443 {offsets = [0, 336], sizes = [8, 16], strides = [1, 1]} : vector<8x384xf32> to vector<8x16xf32>
    %486 = vector.extract_strided_slice %443 {offsets = [0, 352], sizes = [8, 16], strides = [1, 1]} : vector<8x384xf32> to vector<8x16xf32>
    %487 = vector.extract_strided_slice %443 {offsets = [0, 368], sizes = [8, 16], strides = [1, 1]} : vector<8x384xf32> to vector<8x16xf32>
    %488 = vector.shape_cast %480 : vector<8x16xf32> to vector<1x8x16xf32>
    %489 = vector.shape_cast %481 : vector<8x16xf32> to vector<1x8x16xf32>
    %490 = vector.shape_cast %482 : vector<8x16xf32> to vector<1x8x16xf32>
    %491 = vector.shape_cast %483 : vector<8x16xf32> to vector<1x8x16xf32>
    %492 = vector.shape_cast %484 : vector<8x16xf32> to vector<1x8x16xf32>
    %493 = vector.shape_cast %485 : vector<8x16xf32> to vector<1x8x16xf32>
    %494 = vector.shape_cast %486 : vector<8x16xf32> to vector<1x8x16xf32>
    %495 = vector.shape_cast %487 : vector<8x16xf32> to vector<1x8x16xf32>
    %496 = tpu.concatenate %488, %489, %490, %491, %492, %493, %494, %495 in 0 : vector<1x8x16xf32>, vector<1x8x16xf32>, vector<1x8x16xf32>, vector<1x8x16xf32>, vector<1x8x16xf32>, vector<1x8x16xf32>, vector<1x8x16xf32>, vector<1x8x16xf32> -> vector<8x8x16xf32>
    %497 = arith.truncf %462 : vector<8x8x16xf32> to vector<8x8x16xbf16>
    %498 = arith.truncf %479 : vector<8x8x16xf32> to vector<8x8x16xbf16>
    %cst_132 = arith.constant dense<0.000000e+00> : vector<8x8x8xf32>
    %499 = tpu.matmul %497, %498, %cst_132 {dimension_numbers = #tpu.dot_dimension_numbers<[2], [2], [1], [1], [0, 0, 0, 1, 1, 1], [0], [0]>} : vector<8x8x16xbf16>, vector<8x8x16xbf16>, vector<8x8x8xf32> -> vector<8x8x8xf32>
    %500 = vector.shape_cast %35 : vector<8x8xf32> to vector<1x8x8xf32>
    %501 = vector.broadcast %500 : vector<1x8x8xf32> to vector<8x8x8xf32>
    %502 = arith.addf %499, %501 : vector<8x8x8xf32>
    %cst_133 = arith.constant dense<0xFF800000> : vector<8x8xf32>
    %503 = vector.multi_reduction <maximumf>, %502, %cst_133 [2] : vector<8x8x8xf32> to vector<8x8xf32>
    %504 = vector.shape_cast %503 : vector<8x8xf32> to vector<8x8x1xf32>
    %505 = vector.broadcast %504 : vector<8x8x1xf32> to vector<8x8x8xf32>
    %506 = arith.subf %502, %505 : vector<8x8x8xf32>
    %507 = math.exp %506 : vector<8x8x8xf32>
    %cst_134 = arith.constant dense<0.000000e+00> : vector<8x8xf32>
    %508 = vector.multi_reduction <add>, %507, %cst_134 [2] : vector<8x8x8xf32> to vector<8x8xf32>
    %509 = vector.shape_cast %508 : vector<8x8xf32> to vector<8x8x1xf32>
    %510 = tpu.reciprocal %509 {approx = true} : vector<8x8x1xf32> -> vector<8x8x1xf32>
    %511 = vector.broadcast %510 : vector<8x8x1xf32> to vector<8x8x8xf32>
    %512 = arith.mulf %507, %511 : vector<8x8x8xf32>
    %513 = arith.truncf %512 : vector<8x8x8xf32> to vector<8x8x8xbf16>
    %514 = arith.truncf %496 : vector<8x8x16xf32> to vector<8x8x16xbf16>
    %cst_135 = arith.constant dense<0.000000e+00> : vector<8x8x16xf32>
    %515 = tpu.matmul %513, %514, %cst_135 {dimension_numbers = #tpu.dot_dimension_numbers<[2], [1], [1], [2], [0, 0, 0, 1, 1, 2], [0], [0]>} : vector<8x8x8xbf16>, vector<8x8x16xbf16>, vector<8x8x16xf32> -> vector<8x8x16xf32>
    %516 = vector.extract_strided_slice %515 {offsets = [0, 0, 0], sizes = [1, 8, 16], strides = [1, 1, 1]} : vector<8x8x16xf32> to vector<1x8x16xf32>
    %517 = vector.shape_cast %516 : vector<1x8x16xf32> to vector<8x16xf32>
    %518 = vector.extract_strided_slice %515 {offsets = [1, 0, 0], sizes = [1, 8, 16], strides = [1, 1, 1]} : vector<8x8x16xf32> to vector<1x8x16xf32>
    %519 = vector.shape_cast %518 : vector<1x8x16xf32> to vector<8x16xf32>
    %520 = vector.extract_strided_slice %515 {offsets = [2, 0, 0], sizes = [1, 8, 16], strides = [1, 1, 1]} : vector<8x8x16xf32> to vector<1x8x16xf32>
    %521 = vector.shape_cast %520 : vector<1x8x16xf32> to vector<8x16xf32>
    %522 = vector.extract_strided_slice %515 {offsets = [3, 0, 0], sizes = [1, 8, 16], strides = [1, 1, 1]} : vector<8x8x16xf32> to vector<1x8x16xf32>
    %523 = vector.shape_cast %522 : vector<1x8x16xf32> to vector<8x16xf32>
    %524 = vector.extract_strided_slice %515 {offsets = [4, 0, 0], sizes = [1, 8, 16], strides = [1, 1, 1]} : vector<8x8x16xf32> to vector<1x8x16xf32>
    %525 = vector.shape_cast %524 : vector<1x8x16xf32> to vector<8x16xf32>
    %526 = vector.extract_strided_slice %515 {offsets = [5, 0, 0], sizes = [1, 8, 16], strides = [1, 1, 1]} : vector<8x8x16xf32> to vector<1x8x16xf32>
    %527 = vector.shape_cast %526 : vector<1x8x16xf32> to vector<8x16xf32>
    %528 = vector.extract_strided_slice %515 {offsets = [6, 0, 0], sizes = [1, 8, 16], strides = [1, 1, 1]} : vector<8x8x16xf32> to vector<1x8x16xf32>
    %529 = vector.shape_cast %528 : vector<1x8x16xf32> to vector<8x16xf32>
    %530 = vector.extract_strided_slice %515 {offsets = [7, 0, 0], sizes = [1, 8, 16], strides = [1, 1, 1]} : vector<8x8x16xf32> to vector<1x8x16xf32>
    %531 = vector.shape_cast %530 : vector<1x8x16xf32> to vector<8x16xf32>
    %532 = tpu.concatenate %517, %519, %521, %523, %525, %527, %529, %531 in 1 : vector<8x16xf32>, vector<8x16xf32>, vector<8x16xf32>, vector<8x16xf32>, vector<8x16xf32>, vector<8x16xf32>, vector<8x16xf32>, vector<8x16xf32> -> vector<8x128xf32>
    %533 = vector.shape_cast %441 : vector<8x128xf32> to vector<1x8x128xf32>
    %534 = vector.shape_cast %532 : vector<8x128xf32> to vector<1x8x128xf32>
    %535 = tpu.concatenate %533, %534 in 0 : vector<1x8x128xf32>, vector<1x8x128xf32> -> vector<2x8x128xf32>
    %536 = arith.truncf %535 : vector<2x8x128xf32> to vector<2x8x128xbf16>
    %cst_136 = arith.constant dense<0.000000e+00> : vector<2x8x128xf32>
    %537 = tpu.matmul %536, %337, %cst_136 {dimension_numbers = #tpu.dot_dimension_numbers<[2], [1], [1], [2], [0, 0, 0, 1, 1, 2], [0], [0]>} : vector<2x8x128xbf16>, vector<2x128x128xbf16>, vector<2x8x128xf32> -> vector<2x8x128xf32>
    %538 = vector.broadcast %338 : vector<2x1x128xf32> to vector<2x8x128xf32>
    %539 = arith.addf %537, %538 : vector<2x8x128xf32>
    %540 = arith.addf %326, %539 : vector<2x8x128xf32>
    %cst_137 = arith.constant dense<0.000000e+00> : vector<2x8xf32>
    %541 = vector.multi_reduction <add>, %540, %cst_137 [2] : vector<2x8x128xf32> to vector<2x8xf32>
    %542 = vector.shape_cast %541 : vector<2x8xf32> to vector<2x8x1xf32>
    %cst_138 = arith.constant 1.280000e+02 : f32
    %543 = vector.broadcast %cst_138 : f32 to vector<2x8x1xf32>
    %544 = arith.divf %542, %543 : vector<2x8x1xf32>
    %545 = vector.broadcast %544 : vector<2x8x1xf32> to vector<2x8x128xf32>
    %546 = arith.subf %540, %545 : vector<2x8x128xf32>
    %547 = arith.mulf %546, %546 : vector<2x8x128xf32>
    %cst_139 = arith.constant dense<0.000000e+00> : vector<2x8xf32>
    %548 = vector.multi_reduction <add>, %547, %cst_139 [2] : vector<2x8x128xf32> to vector<2x8xf32>
    %549 = vector.shape_cast %548 : vector<2x8xf32> to vector<2x8x1xf32>
    %cst_140 = arith.constant 1.280000e+02 : f32
    %550 = vector.broadcast %cst_140 : f32 to vector<2x8x1xf32>
    %551 = arith.divf %549, %550 : vector<2x8x1xf32>
    %cst_141 = arith.constant 9.99999974E-6 : f32
    %552 = vector.broadcast %cst_141 : f32 to vector<2x8x1xf32>
    %553 = arith.addf %551, %552 : vector<2x8x1xf32>
    %554 = math.rsqrt %553 : vector<2x8x1xf32>
    %555 = vector.broadcast %554 : vector<2x8x1xf32> to vector<2x8x128xf32>
    %556 = arith.mulf %546, %555 : vector<2x8x128xf32>
    %557 = vector.broadcast %343 : vector<2x1x128xf32> to vector<2x8x128xf32>
    %558 = arith.mulf %556, %557 : vector<2x8x128xf32>
    %559 = vector.broadcast %344 : vector<2x1x128xf32> to vector<2x8x128xf32>
    %560 = arith.addf %558, %559 : vector<2x8x128xf32>
    %561 = arith.truncf %560 : vector<2x8x128xf32> to vector<2x8x128xbf16>
    %cst_142 = arith.constant dense<0.000000e+00> : vector<2x8x256xf32>
    %562 = tpu.matmul %561, %339, %cst_142 {dimension_numbers = #tpu.dot_dimension_numbers<[2], [1], [1], [2], [0, 0, 0, 1, 1, 2], [0], [0]>} : vector<2x8x128xbf16>, vector<2x128x256xbf16>, vector<2x8x256xf32> -> vector<2x8x256xf32>
    %563 = vector.broadcast %340 : vector<2x1x256xf32> to vector<2x8x256xf32>
    %564 = arith.addf %562, %563 : vector<2x8x256xf32>
    %cst_143 = arith.constant 0.000000e+00 : f32
    %565 = vector.broadcast %cst_143 : f32 to vector<2x8x256xf32>
    %566 = arith.maximumf %564, %565 : vector<2x8x256xf32>
    %567 = arith.truncf %566 : vector<2x8x256xf32> to vector<2x8x256xbf16>
    %cst_144 = arith.constant dense<0.000000e+00> : vector<2x8x128xf32>
    %568 = tpu.matmul %567, %341, %cst_144 {dimension_numbers = #tpu.dot_dimension_numbers<[2], [1], [1], [2], [0, 0, 0, 1, 1, 2], [0], [0]>} : vector<2x8x256xbf16>, vector<2x256x128xbf16>, vector<2x8x128xf32> -> vector<2x8x128xf32>
    %569 = vector.broadcast %342 : vector<2x1x128xf32> to vector<2x8x128xf32>
    %570 = arith.addf %568, %569 : vector<2x8x128xf32>
    %571 = arith.addf %560, %570 : vector<2x8x128xf32>
    %cst_145 = arith.constant dense<0.000000e+00> : vector<2x8xf32>
    %572 = vector.multi_reduction <add>, %571, %cst_145 [2] : vector<2x8x128xf32> to vector<2x8xf32>
    %573 = vector.shape_cast %572 : vector<2x8xf32> to vector<2x8x1xf32>
    %cst_146 = arith.constant 1.280000e+02 : f32
    %574 = vector.broadcast %cst_146 : f32 to vector<2x8x1xf32>
    %575 = arith.divf %573, %574 : vector<2x8x1xf32>
    %576 = vector.broadcast %575 : vector<2x8x1xf32> to vector<2x8x128xf32>
    %577 = arith.subf %571, %576 : vector<2x8x128xf32>
    %578 = arith.mulf %577, %577 : vector<2x8x128xf32>
    %cst_147 = arith.constant dense<0.000000e+00> : vector<2x8xf32>
    %579 = vector.multi_reduction <add>, %578, %cst_147 [2] : vector<2x8x128xf32> to vector<2x8xf32>
    %580 = vector.shape_cast %579 : vector<2x8xf32> to vector<2x8x1xf32>
    %cst_148 = arith.constant 1.280000e+02 : f32
    %581 = vector.broadcast %cst_148 : f32 to vector<2x8x1xf32>
    %582 = arith.divf %580, %581 : vector<2x8x1xf32>
    %cst_149 = arith.constant 9.99999974E-6 : f32
    %583 = vector.broadcast %cst_149 : f32 to vector<2x8x1xf32>
    %584 = arith.addf %582, %583 : vector<2x8x1xf32>
    %585 = math.rsqrt %584 : vector<2x8x1xf32>
    %586 = vector.broadcast %585 : vector<2x8x1xf32> to vector<2x8x128xf32>
    %587 = arith.mulf %577, %586 : vector<2x8x128xf32>
    %588 = vector.broadcast %345 : vector<2x1x128xf32> to vector<2x8x128xf32>
    %589 = arith.mulf %587, %588 : vector<2x8x128xf32>
    %590 = vector.broadcast %346 : vector<2x1x128xf32> to vector<2x8x128xf32>
    %591 = arith.addf %589, %590 : vector<2x8x128xf32>
    %592 = vector.extract_strided_slice %591 {offsets = [0, 0, 0], sizes = [1, 8, 128], strides = [1, 1, 1]} : vector<2x8x128xf32> to vector<1x8x128xf32>
    %593 = vector.shape_cast %592 : vector<1x8x128xf32> to vector<8x128xf32>
    %594 = vector.extract_strided_slice %591 {offsets = [1, 0, 0], sizes = [1, 8, 128], strides = [1, 1, 1]} : vector<2x8x128xf32> to vector<1x8x128xf32>
    %595 = vector.shape_cast %594 : vector<1x8x128xf32> to vector<8x128xf32>
    %596 = vector.extract_strided_slice %595 {offsets = [0, 0], sizes = [4, 128], strides = [1, 1]} : vector<8x128xf32> to vector<4x128xf32>
    %597 = tpu.concatenate %596, %593 in 0 : vector<4x128xf32>, vector<8x128xf32> -> vector<12x128xf32>
    %c4_i32_150 = arith.constant 4 : i32
    %598 = tpu.memref_slice %arg50[%c4_i32_150] : memref<9x!tpu.dma_semaphore, #tpu.memory_space<semaphore_mem>> -> memref<1x!tpu.dma_semaphore, #tpu.memory_space<semaphore_mem>>
    %599 = tpu.memref_squeeze %598 : memref<1x!tpu.dma_semaphore, #tpu.memory_space<semaphore_mem>> -> memref<!tpu.dma_semaphore, #tpu.memory_space<semaphore_mem>>
    tpu.wait_dma2 semaphore(%599 : memref<!tpu.dma_semaphore, #tpu.memory_space<semaphore_mem>>) src(%arg35 : memref<128x384xbf16, #tpu.memory_space<any>>) dst(%arg45 : memref<128x384xbf16, #tpu.memory_space<vmem>>)
    %c5_i32_151 = arith.constant 5 : i32
    %600 = tpu.memref_slice %arg50[%c5_i32_151] : memref<9x!tpu.dma_semaphore, #tpu.memory_space<semaphore_mem>> -> memref<1x!tpu.dma_semaphore, #tpu.memory_space<semaphore_mem>>
    %601 = tpu.memref_squeeze %600 : memref<1x!tpu.dma_semaphore, #tpu.memory_space<semaphore_mem>> -> memref<!tpu.dma_semaphore, #tpu.memory_space<semaphore_mem>>
    tpu.wait_dma2 semaphore(%601 : memref<!tpu.dma_semaphore, #tpu.memory_space<semaphore_mem>>) src(%arg36 : memref<128x128xbf16, #tpu.memory_space<any>>) dst(%arg46 : memref<128x128xbf16, #tpu.memory_space<vmem>>)
    %602 = arith.truncf %597 : vector<12x128xf32> to vector<12x128xbf16>
    %c0_152 = arith.constant 0 : index
    %c0_153 = arith.constant 0 : index
    %603 = vector.load %arg45[%c0_152, %c0_153] : memref<128x384xbf16, #tpu.memory_space<vmem>>, vector<128x384xbf16>
    %cst_154 = arith.constant dense<0.000000e+00> : vector<12x384xf32>
    %604 = tpu.matmul %602, %603, %cst_154 {dimension_numbers = #tpu.dot_dimension_numbers<[1], [0], [0], [1], [0, 0, 1, 1], [], []>} : vector<12x128xbf16>, vector<128x384xbf16>, vector<12x384xf32> -> vector<12x384xf32>
    %c0_155 = arith.constant 0 : index
    %c0_156 = arith.constant 0 : index
    %605 = vector.load %arg26[%c0_155, %c0_156] : memref<1x384xf32, #tpu.memory_space<vmem>>, vector<1x384xf32>
    %606 = vector.broadcast %605 : vector<1x384xf32> to vector<12x384xf32>
    %607 = arith.addf %604, %606 : vector<12x384xf32>
    %608 = vector.extract_strided_slice %607 {offsets = [0, 0], sizes = [12, 16], strides = [1, 1]} : vector<12x384xf32> to vector<12x16xf32>
    %609 = vector.extract_strided_slice %607 {offsets = [0, 16], sizes = [12, 16], strides = [1, 1]} : vector<12x384xf32> to vector<12x16xf32>
    %610 = vector.extract_strided_slice %607 {offsets = [0, 32], sizes = [12, 16], strides = [1, 1]} : vector<12x384xf32> to vector<12x16xf32>
    %611 = vector.extract_strided_slice %607 {offsets = [0, 48], sizes = [12, 16], strides = [1, 1]} : vector<12x384xf32> to vector<12x16xf32>
    %612 = vector.extract_strided_slice %607 {offsets = [0, 64], sizes = [12, 16], strides = [1, 1]} : vector<12x384xf32> to vector<12x16xf32>
    %613 = vector.extract_strided_slice %607 {offsets = [0, 80], sizes = [12, 16], strides = [1, 1]} : vector<12x384xf32> to vector<12x16xf32>
    %614 = vector.extract_strided_slice %607 {offsets = [0, 96], sizes = [12, 16], strides = [1, 1]} : vector<12x384xf32> to vector<12x16xf32>
    %615 = vector.extract_strided_slice %607 {offsets = [0, 112], sizes = [12, 16], strides = [1, 1]} : vector<12x384xf32> to vector<12x16xf32>
    %616 = vector.shape_cast %608 : vector<12x16xf32> to vector<1x12x16xf32>
    %617 = vector.shape_cast %609 : vector<12x16xf32> to vector<1x12x16xf32>
    %618 = vector.shape_cast %610 : vector<12x16xf32> to vector<1x12x16xf32>
    %619 = vector.shape_cast %611 : vector<12x16xf32> to vector<1x12x16xf32>
    %620 = vector.shape_cast %612 : vector<12x16xf32> to vector<1x12x16xf32>
    %621 = vector.shape_cast %613 : vector<12x16xf32> to vector<1x12x16xf32>
    %622 = vector.shape_cast %614 : vector<12x16xf32> to vector<1x12x16xf32>
    %623 = vector.shape_cast %615 : vector<12x16xf32> to vector<1x12x16xf32>
    %624 = tpu.concatenate %616, %617, %618, %619, %620, %621, %622, %623 in 0 : vector<1x12x16xf32>, vector<1x12x16xf32>, vector<1x12x16xf32>, vector<1x12x16xf32>, vector<1x12x16xf32>, vector<1x12x16xf32>, vector<1x12x16xf32>, vector<1x12x16xf32> -> vector<8x12x16xf32>
    %cst_157 = arith.constant 2.500000e-01 : f32
    %625 = vector.broadcast %cst_157 : f32 to vector<8x12x16xf32>
    %626 = arith.mulf %624, %625 : vector<8x12x16xf32>
    %627 = vector.extract_strided_slice %607 {offsets = [0, 128], sizes = [12, 16], strides = [1, 1]} : vector<12x384xf32> to vector<12x16xf32>
    %628 = vector.extract_strided_slice %607 {offsets = [0, 144], sizes = [12, 16], strides = [1, 1]} : vector<12x384xf32> to vector<12x16xf32>
    %629 = vector.extract_strided_slice %607 {offsets = [0, 160], sizes = [12, 16], strides = [1, 1]} : vector<12x384xf32> to vector<12x16xf32>
    %630 = vector.extract_strided_slice %607 {offsets = [0, 176], sizes = [12, 16], strides = [1, 1]} : vector<12x384xf32> to vector<12x16xf32>
    %631 = vector.extract_strided_slice %607 {offsets = [0, 192], sizes = [12, 16], strides = [1, 1]} : vector<12x384xf32> to vector<12x16xf32>
    %632 = vector.extract_strided_slice %607 {offsets = [0, 208], sizes = [12, 16], strides = [1, 1]} : vector<12x384xf32> to vector<12x16xf32>
    %633 = vector.extract_strided_slice %607 {offsets = [0, 224], sizes = [12, 16], strides = [1, 1]} : vector<12x384xf32> to vector<12x16xf32>
    %634 = vector.extract_strided_slice %607 {offsets = [0, 240], sizes = [12, 16], strides = [1, 1]} : vector<12x384xf32> to vector<12x16xf32>
    %635 = vector.shape_cast %627 : vector<12x16xf32> to vector<1x12x16xf32>
    %636 = vector.shape_cast %628 : vector<12x16xf32> to vector<1x12x16xf32>
    %637 = vector.shape_cast %629 : vector<12x16xf32> to vector<1x12x16xf32>
    %638 = vector.shape_cast %630 : vector<12x16xf32> to vector<1x12x16xf32>
    %639 = vector.shape_cast %631 : vector<12x16xf32> to vector<1x12x16xf32>
    %640 = vector.shape_cast %632 : vector<12x16xf32> to vector<1x12x16xf32>
    %641 = vector.shape_cast %633 : vector<12x16xf32> to vector<1x12x16xf32>
    %642 = vector.shape_cast %634 : vector<12x16xf32> to vector<1x12x16xf32>
    %643 = tpu.concatenate %635, %636, %637, %638, %639, %640, %641, %642 in 0 : vector<1x12x16xf32>, vector<1x12x16xf32>, vector<1x12x16xf32>, vector<1x12x16xf32>, vector<1x12x16xf32>, vector<1x12x16xf32>, vector<1x12x16xf32>, vector<1x12x16xf32> -> vector<8x12x16xf32>
    %644 = vector.extract_strided_slice %607 {offsets = [0, 256], sizes = [12, 16], strides = [1, 1]} : vector<12x384xf32> to vector<12x16xf32>
    %645 = vector.extract_strided_slice %607 {offsets = [0, 272], sizes = [12, 16], strides = [1, 1]} : vector<12x384xf32> to vector<12x16xf32>
    %646 = vector.extract_strided_slice %607 {offsets = [0, 288], sizes = [12, 16], strides = [1, 1]} : vector<12x384xf32> to vector<12x16xf32>
    %647 = vector.extract_strided_slice %607 {offsets = [0, 304], sizes = [12, 16], strides = [1, 1]} : vector<12x384xf32> to vector<12x16xf32>
    %648 = vector.extract_strided_slice %607 {offsets = [0, 320], sizes = [12, 16], strides = [1, 1]} : vector<12x384xf32> to vector<12x16xf32>
    %649 = vector.extract_strided_slice %607 {offsets = [0, 336], sizes = [12, 16], strides = [1, 1]} : vector<12x384xf32> to vector<12x16xf32>
    %650 = vector.extract_strided_slice %607 {offsets = [0, 352], sizes = [12, 16], strides = [1, 1]} : vector<12x384xf32> to vector<12x16xf32>
    %651 = vector.extract_strided_slice %607 {offsets = [0, 368], sizes = [12, 16], strides = [1, 1]} : vector<12x384xf32> to vector<12x16xf32>
    %652 = vector.shape_cast %644 : vector<12x16xf32> to vector<1x12x16xf32>
    %653 = vector.shape_cast %645 : vector<12x16xf32> to vector<1x12x16xf32>
    %654 = vector.shape_cast %646 : vector<12x16xf32> to vector<1x12x16xf32>
    %655 = vector.shape_cast %647 : vector<12x16xf32> to vector<1x12x16xf32>
    %656 = vector.shape_cast %648 : vector<12x16xf32> to vector<1x12x16xf32>
    %657 = vector.shape_cast %649 : vector<12x16xf32> to vector<1x12x16xf32>
    %658 = vector.shape_cast %650 : vector<12x16xf32> to vector<1x12x16xf32>
    %659 = vector.shape_cast %651 : vector<12x16xf32> to vector<1x12x16xf32>
    %660 = tpu.concatenate %652, %653, %654, %655, %656, %657, %658, %659 in 0 : vector<1x12x16xf32>, vector<1x12x16xf32>, vector<1x12x16xf32>, vector<1x12x16xf32>, vector<1x12x16xf32>, vector<1x12x16xf32>, vector<1x12x16xf32>, vector<1x12x16xf32> -> vector<8x12x16xf32>
    %661 = arith.truncf %626 : vector<8x12x16xf32> to vector<8x12x16xbf16>
    %662 = arith.truncf %643 : vector<8x12x16xf32> to vector<8x12x16xbf16>
    %cst_158 = arith.constant dense<0.000000e+00> : vector<8x12x12xf32>
    %663 = tpu.matmul %661, %662, %cst_158 {dimension_numbers = #tpu.dot_dimension_numbers<[2], [2], [1], [1], [0, 0, 0, 1, 1, 1], [0], [0]>} : vector<8x12x16xbf16>, vector<8x12x16xbf16>, vector<8x12x12xf32> -> vector<8x12x12xf32>
    %664 = vector.shape_cast %45 : vector<12x12xf32> to vector<1x12x12xf32>
    %665 = vector.broadcast %664 : vector<1x12x12xf32> to vector<8x12x12xf32>
    %666 = arith.addf %663, %665 : vector<8x12x12xf32>
    %cst_159 = arith.constant dense<0xFF800000> : vector<8x12xf32>
    %667 = vector.multi_reduction <maximumf>, %666, %cst_159 [2] : vector<8x12x12xf32> to vector<8x12xf32>
    %668 = vector.shape_cast %667 : vector<8x12xf32> to vector<8x12x1xf32>
    %669 = vector.broadcast %668 : vector<8x12x1xf32> to vector<8x12x12xf32>
    %670 = arith.subf %666, %669 : vector<8x12x12xf32>
    %671 = math.exp %670 : vector<8x12x12xf32>
    %cst_160 = arith.constant dense<0.000000e+00> : vector<8x12xf32>
    %672 = vector.multi_reduction <add>, %671, %cst_160 [2] : vector<8x12x12xf32> to vector<8x12xf32>
    %673 = vector.shape_cast %672 : vector<8x12xf32> to vector<8x12x1xf32>
    %674 = tpu.reciprocal %673 {approx = true} : vector<8x12x1xf32> -> vector<8x12x1xf32>
    %675 = vector.broadcast %674 : vector<8x12x1xf32> to vector<8x12x12xf32>
    %676 = arith.mulf %671, %675 : vector<8x12x12xf32>
    %677 = arith.truncf %676 : vector<8x12x12xf32> to vector<8x12x12xbf16>
    %678 = arith.truncf %660 : vector<8x12x16xf32> to vector<8x12x16xbf16>
    %cst_161 = arith.constant dense<0.000000e+00> : vector<8x12x16xf32>
    %679 = tpu.matmul %677, %678, %cst_161 {dimension_numbers = #tpu.dot_dimension_numbers<[2], [1], [1], [2], [0, 0, 0, 1, 1, 2], [0], [0]>} : vector<8x12x12xbf16>, vector<8x12x16xbf16>, vector<8x12x16xf32> -> vector<8x12x16xf32>
    %680 = vector.extract_strided_slice %679 {offsets = [0, 0, 0], sizes = [1, 12, 16], strides = [1, 1, 1]} : vector<8x12x16xf32> to vector<1x12x16xf32>
    %681 = vector.shape_cast %680 : vector<1x12x16xf32> to vector<12x16xf32>
    %682 = vector.extract_strided_slice %679 {offsets = [1, 0, 0], sizes = [1, 12, 16], strides = [1, 1, 1]} : vector<8x12x16xf32> to vector<1x12x16xf32>
    %683 = vector.shape_cast %682 : vector<1x12x16xf32> to vector<12x16xf32>
    %684 = vector.extract_strided_slice %679 {offsets = [2, 0, 0], sizes = [1, 12, 16], strides = [1, 1, 1]} : vector<8x12x16xf32> to vector<1x12x16xf32>
    %685 = vector.shape_cast %684 : vector<1x12x16xf32> to vector<12x16xf32>
    %686 = vector.extract_strided_slice %679 {offsets = [3, 0, 0], sizes = [1, 12, 16], strides = [1, 1, 1]} : vector<8x12x16xf32> to vector<1x12x16xf32>
    %687 = vector.shape_cast %686 : vector<1x12x16xf32> to vector<12x16xf32>
    %688 = vector.extract_strided_slice %679 {offsets = [4, 0, 0], sizes = [1, 12, 16], strides = [1, 1, 1]} : vector<8x12x16xf32> to vector<1x12x16xf32>
    %689 = vector.shape_cast %688 : vector<1x12x16xf32> to vector<12x16xf32>
    %690 = vector.extract_strided_slice %679 {offsets = [5, 0, 0], sizes = [1, 12, 16], strides = [1, 1, 1]} : vector<8x12x16xf32> to vector<1x12x16xf32>
    %691 = vector.shape_cast %690 : vector<1x12x16xf32> to vector<12x16xf32>
    %692 = vector.extract_strided_slice %679 {offsets = [6, 0, 0], sizes = [1, 12, 16], strides = [1, 1, 1]} : vector<8x12x16xf32> to vector<1x12x16xf32>
    %693 = vector.shape_cast %692 : vector<1x12x16xf32> to vector<12x16xf32>
    %694 = vector.extract_strided_slice %679 {offsets = [7, 0, 0], sizes = [1, 12, 16], strides = [1, 1, 1]} : vector<8x12x16xf32> to vector<1x12x16xf32>
    %695 = vector.shape_cast %694 : vector<1x12x16xf32> to vector<12x16xf32>
    %696 = tpu.concatenate %681, %683, %685, %687, %689, %691, %693, %695 in 1 : vector<12x16xf32>, vector<12x16xf32>, vector<12x16xf32>, vector<12x16xf32>, vector<12x16xf32>, vector<12x16xf32>, vector<12x16xf32>, vector<12x16xf32> -> vector<12x128xf32>
    %697 = arith.truncf %696 : vector<12x128xf32> to vector<12x128xbf16>
    %c0_162 = arith.constant 0 : index
    %c0_163 = arith.constant 0 : index
    %698 = vector.load %arg46[%c0_162, %c0_163] : memref<128x128xbf16, #tpu.memory_space<vmem>>, vector<128x128xbf16>
    %cst_164 = arith.constant dense<0.000000e+00> : vector<12x128xf32>
    %699 = tpu.matmul %697, %698, %cst_164 {dimension_numbers = #tpu.dot_dimension_numbers<[1], [0], [0], [1], [0, 0, 1, 1], [], []>} : vector<12x128xbf16>, vector<128x128xbf16>, vector<12x128xf32> -> vector<12x128xf32>
    %c0_165 = arith.constant 0 : index
    %c0_166 = arith.constant 0 : index
    %700 = vector.load %arg27[%c0_165, %c0_166] : memref<1x128xf32, #tpu.memory_space<vmem>>, vector<1x128xf32>
    %701 = vector.broadcast %700 : vector<1x128xf32> to vector<12x128xf32>
    %702 = arith.addf %699, %701 : vector<12x128xf32>
    %c6_i32_167 = arith.constant 6 : i32
    %703 = tpu.memref_slice %arg50[%c6_i32_167] : memref<9x!tpu.dma_semaphore, #tpu.memory_space<semaphore_mem>> -> memref<1x!tpu.dma_semaphore, #tpu.memory_space<semaphore_mem>>
    %704 = tpu.memref_squeeze %703 : memref<1x!tpu.dma_semaphore, #tpu.memory_space<semaphore_mem>> -> memref<!tpu.dma_semaphore, #tpu.memory_space<semaphore_mem>>
    tpu.wait_dma2 semaphore(%704 : memref<!tpu.dma_semaphore, #tpu.memory_space<semaphore_mem>>) src(%arg37 : memref<384x64xbf16, #tpu.memory_space<any>>) dst(%arg47 : memref<384x64xbf16, #tpu.memory_space<vmem>>)
    %c7_i32_168 = arith.constant 7 : i32
    %705 = tpu.memref_slice %arg50[%c7_i32_168] : memref<9x!tpu.dma_semaphore, #tpu.memory_space<semaphore_mem>> -> memref<1x!tpu.dma_semaphore, #tpu.memory_space<semaphore_mem>>
    %706 = tpu.memref_squeeze %705 : memref<1x!tpu.dma_semaphore, #tpu.memory_space<semaphore_mem>> -> memref<!tpu.dma_semaphore, #tpu.memory_space<semaphore_mem>>
    tpu.wait_dma2 semaphore(%706 : memref<!tpu.dma_semaphore, #tpu.memory_space<semaphore_mem>>) src(%arg38 : memref<64x32xbf16, #tpu.memory_space<any>>) dst(%arg48 : memref<64x32xbf16, #tpu.memory_space<vmem>>)
    %c8_i32_169 = arith.constant 8 : i32
    %707 = tpu.memref_slice %arg50[%c8_i32_169] : memref<9x!tpu.dma_semaphore, #tpu.memory_space<semaphore_mem>> -> memref<1x!tpu.dma_semaphore, #tpu.memory_space<semaphore_mem>>
    %708 = tpu.memref_squeeze %707 : memref<1x!tpu.dma_semaphore, #tpu.memory_space<semaphore_mem>> -> memref<!tpu.dma_semaphore, #tpu.memory_space<semaphore_mem>>
    tpu.wait_dma2 semaphore(%708 : memref<!tpu.dma_semaphore, #tpu.memory_space<semaphore_mem>>) src(%arg39 : memref<32x2xbf16, #tpu.memory_space<any>>) dst(%arg49 : memref<32x2xbf16, #tpu.memory_space<vmem>>)
    %709 = vector.extract_strided_slice %702 {offsets = [0, 0], sizes = [4, 128], strides = [1, 1]} : vector<12x128xf32> to vector<4x128xf32>
    %710 = vector.extract_strided_slice %702 {offsets = [4, 0], sizes = [4, 128], strides = [1, 1]} : vector<12x128xf32> to vector<4x128xf32>
    %711 = vector.extract_strided_slice %702 {offsets = [8, 0], sizes = [4, 128], strides = [1, 1]} : vector<12x128xf32> to vector<4x128xf32>
    %712 = tpu.concatenate %709, %710, %711 in 1 : vector<4x128xf32>, vector<4x128xf32>, vector<4x128xf32> -> vector<4x384xf32>
    %713 = arith.truncf %712 : vector<4x384xf32> to vector<4x384xbf16>
    %c0_170 = arith.constant 0 : index
    %c0_171 = arith.constant 0 : index
    %714 = vector.load %arg47[%c0_170, %c0_171] : memref<384x64xbf16, #tpu.memory_space<vmem>>, vector<384x64xbf16>
    %cst_172 = arith.constant dense<0.000000e+00> : vector<4x64xf32>
    %715 = tpu.matmul %713, %714, %cst_172 {dimension_numbers = #tpu.dot_dimension_numbers<[1], [0], [0], [1], [0, 0, 1, 1], [], []>} : vector<4x384xbf16>, vector<384x64xbf16>, vector<4x64xf32> -> vector<4x64xf32>
    %c0_173 = arith.constant 0 : index
    %c0_174 = arith.constant 0 : index
    %716 = vector.load %arg28[%c0_173, %c0_174] : memref<1x64xf32, #tpu.memory_space<vmem>>, vector<1x64xf32>
    %717 = vector.broadcast %716 : vector<1x64xf32> to vector<4x64xf32>
    %718 = arith.addf %715, %717 : vector<4x64xf32>
    %719 = arith.truncf %718 : vector<4x64xf32> to vector<4x64xbf16>
    %c0_175 = arith.constant 0 : index
    %c0_176 = arith.constant 0 : index
    %720 = vector.load %arg48[%c0_175, %c0_176] : memref<64x32xbf16, #tpu.memory_space<vmem>>, vector<64x32xbf16>
    %cst_177 = arith.constant dense<0.000000e+00> : vector<4x32xf32>
    %721 = tpu.matmul %719, %720, %cst_177 {dimension_numbers = #tpu.dot_dimension_numbers<[1], [0], [0], [1], [0, 0, 1, 1], [], []>} : vector<4x64xbf16>, vector<64x32xbf16>, vector<4x32xf32> -> vector<4x32xf32>
    %c0_178 = arith.constant 0 : index
    %c0_179 = arith.constant 0 : index
    %722 = vector.load %arg29[%c0_178, %c0_179] : memref<1x32xf32, #tpu.memory_space<vmem>>, vector<1x32xf32>
    %723 = vector.broadcast %722 : vector<1x32xf32> to vector<4x32xf32>
    %724 = arith.addf %721, %723 : vector<4x32xf32>
    %cst_180 = arith.constant 0.000000e+00 : f32
    %725 = vector.broadcast %cst_180 : f32 to vector<4x32xf32>
    %726 = arith.maximumf %724, %725 : vector<4x32xf32>
    %727 = arith.truncf %726 : vector<4x32xf32> to vector<4x32xbf16>
    %c0_181 = arith.constant 0 : index
    %c0_182 = arith.constant 0 : index
    %728 = vector.load %arg49[%c0_181, %c0_182] : memref<32x2xbf16, #tpu.memory_space<vmem>>, vector<32x2xbf16>
    %cst_183 = arith.constant dense<0.000000e+00> : vector<4x2xf32>
    %729 = tpu.matmul %727, %728, %cst_183 {dimension_numbers = #tpu.dot_dimension_numbers<[1], [0], [0], [1], [0, 0, 1, 1], [], []>} : vector<4x32xbf16>, vector<32x2xbf16>, vector<4x2xf32> -> vector<4x2xf32>
    %c0_184 = arith.constant 0 : index
    %c0_185 = arith.constant 0 : index
    %730 = vector.load %arg30[%c0_184, %c0_185] : memref<1x2xf32, #tpu.memory_space<vmem>>, vector<1x2xf32>
    %731 = vector.broadcast %730 : vector<1x2xf32> to vector<4x2xf32>
    %732 = arith.addf %729, %731 : vector<4x2xf32>
    %733 = vector.extract_strided_slice %64 {offsets = [0, 0], sizes = [4, 1], strides = [1, 1]} : vector<8x1xf32> to vector<4x1xf32>
    %734 = vector.extract_strided_slice %64 {offsets = [4, 0], sizes = [4, 1], strides = [1, 1]} : vector<8x1xf32> to vector<4x1xf32>
    %735 = tpu.concatenate %732, %733, %734 in 1 : vector<4x2xf32>, vector<4x1xf32>, vector<4x1xf32> -> vector<4x4xf32>
    %c0_186 = arith.constant 0 : index
    %c0_187 = arith.constant 0 : index
    %736 = vector.load %arg40[%c0_186, %c0_187] : memref<4x4xf32, #tpu.memory_space<vmem>>, vector<4x4xf32>
    tpu.vector_store %arg40[%c0_186, %c0_187], %735 {strides = array<i32>} : memref<4x4xf32, #tpu.memory_space<vmem>>, vector<4x4xf32>,
    return
  }
}

</mosaic_0001>

<llo_original>
// kernel: forward.1
$region0: #{forward.1}
  #allocation0 [shape = 'u32[]', space=smem, size = 0x4, offset = 0x4, fixed_abs, tag = 'smem constant byte address 0x4 - core index']
  #allocation1 [shape = 'u32[144,128]{1,0:T(1,128)}', space=vmem, size = 0x12000, scoped, tag = 'internal scratch']
  #allocation2 [shape = 'bf16[2,128,384]{2,1,0:T(16,128)(2,1)}', space=vmem, size = 0x30000, scoped, tag = 'scratch operand']
  #allocation3 [shape = 'bf16[2,128,128]{2,1,0:T(16,128)(2,1)}', space=vmem, size = 0x10000, scoped, tag = 'scratch operand']
  #allocation4 [shape = 'bf16[2,128,256]{2,1,0:T(16,128)(2,1)}', space=vmem, size = 0x20000, scoped, tag = 'scratch operand']
  #allocation5 [shape = 'bf16[2,256,128]{2,1,0:T(16,128)(2,1)}', space=vmem, size = 0x20000, scoped, tag = 'scratch operand']
  #allocation6 [shape = 'bf16[128,384]{1,0:T(16,128)(2,1)}', space=vmem, size = 0x18000, scoped, tag = 'scratch operand']
  #allocation7 [shape = 'bf16[128,128]{1,0:T(16,128)(2,1)}', space=vmem, size = 0x8000, scoped, tag = 'scratch operand']
  #allocation8 [shape = 'bf16[384,64]{1,0:T(16,128)(2,1)}', space=vmem, size = 0x18000, scoped, tag = 'scratch operand']
  #allocation9 [shape = 'bf16[64,32]{1,0:T(16,128)(2,1)}', space=vmem, size = 0x4000, scoped, tag = 'scratch operand']
  #allocation10 [shape = 'bf16[32,2]{1,0:T(16,128)(2,1)}', space=vmem, size = 0x2000, scoped, tag = 'scratch operand']
  #allocation11 [shape = 's32[9]{0}', space=sflag, size = 0x24, scoped, tag = 'scratch operand']
  #allocation12 [shape = 'f32[1,1]{1,0:T(1,128)S(1)}', space=vmem, size = 0x200, scoped, tag = 'scoped memory for forward.1']
  #allocation41 [shape = 's32[]', space=sflag, size = 0x4, offset = 0, fixed_abs, tag = 'sflag constant byte address 0x0 - dummy sync flag']
  #allocation43 [shape = 's32[]', space=sflag, size = 0x4, offset = 0, fixed_abs, tag = 'sflag constant byte address 0x0 - dummy sync flag']
  #allocation44 [shape = 's32[]', space=sflag, size = 0x4, offset = 0, fixed_abs, tag = 'sflag constant byte address 0x0 - dummy sync flag']
  #allocation45 [shape = 'u32[]', space=smem, size = 0x4, offset = 0x44, fixed_abs, tag = 'smem constant byte address 0x44 - assertion arg 0']
  #allocation46 [shape = 'u32[]', space=smem, size = 0x4, offset = 0x48, fixed_abs, tag = 'smem constant byte address 0x48 - assertion arg 1']
  #allocation47 [shape = 's32[]', space=sflag, size = 0x4, offset = 0, fixed_abs, tag = 'sflag constant byte address 0x0 - dummy sync flag']
  #allocation48 [shape = 's32[]', space=sflag, size = 0x4, offset = 0, fixed_abs, tag = 'sflag constant byte address 0x0 - dummy sync flag']
  #allocation49 [shape = 's32[]', space=sflag, size = 0x4, offset = 0, fixed_abs, tag = 'sflag constant byte address 0x0 - dummy sync flag']
  #allocation50 [shape = 's32[]', space=sflag, size = 0x4, offset = 0, fixed_abs, tag = 'sflag constant byte address 0x0 - dummy sync flag']
  #allocation52 [shape = 's32[]', space=sflag, size = 0x4, offset = 0, fixed_abs, tag = 'sflag constant byte address 0x0 - dummy sync flag']
  #allocation53 [shape = 's32[]', space=sflag, size = 0x4, offset = 0, fixed_abs, tag = 'sflag constant byte address 0x0 - dummy sync flag']
  #allocation54 [shape = 's32[]', space=sflag, size = 0x4, offset = 0, fixed_abs, tag = 'sflag constant byte address 0x0 - dummy sync flag']
  #allocation55 [shape = 's32[]', space=sflag, size = 0x4, offset = 0, fixed_abs, tag = 'sflag constant byte address 0x0 - dummy sync flag']
  #allocation56 [shape = 's32[]', space=sflag, size = 0x4, offset = 0, fixed_abs, tag = 'sflag constant byte address 0x0 - dummy sync flag']
  %s0 = inlined_call_operand.smem [shape: u32[41], index: -1, kind: input, shape index: {}]
  %s1 = sld [smem:[%s0]]
  %s2 = scalar_lea.smem %s0, 1
  %s3 = sld [smem:[%s2]]
  %s4 = scalar_lea.smem %s0, 2
  %s5 = sld [smem:[%s4]]
  %s6 = scalar_lea.smem %s0, 3
  %s7 = sld [smem:[%s6]]
  %s8 = scalar_lea.smem %s0, 4
  %s9 = sld [smem:[%s8]]
  %s10 = scalar_lea.smem %s0, 5
  %s11 = sld [smem:[%s10]]
  %s12 = scalar_lea.smem %s0, 6
  %s13 = sld [smem:[%s12]]
  %s14 = scalar_lea.smem %s0, 7
  %s15 = sld [smem:[%s14]]
  %s16 = scalar_lea.smem %s0, 8
  %s17 = sld [smem:[%s16]]
  %s18 = scalar_lea.smem %s0, 9
  %s19 = sld [smem:[%s18]]
  %s20 = scalar_lea.smem %s0, 10
  %s21 = sld [smem:[%s20]]
  %s22 = scalar_lea.smem %s0, 11
  %s23 = sld [smem:[%s22]]
  %s24 = scalar_lea.smem %s0, 12
  %s25 = sld [smem:[%s24]]
  %s26 = scalar_lea.smem %s0, 13
  %s27 = sld [smem:[%s26]]
  %s28 = scalar_lea.smem %s0, 14
  %s29 = sld [smem:[%s28]]
  %s30 = scalar_lea.smem %s0, 15
  %s31 = sld [smem:[%s30]]
  %s32 = scalar_lea.smem %s0, 16
  %s33 = sld [smem:[%s32]]
  %s34 = scalar_lea.smem %s0, 17
  %s35 = sld [smem:[%s34]]
  %s36 = scalar_lea.smem %s0, 18
  %s37 = sld [smem:[%s36]]
  %s38 = scalar_lea.smem %s0, 19
  %s39 = sld [smem:[%s38]]
  %s40 = scalar_lea.smem %s0, 20
  %s41 = sld [smem:[%s40]]
  %s42 = scalar_lea.smem %s0, 21
  %s43 = sld [smem:[%s42]]
  %s44 = scalar_lea.smem %s0, 22
  %s45 = sld [smem:[%s44]]
  %s46 = scalar_lea.smem %s0, 23
  %s47 = sld [smem:[%s46]]
  %s48 = scalar_lea.smem %s0, 24
  %s49 = sld [smem:[%s48]]
  %s50 = scalar_lea.smem %s0, 25
  %s51 = sld [smem:[%s50]]
  %s52 = scalar_lea.smem %s0, 26
  %s53 = sld [smem:[%s52]]
  %s54 = scalar_lea.smem %s0, 27
  %s55 = sld [smem:[%s54]]
  %s56 = scalar_lea.smem %s0, 28
  %s57 = sld [smem:[%s56]]
  %s58 = scalar_lea.smem %s0, 29
  %s59 = sld [smem:[%s58]]
  %s60 = scalar_lea.smem %s0, 30
  %s61 = sld [smem:[%s60]]
  %s62 = scalar_lea.smem %s0, 31
  %s63 = sld [smem:[%s62]]
  %s64 = scalar_lea.smem %s0, 32
  %s65 = sld [smem:[%s64]]
  %s66 = scalar_lea.smem %s0, 33
  %s67 = sld [smem:[%s66]]
  %s68 = scalar_lea.smem %s0, 34
  %s69 = sld [smem:[%s68]]
  %s70 = scalar_lea.smem %s0, 35
  %s71 = sld [smem:[%s70]]
  %s72 = scalar_lea.smem %s0, 36
  %s73 = sld [smem:[%s72]]
  %s74 = scalar_lea.smem %s0, 37
  %s75 = sld [smem:[%s74]]
  %s76 = scalar_lea.smem %s0, 38
  %s77 = sld [smem:[%s76]]
  %s78 = scalar_lea.smem %s0, 39
  %s79 = sld [smem:[%s78]]
  %s80 = scalar_lea.smem %s0, 40
  %s81 = sld [smem:[%s80]]
  %s82 = sld [smem:[#allocation0]]
  $region357: #{forward.1} parent=0
    _
  %s84 = ssub.s32 1, %s82
  %s85 = scalar_select 0, %s84, %s82
  %v86 = vstv %s11
  %87 = vst [vmem:[#allocation12] sm:$0x1] %v86
  $region1: #{forward.1} parent=0
    #allocation13 [shape = 'u8[512]{0}', space=vmem, size = 0x400, scoped, tag = 'input window, operand 3, single buffered']
    #allocation14 [shape = 's32[1]{0}', space=sflag, size = 0x4, scoped, tag = 'scoped memory for forward.1']
    #allocation15 [shape = 'u8[65536]{0}', space=vmem, size = 0x10000, scoped, tag = 'input window, operand 8, single buffered']
    #allocation16 [shape = 's32[1]{0}', space=sflag, size = 0x4, scoped, tag = 'scoped memory for forward.1']
    #allocation17 [shape = 'u8[1024]{0}', space=vmem, size = 0x400, scoped, tag = 'input window, operand 9, single buffered']
    #allocation18 [shape = 'u8[131072]{0}', space=vmem, size = 0x20000, scoped, tag = 'input window, operand 10, single buffered']
    #allocation19 [shape = 's32[1]{0}', space=sflag, size = 0x4, scoped, tag = 'scoped memory for forward.1']
    #allocation20 [shape = 'u8[2048]{0}', space=vmem, size = 0x800, scoped, tag = 'input window, operand 11, single buffered']
    #allocation21 [shape = 'u8[131072]{0}', space=vmem, size = 0x20000, scoped, tag = 'input window, operand 12, single buffered']
    #allocation22 [shape = 's32[1]{0}', space=sflag, size = 0x4, scoped, tag = 'scoped memory for forward.1']
    #allocation23 [shape = 'u8[1024]{0}', space=vmem, size = 0x400, scoped, tag = 'input window, operand 13, single buffered']
    #allocation24 [shape = 'u8[1024]{0}', space=vmem, size = 0x400, scoped, tag = 'input window, operand 14, single buffered']
    #allocation25 [shape = 's32[1]{0}', space=sflag, size = 0x4, scoped, tag = 'scoped memory for forward.1']
    #allocation26 [shape = 'u8[1024]{0}', space=vmem, size = 0x400, scoped, tag = 'input window, operand 15, single buffered']
    #allocation27 [shape = 'u8[1024]{0}', space=vmem, size = 0x400, scoped, tag = 'input window, operand 16, single buffered']
    #allocation28 [shape = 's32[1]{0}', space=sflag, size = 0x4, scoped, tag = 'scoped memory for forward.1']
    #allocation29 [shape = 'u8[1024]{0}', space=vmem, size = 0x400, scoped, tag = 'input window, operand 17, single buffered']
    #allocation30 [shape = 'u8[3072]{0}', space=vmem, size = 0xc00, scoped, tag = 'input window, operand 18, single buffered']
    #allocation31 [shape = 's32[1]{0}', space=sflag, size = 0x4, scoped, tag = 'scoped memory for forward.1']
    #allocation32 [shape = 'u8[2048]{0}', space=vmem, size = 0x800, scoped, tag = 'input window, operand 20, single buffered']
    #allocation33 [shape = 'u8[1536]{0}', space=vmem, size = 0x800, scoped, tag = 'input window, operand 26, single buffered']
    #allocation34 [shape = 's32[1]{0}', space=sflag, size = 0x4, scoped, tag = 'scoped memory for forward.1']
    #allocation35 [shape = 'u8[512]{0}', space=vmem, size = 0x400, scoped, tag = 'input window, operand 27, single buffered']
    #allocation36 [shape = 'u8[512]{0}', space=vmem, size = 0x400, scoped, tag = 'input window, operand 28, single buffered']
    #allocation37 [shape = 's32[1]{0}', space=sflag, size = 0x4, scoped, tag = 'scoped memory for forward.1']
    #allocation38 [shape = 'u8[512]{0}', space=vmem, size = 0x400, scoped, tag = 'input window, operand 29, single buffered']
    #allocation39 [shape = 'u8[512]{0}', space=vmem, size = 0x400, scoped, tag = 'input window, operand 30, single buffered']
    #allocation40 [shape = 's32[1]{0}', space=sflag, size = 0x4, scoped, tag = 'scoped memory for forward.1']
    #allocation42 [shape = 'u32[9]{0}', space=smem, size = 0x24, scoped, tag = 'DMA stride descriptor']
    #allocation51 [shape = 'u32[9]{0}', space=smem, size = 0x24, scoped, tag = 'DMA stride descriptor']
    %88 = vsyncpa [#allocation14], 0
    %89 = vsyncpa [#allocation16], 0
    %90 = vsyncpa [#allocation19], 0
    %91 = vsyncpa [#allocation22], 0
    %92 = vsyncpa [#allocation25], 0
    %93 = vsyncpa [#allocation28], 0
    %94 = vsyncpa [#allocation31], 0
    %95 = vsyncpa [#allocation34], 0
    %96 = vsyncpa [#allocation37], 0
    %97 = vsyncpa [#allocation40], 0
    // Predicated region
    $region2: #{forward.1} parent=1 // pred_check
      _
    $region3: #{forward.1} parent=1 // pred_check_branch
      %99 = sbr.rel (0) target = $region5
    $region4: #{forward.1} parent=1 // pred_region
      _
    $region5: #{forward.1} parent=1 // pred_fallthru
      _
    // Predicated region
    $region6: #{forward.1} parent=1 // pred_check
      _
    $region7: #{forward.1} parent=1 // pred_check_branch
      %101 = sbr.rel (0) target = $region9
    $region8: #{forward.1} parent=1 // pred_region
      _
    $region9: #{forward.1} parent=1 // pred_fallthru
      _
    // Predicated region
    $region10: #{forward.1} parent=1 // pred_check
      _
    $region11: #{forward.1} parent=1 // pred_check_branch
      %103 = sbr.rel (0) target = $region13
    $region12: #{forward.1} parent=1 // pred_region
      _
    $region13: #{forward.1} parent=1 // pred_fallthru
      _
    // Predicated region
    $region14: #{forward.1} parent=1 // pred_check
      _
    $region15: #{forward.1} parent=1 // pred_check_branch
      %105 = sbr.rel (0) target = $region17
    $region16: #{forward.1} parent=1 // pred_region
      %s107 = ssub.s32 16, 16
      %108 = vsyncadd [#allocation14], %s107
      %s110 = sshll.u32 [#allocation13], 4
      %s111 = int_to_ptr.vmem [resolvable:$true] %s110
      %113 = dma.hbm_to_vmem [thread:$0]  %s7, 16, %s111, [#allocation14]
    $region17: #{forward.1} parent=1 // pred_fallthru
      _
    // Predicated region
    $region18: #{forward.1} parent=1 // pred_check
      _
    $region19: #{forward.1} parent=1 // pred_check_branch
      %115 = sbr.rel (0) target = $region21
    $region20: #{forward.1} parent=1 // pred_region
      _
    $region21: #{forward.1} parent=1 // pred_fallthru
      _
    // Predicated region
    $region22: #{forward.1} parent=1 // pred_check
      _
    $region23: #{forward.1} parent=1 // pred_check_branch
      %117 = sbr.rel (0) target = $region25
    $region24: #{forward.1} parent=1 // pred_region
      _
    $region25: #{forward.1} parent=1 // pred_fallthru
      _
    // Predicated region
    $region26: #{forward.1} parent=1 // pred_check
      _
    $region27: #{forward.1} parent=1 // pred_check_branch
      %119 = sbr.rel (0) target = $region29
    $region28: #{forward.1} parent=1 // pred_region
      _
    $region29: #{forward.1} parent=1 // pred_fallthru
      _
    // Predicated region
    $region30: #{forward.1} parent=1 // pred_check
      _
    $region31: #{forward.1} parent=1 // pred_check_branch
      %121 = sbr.rel (0) target = $region33
    $region32: #{forward.1} parent=1 // pred_region
      _
    $region33: #{forward.1} parent=1 // pred_fallthru
      _
    // Predicated region
    $region34: #{forward.1} parent=1 // pred_check
      _
    $region35: #{forward.1} parent=1 // pred_check_branch
      %123 = sbr.rel (0) target = $region37
    $region36: #{forward.1} parent=1 // pred_region
      %s125 = ssub.s32 2048, 2048
      %126 = vsyncadd [#allocation16], %s125
      %s127 = sshll.u32 [#allocation15], 4
      %s128 = int_to_ptr.vmem [resolvable:$true] %s127
      %133 = dma.hbm_to_vmem [thread:$0]  %s17, 2048, %s128, [#allocation16], 64, 64, 4
    $region37: #{forward.1} parent=1 // pred_fallthru
      _
    // Predicated region
    $region38: #{forward.1} parent=1 // pred_check
      _
    $region39: #{forward.1} parent=1 // pred_check_branch
      %135 = sbr.rel (0) target = $region41
    $region40: #{forward.1} parent=1 // pred_region
      %s137 = ssub.s32 32, 32
      %138 = vsyncadd [#allocation16], %s137
      %s139 = sshll.u32 [#allocation17], 4
      %s140 = int_to_ptr.vmem [resolvable:$true] %s139
      %145 = dma.hbm_to_vmem [thread:$0]  %s19, 32, %s140, [#allocation16], 16, 16, 1
    $region41: #{forward.1} parent=1 // pred_fallthru
      _
    // Predicated region
    $region42: #{forward.1} parent=1 // pred_check
      _
    $region43: #{forward.1} parent=1 // pred_check_branch
      %147 = sbr.rel (0) target = $region45
    $region44: #{forward.1} parent=1 // pred_region
      %s149 = ssub.s32 4096, 4096
      %150 = vsyncadd [#allocation19], %s149
      %s151 = sshll.u32 [#allocation18], 4
      %s152 = int_to_ptr.vmem [resolvable:$true] %s151
      %157 = dma.hbm_to_vmem [thread:$0]  %s21, 4096, %s152, [#allocation19], 128, 128, 8
    $region45: #{forward.1} parent=1 // pred_fallthru
      _
    // Predicated region
    $region46: #{forward.1} parent=1 // pred_check
      _
    $region47: #{forward.1} parent=1 // pred_check_branch
      %159 = sbr.rel (0) target = $region49
    $region48: #{forward.1} parent=1 // pred_region
      %s161 = ssub.s32 64, 64
      %162 = vsyncadd [#allocation19], %s161
      %s163 = sshll.u32 [#allocation20], 4
      %s164 = int_to_ptr.vmem [resolvable:$true] %s163
      %169 = dma.hbm_to_vmem [thread:$0]  %s23, 64, %s164, [#allocation19], 32, 32, 2
    $region49: #{forward.1} parent=1 // pred_fallthru
      _
    // Predicated region
    $region50: #{forward.1} parent=1 // pred_check
      _
    $region51: #{forward.1} parent=1 // pred_check_branch
      %171 = sbr.rel (0) target = $region53
    $region52: #{forward.1} parent=1 // pred_region
      %s173 = ssub.s32 4096, 4096
      %174 = vsyncadd [#allocation22], %s173
      %s175 = sshll.u32 [#allocation21], 4
      %s176 = int_to_ptr.vmem [resolvable:$true] %s175
      %181 = dma.hbm_to_vmem [thread:$0]  %s25, 4096, %s176, [#allocation22], 64, 64, 4
    $region53: #{forward.1} parent=1 // pred_fallthru
      _
    // Predicated region
    $region54: #{forward.1} parent=1 // pred_check
      _
    $region55: #{forward.1} parent=1 // pred_check_branch
      %183 = sbr.rel (0) target = $region57
    $region56: #{forward.1} parent=1 // pred_region
      %s185 = ssub.s32 32, 32
      %186 = vsyncadd [#allocation22], %s185
      %s187 = sshll.u32 [#allocation23], 4
      %s188 = int_to_ptr.vmem [resolvable:$true] %s187
      %193 = dma.hbm_to_vmem [thread:$0]  %s27, 32, %s188, [#allocation22], 16, 16, 1
    $region57: #{forward.1} parent=1 // pred_fallthru
      _
    // Predicated region
    $region58: #{forward.1} parent=1 // pred_check
      _
    $region59: #{forward.1} parent=1 // pred_check_branch
      %195 = sbr.rel (0) target = $region61
    $region60: #{forward.1} parent=1 // pred_region
      %s197 = ssub.s32 32, 32
      %198 = vsyncadd [#allocation25], %s197
      %s199 = sshll.u32 [#allocation24], 4
      %s200 = int_to_ptr.vmem [resolvable:$true] %s199
      %205 = dma.hbm_to_vmem [thread:$0]  %s29, 32, %s200, [#allocation25], 16, 16, 1
    $region61: #{forward.1} parent=1 // pred_fallthru
      _
    // Predicated region
    $region62: #{forward.1} parent=1 // pred_check
      _
    $region63: #{forward.1} parent=1 // pred_check_branch
      %207 = sbr.rel (0) target = $region65
    $region64: #{forward.1} parent=1 // pred_region
      %s209 = ssub.s32 32, 32
      %210 = vsyncadd [#allocation25], %s209
      %s211 = sshll.u32 [#allocation26], 4
      %s212 = int_to_ptr.vmem [resolvable:$true] %s211
      %217 = dma.hbm_to_vmem [thread:$0]  %s31, 32, %s212, [#allocation25], 16, 16, 1
    $region65: #{forward.1} parent=1 // pred_fallthru
      _
    // Predicated region
    $region66: #{forward.1} parent=1 // pred_check
      _
    $region67: #{forward.1} parent=1 // pred_check_branch
      %219 = sbr.rel (0) target = $region69
    $region68: #{forward.1} parent=1 // pred_region
      %s221 = ssub.s32 32, 32
      %222 = vsyncadd [#allocation28], %s221
      %s223 = sshll.u32 [#allocation27], 4
      %s224 = int_to_ptr.vmem [resolvable:$true] %s223
      %229 = dma.hbm_to_vmem [thread:$0]  %s33, 32, %s224, [#allocation28], 16, 16, 1
    $region69: #{forward.1} parent=1 // pred_fallthru
      _
    // Predicated region
    $region70: #{forward.1} parent=1 // pred_check
      _
    $region71: #{forward.1} parent=1 // pred_check_branch
      %231 = sbr.rel (0) target = $region73
    $region72: #{forward.1} parent=1 // pred_region
      %s233 = ssub.s32 32, 32
      %234 = vsyncadd [#allocation28], %s233
      %s235 = sshll.u32 [#allocation29], 4
      %s236 = int_to_ptr.vmem [resolvable:$true] %s235
      %241 = dma.hbm_to_vmem [thread:$0]  %s35, 32, %s236, [#allocation28], 16, 16, 1
    $region73: #{forward.1} parent=1 // pred_fallthru
      _
    // Predicated region
    $region74: #{forward.1} parent=1 // pred_check
      _
    $region75: #{forward.1} parent=1 // pred_check_branch
      %243 = sbr.rel (0) target = $region77
    $region76: #{forward.1} parent=1 // pred_region
      %s245 = ssub.s32 96, 96
      %246 = vsyncadd [#allocation31], %s245
      %s247 = sshll.u32 [#allocation30], 4
      %s248 = int_to_ptr.vmem [resolvable:$true] %s247
      %253 = dma.hbm_to_vmem [thread:$0]  %s37, 96, %s248, [#allocation31], 48, 48, 3
    $region77: #{forward.1} parent=1 // pred_fallthru
      _
    // Predicated region
    $region78: #{forward.1} parent=1 // pred_check
      _
    $region79: #{forward.1} parent=1 // pred_check_branch
      %255 = sbr.rel (0) target = $region81
    $region80: #{forward.1} parent=1 // pred_region
      _
    $region81: #{forward.1} parent=1 // pred_fallthru
      _
    // Predicated region
    $region82: #{forward.1} parent=1 // pred_check
      _
    $region83: #{forward.1} parent=1 // pred_check_branch
      %257 = sbr.rel (0) target = $region85
    $region84: #{forward.1} parent=1 // pred_region
      %s259 = ssub.s32 64, 64
      %260 = vsyncadd [#allocation31], %s259
      %s261 = sshll.u32 [#allocation32], 4
      %s262 = int_to_ptr.vmem [resolvable:$true] %s261
      %267 = dma.hbm_to_vmem [thread:$0]  %s41, 64, %s262, [#allocation31], 32, 32, 2
    $region85: #{forward.1} parent=1 // pred_fallthru
      _
    // Predicated region
    $region86: #{forward.1} parent=1 // pred_check
      _
    $region87: #{forward.1} parent=1 // pred_check_branch
      %269 = sbr.rel (0) target = $region89
    $region88: #{forward.1} parent=1 // pred_region
      _
    $region89: #{forward.1} parent=1 // pred_fallthru
      _
    // Predicated region
    $region90: #{forward.1} parent=1 // pred_check
      _
    $region91: #{forward.1} parent=1 // pred_check_branch
      %271 = sbr.rel (0) target = $region93
    $region92: #{forward.1} parent=1 // pred_region
      _
    $region93: #{forward.1} parent=1 // pred_fallthru
      _
    // Predicated region
    $region94: #{forward.1} parent=1 // pred_check
      _
    $region95: #{forward.1} parent=1 // pred_check_branch
      %273 = sbr.rel (0) target = $region97
    $region96: #{forward.1} parent=1 // pred_region
      _
    $region97: #{forward.1} parent=1 // pred_fallthru
      _
    // Predicated region
    $region98: #{forward.1} parent=1 // pred_check
      _
    $region99: #{forward.1} parent=1 // pred_check_branch
      %275 = sbr.rel (0) target = $region101
    $region100: #{forward.1} parent=1 // pred_region
      _
    $region101: #{forward.1} parent=1 // pred_fallthru
      _
    // Predicated region
    $region102: #{forward.1} parent=1 // pred_check
      _
    $region103: #{forward.1} parent=1 // pred_check_branch
      %277 = sbr.rel (0) target = $region105
    $region104: #{forward.1} parent=1 // pred_region
      _
    $region105: #{forward.1} parent=1 // pred_fallthru
      _
    // Predicated region
    $region106: #{forward.1} parent=1 // pred_check
      _
    $region107: #{forward.1} parent=1 // pred_check_branch
      %279 = sbr.rel (0) target = $region109
    $region108: #{forward.1} parent=1 // pred_region
      %s281 = ssub.s32 48, 48
      %282 = vsyncadd [#allocation34], %s281
      %s284 = sshll.u32 [#allocation33], 4
      %s285 = int_to_ptr.vmem [resolvable:$true] %s284
      %287 = dma.hbm_to_vmem [thread:$0]  %s53, 48, %s285, [#allocation34]
    $region109: #{forward.1} parent=1 // pred_fallthru
      _
    // Predicated region
    $region110: #{forward.1} parent=1 // pred_check
      _
    $region111: #{forward.1} parent=1 // pred_check_branch
      %289 = sbr.rel (0) target = $region113
    $region112: #{forward.1} parent=1 // pred_region
      %s291 = ssub.s32 16, 16
      %292 = vsyncadd [#allocation34], %s291
      %s294 = sshll.u32 [#allocation35], 4
      %s295 = int_to_ptr.vmem [resolvable:$true] %s294
      %297 = dma.hbm_to_vmem [thread:$0]  %s55, 16, %s295, [#allocation34]
    $region113: #{forward.1} parent=1 // pred_fallthru
      _
    // Predicated region
    $region114: #{forward.1} parent=1 // pred_check
      _
    $region115: #{forward.1} parent=1 // pred_check_branch
      %299 = sbr.rel (0) target = $region117
    $region116: #{forward.1} parent=1 // pred_region
      %s301 = ssub.s32 16, 16
      %302 = vsyncadd [#allocation37], %s301
      %s304 = sshll.u32 [#allocation36], 4
      %s305 = int_to_ptr.vmem [resolvable:$true] %s304
      %307 = dma.hbm_to_vmem [thread:$0]  %s57, 16, %s305, [#allocation37]
    $region117: #{forward.1} parent=1 // pred_fallthru
      _
    // Predicated region
    $region118: #{forward.1} parent=1 // pred_check
      _
    $region119: #{forward.1} parent=1 // pred_check_branch
      %309 = sbr.rel (0) target = $region121
    $region120: #{forward.1} parent=1 // pred_region
      %s311 = ssub.s32 16, 16
      %312 = vsyncadd [#allocation37], %s311
      %s314 = sshll.u32 [#allocation38], 4
      %s315 = int_to_ptr.vmem [resolvable:$true] %s314
      %317 = dma.hbm_to_vmem [thread:$0]  %s59, 16, %s315, [#allocation37]
    $region121: #{forward.1} parent=1 // pred_fallthru
      _
    // Predicated region
    $region122: #{forward.1} parent=1 // pred_check
      _
    $region123: #{forward.1} parent=1 // pred_check_branch
      %319 = sbr.rel (0) target = $region125
    $region124: #{forward.1} parent=1 // pred_region
      %s321 = ssub.s32 16, 16
      %322 = vsyncadd [#allocation40], %s321
      %s324 = sshll.u32 [#allocation39], 4
      %s325 = int_to_ptr.vmem [resolvable:$true] %s324
      %327 = dma.hbm_to_vmem [thread:$0]  %s61, 16, %s325, [#allocation40]
    $region125: #{forward.1} parent=1 // pred_fallthru
      _
    // Predicated region
    $region126: #{forward.1} parent=1 // pred_check
      _
    $region127: #{forward.1} parent=1 // pred_check_branch
      %329 = sbr.rel (0) target = $region129
    $region128: #{forward.1} parent=1 // pred_region
      %330 = dma.done [#allocation14], 16
    $region129: #{forward.1} parent=1 // pred_fallthru
      _
    // Predicated region
    $region130: #{forward.1} parent=1 // pred_check
      _
    $region131: #{forward.1} parent=1 // pred_check_branch
      %332 = sbr.rel (0) target = $region133
    $region132: #{forward.1} parent=1 // pred_region
      %333 = dma.done [#allocation16], 2048
    $region133: #{forward.1} parent=1 // pred_fallthru
      _
    // Predicated region
    $region134: #{forward.1} parent=1 // pred_check
      _
    $region135: #{forward.1} parent=1 // pred_check_branch
      %335 = sbr.rel (0) target = $region137
    $region136: #{forward.1} parent=1 // pred_region
      %336 = dma.done [#allocation16], 32
    $region137: #{forward.1} parent=1 // pred_fallthru
      _
    // Predicated region
    $region138: #{forward.1} parent=1 // pred_check
      _
    $region139: #{forward.1} parent=1 // pred_check_branch
      %338 = sbr.rel (0) target = $region141
    $region140: #{forward.1} parent=1 // pred_region
      %339 = dma.done [#allocation19], 4096
    $region141: #{forward.1} parent=1 // pred_fallthru
      _
    // Predicated region
    $region142: #{forward.1} parent=1 // pred_check
      _
    $region143: #{forward.1} parent=1 // pred_check_branch
      %341 = sbr.rel (0) target = $region145
    $region144: #{forward.1} parent=1 // pred_region
      %342 = dma.done [#allocation19], 64
    $region145: #{forward.1} parent=1 // pred_fallthru
      _
    // Predicated region
    $region146: #{forward.1} parent=1 // pred_check
      _
    $region147: #{forward.1} parent=1 // pred_check_branch
      %344 = sbr.rel (0) target = $region149
    $region148: #{forward.1} parent=1 // pred_region
      %345 = dma.done [#allocation22], 4096
    $region149: #{forward.1} parent=1 // pred_fallthru
      _
    // Predicated region
    $region150: #{forward.1} parent=1 // pred_check
      _
    $region151: #{forward.1} parent=1 // pred_check_branch
      %347 = sbr.rel (0) target = $region153
    $region152: #{forward.1} parent=1 // pred_region
      %348 = dma.done [#allocation22], 32
    $region153: #{forward.1} parent=1 // pred_fallthru
      _
    // Predicated region
    $region154: #{forward.1} parent=1 // pred_check
      _
    $region155: #{forward.1} parent=1 // pred_check_branch
      %350 = sbr.rel (0) target = $region157
    $region156: #{forward.1} parent=1 // pred_region
      %351 = dma.done [#allocation25], 32
    $region157: #{forward.1} parent=1 // pred_fallthru
      _
    // Predicated region
    $region158: #{forward.1} parent=1 // pred_check
      _
    $region159: #{forward.1} parent=1 // pred_check_branch
      %353 = sbr.rel (0) target = $region161
    $region160: #{forward.1} parent=1 // pred_region
      %354 = dma.done [#allocation25], 32
    $region161: #{forward.1} parent=1 // pred_fallthru
      _
    // Predicated region
    $region162: #{forward.1} parent=1 // pred_check
      _
    $region163: #{forward.1} parent=1 // pred_check_branch
      %356 = sbr.rel (0) target = $region165
    $region164: #{forward.1} parent=1 // pred_region
      %357 = dma.done [#allocation28], 32
    $region165: #{forward.1} parent=1 // pred_fallthru
      _
    // Predicated region
    $region166: #{forward.1} parent=1 // pred_check
      _
    $region167: #{forward.1} parent=1 // pred_check_branch
      %359 = sbr.rel (0) target = $region169
    $region168: #{forward.1} parent=1 // pred_region
      %360 = dma.done [#allocation28], 32
    $region169: #{forward.1} parent=1 // pred_fallthru
      _
    // Predicated region
    $region170: #{forward.1} parent=1 // pred_check
      _
    $region171: #{forward.1} parent=1 // pred_check_branch
      %362 = sbr.rel (0) target = $region173
    $region172: #{forward.1} parent=1 // pred_region
      %363 = dma.done [#allocation31], 96
    $region173: #{forward.1} parent=1 // pred_fallthru
      _
    // Predicated region
    $region174: #{forward.1} parent=1 // pred_check
      _
    $region175: #{forward.1} parent=1 // pred_check_branch
      %365 = sbr.rel (0) target = $region177
    $region176: #{forward.1} parent=1 // pred_region
      %366 = dma.done [#allocation31], 64
    $region177: #{forward.1} parent=1 // pred_fallthru
      _
    // Predicated region
    $region178: #{forward.1} parent=1 // pred_check
      _
    $region179: #{forward.1} parent=1 // pred_check_branch
      %368 = sbr.rel (0) target = $region181
    $region180: #{forward.1} parent=1 // pred_region
      %369 = dma.done [#allocation34], 48
    $region181: #{forward.1} parent=1 // pred_fallthru
      _
    // Predicated region
    $region182: #{forward.1} parent=1 // pred_check
      _
    $region183: #{forward.1} parent=1 // pred_check_branch
      %371 = sbr.rel (0) target = $region185
    $region184: #{forward.1} parent=1 // pred_region
      %372 = dma.done [#allocation34], 16
    $region185: #{forward.1} parent=1 // pred_fallthru
      _
    // Predicated region
    $region186: #{forward.1} parent=1 // pred_check
      _
    $region187: #{forward.1} parent=1 // pred_check_branch
      %374 = sbr.rel (0) target = $region189
    $region188: #{forward.1} parent=1 // pred_region
      %375 = dma.done [#allocation37], 16
    $region189: #{forward.1} parent=1 // pred_fallthru
      _
    // Predicated region
    $region190: #{forward.1} parent=1 // pred_check
      _
    $region191: #{forward.1} parent=1 // pred_check_branch
      %377 = sbr.rel (0) target = $region193
    $region192: #{forward.1} parent=1 // pred_region
      %378 = dma.done [#allocation37], 16
    $region193: #{forward.1} parent=1 // pred_fallthru
      _
    // Predicated region
    $region194: #{forward.1} parent=1 // pred_check
      _
    $region195: #{forward.1} parent=1 // pred_check_branch
      %380 = sbr.rel (0) target = $region197
    $region196: #{forward.1} parent=1 // pred_region
      %381 = dma.done [#allocation40], 16
    $region197: #{forward.1} parent=1 // pred_fallthru
      _
    %s384 = sshll.u32 1, 14
    %s385 = sxor.u32 4294967295, %s384
    %s387 = sld [smem:[#allocation0]]
    %s388 = sadd.s32 2, %s387
    %s390 = sshll.u32 7, 26
    %s391 = sxor.u32 4294967295, %s390
    %s392 = sand.u32 0, %s391
    %s393 = sshll.u32 %s388, 26
    %s394 = sor.u32 %s392, %s393
    %s395 = sshll.u32 [#allocation2], 4
    %s396 = int_to_ptr.vmem [resolvable:$true] %s395
    %399 = sst [smem:[#allocation42]] 384
    %s400 = scalar_lea.smem [#allocation42], 1
    %401 = sst [smem:[%s400]] 384
    %s402 = scalar_lea.smem [#allocation42], 2
    %403 = sst [smem:[%s402]] 3
    %s404 = scalar_lea.smem [#allocation42], 3
    %405 = sst [smem:[%s404]] 64
    %s406 = scalar_lea.smem [#allocation42], 4
    %407 = sst [smem:[%s406]] 128
    %s408 = scalar_lea.smem [#allocation42], 5
    %409 = sst [smem:[%s408]] 2
    %s410 = scalar_lea.smem [#allocation42], 6
    %411 = sst [smem:[%s410]] 192
    %s412 = scalar_lea.smem [#allocation42], 7
    %413 = sst [smem:[%s412]] 64
    %s414 = scalar_lea.smem [#allocation42], 8
    %415 = sst [smem:[%s414]] 4
    %417 = dma.general %s63, 6144, %s396, [#allocation11], [#allocation41], [#allocation42], %s394, 0
    %s418 = scalar_lea.sflag [#allocation11], 1
    // Predicated region
    $region198: #{forward.1} parent=1 // pred_check
      _
    $region199: #{forward.1} parent=1 // pred_check_branch
      %420 = sbr.rel target = $region201
    $region200: #{forward.1} parent=1 // pred_region
      %421 = sst [smem:[#allocation45]] [#allocation44]
      %422 = sst [smem:[#allocation46]] [#allocation43]
    $region201: #{forward.1} parent=1 // pred_fallthru
      _
    %424 = shalt.err (0)
    %s426 = sshll.u32 [#allocation3], 4
    %s427 = int_to_ptr.vmem [resolvable:$true] %s426
    %429 = dma.hbm_to_vmem [thread:$0]  %s65, 2048, %s427, %s418
    %s430 = scalar_lea.sflag [#allocation11], 2
    %p432 = scmp.lt.u32.totalorder 4, 8
    %p433 = pneg %p432
    // Predicated region
    $region202: #{forward.1} parent=1 // pred_check
      _
    $region203: #{forward.1} parent=1 // pred_check_branch
      %435 = sbr.rel (%p432) target = $region205
    $region204: #{forward.1} parent=1 // pred_region
      %s576 = sand.u32 4, 7
      %p577 = scmp.eq.s32.totalorder %s576, 0
      %p578 = pneg %p577
      // Predicated region
      $region217: #{forward.1} parent=204 // pred_check
        _
      $region218: #{forward.1} parent=204 // pred_check_branch
        %580 = sbr.rel (%p577) target = $region220
      $region219: #{forward.1} parent=204 // pred_region
        %s581 = sand.u32 4, 7
        %s582 = ssub.s32 4, %s581
        %s583 = scalar_lea.vmem %s67, %s582
        %s584 = ssub.s32 4, %s581
        %s585 = scalar_lea.vmem [#allocation4], %s584
        loop: start=0, step=1, limit=1
        $region221: #{forward.1} parent=219 // loop_pre_header
          _
        $region222: #{forward.1} parent=219 // loop_header
          %s587 = sphi 0, %s591
          %p588 = scmp.ge.s32.totalorder %s587, 1
          %s592 = sphi %s67, %s67
          %s593 = sphi [#allocation4], [#allocation4]
        $region223: #{forward.1} parent=219 // loop_header_branch
          %590 = sbr.rel (%p588) target = $region227
        $region224: #{forward.1} parent=219 // loop_body
          _
        $region225: #{forward.1} parent=219 // loop_footer
          %s591 = sadd.s32 1, %s587
        $region226: #{forward.1} parent=219 // loop_footer_branch
          %586 = sbr.rel target = $region222
        $region227: #{forward.1} parent=219 // loop_exit
          _
        %s594 = sshllo.u32 0, %s581
        loop: start=0, step=1, limit=1
        $region228: #{forward.1} parent=219 // loop_pre_header
          _
        $region229: #{forward.1} parent=219 // loop_header
          %s596 = sphi 0, %s600
          %p597 = scmp.ge.s32.totalorder %s596, 1
          %s601 = sphi %s583, %s583
          %s602 = sphi %s585, %s585
        $region230: #{forward.1} parent=219 // loop_header_branch
          %599 = sbr.rel (%p597) target = $region234
        $region231: #{forward.1} parent=219 // loop_body
          %v603 = vld [vmem:[%s601] sm:%s594]
          %604 = vst [vmem:[%s602] sm:%s594] %v603
          %v605 = vld [vmem:[%s601 + $0x8] sm:%s594]
          %606 = vst [vmem:[%s602 + $0x4] sm:%s594] %v605
          %v607 = vld [vmem:[%s601 + $0x4] sm:%s594]
          %608 = vst [vmem:[%s602 + $0x8] sm:%s594] %v607
          %v609 = vld [vmem:[%s601 + $0xc] sm:%s594]
          %610 = vst [vmem:[%s602 + $0xc] sm:%s594] %v609
          %v611 = vld [vmem:[%s601 + $0x10] sm:%s594]
          %612 = vst [vmem:[%s602 + $0x10] sm:%s594] %v611
          %v613 = vld [vmem:[%s601 + $0x18] sm:%s594]
          %614 = vst [vmem:[%s602 + $0x14] sm:%s594] %v613
          %v615 = vld [vmem:[%s601 + $0x14] sm:%s594]
          %616 = vst [vmem:[%s602 + $0x18] sm:%s594] %v615
          %v617 = vld [vmem:[%s601 + $0x1c] sm:%s594]
          %618 = vst [vmem:[%s602 + $0x1c] sm:%s594] %v617
          %v619 = vld [vmem:[%s601 + $0x20] sm:%s594]
          %620 = vst [vmem:[%s602 + $0x20] sm:%s594] %v619
          %v621 = vld [vmem:[%s601 + $0x28] sm:%s594]
          %622 = vst [vmem:[%s602 + $0x24] sm:%s594] %v621
          %v623 = vld [vmem:[%s601 + $0x24] sm:%s594]
          %624 = vst [vmem:[%s602 + $0x28] sm:%s594] %v623
          %v625 = vld [vmem:[%s601 + $0x2c] sm:%s594]
          %626 = vst [vmem:[%s602 + $0x2c] sm:%s594] %v625
          %v627 = vld [vmem:[%s601 + $0x30] sm:%s594]
          %628 = vst [vmem:[%s602 + $0x30] sm:%s594] %v627
          %v629 = vld [vmem:[%s601 + $0x38] sm:%s594]
          %630 = vst [vmem:[%s602 + $0x34] sm:%s594] %v629
          %v631 = vld [vmem:[%s601 + $0x34] sm:%s594]
          %632 = vst [vmem:[%s602 + $0x38] sm:%s594] %v631
          %v633 = vld [vmem:[%s601 + $0x3c] sm:%s594]
          %634 = vst [vmem:[%s602 + $0x3c] sm:%s594] %v633
          %v635 = vld [vmem:[%s601 + $0x40] sm:%s594]
          %636 = vst [vmem:[%s602 + $0x40] sm:%s594] %v635
          %v637 = vld [vmem:[%s601 + $0x48] sm:%s594]
          %638 = vst [vmem:[%s602 + $0x44] sm:%s594] %v637
          %v639 = vld [vmem:[%s601 + $0x44] sm:%s594]
          %640 = vst [vmem:[%s602 + $0x48] sm:%s594] %v639
          %v641 = vld [vmem:[%s601 + $0x4c] sm:%s594]
          %642 = vst [vmem:[%s602 + $0x4c] sm:%s594] %v641
          %v643 = vld [vmem:[%s601 + $0x50] sm:%s594]
          %644 = vst [vmem:[%s602 + $0x50] sm:%s594] %v643
          %v645 = vld [vmem:[%s601 + $0x58] sm:%s594]
          %646 = vst [vmem:[%s602 + $0x54] sm:%s594] %v645
          %v647 = vld [vmem:[%s601 + $0x54] sm:%s594]
          %648 = vst [vmem:[%s602 + $0x58] sm:%s594] %v647
          %v649 = vld [vmem:[%s601 + $0x5c] sm:%s594]
          %650 = vst [vmem:[%s602 + $0x5c] sm:%s594] %v649
          %v651 = vld [vmem:[%s601 + $0x60] sm:%s594]
          %652 = vst [vmem:[%s602 + $0x60] sm:%s594] %v651
          %v653 = vld [vmem:[%s601 + $0x68] sm:%s594]
          %654 = vst [vmem:[%s602 + $0x64] sm:%s594] %v653
          %v655 = vld [vmem:[%s601 + $0x64] sm:%s594]
          %656 = vst [vmem:[%s602 + $0x68] sm:%s594] %v655
          %v657 = vld [vmem:[%s601 + $0x6c] sm:%s594]
          %658 = vst [vmem:[%s602 + $0x6c] sm:%s594] %v657
          %v659 = vld [vmem:[%s601 + $0x70] sm:%s594]
          %660 = vst [vmem:[%s602 + $0x70] sm:%s594] %v659
          %v661 = vld [vmem:[%s601 + $0x78] sm:%s594]
          %662 = vst [vmem:[%s602 + $0x74] sm:%s594] %v661
          %v663 = vld [vmem:[%s601 + $0x74] sm:%s594]
          %664 = vst [vmem:[%s602 + $0x78] sm:%s594] %v663
          %v665 = vld [vmem:[%s601 + $0x7c] sm:%s594]
          %666 = vst [vmem:[%s602 + $0x7c] sm:%s594] %v665
          %v667 = vld [vmem:[%s601 + $0x80] sm:%s594]
          %668 = vst [vmem:[%s602 + $0x80] sm:%s594] %v667
          %v669 = vld [vmem:[%s601 + $0x88] sm:%s594]
          %670 = vst [vmem:[%s602 + $0x84] sm:%s594] %v669
          %v671 = vld [vmem:[%s601 + $0x84] sm:%s594]
          %672 = vst [vmem:[%s602 + $0x88] sm:%s594] %v671
          %v673 = vld [vmem:[%s601 + $0x8c] sm:%s594]
          %674 = vst [vmem:[%s602 + $0x8c] sm:%s594] %v673
          %v675 = vld [vmem:[%s601 + $0x90] sm:%s594]
          %676 = vst [vmem:[%s602 + $0x90] sm:%s594] %v675
          %v677 = vld [vmem:[%s601 + $0x98] sm:%s594]
          %678 = vst [vmem:[%s602 + $0x94] sm:%s594] %v677
          %v679 = vld [vmem:[%s601 + $0x94] sm:%s594]
          %680 = vst [vmem:[%s602 + $0x98] sm:%s594] %v679
          %v681 = vld [vmem:[%s601 + $0x9c] sm:%s594]
          %682 = vst [vmem:[%s602 + $0x9c] sm:%s594] %v681
          %v683 = vld [vmem:[%s601 + $0xa0] sm:%s594]
          %684 = vst [vmem:[%s602 + $0xa0] sm:%s594] %v683
          %v685 = vld [vmem:[%s601 + $0xa8] sm:%s594]
          %686 = vst [vmem:[%s602 + $0xa4] sm:%s594] %v685
          %v687 = vld [vmem:[%s601 + $0xa4] sm:%s594]
          %688 = vst [vmem:[%s602 + $0xa8] sm:%s594] %v687
          %v689 = vld [vmem:[%s601 + $0xac] sm:%s594]
          %690 = vst [vmem:[%s602 + $0xac] sm:%s594] %v689
          %v691 = vld [vmem:[%s601 + $0xb0] sm:%s594]
          %692 = vst [vmem:[%s602 + $0xb0] sm:%s594] %v691
          %v693 = vld [vmem:[%s601 + $0xb8] sm:%s594]
          %694 = vst [vmem:[%s602 + $0xb4] sm:%s594] %v693
          %v695 = vld [vmem:[%s601 + $0xb4] sm:%s594]
          %696 = vst [vmem:[%s602 + $0xb8] sm:%s594] %v695
          %v697 = vld [vmem:[%s601 + $0xbc] sm:%s594]
          %698 = vst [vmem:[%s602 + $0xbc] sm:%s594] %v697
          %v699 = vld [vmem:[%s601 + $0xc0] sm:%s594]
          %700 = vst [vmem:[%s602 + $0xc0] sm:%s594] %v699
          %v701 = vld [vmem:[%s601 + $0xc8] sm:%s594]
          %702 = vst [vmem:[%s602 + $0xc4] sm:%s594] %v701
          %v703 = vld [vmem:[%s601 + $0xc4] sm:%s594]
          %704 = vst [vmem:[%s602 + $0xc8] sm:%s594] %v703
          %v705 = vld [vmem:[%s601 + $0xcc] sm:%s594]
          %706 = vst [vmem:[%s602 + $0xcc] sm:%s594] %v705
          %v707 = vld [vmem:[%s601 + $0xd0] sm:%s594]
          %708 = vst [vmem:[%s602 + $0xd0] sm:%s594] %v707
          %v709 = vld [vmem:[%s601 + $0xd8] sm:%s594]
          %710 = vst [vmem:[%s602 + $0xd4] sm:%s594] %v709
          %v711 = vld [vmem:[%s601 + $0xd4] sm:%s594]
          %712 = vst [vmem:[%s602 + $0xd8] sm:%s594] %v711
          %v713 = vld [vmem:[%s601 + $0xdc] sm:%s594]
          %714 = vst [vmem:[%s602 + $0xdc] sm:%s594] %v713
          %v715 = vld [vmem:[%s601 + $0xe0] sm:%s594]
          %716 = vst [vmem:[%s602 + $0xe0] sm:%s594] %v715
          %v717 = vld [vmem:[%s601 + $0xe8] sm:%s594]
          %718 = vst [vmem:[%s602 + $0xe4] sm:%s594] %v717
          %v719 = vld [vmem:[%s601 + $0xe4] sm:%s594]
          %720 = vst [vmem:[%s602 + $0xe8] sm:%s594] %v719
          %v721 = vld [vmem:[%s601 + $0xec] sm:%s594]
          %722 = vst [vmem:[%s602 + $0xec] sm:%s594] %v721
          %v723 = vld [vmem:[%s601 + $0xf0] sm:%s594]
          %724 = vst [vmem:[%s602 + $0xf0] sm:%s594] %v723
          %v725 = vld [vmem:[%s601 + $0xf8] sm:%s594]
          %726 = vst [vmem:[%s602 + $0xf4] sm:%s594] %v725
          %v727 = vld [vmem:[%s601 + $0xf4] sm:%s594]
          %728 = vst [vmem:[%s602 + $0xf8] sm:%s594] %v727
          %v729 = vld [vmem:[%s601 + $0xfc] sm:%s594]
          %730 = vst [vmem:[%s602 + $0xfc] sm:%s594] %v729
        $region232: #{forward.1} parent=219 // loop_footer
          %s600 = sadd.s32 1, %s596
        $region233: #{forward.1} parent=219 // loop_footer_branch
          %595 = sbr.rel target = $region229
        $region234: #{forward.1} parent=219 // loop_exit
          _
      $region220: #{forward.1} parent=204 // pred_fallthru
        _
    $region205: #{forward.1} parent=1 // pred_fallthru
      _
    // Predicated region
    $region206: #{forward.1} parent=1 // pred_check
      %p436 = pneg %p432
    $region207: #{forward.1} parent=1 // pred_check_branch
      %438 = sbr.rel (%p436) target = $region209
    $region208: #{forward.1} parent=1 // pred_region
      %s439 = sshllo.u32 0, 4
      loop: start=0, step=1, limit=1
      $region210: #{forward.1} parent=208 // loop_pre_header
        _
      $region211: #{forward.1} parent=208 // loop_header
        %s441 = sphi 0, %s445
        %p442 = scmp.ge.s32.totalorder %s441, 1
        %s446 = sphi %s67, %s67
        %s447 = sphi [#allocation4], [#allocation4]
      $region212: #{forward.1} parent=208 // loop_header_branch
        %444 = sbr.rel (%p442) target = $region216
      $region213: #{forward.1} parent=208 // loop_body
        %v448 = vld [vmem:[%s446] sm:%s439]
        %449 = vst [vmem:[%s447] sm:%s439] %v448
        %v450 = vld [vmem:[%s446 + $0x8] sm:%s439]
        %451 = vst [vmem:[%s447 + $0x4] sm:%s439] %v450
        %v452 = vld [vmem:[%s446 + $0x4] sm:%s439]
        %453 = vst [vmem:[%s447 + $0x8] sm:%s439] %v452
        %v454 = vld [vmem:[%s446 + $0xc] sm:%s439]
        %455 = vst [vmem:[%s447 + $0xc] sm:%s439] %v454
        %v456 = vld [vmem:[%s446 + $0x10] sm:%s439]
        %457 = vst [vmem:[%s447 + $0x10] sm:%s439] %v456
        %v458 = vld [vmem:[%s446 + $0x18] sm:%s439]
        %459 = vst [vmem:[%s447 + $0x14] sm:%s439] %v458
        %v460 = vld [vmem:[%s446 + $0x14] sm:%s439]
        %461 = vst [vmem:[%s447 + $0x18] sm:%s439] %v460
        %v462 = vld [vmem:[%s446 + $0x1c] sm:%s439]
        %463 = vst [vmem:[%s447 + $0x1c] sm:%s439] %v462
        %v464 = vld [vmem:[%s446 + $0x20] sm:%s439]
        %465 = vst [vmem:[%s447 + $0x20] sm:%s439] %v464
        %v466 = vld [vmem:[%s446 + $0x28] sm:%s439]
        %467 = vst [vmem:[%s447 + $0x24] sm:%s439] %v466
        %v468 = vld [vmem:[%s446 + $0x24] sm:%s439]
        %469 = vst [vmem:[%s447 + $0x28] sm:%s439] %v468
        %v470 = vld [vmem:[%s446 + $0x2c] sm:%s439]
        %471 = vst [vmem:[%s447 + $0x2c] sm:%s439] %v470
        %v472 = vld [vmem:[%s446 + $0x30] sm:%s439]
        %473 = vst [vmem:[%s447 + $0x30] sm:%s439] %v472
        %v474 = vld [vmem:[%s446 + $0x38] sm:%s439]
        %475 = vst [vmem:[%s447 + $0x34] sm:%s439] %v474
        %v476 = vld [vmem:[%s446 + $0x34] sm:%s439]
        %477 = vst [vmem:[%s447 + $0x38] sm:%s439] %v476
        %v478 = vld [vmem:[%s446 + $0x3c] sm:%s439]
        %479 = vst [vmem:[%s447 + $0x3c] sm:%s439] %v478
        %v480 = vld [vmem:[%s446 + $0x40] sm:%s439]
        %481 = vst [vmem:[%s447 + $0x40] sm:%s439] %v480
        %v482 = vld [vmem:[%s446 + $0x48] sm:%s439]
        %483 = vst [vmem:[%s447 + $0x44] sm:%s439] %v482
        %v484 = vld [vmem:[%s446 + $0x44] sm:%s439]
        %485 = vst [vmem:[%s447 + $0x48] sm:%s439] %v484
        %v486 = vld [vmem:[%s446 + $0x4c] sm:%s439]
        %487 = vst [vmem:[%s447 + $0x4c] sm:%s439] %v486
        %v488 = vld [vmem:[%s446 + $0x50] sm:%s439]
        %489 = vst [vmem:[%s447 + $0x50] sm:%s439] %v488
        %v490 = vld [vmem:[%s446 + $0x58] sm:%s439]
        %491 = vst [vmem:[%s447 + $0x54] sm:%s439] %v490
        %v492 = vld [vmem:[%s446 + $0x54] sm:%s439]
        %493 = vst [vmem:[%s447 + $0x58] sm:%s439] %v492
        %v494 = vld [vmem:[%s446 + $0x5c] sm:%s439]
        %495 = vst [vmem:[%s447 + $0x5c] sm:%s439] %v494
        %v496 = vld [vmem:[%s446 + $0x60] sm:%s439]
        %497 = vst [vmem:[%s447 + $0x60] sm:%s439] %v496
        %v498 = vld [vmem:[%s446 + $0x68] sm:%s439]
        %499 = vst [vmem:[%s447 + $0x64] sm:%s439] %v498
        %v500 = vld [vmem:[%s446 + $0x64] sm:%s439]
        %501 = vst [vmem:[%s447 + $0x68] sm:%s439] %v500
        %v502 = vld [vmem:[%s446 + $0x6c] sm:%s439]
        %503 = vst [vmem:[%s447 + $0x6c] sm:%s439] %v502
        %v504 = vld [vmem:[%s446 + $0x70] sm:%s439]
        %505 = vst [vmem:[%s447 + $0x70] sm:%s439] %v504
        %v506 = vld [vmem:[%s446 + $0x78] sm:%s439]
        %507 = vst [vmem:[%s447 + $0x74] sm:%s439] %v506
        %v508 = vld [vmem:[%s446 + $0x74] sm:%s439]
        %509 = vst [vmem:[%s447 + $0x78] sm:%s439] %v508
        %v510 = vld [vmem:[%s446 + $0x7c] sm:%s439]
        %511 = vst [vmem:[%s447 + $0x7c] sm:%s439] %v510
        %v512 = vld [vmem:[%s446 + $0x80] sm:%s439]
        %513 = vst [vmem:[%s447 + $0x80] sm:%s439] %v512
        %v514 = vld [vmem:[%s446 + $0x88] sm:%s439]
        %515 = vst [vmem:[%s447 + $0x84] sm:%s439] %v514
        %v516 = vld [vmem:[%s446 + $0x84] sm:%s439]
        %517 = vst [vmem:[%s447 + $0x88] sm:%s439] %v516
        %v518 = vld [vmem:[%s446 + $0x8c] sm:%s439]
        %519 = vst [vmem:[%s447 + $0x8c] sm:%s439] %v518
        %v520 = vld [vmem:[%s446 + $0x90] sm:%s439]
        %521 = vst [vmem:[%s447 + $0x90] sm:%s439] %v520
        %v522 = vld [vmem:[%s446 + $0x98] sm:%s439]
        %523 = vst [vmem:[%s447 + $0x94] sm:%s439] %v522
        %v524 = vld [vmem:[%s446 + $0x94] sm:%s439]
        %525 = vst [vmem:[%s447 + $0x98] sm:%s439] %v524
        %v526 = vld [vmem:[%s446 + $0x9c] sm:%s439]
        %527 = vst [vmem:[%s447 + $0x9c] sm:%s439] %v526
        %v528 = vld [vmem:[%s446 + $0xa0] sm:%s439]
        %529 = vst [vmem:[%s447 + $0xa0] sm:%s439] %v528
        %v530 = vld [vmem:[%s446 + $0xa8] sm:%s439]
        %531 = vst [vmem:[%s447 + $0xa4] sm:%s439] %v530
        %v532 = vld [vmem:[%s446 + $0xa4] sm:%s439]
        %533 = vst [vmem:[%s447 + $0xa8] sm:%s439] %v532
        %v534 = vld [vmem:[%s446 + $0xac] sm:%s439]
        %535 = vst [vmem:[%s447 + $0xac] sm:%s439] %v534
        %v536 = vld [vmem:[%s446 + $0xb0] sm:%s439]
        %537 = vst [vmem:[%s447 + $0xb0] sm:%s439] %v536
        %v538 = vld [vmem:[%s446 + $0xb8] sm:%s439]
        %539 = vst [vmem:[%s447 + $0xb4] sm:%s439] %v538
        %v540 = vld [vmem:[%s446 + $0xb4] sm:%s439]
        %541 = vst [vmem:[%s447 + $0xb8] sm:%s439] %v540
        %v542 = vld [vmem:[%s446 + $0xbc] sm:%s439]
        %543 = vst [vmem:[%s447 + $0xbc] sm:%s439] %v542
        %v544 = vld [vmem:[%s446 + $0xc0] sm:%s439]
        %545 = vst [vmem:[%s447 + $0xc0] sm:%s439] %v544
        %v546 = vld [vmem:[%s446 + $0xc8] sm:%s439]
        %547 = vst [vmem:[%s447 + $0xc4] sm:%s439] %v546
        %v548 = vld [vmem:[%s446 + $0xc4] sm:%s439]
        %549 = vst [vmem:[%s447 + $0xc8] sm:%s439] %v548
        %v550 = vld [vmem:[%s446 + $0xcc] sm:%s439]
        %551 = vst [vmem:[%s447 + $0xcc] sm:%s439] %v550
        %v552 = vld [vmem:[%s446 + $0xd0] sm:%s439]
        %553 = vst [vmem:[%s447 + $0xd0] sm:%s439] %v552
        %v554 = vld [vmem:[%s446 + $0xd8] sm:%s439]
        %555 = vst [vmem:[%s447 + $0xd4] sm:%s439] %v554
        %v556 = vld [vmem:[%s446 + $0xd4] sm:%s439]
        %557 = vst [vmem:[%s447 + $0xd8] sm:%s439] %v556
        %v558 = vld [vmem:[%s446 + $0xdc] sm:%s439]
        %559 = vst [vmem:[%s447 + $0xdc] sm:%s439] %v558
        %v560 = vld [vmem:[%s446 + $0xe0] sm:%s439]
        %561 = vst [vmem:[%s447 + $0xe0] sm:%s439] %v560
        %v562 = vld [vmem:[%s446 + $0xe8] sm:%s439]
        %563 = vst [vmem:[%s447 + $0xe4] sm:%s439] %v562
        %v564 = vld [vmem:[%s446 + $0xe4] sm:%s439]
        %565 = vst [vmem:[%s447 + $0xe8] sm:%s439] %v564
        %v566 = vld [vmem:[%s446 + $0xec] sm:%s439]
        %567 = vst [vmem:[%s447 + $0xec] sm:%s439] %v566
        %v568 = vld [vmem:[%s446 + $0xf0] sm:%s439]
        %569 = vst [vmem:[%s447 + $0xf0] sm:%s439] %v568
        %v570 = vld [vmem:[%s446 + $0xf8] sm:%s439]
        %571 = vst [vmem:[%s447 + $0xf4] sm:%s439] %v570
        %v572 = vld [vmem:[%s446 + $0xf4] sm:%s439]
        %573 = vst [vmem:[%s447 + $0xf8] sm:%s439] %v572
        %v574 = vld [vmem:[%s446 + $0xfc] sm:%s439]
        %575 = vst [vmem:[%s447 + $0xfc] sm:%s439] %v574
      $region214: #{forward.1} parent=208 // loop_footer
        %s445 = sadd.s32 1, %s441
      $region215: #{forward.1} parent=208 // loop_footer_branch
        %440 = sbr.rel target = $region211
      $region216: #{forward.1} parent=208 // loop_exit
        _
    $region209: #{forward.1} parent=1 // pred_fallthru
      _
    // Predicated region
    $region235: #{forward.1} parent=1 // pred_check
      _
    $region236: #{forward.1} parent=1 // pred_check_branch
      %733 = sbr.rel (0) target = $region238
    $region237: #{forward.1} parent=1 // pred_region
      %734 = vsyncadd %s430, 4096
    $region238: #{forward.1} parent=1 // pred_fallthru
      _
    %s735 = scalar_lea.sflag [#allocation11], 3
    // Predicated region
    $region239: #{forward.1} parent=1 // pred_check
      _
    $region240: #{forward.1} parent=1 // pred_check_branch
      %737 = sbr.rel target = $region242
    $region241: #{forward.1} parent=1 // pred_region
      %738 = sst [smem:[#allocation45]] [#allocation49]
      %739 = sst [smem:[#allocation46]] [#allocation48]
    $region242: #{forward.1} parent=1 // pred_fallthru
      _
    %741 = shalt.err (0)
    %s743 = sshll.u32 [#allocation5], 4
    %s744 = int_to_ptr.vmem [resolvable:$true] %s743
    %746 = dma.hbm_to_vmem [thread:$0]  %s69, 4096, %s744, %s735
    %s747 = scalar_lea.sflag [#allocation11], 4
    %s749 = sshll.u32 1, 14
    %s750 = sxor.u32 4294967295, %s749
    %s752 = sadd.s32 2, %s387
    %s754 = sshll.u32 7, 26
    %s755 = sxor.u32 4294967295, %s754
    %s756 = sand.u32 0, %s755
    %s757 = sshll.u32 %s752, 26
    %s758 = sor.u32 %s756, %s757
    %s759 = sshll.u32 [#allocation6], 4
    %s760 = int_to_ptr.vmem [resolvable:$true] %s759
    %763 = sst [smem:[#allocation51]] 384
    %s764 = scalar_lea.smem [#allocation51], 1
    %765 = sst [smem:[%s764]] 384
    %s766 = scalar_lea.smem [#allocation51], 2
    %767 = sst [smem:[%s766]] 3
    %s768 = scalar_lea.smem [#allocation51], 3
    %769 = sst [smem:[%s768]] 64
    %s770 = scalar_lea.smem [#allocation51], 4
    %771 = sst [smem:[%s770]] 128
    %s772 = scalar_lea.smem [#allocation51], 5
    %773 = sst [smem:[%s772]] 2
    %s774 = scalar_lea.smem [#allocation51], 6
    %775 = sst [smem:[%s774]] 192
    %s776 = scalar_lea.smem [#allocation51], 7
    %777 = sst [smem:[%s776]] 64
    %s778 = scalar_lea.smem [#allocation51], 8
    %779 = sst [smem:[%s778]] 4
    %781 = dma.general %s71, 3072, %s760, %s747, [#allocation50], [#allocation51], %s758, 0
    %s782 = scalar_lea.sflag [#allocation11], 5
    // Predicated region
    $region243: #{forward.1} parent=1 // pred_check
      _
    $region244: #{forward.1} parent=1 // pred_check_branch
      %784 = sbr.rel target = $region246
    $region245: #{forward.1} parent=1 // pred_region
      %785 = sst [smem:[#allocation45]] [#allocation53]
      %786 = sst [smem:[#allocation46]] [#allocation52]
    $region246: #{forward.1} parent=1 // pred_fallthru
      _
    %788 = shalt.err (0)
    %s790 = sshll.u32 [#allocation7], 4
    %s791 = int_to_ptr.vmem [resolvable:$true] %s790
    %793 = dma.hbm_to_vmem [thread:$0]  %s73, 1024, %s791, %s782
    %s794 = scalar_lea.sflag [#allocation11], 6
    %p796 = scmp.lt.u32.totalorder 192, 8
    %p797 = pneg %p796
    // Predicated region
    $region247: #{forward.1} parent=1 // pred_check
      _
    $region248: #{forward.1} parent=1 // pred_check_branch
      %799 = sbr.rel (%p796) target = $region250
    $region249: #{forward.1} parent=1 // pred_region
      %s814 = sand.u32 192, 7
      %p815 = scmp.eq.s32.totalorder %s814, 0
      // Predicated region
      $region262: #{forward.1} parent=249 // pred_check
        %p816 = pneg %p815
      $region263: #{forward.1} parent=249 // pred_check_branch
        %818 = sbr.rel (%p816) target = $region265
      $region264: #{forward.1} parent=249 // pred_region
        loop: start=0, step=1, limit=1
        $region266: #{forward.1} parent=264 // loop_pre_header
          _
        $region267: #{forward.1} parent=264 // loop_header
          %s820 = sphi 0, %s824
          %p821 = scmp.ge.s32.totalorder %s820, 1
          %s825 = sphi %s75, %s75
          %s826 = sphi [#allocation8], [#allocation8]
        $region268: #{forward.1} parent=264 // loop_header_branch
          %823 = sbr.rel (%p821) target = $region272
        $region269: #{forward.1} parent=264 // loop_body
          %v827 = vld [vmem:[%s825] sm:$0xff]
          %828 = vst [vmem:[%s826] sm:$0xff] %v827
          %v829 = vld [vmem:[%s825 + $0x8] sm:$0xff]
          %830 = vst [vmem:[%s826 + $0x8] sm:$0xff] %v829
          %v831 = vld [vmem:[%s825 + $0x10] sm:$0xff]
          %832 = vst [vmem:[%s826 + $0x10] sm:$0xff] %v831
          %v833 = vld [vmem:[%s825 + $0x18] sm:$0xff]
          %834 = vst [vmem:[%s826 + $0x18] sm:$0xff] %v833
          %v835 = vld [vmem:[%s825 + $0x20] sm:$0xff]
          %836 = vst [vmem:[%s826 + $0x20] sm:$0xff] %v835
          %v837 = vld [vmem:[%s825 + $0x28] sm:$0xff]
          %838 = vst [vmem:[%s826 + $0x28] sm:$0xff] %v837
          %v839 = vld [vmem:[%s825 + $0x30] sm:$0xff]
          %840 = vst [vmem:[%s826 + $0x30] sm:$0xff] %v839
          %v841 = vld [vmem:[%s825 + $0x38] sm:$0xff]
          %842 = vst [vmem:[%s826 + $0x38] sm:$0xff] %v841
          %v843 = vld [vmem:[%s825 + $0x40] sm:$0xff]
          %844 = vst [vmem:[%s826 + $0x40] sm:$0xff] %v843
          %v845 = vld [vmem:[%s825 + $0x48] sm:$0xff]
          %846 = vst [vmem:[%s826 + $0x48] sm:$0xff] %v845
          %v847 = vld [vmem:[%s825 + $0x50] sm:$0xff]
          %848 = vst [vmem:[%s826 + $0x50] sm:$0xff] %v847
          %v849 = vld [vmem:[%s825 + $0x58] sm:$0xff]
          %850 = vst [vmem:[%s826 + $0x58] sm:$0xff] %v849
          %v851 = vld [vmem:[%s825 + $0x60] sm:$0xff]
          %852 = vst [vmem:[%s826 + $0x60] sm:$0xff] %v851
          %v853 = vld [vmem:[%s825 + $0x68] sm:$0xff]
          %854 = vst [vmem:[%s826 + $0x68] sm:$0xff] %v853
          %v855 = vld [vmem:[%s825 + $0x70] sm:$0xff]
          %856 = vst [vmem:[%s826 + $0x70] sm:$0xff] %v855
          %v857 = vld [vmem:[%s825 + $0x78] sm:$0xff]
          %858 = vst [vmem:[%s826 + $0x78] sm:$0xff] %v857
          %v859 = vld [vmem:[%s825 + $0x80] sm:$0xff]
          %860 = vst [vmem:[%s826 + $0x80] sm:$0xff] %v859
          %v861 = vld [vmem:[%s825 + $0x88] sm:$0xff]
          %862 = vst [vmem:[%s826 + $0x88] sm:$0xff] %v861
          %v863 = vld [vmem:[%s825 + $0x90] sm:$0xff]
          %864 = vst [vmem:[%s826 + $0x90] sm:$0xff] %v863
          %v865 = vld [vmem:[%s825 + $0x98] sm:$0xff]
          %866 = vst [vmem:[%s826 + $0x98] sm:$0xff] %v865
          %v867 = vld [vmem:[%s825 + $0xa0] sm:$0xff]
          %868 = vst [vmem:[%s826 + $0xa0] sm:$0xff] %v867
          %v869 = vld [vmem:[%s825 + $0xa8] sm:$0xff]
          %870 = vst [vmem:[%s826 + $0xa8] sm:$0xff] %v869
          %v871 = vld [vmem:[%s825 + $0xb0] sm:$0xff]
          %872 = vst [vmem:[%s826 + $0xb0] sm:$0xff] %v871
          %v873 = vld [vmem:[%s825 + $0xb8] sm:$0xff]
          %874 = vst [vmem:[%s826 + $0xb8] sm:$0xff] %v873
        $region270: #{forward.1} parent=264 // loop_footer
          %s824 = sadd.s32 1, %s820
        $region271: #{forward.1} parent=264 // loop_footer_branch
          %819 = sbr.rel target = $region267
        $region272: #{forward.1} parent=264 // loop_exit
          _
      $region265: #{forward.1} parent=249 // pred_fallthru
        _
      %p875 = pneg %p815
      // Predicated region
      $region273: #{forward.1} parent=249 // pred_check
        _
      $region274: #{forward.1} parent=249 // pred_check_branch
        %877 = sbr.rel (%p815) target = $region276
      $region275: #{forward.1} parent=249 // pred_region
        %s878 = sand.u32 192, 7
      $region276: #{forward.1} parent=249 // pred_fallthru
        _
    $region250: #{forward.1} parent=1 // pred_fallthru
      _
    // Predicated region
    $region251: #{forward.1} parent=1 // pred_check
      %p800 = pneg %p796
    $region252: #{forward.1} parent=1 // pred_check_branch
      %802 = sbr.rel (%p800) target = $region254
    $region253: #{forward.1} parent=1 // pred_region
      %s803 = sshllo.u32 0, 192
      loop: start=0, step=1, limit=1
      $region255: #{forward.1} parent=253 // loop_pre_header
        _
      $region256: #{forward.1} parent=253 // loop_header
        %s805 = sphi 0, %s809
        %p806 = scmp.ge.s32.totalorder %s805, 1
        %s810 = sphi %s75, %s75
        %s811 = sphi [#allocation8], [#allocation8]
      $region257: #{forward.1} parent=253 // loop_header_branch
        %808 = sbr.rel (%p806) target = $region261
      $region258: #{forward.1} parent=253 // loop_body
        %v812 = vld [vmem:[%s810] sm:%s803]
        %813 = vst [vmem:[%s811] sm:%s803] %v812
      $region259: #{forward.1} parent=253 // loop_footer
        %s809 = sadd.s32 1, %s805
      $region260: #{forward.1} parent=253 // loop_footer_branch
        %804 = sbr.rel target = $region256
      $region261: #{forward.1} parent=253 // loop_exit
        _
    $region254: #{forward.1} parent=1 // pred_fallthru
      _
    // Predicated region
    $region277: #{forward.1} parent=1 // pred_check
      _
    $region278: #{forward.1} parent=1 // pred_check_branch
      %881 = sbr.rel (0) target = $region280
    $region279: #{forward.1} parent=1 // pred_region
      %882 = vsyncadd %s794, 3072
    $region280: #{forward.1} parent=1 // pred_fallthru
      _
    %s883 = scalar_lea.sflag [#allocation11], 7
    %p885 = scmp.lt.u32.totalorder 32, 8
    %p886 = pneg %p885
    // Predicated region
    $region281: #{forward.1} parent=1 // pred_check
      _
    $region282: #{forward.1} parent=1 // pred_check_branch
      %888 = sbr.rel (%p885) target = $region284
    $region283: #{forward.1} parent=1 // pred_region
      %s903 = sand.u32 32, 7
      %p904 = scmp.eq.s32.totalorder %s903, 0
      // Predicated region
      $region296: #{forward.1} parent=283 // pred_check
        %p905 = pneg %p904
      $region297: #{forward.1} parent=283 // pred_check_branch
        %907 = sbr.rel (%p905) target = $region299
      $region298: #{forward.1} parent=283 // pred_region
        loop: start=0, step=1, limit=1
        $region300: #{forward.1} parent=298 // loop_pre_header
          _
        $region301: #{forward.1} parent=298 // loop_header
          %s909 = sphi 0, %s913
          %p910 = scmp.ge.s32.totalorder %s909, 1
          %s914 = sphi %s77, %s77
          %s915 = sphi [#allocation9], [#allocation9]
        $region302: #{forward.1} parent=298 // loop_header_branch
          %912 = sbr.rel (%p910) target = $region306
        $region303: #{forward.1} parent=298 // loop_body
          %v916 = vld [vmem:[%s914] sm:$0xff]
          %917 = vst [vmem:[%s915] sm:$0xff] %v916
          %v918 = vld [vmem:[%s914 + $0x8] sm:$0xff]
          %919 = vst [vmem:[%s915 + $0x8] sm:$0xff] %v918
          %v920 = vld [vmem:[%s914 + $0x10] sm:$0xff]
          %921 = vst [vmem:[%s915 + $0x10] sm:$0xff] %v920
          %v922 = vld [vmem:[%s914 + $0x18] sm:$0xff]
          %923 = vst [vmem:[%s915 + $0x18] sm:$0xff] %v922
        $region304: #{forward.1} parent=298 // loop_footer
          %s913 = sadd.s32 1, %s909
        $region305: #{forward.1} parent=298 // loop_footer_branch
          %908 = sbr.rel target = $region301
        $region306: #{forward.1} parent=298 // loop_exit
          _
      $region299: #{forward.1} parent=283 // pred_fallthru
        _
      %p924 = pneg %p904
      // Predicated region
      $region307: #{forward.1} parent=283 // pred_check
        _
      $region308: #{forward.1} parent=283 // pred_check_branch
        %926 = sbr.rel (%p904) target = $region310
      $region309: #{forward.1} parent=283 // pred_region
        %s927 = sand.u32 32, 7
      $region310: #{forward.1} parent=283 // pred_fallthru
        _
    $region284: #{forward.1} parent=1 // pred_fallthru
      _
    // Predicated region
    $region285: #{forward.1} parent=1 // pred_check
      %p889 = pneg %p885
    $region286: #{forward.1} parent=1 // pred_check_branch
      %891 = sbr.rel (%p889) target = $region288
    $region287: #{forward.1} parent=1 // pred_region
      %s892 = sshllo.u32 0, 32
      loop: start=0, step=1, limit=1
      $region289: #{forward.1} parent=287 // loop_pre_header
        _
      $region290: #{forward.1} parent=287 // loop_header
        %s894 = sphi 0, %s898
        %p895 = scmp.ge.s32.totalorder %s894, 1
        %s899 = sphi %s77, %s77
        %s900 = sphi [#allocation9], [#allocation9]
      $region291: #{forward.1} parent=287 // loop_header_branch
        %897 = sbr.rel (%p895) target = $region295
      $region292: #{forward.1} parent=287 // loop_body
        %v901 = vld [vmem:[%s899] sm:%s892]
        %902 = vst [vmem:[%s900] sm:%s892] %v901
      $region293: #{forward.1} parent=287 // loop_footer
        %s898 = sadd.s32 1, %s894
      $region294: #{forward.1} parent=287 // loop_footer_branch
        %893 = sbr.rel target = $region290
      $region295: #{forward.1} parent=287 // loop_exit
        _
    $region288: #{forward.1} parent=1 // pred_fallthru
      _
    // Predicated region
    $region311: #{forward.1} parent=1 // pred_check
      _
    $region312: #{forward.1} parent=1 // pred_check_branch
      %930 = sbr.rel (0) target = $region314
    $region313: #{forward.1} parent=1 // pred_region
      %931 = vsyncadd %s883, 512
    $region314: #{forward.1} parent=1 // pred_fallthru
      _
    %s932 = scalar_lea.sflag [#allocation11], 8
    %p934 = scmp.lt.u32.totalorder 16, 8
    %p935 = pneg %p934
    // Predicated region
    $region315: #{forward.1} parent=1 // pred_check
      _
    $region316: #{forward.1} parent=1 // pred_check_branch
      %937 = sbr.rel (%p934) target = $region318
    $region317: #{forward.1} parent=1 // pred_region
      %s952 = sand.u32 16, 7
      %p953 = scmp.eq.s32.totalorder %s952, 0
      // Predicated region
      $region330: #{forward.1} parent=317 // pred_check
        %p954 = pneg %p953
      $region331: #{forward.1} parent=317 // pred_check_branch
        %956 = sbr.rel (%p954) target = $region333
      $region332: #{forward.1} parent=317 // pred_region
        loop: start=0, step=1, limit=1
        $region334: #{forward.1} parent=332 // loop_pre_header
          _
        $region335: #{forward.1} parent=332 // loop_header
          %s958 = sphi 0, %s962
          %p959 = scmp.ge.s32.totalorder %s958, 1
          %s963 = sphi %s79, %s79
          %s964 = sphi [#allocation10], [#allocation10]
        $region336: #{forward.1} parent=332 // loop_header_branch
          %961 = sbr.rel (%p959) target = $region340
        $region337: #{forward.1} parent=332 // loop_body
          %v965 = vld [vmem:[%s963] sm:$0xff]
          %966 = vst [vmem:[%s964] sm:$0xff] %v965
          %v967 = vld [vmem:[%s963 + $0x8] sm:$0xff]
          %968 = vst [vmem:[%s964 + $0x8] sm:$0xff] %v967
        $region338: #{forward.1} parent=332 // loop_footer
          %s962 = sadd.s32 1, %s958
        $region339: #{forward.1} parent=332 // loop_footer_branch
          %957 = sbr.rel target = $region335
        $region340: #{forward.1} parent=332 // loop_exit
          _
      $region333: #{forward.1} parent=317 // pred_fallthru
        _
      %p969 = pneg %p953
      // Predicated region
      $region341: #{forward.1} parent=317 // pred_check
        _
      $region342: #{forward.1} parent=317 // pred_check_branch
        %971 = sbr.rel (%p953) target = $region344
      $region343: #{forward.1} parent=317 // pred_region
        %s972 = sand.u32 16, 7
      $region344: #{forward.1} parent=317 // pred_fallthru
        _
    $region318: #{forward.1} parent=1 // pred_fallthru
      _
    // Predicated region
    $region319: #{forward.1} parent=1 // pred_check
      %p938 = pneg %p934
    $region320: #{forward.1} parent=1 // pred_check_branch
      %940 = sbr.rel (%p938) target = $region322
    $region321: #{forward.1} parent=1 // pred_region
      %s941 = sshllo.u32 0, 16
      loop: start=0, step=1, limit=1
      $region323: #{forward.1} parent=321 // loop_pre_header
        _
      $region324: #{forward.1} parent=321 // loop_header
        %s943 = sphi 0, %s947
        %p944 = scmp.ge.s32.totalorder %s943, 1
        %s948 = sphi %s79, %s79
        %s949 = sphi [#allocation10], [#allocation10]
      $region325: #{forward.1} parent=321 // loop_header_branch
        %946 = sbr.rel (%p944) target = $region329
      $region326: #{forward.1} parent=321 // loop_body
        %v950 = vld [vmem:[%s948] sm:%s941]
        %951 = vst [vmem:[%s949] sm:%s941] %v950
      $region327: #{forward.1} parent=321 // loop_footer
        %s947 = sadd.s32 1, %s943
      $region328: #{forward.1} parent=321 // loop_footer_branch
        %942 = sbr.rel target = $region324
      $region329: #{forward.1} parent=321 // loop_exit
        _
    $region322: #{forward.1} parent=1 // pred_fallthru
      _
    // Predicated region
    $region345: #{forward.1} parent=1 // pred_check
      _
    $region346: #{forward.1} parent=1 // pred_check_branch
      %975 = sbr.rel (0) target = $region348
    $region347: #{forward.1} parent=1 // pred_region
      %976 = vsyncadd %s932, 256
    $region348: #{forward.1} parent=1 // pred_fallthru
      _
    %v977 = vld [vmem:[%s1] sm:$0xff]
    %v978 = vld [vmem:[%s3] sm:$0xff]
    %v979 = vlaneseq
    %v980 = vshrl.u32 %v979, 7
    %v981 = vlaneseq
    %v982 = vand.u32 %v981, 127
    %vm983 = vcmp.lt.s32.totalorder %v980, 4
    %vm984 = vcmp.lt.s32.totalorder %v982, 4
    %vm985 = vmand %vm983, %vm984
    %vm986 = vcmp.ge.s32.totalorder %v980, 4
    %vm987 = vcmp.ge.s32.totalorder %v982, 4
    %vm988 = vmand %vm986, %vm987
    %vm989 = vmor %vm985, %vm988
    %v990 = vsel %vm989, 0.0, -1e+30
    %v991 = vadd.s32 %v980, 8
    %v992 = vand.u32 %v980, 3
    %v993 = vand.u32 %v991, 3
    %v994 = vand.u32 %v982, 3
    %vm995 = vcmp.eq.s32.totalorder %v992, %v994
    %vm996 = vcmp.eq.s32.totalorder %v993, %v994
    %v997 = vsel %vm995, 0.0, -1e+30
    %v998 = vsel %vm996, 0.0, -1e+30
    %v999 = vpack.c.bf16 %v977, %v977
    %v1000 = vld [vmem:[%s5] sm:$0xf]
    %v1001 = vld [vmem:[%s5 + $0x4] sm:$0xf]
    %v1002 = vld [vmem:[%s5 + $0x8] sm:$0xf]
    %v1003 = vld [vmem:[%s5 + $0xc] sm:$0xf]
    %v1004 = vld [vmem:[%s5 + $0x10] sm:$0xf]
    %v1005 = vld [vmem:[%s5 + $0x14] sm:$0xf]
    %v1006 = vld [vmem:[%s5 + $0x18] sm:$0xf]
    %v1007 = vld [vmem:[%s5 + $0x1c] sm:$0xf]
    %v1008 = vld [vmem:[%s5 + $0x20] sm:$0xf]
    %v1009 = vld [vmem:[%s5 + $0x24] sm:$0xf]
    %v1010 = vld [vmem:[%s5 + $0x28] sm:$0xf]
    %v1011 = vld [vmem:[%s5 + $0x2c] sm:$0xf]
    %v1012 = vld [vmem:[%s5 + $0x30] sm:$0xf]
    %v1013 = vld [vmem:[%s5 + $0x34] sm:$0xf]
    %v1014 = vld [vmem:[%s5 + $0x38] sm:$0xf]
    %v1015 = vld [vmem:[%s5 + $0x3c] sm:$0xf]
    %v1016 = vld [vmem:[#allocation13] sm:$0x1]
    %v1018 = vlaneseq
    %v1019 = vshrl.u32 %v1018, 7
    %v1020 = vsub.s32 0, %v1019
    %v1021 = vrot.slane %v1016, %v1020
    %v1039 = vunpack.c.l.b16 %v1000
    %v1040 = vunpack.c.l.b16 %v1001
    %v1041 = vunpack.c.l.b16 %v1002
    %v1042 = vunpack.c.l.b16 %v1003
    %v1043 = vunpack.c.l.b16 %v1004
    %v1044 = vunpack.c.l.b16 %v1005
    %v1045 = vunpack.c.l.b16 %v1006
    %v1046 = vunpack.c.l.b16 %v1007
    %v1047 = vunpack.c.l.b16 %v1008
    %v1048 = vunpack.c.l.b16 %v1009
    %v1049 = vunpack.c.l.b16 %v1010
    %v1050 = vunpack.c.l.b16 %v1011
    %v1051 = vunpack.c.l.b16 %v1012
    %v1052 = vunpack.c.l.b16 %v1013
    %v1053 = vunpack.c.l.b16 %v1014
    %v1054 = vunpack.c.l.b16 %v1015
    %v1055 = vpack.c.b16 %v1040, %v1039
    %v1056 = vpack.c.b16 %v1042, %v1041
    %v1057 = vpack.c.b16 %v1044, %v1043
    %v1058 = vpack.c.b16 %v1046, %v1045
    %v1059 = vpack.c.b16 %v1048, %v1047
    %v1060 = vpack.c.b16 %v1050, %v1049
    %v1061 = vpack.c.b16 %v1052, %v1051
    %v1062 = vpack.c.b16 %v1054, %v1053
    %1071 = vmatprep.subr.bf16.mxu0 0
    %1072 = vmatpush1.bf16.msra.mxu0 %v1055
    %1073 = vmatprep.subr.bf16.mxu0 0
    %1074 = vmatpush1.bf16.msra.mxu0 %v1056
    %1075 = vmatprep.subr.bf16.mxu0 0
    %1076 = vmatpush1.bf16.msra.mxu0 %v1057
    %1077 = vmatprep.subr.bf16.mxu0 0
    %1078 = vmatpush1.bf16.msra.mxu0 %v1058
    %1079 = vmatprep.subr.bf16.mxu0 0
    %1080 = vmatpush1.bf16.msra.mxu0 %v1059
    %1081 = vmatprep.subr.bf16.mxu0 0
    %1082 = vmatpush1.bf16.msra.mxu0 %v1060
    %1083 = vmatprep.subr.bf16.mxu0 0
    %1084 = vmatpush1.bf16.msra.mxu0 %v1061
    %1085 = vmatprep.subr.bf16.mxu0 0
    %1086 = vmatpush1.bf16.msra.mxu0 %v1062
    %1087 = vmatprep.subr.bf16.mxu0 0
    %1088 = vmatpush1.bf16.msra.mxu0 0
    %1089 = vmatprep.subr.bf16.mxu0 0
    %1090 = vmatpush1.bf16.msra.mxu0 0
    %1091 = vmatprep.subr.bf16.mxu0 0
    %1092 = vmatpush1.bf16.msra.mxu0 0
    %1093 = vmatprep.subr.bf16.mxu0 0
    %1094 = vmatpush1.bf16.msra.mxu0 0
    %1095 = vmatprep.subr.bf16.mxu0 0
    %1096 = vmatpush1.bf16.msra.mxu0 0
    %1097 = vmatprep.subr.bf16.mxu0 0
    %1098 = vmatpush1.bf16.msra.mxu0 0
    %1099 = vmatprep.subr.bf16.mxu0 0
    %1100 = vmatpush1.bf16.msra.mxu0 0
    %1101 = vmatprep.subr.bf16.mxu0 0
    %1102 = vmatpush1.bf16.msra.mxu0 0
    %1103 = vmatprep.mubr.bf16.mxu0 0
    %1104 = vmatmul.mubr.bf16.gmra.mrb[0].mxu0 %v999
    %v1105 = vpop.f32.mrb[0].mxu0
    %v1106 = vadd.f32 %v1021, %v1105
    %v1107 = vpop.f32.mrb[0].mxu0
    %v1108 = vpop.f32.mrb[0].mxu0
    %v1109 = vpop.f32.mrb[0].mxu0
    %1110 = vdwg.mxu0
    %v1111 = vmax.f32 %v1106, 0.0
    %v1112 = vpack.c.bf16 %v1111, %v1111
    %v1113 = vld [vmem:[%s9] sm:$0xf]
    %v1114 = vld [vmem:[%s9 + $0x4] sm:$0xf]
    %v1115 = vld [vmem:[%s9 + $0x8] sm:$0xf]
    %v1116 = vld [vmem:[%s9 + $0xc] sm:$0xf]
    %v1117 = vld [vmem:[%s9 + $0x10] sm:$0xf]
    %v1118 = vld [vmem:[%s9 + $0x14] sm:$0xf]
    %v1119 = vld [vmem:[%s9 + $0x18] sm:$0xf]
    %v1120 = vld [vmem:[%s9 + $0x1c] sm:$0xf]
    %v1121 = vld [vmem:[#allocation12] sm:$0x1]
    %v1123 = vlaneseq
    %v1124 = vshrl.u32 %v1123, 7
    %v1125 = vsub.s32 0, %v1124
    %v1126 = vrot.slane %v1121, %v1125
    %v1136 = vunpack.c.l.b16 %v1113
    %v1137 = vunpack.c.l.b16 %v1114
    %v1138 = vunpack.c.l.b16 %v1115
    %v1139 = vunpack.c.l.b16 %v1116
    %v1140 = vunpack.c.l.b16 %v1117
    %v1141 = vunpack.c.l.b16 %v1118
    %v1142 = vunpack.c.l.b16 %v1119
    %v1143 = vunpack.c.l.b16 %v1120
    %v1144 = vpack.c.b16 %v1137, %v1136
    %v1145 = vpack.c.b16 %v1139, %v1138
    %v1146 = vpack.c.b16 %v1141, %v1140
    %v1147 = vpack.c.b16 %v1143, %v1142
    %vm1152 = vcmask 523264
    %v1154 = vsel %vm1152, %v1112, 0
    %1156 = vmatprep.subr.bf16.mxu0 0
    %1157 = vmatpush1.bf16.msra.mxu0 %v1144
    %1158 = vmatprep.subr.bf16.mxu0 0
    %1159 = vmatpush1.bf16.msra.mxu0 %v1145
    %1160 = vmatprep.subr.bf16.mxu0 0
    %1161 = vmatpush1.bf16.msra.mxu0 %v1146
    %1162 = vmatprep.subr.bf16.mxu0 0
    %1163 = vmatpush1.bf16.msra.mxu0 %v1147
    %1164 = vmatprep.subr.bf16.mxu0 0
    %1165 = vmatpush1.bf16.msra.mxu0 0
    %1166 = vmatprep.subr.bf16.mxu0 0
    %1167 = vmatpush1.bf16.msra.mxu0 0
    %1168 = vmatprep.subr.bf16.mxu0 0
    %1169 = vmatpush1.bf16.msra.mxu0 0
    %1170 = vmatprep.subr.bf16.mxu0 0
    %1171 = vmatpush1.bf16.msra.mxu0 0
    %1172 = vmatprep.subr.bf16.mxu0 0
    %1173 = vmatpush1.bf16.msra.mxu0 0
    %1174 = vmatprep.subr.bf16.mxu0 0
    %1175 = vmatpush1.bf16.msra.mxu0 0
    %1176 = vmatprep.subr.bf16.mxu0 0
    %1177 = vmatpush1.bf16.msra.mxu0 0
    %1178 = vmatprep.subr.bf16.mxu0 0
    %1179 = vmatpush1.bf16.msra.mxu0 0
    %1180 = vmatprep.subr.bf16.mxu0 0
    %1181 = vmatpush1.bf16.msra.mxu0 0
    %1182 = vmatprep.subr.bf16.mxu0 0
    %1183 = vmatpush1.bf16.msra.mxu0 0
    %1184 = vmatprep.subr.bf16.mxu0 0
    %1185 = vmatpush1.bf16.msra.mxu0 0
    %1186 = vmatprep.subr.bf16.mxu0 0
    %1187 = vmatpush1.bf16.msra.mxu0 0
    %1188 = vmatprep.mubr.bf16.mxu0 0
    %1189 = vmatmul.mubr.bf16.gmra.mrb[0].mxu0 %v1154
    %v1190 = vpop.f32.mrb[0].mxu0
    %v1191 = vadd.f32 %v1126, %v1190
    %v1192 = vpop.f32.mrb[0].mxu0
    %v1193 = vpop.f32.mrb[0].mxu0
    %v1194 = vpop.f32.mrb[0].mxu0
    %1195 = vdwg.mxu0
    %v1196 = vxor.u32 %v1191, 2147483648
    %v1197 = vmul.f32 %v1196, 1.442695
    %v1198 = vpow.pop %v1197
    %v1199 = vadd.f32 %v1198, 1.0
    %v1200 = vrcp.pop %v1199
    %v1201 = vmul.f32 1.0, %v1200
    %1203 = vset.pattern.permute.xlu0 0
    %1204 = vperm.xlu0 %1203, %v1201
    %v1205 = vpop.permute.xlu0 %1204
    %v1207 = vmul.f32 %v1205, %v977
    %v1208 = vld [vmem:[%s13] sm:$0xff]
    %v1209 = vld [vmem:[%s13 + $0x8] sm:$0xf]
    %v1210 = vld [vmem:[%s13 + $0xc] sm:$0xff]
    %v1211 = vld [vmem:[%s13 + $0x14] sm:$0xf]
    %v1212 = vld [vmem:[%s13 + $0x18] sm:$0xff]
    %v1213 = vld [vmem:[%s13 + $0x20] sm:$0xf]
    %v1214 = vld [vmem:[%s13 + $0x24] sm:$0xff]
    %v1215 = vld [vmem:[%s13 + $0x2c] sm:$0xf]
    %v1216 = vld [vmem:[%s13 + $0x30] sm:$0xff]
    %v1217 = vld [vmem:[%s13 + $0x38] sm:$0xf]
    %v1218 = vld [vmem:[%s13 + $0x3c] sm:$0xff]
    %v1219 = vld [vmem:[%s13 + $0x44] sm:$0xf]
    %v1220 = vld [vmem:[%s13 + $0x48] sm:$0xff]
    %v1221 = vld [vmem:[%s13 + $0x50] sm:$0xf]
    %v1222 = vld [vmem:[%s13 + $0x54] sm:$0xff]
    %v1223 = vld [vmem:[%s13 + $0x5c] sm:$0xf]
    %v1224 = vld [vmem:[%s13 + $0x60] sm:$0xff]
    %v1225 = vld [vmem:[%s13 + $0x68] sm:$0xf]
    %v1226 = vld [vmem:[%s13 + $0x6c] sm:$0xff]
    %v1227 = vld [vmem:[%s13 + $0x74] sm:$0xf]
    %v1228 = vld [vmem:[%s13 + $0x78] sm:$0xff]
    %v1229 = vld [vmem:[%s13 + $0x80] sm:$0xf]
    %v1230 = vld [vmem:[%s13 + $0x84] sm:$0xff]
    %v1231 = vld [vmem:[%s13 + $0x8c] sm:$0xf]
    %v1232 = vld [vmem:[%s13 + $0x90] sm:$0xff]
    %v1233 = vld [vmem:[%s13 + $0x98] sm:$0xf]
    %v1234 = vld [vmem:[%s13 + $0x9c] sm:$0xff]
    %v1235 = vld [vmem:[%s13 + $0xa4] sm:$0xf]
    %v1236 = vld [vmem:[%s13 + $0xa8] sm:$0xff]
    %v1237 = vld [vmem:[%s13 + $0xb0] sm:$0xf]
    %v1238 = vld [vmem:[%s13 + $0xb4] sm:$0xff]
    %v1239 = vld [vmem:[%s13 + $0xbc] sm:$0xf]
    %v1240 = vld [vmem:[%s13 + $0xc0] sm:$0xff]
    %v1241 = vld [vmem:[%s13 + $0xc8] sm:$0xf]
    %v1242 = vld [vmem:[%s13 + $0xcc] sm:$0xff]
    %v1243 = vld [vmem:[%s13 + $0xd4] sm:$0xf]
    %v1244 = vld [vmem:[%s13 + $0xd8] sm:$0xff]
    %v1245 = vld [vmem:[%s13 + $0xe0] sm:$0xf]
    %v1246 = vld [vmem:[%s13 + $0xe4] sm:$0xff]
    %v1247 = vld [vmem:[%s13 + $0xec] sm:$0xf]
    %v1248 = vld [vmem:[%s13 + $0xf0] sm:$0xff]
    %v1249 = vld [vmem:[%s13 + $0xf8] sm:$0xf]
    %v1250 = vld [vmem:[%s13 + $0xfc] sm:$0xff]
    %v1251 = vld [vmem:[%s13 + $0x104] sm:$0xf]
    %v1252 = vld [vmem:[%s13 + $0x108] sm:$0xff]
    %v1253 = vld [vmem:[%s13 + $0x110] sm:$0xf]
    %v1254 = vld [vmem:[%s13 + $0x114] sm:$0xff]
    %v1255 = vld [vmem:[%s13 + $0x11c] sm:$0xf]
    %v1256 = vld [vmem:[%s13 + $0x120] sm:$0xff]
    %v1257 = vld [vmem:[%s13 + $0x128] sm:$0xf]
    %v1258 = vld [vmem:[%s13 + $0x12c] sm:$0xff]
    %v1259 = vld [vmem:[%s13 + $0x134] sm:$0xf]
    %v1260 = vld [vmem:[%s13 + $0x138] sm:$0xff]
    %v1261 = vld [vmem:[%s13 + $0x140] sm:$0xf]
    %v1262 = vld [vmem:[%s13 + $0x144] sm:$0xff]
    %v1263 = vld [vmem:[%s13 + $0x14c] sm:$0xf]
    %v1264 = vld [vmem:[%s13 + $0x150] sm:$0xff]
    %v1265 = vld [vmem:[%s13 + $0x158] sm:$0xf]
    %v1266 = vld [vmem:[%s13 + $0x15c] sm:$0xff]
    %v1267 = vld [vmem:[%s13 + $0x164] sm:$0xf]
    %v1268 = vld [vmem:[%s13 + $0x168] sm:$0xff]
    %v1269 = vld [vmem:[%s13 + $0x170] sm:$0xf]
    %v1270 = vld [vmem:[%s13 + $0x174] sm:$0xff]
    %v1271 = vld [vmem:[%s13 + $0x17c] sm:$0xf]
    %v1272 = vld [vmem:[%s15] sm:$0x7]
    %v1273 = vld [vmem:[%s15 + $0x3] sm:$0x7]
    %v1274 = vld [vmem:[#allocation15] sm:$0xf]
    %v1275 = vld [vmem:[#allocation15 + $0x4] sm:$0xf]
    %v1276 = vld [vmem:[#allocation15 + $0x8] sm:$0xf]
    %v1277 = vld [vmem:[#allocation15 + $0xc] sm:$0xf]
    %v1278 = vld [vmem:[#allocation15 + $0x10] sm:$0xf]
    %v1279 = vld [vmem:[#allocation15 + $0x14] sm:$0xf]
    %v1280 = vld [vmem:[#allocation15 + $0x18] sm:$0xf]
    %v1281 = vld [vmem:[#allocation15 + $0x1c] sm:$0xf]
    %v1282 = vld [vmem:[#allocation15 + $0x20] sm:$0xf]
    %v1283 = vld [vmem:[#allocation15 + $0x24] sm:$0xf]
    %v1284 = vld [vmem:[#allocation15 + $0x28] sm:$0xf]
    %v1285 = vld [vmem:[#allocation15 + $0x2c] sm:$0xf]
    %v1286 = vld [vmem:[#allocation15 + $0x30] sm:$0xf]
    %v1287 = vld [vmem:[#allocation15 + $0x34] sm:$0xf]
    %v1288 = vld [vmem:[#allocation15 + $0x38] sm:$0xf]
    %v1289 = vld [vmem:[#allocation15 + $0x3c] sm:$0xf]
    %v1290 = vld [vmem:[#allocation15 + $0x40] sm:$0xf]
    %v1291 = vld [vmem:[#allocation15 + $0x44] sm:$0xf]
    %v1292 = vld [vmem:[#allocation15 + $0x48] sm:$0xf]
    %v1293 = vld [vmem:[#allocation15 + $0x4c] sm:$0xf]
    %v1294 = vld [vmem:[#allocation15 + $0x50] sm:$0xf]
    %v1295 = vld [vmem:[#allocation15 + $0x54] sm:$0xf]
    %v1296 = vld [vmem:[#allocation15 + $0x58] sm:$0xf]
    %v1297 = vld [vmem:[#allocation15 + $0x5c] sm:$0xf]
    %v1298 = vld [vmem:[#allocation15 + $0x60] sm:$0xf]
    %v1299 = vld [vmem:[#allocation15 + $0x64] sm:$0xf]
    %v1300 = vld [vmem:[#allocation15 + $0x68] sm:$0xf]
    %v1301 = vld [vmem:[#allocation15 + $0x6c] sm:$0xf]
    %v1302 = vld [vmem:[#allocation15 + $0x70] sm:$0xf]
    %v1303 = vld [vmem:[#allocation15 + $0x74] sm:$0xf]
    %v1304 = vld [vmem:[#allocation15 + $0x78] sm:$0xf]
    %v1305 = vld [vmem:[#allocation15 + $0x7c] sm:$0xf]
    %v1306 = vld [vmem:[#allocation17] sm:$0x1]
    %v1307 = vld [vmem:[#allocation17 + $0x1] sm:$0x1]
    %v1308 = vld [vmem:[#allocation18] sm:$0xff]
    %v1309 = vld [vmem:[#allocation18 + $0x8] sm:$0xff]
    %v1310 = vld [vmem:[#allocation18 + $0x10] sm:$0xff]
    %v1311 = vld [vmem:[#allocation18 + $0x18] sm:$0xff]
    %v1312 = vld [vmem:[#allocation18 + $0x20] sm:$0xff]
    %v1313 = vld [vmem:[#allocation18 + $0x28] sm:$0xff]
    %v1314 = vld [vmem:[#allocation18 + $0x30] sm:$0xff]
    %v1315 = vld [vmem:[#allocation18 + $0x38] sm:$0xff]
    %v1316 = vld [vmem:[#allocation18 + $0x40] sm:$0xff]
    %v1317 = vld [vmem:[#allocation18 + $0x48] sm:$0xff]
    %v1318 = vld [vmem:[#allocation18 + $0x50] sm:$0xff]
    %v1319 = vld [vmem:[#allocation18 + $0x58] sm:$0xff]
    %v1320 = vld [vmem:[#allocation18 + $0x60] sm:$0xff]
    %v1321 = vld [vmem:[#allocation18 + $0x68] sm:$0xff]
    %v1322 = vld [vmem:[#allocation18 + $0x70] sm:$0xff]
    %v1323 = vld [vmem:[#allocation18 + $0x78] sm:$0xff]
    %v1324 = vld [vmem:[#allocation18 + $0x80] sm:$0xff]
    %v1325 = vld [vmem:[#allocation18 + $0x88] sm:$0xff]
    %v1326 = vld [vmem:[#allocation18 + $0x90] sm:$0xff]
    %v1327 = vld [vmem:[#allocation18 + $0x98] sm:$0xff]
    %v1328 = vld [vmem:[#allocation18 + $0xa0] sm:$0xff]
    %v1329 = vld [vmem:[#allocation18 + $0xa8] sm:$0xff]
    %v1330 = vld [vmem:[#allocation18 + $0xb0] sm:$0xff]
    %v1331 = vld [vmem:[#allocation18 + $0xb8] sm:$0xff]
    %v1332 = vld [vmem:[#allocation18 + $0xc0] sm:$0xff]
    %v1333 = vld [vmem:[#allocation18 + $0xc8] sm:$0xff]
    %v1334 = vld [vmem:[#allocation18 + $0xd0] sm:$0xff]
    %v1335 = vld [vmem:[#allocation18 + $0xd8] sm:$0xff]
    %v1336 = vld [vmem:[#allocation18 + $0xe0] sm:$0xff]
    %v1337 = vld [vmem:[#allocation18 + $0xe8] sm:$0xff]
    %v1338 = vld [vmem:[#allocation18 + $0xf0] sm:$0xff]
    %v1339 = vld [vmem:[#allocation18 + $0xf8] sm:$0xff]
    %v1340 = vld [vmem:[#allocation20] sm:$0x3]
    %v1341 = vld [vmem:[#allocation20 + $0x2] sm:$0x3]
    %v1342 = vld [vmem:[#allocation21] sm:$0xf]
    %v1343 = vld [vmem:[#allocation21 + $0x4] sm:$0xf]
    %v1344 = vld [vmem:[#allocation21 + $0x8] sm:$0xf]
    %v1345 = vld [vmem:[#allocation21 + $0xc] sm:$0xf]
    %v1346 = vld [vmem:[#allocation21 + $0x10] sm:$0xf]
    %v1347 = vld [vmem:[#allocation21 + $0x14] sm:$0xf]
    %v1348 = vld [vmem:[#allocation21 + $0x18] sm:$0xf]
    %v1349 = vld [vmem:[#allocation21 + $0x1c] sm:$0xf]
    %v1350 = vld [vmem:[#allocation21 + $0x20] sm:$0xf]
    %v1351 = vld [vmem:[#allocation21 + $0x24] sm:$0xf]
    %v1352 = vld [vmem:[#allocation21 + $0x28] sm:$0xf]
    %v1353 = vld [vmem:[#allocation21 + $0x2c] sm:$0xf]
    %v1354 = vld [vmem:[#allocation21 + $0x30] sm:$0xf]
    %v1355 = vld [vmem:[#allocation21 + $0x34] sm:$0xf]
    %v1356 = vld [vmem:[#allocation21 + $0x38] sm:$0xf]
    %v1357 = vld [vmem:[#allocation21 + $0x3c] sm:$0xf]
    %v1358 = vld [vmem:[#allocation21 + $0x40] sm:$0xf]
    %v1359 = vld [vmem:[#allocation21 + $0x44] sm:$0xf]
    %v1360 = vld [vmem:[#allocation21 + $0x48] sm:$0xf]
    %v1361 = vld [vmem:[#allocation21 + $0x4c] sm:$0xf]
    %v1362 = vld [vmem:[#allocation21 + $0x50] sm:$0xf]
    %v1363 = vld [vmem:[#allocation21 + $0x54] sm:$0xf]
    %v1364 = vld [vmem:[#allocation21 + $0x58] sm:$0xf]
    %v1365 = vld [vmem:[#allocation21 + $0x5c] sm:$0xf]
    %v1366 = vld [vmem:[#allocation21 + $0x60] sm:$0xf]
    %v1367 = vld [vmem:[#allocation21 + $0x64] sm:$0xf]
    %v1368 = vld [vmem:[#allocation21 + $0x68] sm:$0xf]
    %v1369 = vld [vmem:[#allocation21 + $0x6c] sm:$0xf]
    %v1370 = vld [vmem:[#allocation21 + $0x70] sm:$0xf]
    %v1371 = vld [vmem:[#allocation21 + $0x74] sm:$0xf]
    %v1372 = vld [vmem:[#allocation21 + $0x78] sm:$0xf]
    %v1373 = vld [vmem:[#allocation21 + $0x7c] sm:$0xf]
    %v1374 = vld [vmem:[#allocation21 + $0x80] sm:$0xf]
    %v1375 = vld [vmem:[#allocation21 + $0x84] sm:$0xf]
    %v1376 = vld [vmem:[#allocation21 + $0x88] sm:$0xf]
    %v1377 = vld [vmem:[#allocation21 + $0x8c] sm:$0xf]
    %v1378 = vld [vmem:[#allocation21 + $0x90] sm:$0xf]
    %v1379 = vld [vmem:[#allocation21 + $0x94] sm:$0xf]
    %v1380 = vld [vmem:[#allocation21 + $0x98] sm:$0xf]
    %v1381 = vld [vmem:[#allocation21 + $0x9c] sm:$0xf]
    %v1382 = vld [vmem:[#allocation21 + $0xa0] sm:$0xf]
    %v1383 = vld [vmem:[#allocation21 + $0xa4] sm:$0xf]
    %v1384 = vld [vmem:[#allocation21 + $0xa8] sm:$0xf]
    %v1385 = vld [vmem:[#allocation21 + $0xac] sm:$0xf]
    %v1386 = vld [vmem:[#allocation21 + $0xb0] sm:$0xf]
    %v1387 = vld [vmem:[#allocation21 + $0xb4] sm:$0xf]
    %v1388 = vld [vmem:[#allocation21 + $0xb8] sm:$0xf]
    %v1389 = vld [vmem:[#allocation21 + $0xbc] sm:$0xf]
    %v1390 = vld [vmem:[#allocation21 + $0xc0] sm:$0xf]
    %v1391 = vld [vmem:[#allocation21 + $0xc4] sm:$0xf]
    %v1392 = vld [vmem:[#allocation21 + $0xc8] sm:$0xf]
    %v1393 = vld [vmem:[#allocation21 + $0xcc] sm:$0xf]
    %v1394 = vld [vmem:[#allocation21 + $0xd0] sm:$0xf]
    %v1395 = vld [vmem:[#allocation21 + $0xd4] sm:$0xf]
    %v1396 = vld [vmem:[#allocation21 + $0xd8] sm:$0xf]
    %v1397 = vld [vmem:[#allocation21 + $0xdc] sm:$0xf]
    %v1398 = vld [vmem:[#allocation21 + $0xe0] sm:$0xf]
    %v1399 = vld [vmem:[#allocation21 + $0xe4] sm:$0xf]
    %v1400 = vld [vmem:[#allocation21 + $0xe8] sm:$0xf]
    %v1401 = vld [vmem:[#allocation21 + $0xec] sm:$0xf]
    %v1402 = vld [vmem:[#allocation21 + $0xf0] sm:$0xf]
    %v1403 = vld [vmem:[#allocation21 + $0xf4] sm:$0xf]
    %v1404 = vld [vmem:[#allocation21 + $0xf8] sm:$0xf]
    %v1405 = vld [vmem:[#allocation21 + $0xfc] sm:$0xf]
    %v1406 = vld [vmem:[#allocation23] sm:$0x1]
    %v1407 = vld [vmem:[#allocation23 + $0x1] sm:$0x1]
    %v1408 = vld [vmem:[#allocation24] sm:$0x1]
    %v1409 = vld [vmem:[#allocation24 + $0x1] sm:$0x1]
    %v1410 = vld [vmem:[#allocation26] sm:$0x1]
    %v1411 = vld [vmem:[#allocation26 + $0x1] sm:$0x1]
    %v1412 = vld [vmem:[#allocation27] sm:$0x1]
    %v1413 = vld [vmem:[#allocation27 + $0x1] sm:$0x1]
    %v1414 = vld [vmem:[#allocation29] sm:$0x1]
    %v1415 = vld [vmem:[#allocation29 + $0x1] sm:$0x1]
    %v1416 = vpack.c.bf16 %v1207, %v1207
    %v1417 = vpack.c.bf16 %v978, %v978
    %v1420 = vlaneseq
    %v1421 = vshrl.u32 %v1420, 7
    %v1422 = vsub.s32 0, %v1421
    %v1423 = vrot.slane %v1272, %v1422
    %v1424 = vlaneseq
    %v1425 = vshrl.u32 %v1424, 7
    %v1426 = vsub.s32 1, %v1425
    %v1427 = vrot.slane %v1272, %v1426
    %v1428 = vlaneseq
    %v1429 = vshrl.u32 %v1428, 7
    %v1430 = vsub.s32 2, %v1429
    %v1431 = vrot.slane %v1272, %v1430
    %v1432 = vlaneseq
    %v1433 = vshrl.u32 %v1432, 7
    %v1434 = vsub.s32 0, %v1433
    %v1435 = vrot.slane %v1273, %v1434
    %v1436 = vlaneseq
    %v1437 = vshrl.u32 %v1436, 7
    %v1438 = vsub.s32 1, %v1437
    %v1439 = vrot.slane %v1273, %v1438
    %v1440 = vlaneseq
    %v1441 = vshrl.u32 %v1440, 7
    %v1442 = vsub.s32 2, %v1441
    %v1443 = vrot.slane %v1273, %v1442
    %v1482 = vunpack.c.l.b16 %v1208
    %v1483 = vunpack.c.h.b16 %v1208
    %v1484 = vunpack.c.l.b16 %v1209
    %v1485 = vunpack.c.l.b16 %v1210
    %v1486 = vunpack.c.h.b16 %v1210
    %v1487 = vunpack.c.l.b16 %v1211
    %v1488 = vunpack.c.l.b16 %v1212
    %v1489 = vunpack.c.h.b16 %v1212
    %v1490 = vunpack.c.l.b16 %v1213
    %v1491 = vunpack.c.l.b16 %v1214
    %v1492 = vunpack.c.h.b16 %v1214
    %v1493 = vunpack.c.l.b16 %v1215
    %v1494 = vunpack.c.l.b16 %v1216
    %v1495 = vunpack.c.h.b16 %v1216
    %v1496 = vunpack.c.l.b16 %v1217
    %v1497 = vunpack.c.l.b16 %v1218
    %v1498 = vunpack.c.h.b16 %v1218
    %v1499 = vunpack.c.l.b16 %v1219
    %v1500 = vunpack.c.l.b16 %v1220
    %v1501 = vunpack.c.h.b16 %v1220
    %v1502 = vunpack.c.l.b16 %v1221
    %v1503 = vunpack.c.l.b16 %v1222
    %v1504 = vunpack.c.h.b16 %v1222
    %v1505 = vunpack.c.l.b16 %v1223
    %v1506 = vunpack.c.l.b16 %v1224
    %v1507 = vunpack.c.h.b16 %v1224
    %v1508 = vunpack.c.l.b16 %v1225
    %v1509 = vunpack.c.l.b16 %v1226
    %v1510 = vunpack.c.h.b16 %v1226
    %v1511 = vunpack.c.l.b16 %v1227
    %v1512 = vunpack.c.l.b16 %v1228
    %v1513 = vunpack.c.h.b16 %v1228
    %v1514 = vunpack.c.l.b16 %v1229
    %v1515 = vunpack.c.l.b16 %v1230
    %v1516 = vunpack.c.h.b16 %v1230
    %v1517 = vunpack.c.l.b16 %v1231
    %v1518 = vunpack.c.l.b16 %v1232
    %v1519 = vunpack.c.h.b16 %v1232
    %v1520 = vunpack.c.l.b16 %v1233
    %v1521 = vunpack.c.l.b16 %v1234
    %v1522 = vunpack.c.h.b16 %v1234
    %v1523 = vunpack.c.l.b16 %v1235
    %v1524 = vunpack.c.l.b16 %v1236
    %v1525 = vunpack.c.h.b16 %v1236
    %v1526 = vunpack.c.l.b16 %v1237
    %v1527 = vunpack.c.l.b16 %v1238
    %v1528 = vunpack.c.h.b16 %v1238
    %v1529 = vunpack.c.l.b16 %v1239
    %v1530 = vpack.c.b16 %v1485, %v1482
    %v1531 = vpack.c.b16 %v1486, %v1483
    %v1532 = vpack.c.b16 %v1487, %v1484
    %v1533 = vpack.c.b16 %v1491, %v1488
    %v1534 = vpack.c.b16 %v1492, %v1489
    %v1535 = vpack.c.b16 %v1493, %v1490
    %v1536 = vpack.c.b16 %v1497, %v1494
    %v1537 = vpack.c.b16 %v1498, %v1495
    %v1538 = vpack.c.b16 %v1499, %v1496
    %v1539 = vpack.c.b16 %v1503, %v1500
    %v1540 = vpack.c.b16 %v1504, %v1501
    %v1541 = vpack.c.b16 %v1505, %v1502
    %v1542 = vpack.c.b16 %v1509, %v1506
    %v1543 = vpack.c.b16 %v1510, %v1507
    %v1544 = vpack.c.b16 %v1511, %v1508
    %v1545 = vpack.c.b16 %v1515, %v1512
    %v1546 = vpack.c.b16 %v1516, %v1513
    %v1547 = vpack.c.b16 %v1517, %v1514
    %v1548 = vpack.c.b16 %v1521, %v1518
    %v1549 = vpack.c.b16 %v1522, %v1519
    %v1550 = vpack.c.b16 %v1523, %v1520
    %v1551 = vpack.c.b16 %v1527, %v1524
    %v1552 = vpack.c.b16 %v1528, %v1525
    %v1553 = vpack.c.b16 %v1529, %v1526
    %1578 = vmatprep.subr.bf16.mxu0 %v1531
    %1579 = vmatpush1.bf16.msra.mxu0 %v1530
    %1580 = vmatprep.subr.bf16.mxu0 %v1534
    %1581 = vmatpush1.bf16.msra.mxu0 %v1533
    %1582 = vmatprep.subr.bf16.mxu0 %v1537
    %1583 = vmatpush1.bf16.msra.mxu0 %v1536
    %1584 = vmatprep.subr.bf16.mxu0 %v1540
    %1585 = vmatpush1.bf16.msra.mxu0 %v1539
    %1586 = vmatprep.subr.bf16.mxu0 %v1543
    %1587 = vmatpush1.bf16.msra.mxu0 %v1542
    %1588 = vmatprep.subr.bf16.mxu0 %v1546
    %1589 = vmatpush1.bf16.msra.mxu0 %v1545
    %1590 = vmatprep.subr.bf16.mxu0 %v1549
    %1591 = vmatpush1.bf16.msra.mxu0 %v1548
    %1592 = vmatprep.subr.bf16.mxu0 %v1552
    %1593 = vmatpush1.bf16.msra.mxu0 %v1551
    %1594 = vmatprep.subr.bf16.mxu0 0
    %1595 = vmatpush1.bf16.msra.mxu0 0
    %1596 = vmatprep.subr.bf16.mxu0 0
    %1597 = vmatpush1.bf16.msra.mxu0 0
    %1598 = vmatprep.subr.bf16.mxu0 0
    %1599 = vmatpush1.bf16.msra.mxu0 0
    %1600 = vmatprep.subr.bf16.mxu0 0
    %1601 = vmatpush1.bf16.msra.mxu0 0
    %1602 = vmatprep.subr.bf16.mxu0 0
    %1603 = vmatpush1.bf16.msra.mxu0 0
    %1604 = vmatprep.subr.bf16.mxu0 0
    %1605 = vmatpush1.bf16.msra.mxu0 0
    %1606 = vmatprep.subr.bf16.mxu0 0
    %1607 = vmatpush1.bf16.msra.mxu0 0
    %1608 = vmatprep.subr.bf16.mxu0 0
    %1609 = vmatpush1.bf16.msra.mxu0 0
    %1610 = vmatprep.mubr.bf16.mxu0 0
    %1611 = vmatmul.mubr.bf16.gmra.mrb[0].mxu0 %v1416
    %v1612 = vpop.f32.mrb[0].mxu0
    %v1613 = vadd.f32 %v1423, %v1612
    %v1614 = vpop.f32.mrb[0].mxu0
    %v1615 = vadd.f32 %v1427, %v1614
    %v1616 = vpop.f32.mrb[0].mxu0
    %v1617 = vpop.f32.mrb[0].mxu0
    %1618 = vdwg.mxu0
    %1619 = vmatprep.subr.bf16.mxu0 0
    %1620 = vmatpush1.bf16.msra.mxu0 %v1532
    %1621 = vmatprep.subr.bf16.mxu0 0
    %1622 = vmatpush1.bf16.msra.mxu0 %v1535
    %1623 = vmatprep.subr.bf16.mxu0 0
    %1624 = vmatpush1.bf16.msra.mxu0 %v1538
    %1625 = vmatprep.subr.bf16.mxu0 0
    %1626 = vmatpush1.bf16.msra.mxu0 %v1541
    %1627 = vmatprep.subr.bf16.mxu0 0
    %1628 = vmatpush1.bf16.msra.mxu0 %v1544
    %1629 = vmatprep.subr.bf16.mxu0 0
    %1630 = vmatpush1.bf16.msra.mxu0 %v1547
    %1631 = vmatprep.subr.bf16.mxu0 0
    %1632 = vmatpush1.bf16.msra.mxu0 %v1550
    %1633 = vmatprep.subr.bf16.mxu0 0
    %1634 = vmatpush1.bf16.msra.mxu0 %v1553
    %1635 = vmatprep.subr.bf16.mxu0 0
    %1636 = vmatpush1.bf16.msra.mxu0 0
    %1637 = vmatprep.subr.bf16.mxu0 0
    %1638 = vmatpush1.bf16.msra.mxu0 0
    %1639 = vmatprep.subr.bf16.mxu0 0
    %1640 = vmatpush1.bf16.msra.mxu0 0
    %1641 = vmatprep.subr.bf16.mxu0 0
    %1642 = vmatpush1.bf16.msra.mxu0 0
    %1643 = vmatprep.subr.bf16.mxu0 0
    %1644 = vmatpush1.bf16.msra.mxu0 0
    %1645 = vmatprep.subr.bf16.mxu0 0
    %1646 = vmatpush1.bf16.msra.mxu0 0
    %1647 = vmatprep.subr.bf16.mxu0 0
    %1648 = vmatpush1.bf16.msra.mxu0 0
    %1649 = vmatprep.subr.bf16.mxu0 0
    %1650 = vmatpush1.bf16.msra.mxu0 0
    %1651 = vmatprep.mubr.bf16.mxu0 0
    %1652 = vmatmul.mubr.bf16.gmra.mrb[0].mxu0 %v1416
    %v1653 = vpop.f32.mrb[0].mxu0
    %v1654 = vadd.f32 %v1431, %v1653
    %v1655 = vpop.f32.mrb[0].mxu0
    %v1656 = vpop.f32.mrb[0].mxu0
    %v1657 = vpop.f32.mrb[0].mxu0
    %1658 = vdwg.mxu0
    %v1691 = vunpack.c.l.b16 %v1240
    %v1692 = vunpack.c.h.b16 %v1240
    %v1693 = vunpack.c.l.b16 %v1241
    %v1694 = vunpack.c.l.b16 %v1242
    %v1695 = vunpack.c.h.b16 %v1242
    %v1696 = vunpack.c.l.b16 %v1243
    %v1697 = vunpack.c.l.b16 %v1244
    %v1698 = vunpack.c.h.b16 %v1244
    %v1699 = vunpack.c.l.b16 %v1245
    %v1700 = vunpack.c.l.b16 %v1246
    %v1701 = vunpack.c.h.b16 %v1246
    %v1702 = vunpack.c.l.b16 %v1247
    %v1703 = vunpack.c.l.b16 %v1248
    %v1704 = vunpack.c.h.b16 %v1248
    %v1705 = vunpack.c.l.b16 %v1249
    %v1706 = vunpack.c.l.b16 %v1250
    %v1707 = vunpack.c.h.b16 %v1250
    %v1708 = vunpack.c.l.b16 %v1251
    %v1709 = vunpack.c.l.b16 %v1252
    %v1710 = vunpack.c.h.b16 %v1252
    %v1711 = vunpack.c.l.b16 %v1253
    %v1712 = vunpack.c.l.b16 %v1254
    %v1713 = vunpack.c.h.b16 %v1254
    %v1714 = vunpack.c.l.b16 %v1255
    %v1715 = vunpack.c.l.b16 %v1256
    %v1716 = vunpack.c.h.b16 %v1256
    %v1717 = vunpack.c.l.b16 %v1257
    %v1718 = vunpack.c.l.b16 %v1258
    %v1719 = vunpack.c.h.b16 %v1258
    %v1720 = vunpack.c.l.b16 %v1259
    %v1721 = vunpack.c.l.b16 %v1260
    %v1722 = vunpack.c.h.b16 %v1260
    %v1723 = vunpack.c.l.b16 %v1261
    %v1724 = vunpack.c.l.b16 %v1262
    %v1725 = vunpack.c.h.b16 %v1262
    %v1726 = vunpack.c.l.b16 %v1263
    %v1727 = vunpack.c.l.b16 %v1264
    %v1728 = vunpack.c.h.b16 %v1264
    %v1729 = vunpack.c.l.b16 %v1265
    %v1730 = vunpack.c.l.b16 %v1266
    %v1731 = vunpack.c.h.b16 %v1266
    %v1732 = vunpack.c.l.b16 %v1267
    %v1733 = vunpack.c.l.b16 %v1268
    %v1734 = vunpack.c.h.b16 %v1268
    %v1735 = vunpack.c.l.b16 %v1269
    %v1736 = vunpack.c.l.b16 %v1270
    %v1737 = vunpack.c.h.b16 %v1270
    %v1738 = vunpack.c.l.b16 %v1271
    %v1739 = vpack.c.b16 %v1694, %v1691
    %v1740 = vpack.c.b16 %v1695, %v1692
    %v1741 = vpack.c.b16 %v1696, %v1693
    %v1742 = vpack.c.b16 %v1700, %v1697
    %v1743 = vpack.c.b16 %v1701, %v1698
    %v1744 = vpack.c.b16 %v1702, %v1699
    %v1745 = vpack.c.b16 %v1706, %v1703
    %v1746 = vpack.c.b16 %v1707, %v1704
    %v1747 = vpack.c.b16 %v1708, %v1705
    %v1748 = vpack.c.b16 %v1712, %v1709
    %v1749 = vpack.c.b16 %v1713, %v1710
    %v1750 = vpack.c.b16 %v1714, %v1711
    %v1751 = vpack.c.b16 %v1718, %v1715
    %v1752 = vpack.c.b16 %v1719, %v1716
    %v1753 = vpack.c.b16 %v1720, %v1717
    %v1754 = vpack.c.b16 %v1724, %v1721
    %v1755 = vpack.c.b16 %v1725, %v1722
    %v1756 = vpack.c.b16 %v1726, %v1723
    %v1757 = vpack.c.b16 %v1730, %v1727
    %v1758 = vpack.c.b16 %v1731, %v1728
    %v1759 = vpack.c.b16 %v1732, %v1729
    %v1760 = vpack.c.b16 %v1736, %v1733
    %v1761 = vpack.c.b16 %v1737, %v1734
    %v1762 = vpack.c.b16 %v1738, %v1735
    %1787 = vmatprep.subr.bf16.mxu0 %v1740
    %1788 = vmatpush1.bf16.msra.mxu0 %v1739
    %1789 = vmatprep.subr.bf16.mxu0 %v1743
    %1790 = vmatpush1.bf16.msra.mxu0 %v1742
    %1791 = vmatprep.subr.bf16.mxu0 %v1746
    %1792 = vmatpush1.bf16.msra.mxu0 %v1745
    %1793 = vmatprep.subr.bf16.mxu0 %v1749
    %1794 = vmatpush1.bf16.msra.mxu0 %v1748
    %1795 = vmatprep.subr.bf16.mxu0 %v1752
    %1796 = vmatpush1.bf16.msra.mxu0 %v1751
    %1797 = vmatprep.subr.bf16.mxu0 %v1755
    %1798 = vmatpush1.bf16.msra.mxu0 %v1754
    %1799 = vmatprep.subr.bf16.mxu0 %v1758
    %1800 = vmatpush1.bf16.msra.mxu0 %v1757
    %1801 = vmatprep.subr.bf16.mxu0 %v1761
    %1802 = vmatpush1.bf16.msra.mxu0 %v1760
    %1803 = vmatprep.subr.bf16.mxu0 0
    %1804 = vmatpush1.bf16.msra.mxu0 0
    %1805 = vmatprep.subr.bf16.mxu0 0
    %1806 = vmatpush1.bf16.msra.mxu0 0
    %1807 = vmatprep.subr.bf16.mxu0 0
    %1808 = vmatpush1.bf16.msra.mxu0 0
    %1809 = vmatprep.subr.bf16.mxu0 0
    %1810 = vmatpush1.bf16.msra.mxu0 0
    %1811 = vmatprep.subr.bf16.mxu0 0
    %1812 = vmatpush1.bf16.msra.mxu0 0
    %1813 = vmatprep.subr.bf16.mxu0 0
    %1814 = vmatpush1.bf16.msra.mxu0 0
    %1815 = vmatprep.subr.bf16.mxu0 0
    %1816 = vmatpush1.bf16.msra.mxu0 0
    %1817 = vmatprep.subr.bf16.mxu0 0
    %1818 = vmatpush1.bf16.msra.mxu0 0
    %1819 = vmatprep.mubr.bf16.mxu0 0
    %1820 = vmatmul.mubr.bf16.gmra.mrb[0].mxu0 %v1417
    %v1821 = vpop.f32.mrb[0].mxu0
    %v1822 = vadd.f32 %v1435, %v1821
    %v1823 = vpop.f32.mrb[0].mxu0
    %v1824 = vadd.f32 %v1439, %v1823
    %v1825 = vpop.f32.mrb[0].mxu0
    %v1826 = vpop.f32.mrb[0].mxu0
    %1827 = vdwg.mxu0
    %1828 = vmatprep.subr.bf16.mxu0 0
    %1829 = vmatpush1.bf16.msra.mxu0 %v1741
    %1830 = vmatprep.subr.bf16.mxu0 0
    %1831 = vmatpush1.bf16.msra.mxu0 %v1744
    %1832 = vmatprep.subr.bf16.mxu0 0
    %1833 = vmatpush1.bf16.msra.mxu0 %v1747
    %1834 = vmatprep.subr.bf16.mxu0 0
    %1835 = vmatpush1.bf16.msra.mxu0 %v1750
    %1836 = vmatprep.subr.bf16.mxu0 0
    %1837 = vmatpush1.bf16.msra.mxu0 %v1753
    %1838 = vmatprep.subr.bf16.mxu0 0
    %1839 = vmatpush1.bf16.msra.mxu0 %v1756
    %1840 = vmatprep.subr.bf16.mxu0 0
    %1841 = vmatpush1.bf16.msra.mxu0 %v1759
    %1842 = vmatprep.subr.bf16.mxu0 0
    %1843 = vmatpush1.bf16.msra.mxu0 %v1762
    %1844 = vmatprep.subr.bf16.mxu0 0
    %1845 = vmatpush1.bf16.msra.mxu0 0
    %1846 = vmatprep.subr.bf16.mxu0 0
    %1847 = vmatpush1.bf16.msra.mxu0 0
    %1848 = vmatprep.subr.bf16.mxu0 0
    %1849 = vmatpush1.bf16.msra.mxu0 0
    %1850 = vmatprep.subr.bf16.mxu0 0
    %1851 = vmatpush1.bf16.msra.mxu0 0
    %1852 = vmatprep.subr.bf16.mxu0 0
    %1853 = vmatpush1.bf16.msra.mxu0 0
    %1854 = vmatprep.subr.bf16.mxu0 0
    %1855 = vmatpush1.bf16.msra.mxu0 0
    %1856 = vmatprep.subr.bf16.mxu0 0
    %1857 = vmatpush1.bf16.msra.mxu0 0
    %1858 = vmatprep.subr.bf16.mxu0 0
    %1859 = vmatpush1.bf16.msra.mxu0 0
    %1860 = vmatprep.mubr.bf16.mxu0 0
    %1861 = vmatmul.mubr.bf16.gmra.mrb[0].mxu0 %v1417
    %v1862 = vpop.f32.mrb[0].mxu0
    %v1863 = vadd.f32 %v1443, %v1862
    %v1864 = vpop.f32.mrb[0].mxu0
    %v1865 = vpop.f32.mrb[0].mxu0
    %v1866 = vpop.f32.mrb[0].mxu0
    %1867 = vdwg.mxu0
    %1869 = vrot.lane.b32.xlu0 %v1613, 112
    %v1870 = vpop.permute.xlu0 %1869
    %1872 = vrot.lane.b32.xlu0 %v1613, 96
    %v1873 = vpop.permute.xlu0 %1872
    %1875 = vrot.lane.b32.xlu0 %v1613, 80
    %v1876 = vpop.permute.xlu0 %1875
    %1878 = vrot.lane.b32.xlu0 %v1613, 64
    %v1879 = vpop.permute.xlu0 %1878
    %1881 = vrot.lane.b32.xlu0 %v1613, 48
    %v1882 = vpop.permute.xlu0 %1881
    %1884 = vrot.lane.b32.xlu0 %v1613, 32
    %v1885 = vpop.permute.xlu0 %1884
    %1887 = vrot.lane.b32.xlu0 %v1613, 16
    %v1888 = vpop.permute.xlu0 %1887
    %v1890 = vmul.f32 %v1613, 0.25
    %v1891 = vmul.f32 %v1870, 0.25
    %v1892 = vmul.f32 %v1873, 0.25
    %v1893 = vmul.f32 %v1876, 0.25
    %v1894 = vmul.f32 %v1879, 0.25
    %v1895 = vmul.f32 %v1882, 0.25
    %v1896 = vmul.f32 %v1885, 0.25
    %v1897 = vmul.f32 %v1888, 0.25
    %1899 = vrot.lane.b32.xlu0 %v1615, 112
    %v1900 = vpop.permute.xlu0 %1899
    %1902 = vrot.lane.b32.xlu0 %v1615, 96
    %v1903 = vpop.permute.xlu0 %1902
    %1905 = vrot.lane.b32.xlu0 %v1615, 80
    %v1906 = vpop.permute.xlu0 %1905
    %1908 = vrot.lane.b32.xlu0 %v1615, 64
    %v1909 = vpop.permute.xlu0 %1908
    %1911 = vrot.lane.b32.xlu0 %v1615, 48
    %v1912 = vpop.permute.xlu0 %1911
    %1914 = vrot.lane.b32.xlu0 %v1615, 32
    %v1915 = vpop.permute.xlu0 %1914
    %1917 = vrot.lane.b32.xlu0 %v1615, 16
    %v1918 = vpop.permute.xlu0 %1917
    %1921 = vrot.lane.b32.xlu0 %v1654, 112
    %v1922 = vpop.permute.xlu0 %1921
    %1924 = vrot.lane.b32.xlu0 %v1654, 96
    %v1925 = vpop.permute.xlu0 %1924
    %1927 = vrot.lane.b32.xlu0 %v1654, 80
    %v1928 = vpop.permute.xlu0 %1927
    %1930 = vrot.lane.b32.xlu0 %v1654, 64
    %v1931 = vpop.permute.xlu0 %1930
    %1933 = vrot.lane.b32.xlu0 %v1654, 48
    %v1934 = vpop.permute.xlu0 %1933
    %1936 = vrot.lane.b32.xlu0 %v1654, 32
    %v1937 = vpop.permute.xlu0 %1936
    %1939 = vrot.lane.b32.xlu0 %v1654, 16
    %v1940 = vpop.permute.xlu0 %1939
    %v1942 = vpack.c.bf16 %v1890, %v1890
    %v1943 = vpack.c.bf16 %v1891, %v1891
    %v1944 = vpack.c.bf16 %v1892, %v1892
    %v1945 = vpack.c.bf16 %v1893, %v1893
    %v1946 = vpack.c.bf16 %v1894, %v1894
    %v1947 = vpack.c.bf16 %v1895, %v1895
    %v1948 = vpack.c.bf16 %v1896, %v1896
    %v1949 = vpack.c.bf16 %v1897, %v1897
    %v1950 = vpack.c.bf16 %v1615, %v1615
    %v1951 = vpack.c.bf16 %v1900, %v1900
    %v1952 = vpack.c.bf16 %v1903, %v1903
    %v1953 = vpack.c.bf16 %v1906, %v1906
    %v1954 = vpack.c.bf16 %v1909, %v1909
    %v1955 = vpack.c.bf16 %v1912, %v1912
    %v1956 = vpack.c.bf16 %v1915, %v1915
    %v1957 = vpack.c.bf16 %v1918, %v1918
    %vm1958 = vcmask 130048
    %v1960 = vsel %vm1958, %v1942, 0
    %v1963 = vsel %vm1958, %v1950, 0
    %1965 = vmatprep.subr.bf16.mxu0 0
    %1966 = vmatpush1.bf16.xpose.msra.mxu0 %v1963
    %1967 = vmatprep.subr.bf16.mxu0 0
    %1968 = vmatpush1.bf16.xpose.msra.mxu0 0
    %1969 = vmatprep.subr.bf16.mxu0 0
    %1970 = vmatpush1.bf16.xpose.msra.mxu0 0
    %1971 = vmatprep.subr.bf16.mxu0 0
    %1972 = vmatpush1.bf16.xpose.msra.mxu0 0
    %1973 = vmatprep.subr.bf16.mxu0 0
    %1974 = vmatpush1.bf16.xpose.msra.mxu0 0
    %1975 = vmatprep.subr.bf16.mxu0 0
    %1976 = vmatpush1.bf16.xpose.msra.mxu0 0
    %1977 = vmatprep.subr.bf16.mxu0 0
    %1978 = vmatpush1.bf16.xpose.msra.mxu0 0
    %1979 = vmatprep.subr.bf16.mxu0 0
    %1980 = vmatpush1.bf16.xpose.msra.mxu0 0
    %1981 = vmatprep.subr.bf16.mxu0 0
    %1982 = vmatpush1.bf16.xpose.msra.mxu0 0
    %1983 = vmatprep.subr.bf16.mxu0 0
    %1984 = vmatpush1.bf16.xpose.msra.mxu0 0
    %1985 = vmatprep.subr.bf16.mxu0 0
    %1986 = vmatpush1.bf16.xpose.msra.mxu0 0
    %1987 = vmatprep.subr.bf16.mxu0 0
    %1988 = vmatpush1.bf16.xpose.msra.mxu0 0
    %1989 = vmatprep.subr.bf16.mxu0 0
    %1990 = vmatpush1.bf16.xpose.msra.mxu0 0
    %1991 = vmatprep.subr.bf16.mxu0 0
    %1992 = vmatpush1.bf16.xpose.msra.mxu0 0
    %1993 = vmatprep.subr.bf16.mxu0 0
    %1994 = vmatpush1.bf16.xpose.msra.mxu0 0
    %1995 = vmatprep.subr.bf16.mxu0 0
    %1996 = vmatpush1.bf16.xpose.msra.mxu0 0
    %1997 = vmatprep.mubr.bf16.mxu0 0
    %1998 = vmatmul.mubr.bf16.gmra.mrb[0].mxu0 %v1960
    %v1999 = vpop.f32.mrb[0].mxu0
    %v2000 = vadd.f32 %v990, %v1999
    %v2001 = vpop.f32.mrb[0].mxu0
    %v2002 = vpop.f32.mrb[0].mxu0
    %v2003 = vpop.f32.mrb[0].mxu0
    %2004 = vdwg.mxu0
    %v2006 = vsel %vm1958, %v1943, 0
    %v2009 = vsel %vm1958, %v1951, 0
    %2011 = vmatprep.subr.bf16.mxu0 0
    %2012 = vmatpush1.bf16.xpose.msra.mxu0 %v2009
    %2013 = vmatprep.subr.bf16.mxu0 0
    %2014 = vmatpush1.bf16.xpose.msra.mxu0 0
    %2015 = vmatprep.subr.bf16.mxu0 0
    %2016 = vmatpush1.bf16.xpose.msra.mxu0 0
    %2017 = vmatprep.subr.bf16.mxu0 0
    %2018 = vmatpush1.bf16.xpose.msra.mxu0 0
    %2019 = vmatprep.subr.bf16.mxu0 0
    %2020 = vmatpush1.bf16.xpose.msra.mxu0 0
    %2021 = vmatprep.subr.bf16.mxu0 0
    %2022 = vmatpush1.bf16.xpose.msra.mxu0 0
    %2023 = vmatprep.subr.bf16.mxu0 0
    %2024 = vmatpush1.bf16.xpose.msra.mxu0 0
    %2025 = vmatprep.subr.bf16.mxu0 0
    %2026 = vmatpush1.bf16.xpose.msra.mxu0 0
    %2027 = vmatprep.subr.bf16.mxu0 0
    %2028 = vmatpush1.bf16.xpose.msra.mxu0 0
    %2029 = vmatprep.subr.bf16.mxu0 0
    %2030 = vmatpush1.bf16.xpose.msra.mxu0 0
    %2031 = vmatprep.subr.bf16.mxu0 0
    %2032 = vmatpush1.bf16.xpose.msra.mxu0 0
    %2033 = vmatprep.subr.bf16.mxu0 0
    %2034 = vmatpush1.bf16.xpose.msra.mxu0 0
    %2035 = vmatprep.subr.bf16.mxu0 0
    %2036 = vmatpush1.bf16.xpose.msra.mxu0 0
    %2037 = vmatprep.subr.bf16.mxu0 0
    %2038 = vmatpush1.bf16.xpose.msra.mxu0 0
    %2039 = vmatprep.subr.bf16.mxu0 0
    %2040 = vmatpush1.bf16.xpose.msra.mxu0 0
    %2041 = vmatprep.subr.bf16.mxu0 0
    %2042 = vmatpush1.bf16.xpose.msra.mxu0 0
    %2043 = vmatprep.mubr.bf16.mxu0 0
    %2044 = vmatmul.mubr.bf16.gmra.mrb[0].mxu0 %v2006
    %v2045 = vpop.f32.mrb[0].mxu0
    %v2046 = vadd.f32 %v990, %v2045
    %v2047 = vpop.f32.mrb[0].mxu0
    %v2048 = vpop.f32.mrb[0].mxu0
    %v2049 = vpop.f32.mrb[0].mxu0
    %2050 = vdwg.mxu0
    %v2052 = vsel %vm1958, %v1944, 0
    %v2055 = vsel %vm1958, %v1952, 0
    %2057 = vmatprep.subr.bf16.mxu0 0
    %2058 = vmatpush1.bf16.xpose.msra.mxu0 %v2055
    %2059 = vmatprep.subr.bf16.mxu0 0
    %2060 = vmatpush1.bf16.xpose.msra.mxu0 0
    %2061 = vmatprep.subr.bf16.mxu0 0
    %2062 = vmatpush1.bf16.xpose.msra.mxu0 0
    %2063 = vmatprep.subr.bf16.mxu0 0
    %2064 = vmatpush1.bf16.xpose.msra.mxu0 0
    %2065 = vmatprep.subr.bf16.mxu0 0
    %2066 = vmatpush1.bf16.xpose.msra.mxu0 0
    %2067 = vmatprep.subr.bf16.mxu0 0
    %2068 = vmatpush1.bf16.xpose.msra.mxu0 0
    %2069 = vmatprep.subr.bf16.mxu0 0
    %2070 = vmatpush1.bf16.xpose.msra.mxu0 0
    %2071 = vmatprep.subr.bf16.mxu0 0
    %2072 = vmatpush1.bf16.xpose.msra.mxu0 0
    %2073 = vmatprep.subr.bf16.mxu0 0
    %2074 = vmatpush1.bf16.xpose.msra.mxu0 0
    %2075 = vmatprep.subr.bf16.mxu0 0
    %2076 = vmatpush1.bf16.xpose.msra.mxu0 0
    %2077 = vmatprep.subr.bf16.mxu0 0
    %2078 = vmatpush1.bf16.xpose.msra.mxu0 0
    %2079 = vmatprep.subr.bf16.mxu0 0
    %2080 = vmatpush1.bf16.xpose.msra.mxu0 0
    %2081 = vmatprep.subr.bf16.mxu0 0
    %2082 = vmatpush1.bf16.xpose.msra.mxu0 0
    %2083 = vmatprep.subr.bf16.mxu0 0
    %2084 = vmatpush1.bf16.xpose.msra.mxu0 0
    %2085 = vmatprep.subr.bf16.mxu0 0
    %2086 = vmatpush1.bf16.xpose.msra.mxu0 0
    %2087 = vmatprep.subr.bf16.mxu0 0
    %2088 = vmatpush1.bf16.xpose.msra.mxu0 0
    %2089 = vmatprep.mubr.bf16.mxu0 0
    %2090 = vmatmul.mubr.bf16.gmra.mrb[0].mxu0 %v2052
    %v2091 = vpop.f32.mrb[0].mxu0
    %v2092 = vadd.f32 %v990, %v2091
    %v2093 = vpop.f32.mrb[0].mxu0
    %v2094 = vpop.f32.mrb[0].mxu0
    %v2095 = vpop.f32.mrb[0].mxu0
    %2096 = vdwg.mxu0
    %v2098 = vsel %vm1958, %v1945, 0
    %v2101 = vsel %vm1958, %v1953, 0
    %2103 = vmatprep.subr.bf16.mxu0 0
    %2104 = vmatpush1.bf16.xpose.msra.mxu0 %v2101
    %2105 = vmatprep.subr.bf16.mxu0 0
    %2106 = vmatpush1.bf16.xpose.msra.mxu0 0
    %2107 = vmatprep.subr.bf16.mxu0 0
    %2108 = vmatpush1.bf16.xpose.msra.mxu0 0
    %2109 = vmatprep.subr.bf16.mxu0 0
    %2110 = vmatpush1.bf16.xpose.msra.mxu0 0
    %2111 = vmatprep.subr.bf16.mxu0 0
    %2112 = vmatpush1.bf16.xpose.msra.mxu0 0
    %2113 = vmatprep.subr.bf16.mxu0 0
    %2114 = vmatpush1.bf16.xpose.msra.mxu0 0
    %2115 = vmatprep.subr.bf16.mxu0 0
    %2116 = vmatpush1.bf16.xpose.msra.mxu0 0
    %2117 = vmatprep.subr.bf16.mxu0 0
    %2118 = vmatpush1.bf16.xpose.msra.mxu0 0
    %2119 = vmatprep.subr.bf16.mxu0 0
    %2120 = vmatpush1.bf16.xpose.msra.mxu0 0
    %2121 = vmatprep.subr.bf16.mxu0 0
    %2122 = vmatpush1.bf16.xpose.msra.mxu0 0
    %2123 = vmatprep.subr.bf16.mxu0 0
    %2124 = vmatpush1.bf16.xpose.msra.mxu0 0
    %2125 = vmatprep.subr.bf16.mxu0 0
    %2126 = vmatpush1.bf16.xpose.msra.mxu0 0
    %2127 = vmatprep.subr.bf16.mxu0 0
    %2128 = vmatpush1.bf16.xpose.msra.mxu0 0
    %2129 = vmatprep.subr.bf16.mxu0 0
    %2130 = vmatpush1.bf16.xpose.msra.mxu0 0
    %2131 = vmatprep.subr.bf16.mxu0 0
    %2132 = vmatpush1.bf16.xpose.msra.mxu0 0
    %2133 = vmatprep.subr.bf16.mxu0 0
    %2134 = vmatpush1.bf16.xpose.msra.mxu0 0
    %2135 = vmatprep.mubr.bf16.mxu0 0
    %2136 = vmatmul.mubr.bf16.gmra.mrb[0].mxu0 %v2098
    %v2137 = vpop.f32.mrb[0].mxu0
    %v2138 = vadd.f32 %v990, %v2137
    %v2139 = vpop.f32.mrb[0].mxu0
    %v2140 = vpop.f32.mrb[0].mxu0
    %v2141 = vpop.f32.mrb[0].mxu0
    %2142 = vdwg.mxu0
    %v2144 = vsel %vm1958, %v1946, 0
    %v2147 = vsel %vm1958, %v1954, 0
    %2149 = vmatprep.subr.bf16.mxu0 0
    %2150 = vmatpush1.bf16.xpose.msra.mxu0 %v2147
    %2151 = vmatprep.subr.bf16.mxu0 0
    %2152 = vmatpush1.bf16.xpose.msra.mxu0 0
    %2153 = vmatprep.subr.bf16.mxu0 0
    %2154 = vmatpush1.bf16.xpose.msra.mxu0 0
    %2155 = vmatprep.subr.bf16.mxu0 0
    %2156 = vmatpush1.bf16.xpose.msra.mxu0 0
    %2157 = vmatprep.subr.bf16.mxu0 0
    %2158 = vmatpush1.bf16.xpose.msra.mxu0 0
    %2159 = vmatprep.subr.bf16.mxu0 0
    %2160 = vmatpush1.bf16.xpose.msra.mxu0 0
    %2161 = vmatprep.subr.bf16.mxu0 0
    %2162 = vmatpush1.bf16.xpose.msra.mxu0 0
    %2163 = vmatprep.subr.bf16.mxu0 0
    %2164 = vmatpush1.bf16.xpose.msra.mxu0 0
    %2165 = vmatprep.subr.bf16.mxu0 0
    %2166 = vmatpush1.bf16.xpose.msra.mxu0 0
    %2167 = vmatprep.subr.bf16.mxu0 0
    %2168 = vmatpush1.bf16.xpose.msra.mxu0 0
    %2169 = vmatprep.subr.bf16.mxu0 0
    %2170 = vmatpush1.bf16.xpose.msra.mxu0 0
    %2171 = vmatprep.subr.bf16.mxu0 0
    %2172 = vmatpush1.bf16.xpose.msra.mxu0 0
    %2173 = vmatprep.subr.bf16.mxu0 0
    %2174 = vmatpush1.bf16.xpose.msra.mxu0 0
    %2175 = vmatprep.subr.bf16.mxu0 0
    %2176 = vmatpush1.bf16.xpose.msra.mxu0 0
    %2177 = vmatprep.subr.bf16.mxu0 0
    %2178 = vmatpush1.bf16.xpose.msra.mxu0 0
    %2179 = vmatprep.subr.bf16.mxu0 0
    %2180 = vmatpush1.bf16.xpose.msra.mxu0 0
    %2181 = vmatprep.mubr.bf16.mxu0 0
    %2182 = vmatmul.mubr.bf16.gmra.mrb[0].mxu0 %v2144
    %v2183 = vpop.f32.mrb[0].mxu0
    %v2184 = vadd.f32 %v990, %v2183
    %v2185 = vpop.f32.mrb[0].mxu0
    %v2186 = vpop.f32.mrb[0].mxu0
    %v2187 = vpop.f32.mrb[0].mxu0
    %2188 = vdwg.mxu0
    %v2190 = vsel %vm1958, %v1947, 0
    %v2193 = vsel %vm1958, %v1955, 0
    %2195 = vmatprep.subr.bf16.mxu0 0
    %2196 = vmatpush1.bf16.xpose.msra.mxu0 %v2193
    %2197 = vmatprep.subr.bf16.mxu0 0
    %2198 = vmatpush1.bf16.xpose.msra.mxu0 0
    %2199 = vmatprep.subr.bf16.mxu0 0
    %2200 = vmatpush1.bf16.xpose.msra.mxu0 0
    %2201 = vmatprep.subr.bf16.mxu0 0
    %2202 = vmatpush1.bf16.xpose.msra.mxu0 0
    %2203 = vmatprep.subr.bf16.mxu0 0
    %2204 = vmatpush1.bf16.xpose.msra.mxu0 0
    %2205 = vmatprep.subr.bf16.mxu0 0
    %2206 = vmatpush1.bf16.xpose.msra.mxu0 0
    %2207 = vmatprep.subr.bf16.mxu0 0
    %2208 = vmatpush1.bf16.xpose.msra.mxu0 0
    %2209 = vmatprep.subr.bf16.mxu0 0
    %2210 = vmatpush1.bf16.xpose.msra.mxu0 0
    %2211 = vmatprep.subr.bf16.mxu0 0
    %2212 = vmatpush1.bf16.xpose.msra.mxu0 0
    %2213 = vmatprep.subr.bf16.mxu0 0
    %2214 = vmatpush1.bf16.xpose.msra.mxu0 0
    %2215 = vmatprep.subr.bf16.mxu0 0
    %2216 = vmatpush1.bf16.xpose.msra.mxu0 0
    %2217 = vmatprep.subr.bf16.mxu0 0
    %2218 = vmatpush1.bf16.xpose.msra.mxu0 0
    %2219 = vmatprep.subr.bf16.mxu0 0
    %2220 = vmatpush1.bf16.xpose.msra.mxu0 0
    %2221 = vmatprep.subr.bf16.mxu0 0
    %2222 = vmatpush1.bf16.xpose.msra.mxu0 0
    %2223 = vmatprep.subr.bf16.mxu0 0
    %2224 = vmatpush1.bf16.xpose.msra.mxu0 0
    %2225 = vmatprep.subr.bf16.mxu0 0
    %2226 = vmatpush1.bf16.xpose.msra.mxu0 0
    %2227 = vmatprep.mubr.bf16.mxu0 0
    %2228 = vmatmul.mubr.bf16.gmra.mrb[0].mxu0 %v2190
    %v2229 = vpop.f32.mrb[0].mxu0
    %v2230 = vadd.f32 %v990, %v2229
    %v2231 = vpop.f32.mrb[0].mxu0
    %v2232 = vpop.f32.mrb[0].mxu0
    %v2233 = vpop.f32.mrb[0].mxu0
    %2234 = vdwg.mxu0
    %v2236 = vsel %vm1958, %v1948, 0
    %v2239 = vsel %vm1958, %v1956, 0
    %2241 = vmatprep.subr.bf16.mxu0 0
    %2242 = vmatpush1.bf16.xpose.msra.mxu0 %v2239
    %2243 = vmatprep.subr.bf16.mxu0 0
    %2244 = vmatpush1.bf16.xpose.msra.mxu0 0
    %2245 = vmatprep.subr.bf16.mxu0 0
    %2246 = vmatpush1.bf16.xpose.msra.mxu0 0
    %2247 = vmatprep.subr.bf16.mxu0 0
    %2248 = vmatpush1.bf16.xpose.msra.mxu0 0
    %2249 = vmatprep.subr.bf16.mxu0 0
    %2250 = vmatpush1.bf16.xpose.msra.mxu0 0
    %2251 = vmatprep.subr.bf16.mxu0 0
    %2252 = vmatpush1.bf16.xpose.msra.mxu0 0
    %2253 = vmatprep.subr.bf16.mxu0 0
    %2254 = vmatpush1.bf16.xpose.msra.mxu0 0
    %2255 = vmatprep.subr.bf16.mxu0 0
    %2256 = vmatpush1.bf16.xpose.msra.mxu0 0
    %2257 = vmatprep.subr.bf16.mxu0 0
    %2258 = vmatpush1.bf16.xpose.msra.mxu0 0
    %2259 = vmatprep.subr.bf16.mxu0 0
    %2260 = vmatpush1.bf16.xpose.msra.mxu0 0
    %2261 = vmatprep.subr.bf16.mxu0 0
    %2262 = vmatpush1.bf16.xpose.msra.mxu0 0
    %2263 = vmatprep.subr.bf16.mxu0 0
    %2264 = vmatpush1.bf16.xpose.msra.mxu0 0
    %2265 = vmatprep.subr.bf16.mxu0 0
    %2266 = vmatpush1.bf16.xpose.msra.mxu0 0
    %2267 = vmatprep.subr.bf16.mxu0 0
    %2268 = vmatpush1.bf16.xpose.msra.mxu0 0
    %2269 = vmatprep.subr.bf16.mxu0 0
    %2270 = vmatpush1.bf16.xpose.msra.mxu0 0
    %2271 = vmatprep.subr.bf16.mxu0 0
    %2272 = vmatpush1.bf16.xpose.msra.mxu0 0
    %2273 = vmatprep.mubr.bf16.mxu0 0
    %2274 = vmatmul.mubr.bf16.gmra.mrb[0].mxu0 %v2236
    %v2275 = vpop.f32.mrb[0].mxu0
    %v2276 = vadd.f32 %v990, %v2275
    %v2277 = vpop.f32.mrb[0].mxu0
    %v2278 = vpop.f32.mrb[0].mxu0
    %v2279 = vpop.f32.mrb[0].mxu0
    %2280 = vdwg.mxu0
    %v2282 = vsel %vm1958, %v1949, 0
    %v2285 = vsel %vm1958, %v1957, 0
    %2287 = vmatprep.subr.bf16.mxu0 0
    %2288 = vmatpush1.bf16.xpose.msra.mxu0 %v2285
    %2289 = vmatprep.subr.bf16.mxu0 0
    %2290 = vmatpush1.bf16.xpose.msra.mxu0 0
    %2291 = vmatprep.subr.bf16.mxu0 0
    %2292 = vmatpush1.bf16.xpose.msra.mxu0 0
    %2293 = vmatprep.subr.bf16.mxu0 0
    %2294 = vmatpush1.bf16.xpose.msra.mxu0 0
    %2295 = vmatprep.subr.bf16.mxu0 0
    %2296 = vmatpush1.bf16.xpose.msra.mxu0 0
    %2297 = vmatprep.subr.bf16.mxu0 0
    %2298 = vmatpush1.bf16.xpose.msra.mxu0 0
    %2299 = vmatprep.subr.bf16.mxu0 0
    %2300 = vmatpush1.bf16.xpose.msra.mxu0 0
    %2301 = vmatprep.subr.bf16.mxu0 0
    %2302 = vmatpush1.bf16.xpose.msra.mxu0 0
    %2303 = vmatprep.subr.bf16.mxu0 0
    %2304 = vmatpush1.bf16.xpose.msra.mxu0 0
    %2305 = vmatprep.subr.bf16.mxu0 0
    %2306 = vmatpush1.bf16.xpose.msra.mxu0 0
    %2307 = vmatprep.subr.bf16.mxu0 0
    %2308 = vmatpush1.bf16.xpose.msra.mxu0 0
    %2309 = vmatprep.subr.bf16.mxu0 0
    %2310 = vmatpush1.bf16.xpose.msra.mxu0 0
    %2311 = vmatprep.subr.bf16.mxu0 0
    %2312 = vmatpush1.bf16.xpose.msra.mxu0 0
    %2313 = vmatprep.subr.bf16.mxu0 0
    %2314 = vmatpush1.bf16.xpose.msra.mxu0 0
    %2315 = vmatprep.subr.bf16.mxu0 0
    %2316 = vmatpush1.bf16.xpose.msra.mxu0 0
    %2317 = vmatprep.subr.bf16.mxu0 0
    %2318 = vmatpush1.bf16.xpose.msra.mxu0 0
    %2319 = vmatprep.mubr.bf16.mxu0 0
    %2320 = vmatmul.mubr.bf16.gmra.mrb[0].mxu0 %v2282
    %v2321 = vpop.f32.mrb[0].mxu0
    %v2322 = vadd.f32 %v990, %v2321
    %v2323 = vpop.f32.mrb[0].mxu0
    %v2324 = vpop.f32.mrb[0].mxu0
    %v2325 = vpop.f32.mrb[0].mxu0
    %2326 = vdwg.mxu0
    %vm2327 = vcmask 64512
    %v2328 = vsel %vm2327, %v2000, -inf
    %2329 = vmax.xlane.f32.xlu0 %v2328
    %v2330 = vpop.xlane.xlu0 %2329
    %v2331 = vsel %vm2327, %v2046, -inf
    %2332 = vmax.xlane.f32.xlu0 %v2331
    %v2333 = vpop.xlane.xlu0 %2332
    %v2334 = vsel %vm2327, %v2092, -inf
    %2335 = vmax.xlane.f32.xlu0 %v2334
    %v2336 = vpop.xlane.xlu0 %2335
    %v2337 = vsel %vm2327, %v2138, -inf
    %2338 = vmax.xlane.f32.xlu0 %v2337
    %v2339 = vpop.xlane.xlu0 %2338
    %v2340 = vsel %vm2327, %v2184, -inf
    %2341 = vmax.xlane.f32.xlu0 %v2340
    %v2342 = vpop.xlane.xlu0 %2341
    %v2343 = vsel %vm2327, %v2230, -inf
    %2344 = vmax.xlane.f32.xlu0 %v2343
    %v2345 = vpop.xlane.xlu0 %2344
    %v2346 = vsel %vm2327, %v2276, -inf
    %2347 = vmax.xlane.f32.xlu0 %v2346
    %v2348 = vpop.xlane.xlu0 %2347
    %v2349 = vsel %vm2327, %v2322, -inf
    %2350 = vmax.xlane.f32.xlu0 %v2349
    %v2351 = vpop.xlane.xlu0 %2350
    %v2352 = vsub.f32 %v2000, %v2330
    %v2353 = vsub.f32 %v2046, %v2333
    %v2354 = vsub.f32 %v2092, %v2336
    %v2355 = vsub.f32 %v2138, %v2339
    %v2356 = vsub.f32 %v2184, %v2342
    %v2357 = vsub.f32 %v2230, %v2345
    %v2358 = vsub.f32 %v2276, %v2348
    %v2359 = vsub.f32 %v2322, %v2351
    %v2360 = vmul.f32 %v2352, 1.442695
    %v2361 = vpow.pop %v2360
    %v2362 = vmul.f32 %v2353, 1.442695
    %v2363 = vpow.pop %v2362
    %v2364 = vmul.f32 %v2354, 1.442695
    %v2365 = vpow.pop %v2364
    %v2366 = vmul.f32 %v2355, 1.442695
    %v2367 = vpow.pop %v2366
    %v2368 = vmul.f32 %v2356, 1.442695
    %v2369 = vpow.pop %v2368
    %v2370 = vmul.f32 %v2357, 1.442695
    %v2371 = vpow.pop %v2370
    %v2372 = vmul.f32 %v2358, 1.442695
    %v2373 = vpow.pop %v2372
    %v2374 = vmul.f32 %v2359, 1.442695
    %v2375 = vpow.pop %v2374
    %v2376 = vsel %vm2327, %v2361, 0.0
    %2377 = vadd.xlane.f32.xlu0 %v2376
    %v2378 = vpop.xlane.xlu0 %2377
    %v2379 = vsel %vm2327, %v2363, 0.0
    %2380 = vadd.xlane.f32.xlu0 %v2379
    %v2381 = vpop.xlane.xlu0 %2380
    %v2382 = vsel %vm2327, %v2365, 0.0
    %2383 = vadd.xlane.f32.xlu0 %v2382
    %v2384 = vpop.xlane.xlu0 %2383
    %v2385 = vsel %vm2327, %v2367, 0.0
    %2386 = vadd.xlane.f32.xlu0 %v2385
    %v2387 = vpop.xlane.xlu0 %2386
    %v2388 = vsel %vm2327, %v2369, 0.0
    %2389 = vadd.xlane.f32.xlu0 %v2388
    %v2390 = vpop.xlane.xlu0 %2389
    %v2391 = vsel %vm2327, %v2371, 0.0
    %2392 = vadd.xlane.f32.xlu0 %v2391
    %v2393 = vpop.xlane.xlu0 %2392
    %v2394 = vsel %vm2327, %v2373, 0.0
    %2395 = vadd.xlane.f32.xlu0 %v2394
    %v2396 = vpop.xlane.xlu0 %2395
    %v2397 = vsel %vm2327, %v2375, 0.0
    %2398 = vadd.xlane.f32.xlu0 %v2397
    %v2399 = vpop.xlane.xlu0 %2398
    %v2400 = vrcp.pop %v2378
    %v2401 = vrcp.pop %v2381
    %v2402 = vrcp.pop %v2384
    %v2403 = vrcp.pop %v2387
    %v2404 = vrcp.pop %v2390
    %v2405 = vrcp.pop %v2393
    %v2406 = vrcp.pop %v2396
    %v2407 = vrcp.pop %v2399
    %v2408 = vmul.f32 %v2361, %v2400
    %v2409 = vmul.f32 %v2363, %v2401
    %v2410 = vmul.f32 %v2365, %v2402
    %v2411 = vmul.f32 %v2367, %v2403
    %v2412 = vmul.f32 %v2369, %v2404
    %v2413 = vmul.f32 %v2371, %v2405
    %v2414 = vmul.f32 %v2373, %v2406
    %v2415 = vmul.f32 %v2375, %v2407
    %v2416 = vpack.c.bf16 %v2408, %v2408
    %v2417 = vpack.c.bf16 %v2409, %v2409
    %v2418 = vpack.c.bf16 %v2410, %v2410
    %v2419 = vpack.c.bf16 %v2411, %v2411
    %v2420 = vpack.c.bf16 %v2412, %v2412
    %v2421 = vpack.c.bf16 %v2413, %v2413
    %v2422 = vpack.c.bf16 %v2414, %v2414
    %v2423 = vpack.c.bf16 %v2415, %v2415
    %v2424 = vpack.c.bf16 %v1654, %v1654
    %v2425 = vpack.c.bf16 %v1922, %v1922
    %v2426 = vpack.c.bf16 %v1925, %v1925
    %v2427 = vpack.c.bf16 %v1928, %v1928
    %v2428 = vpack.c.bf16 %v1931, %v1931
    %v2429 = vpack.c.bf16 %v1934, %v1934
    %v2430 = vpack.c.bf16 %v1937, %v1937
    %v2431 = vpack.c.bf16 %v1940, %v1940
    %v2433 = vsel %vm2327, %v2416, 0
    %vm2435 = vcmask 1043456
    %v2437 = vsel %vm2435, %v2424, 0
    %2439 = vmatprep.subr.bf16.mxu0 0
    %2440 = vmatpush1.bf16.msra.mxu0 %v2437
    %2441 = vmatprep.subr.bf16.mxu0 0
    %2442 = vmatpush1.bf16.msra.mxu0 0
    %2443 = vmatprep.subr.bf16.mxu0 0
    %2444 = vmatpush1.bf16.msra.mxu0 0
    %2445 = vmatprep.subr.bf16.mxu0 0
    %2446 = vmatpush1.bf16.msra.mxu0 0
    %2447 = vmatprep.subr.bf16.mxu0 0
    %2448 = vmatpush1.bf16.msra.mxu0 0
    %2449 = vmatprep.subr.bf16.mxu0 0
    %2450 = vmatpush1.bf16.msra.mxu0 0
    %2451 = vmatprep.subr.bf16.mxu0 0
    %2452 = vmatpush1.bf16.msra.mxu0 0
    %2453 = vmatprep.subr.bf16.mxu0 0
    %2454 = vmatpush1.bf16.msra.mxu0 0
    %2455 = vmatprep.subr.bf16.mxu0 0
    %2456 = vmatpush1.bf16.msra.mxu0 0
    %2457 = vmatprep.subr.bf16.mxu0 0
    %2458 = vmatpush1.bf16.msra.mxu0 0
    %2459 = vmatprep.subr.bf16.mxu0 0
    %2460 = vmatpush1.bf16.msra.mxu0 0
    %2461 = vmatprep.subr.bf16.mxu0 0
    %2462 = vmatpush1.bf16.msra.mxu0 0
    %2463 = vmatprep.subr.bf16.mxu0 0
    %2464 = vmatpush1.bf16.msra.mxu0 0
    %2465 = vmatprep.subr.bf16.mxu0 0
    %2466 = vmatpush1.bf16.msra.mxu0 0
    %2467 = vmatprep.subr.bf16.mxu0 0
    %2468 = vmatpush1.bf16.msra.mxu0 0
    %2469 = vmatprep.subr.bf16.mxu0 0
    %2470 = vmatpush1.bf16.msra.mxu0 0
    %2471 = vmatprep.mubr.bf16.mxu0 0
    %2472 = vmatmul.mubr.bf16.gmra.mrb[0].mxu0 %v2433
    %v2473 = vpop.f32.mrb[0].mxu0
    %v2474 = vadd.f32 0.0, %v2473
    %v2475 = vpop.f32.mrb[0].mxu0
    %v2476 = vpop.f32.mrb[0].mxu0
    %v2477 = vpop.f32.mrb[0].mxu0
    %2478 = vdwg.mxu0
    %v2480 = vsel %vm2327, %v2417, 0
    %v2483 = vsel %vm2435, %v2425, 0
    %2485 = vmatprep.subr.bf16.mxu0 0
    %2486 = vmatpush1.bf16.msra.mxu0 %v2483
    %2487 = vmatprep.subr.bf16.mxu0 0
    %2488 = vmatpush1.bf16.msra.mxu0 0
    %2489 = vmatprep.subr.bf16.mxu0 0
    %2490 = vmatpush1.bf16.msra.mxu0 0
    %2491 = vmatprep.subr.bf16.mxu0 0
    %2492 = vmatpush1.bf16.msra.mxu0 0
    %2493 = vmatprep.subr.bf16.mxu0 0
    %2494 = vmatpush1.bf16.msra.mxu0 0
    %2495 = vmatprep.subr.bf16.mxu0 0
    %2496 = vmatpush1.bf16.msra.mxu0 0
    %2497 = vmatprep.subr.bf16.mxu0 0
    %2498 = vmatpush1.bf16.msra.mxu0 0
    %2499 = vmatprep.subr.bf16.mxu0 0
    %2500 = vmatpush1.bf16.msra.mxu0 0
    %2501 = vmatprep.subr.bf16.mxu0 0
    %2502 = vmatpush1.bf16.msra.mxu0 0
    %2503 = vmatprep.subr.bf16.mxu0 0
    %2504 = vmatpush1.bf16.msra.mxu0 0
    %2505 = vmatprep.subr.bf16.mxu0 0
    %2506 = vmatpush1.bf16.msra.mxu0 0
    %2507 = vmatprep.subr.bf16.mxu0 0
    %2508 = vmatpush1.bf16.msra.mxu0 0
    %2509 = vmatprep.subr.bf16.mxu0 0
    %2510 = vmatpush1.bf16.msra.mxu0 0
    %2511 = vmatprep.subr.bf16.mxu0 0
    %2512 = vmatpush1.bf16.msra.mxu0 0
    %2513 = vmatprep.subr.bf16.mxu0 0
    %2514 = vmatpush1.bf16.msra.mxu0 0
    %2515 = vmatprep.subr.bf16.mxu0 0
    %2516 = vmatpush1.bf16.msra.mxu0 0
    %2517 = vmatprep.mubr.bf16.mxu0 0
    %2518 = vmatmul.mubr.bf16.gmra.mrb[0].mxu0 %v2480
    %v2519 = vpop.f32.mrb[0].mxu0
    %v2520 = vadd.f32 0.0, %v2519
    %v2521 = vpop.f32.mrb[0].mxu0
    %v2522 = vpop.f32.mrb[0].mxu0
    %v2523 = vpop.f32.mrb[0].mxu0
    %2524 = vdwg.mxu0
    %v2526 = vsel %vm2327, %v2418, 0
    %v2529 = vsel %vm2435, %v2426, 0
    %2531 = vmatprep.subr.bf16.mxu0 0
    %2532 = vmatpush1.bf16.msra.mxu0 %v2529
    %2533 = vmatprep.subr.bf16.mxu0 0
    %2534 = vmatpush1.bf16.msra.mxu0 0
    %2535 = vmatprep.subr.bf16.mxu0 0
    %2536 = vmatpush1.bf16.msra.mxu0 0
    %2537 = vmatprep.subr.bf16.mxu0 0
    %2538 = vmatpush1.bf16.msra.mxu0 0
    %2539 = vmatprep.subr.bf16.mxu0 0
    %2540 = vmatpush1.bf16.msra.mxu0 0
    %2541 = vmatprep.subr.bf16.mxu0 0
    %2542 = vmatpush1.bf16.msra.mxu0 0
    %2543 = vmatprep.subr.bf16.mxu0 0
    %2544 = vmatpush1.bf16.msra.mxu0 0
    %2545 = vmatprep.subr.bf16.mxu0 0
    %2546 = vmatpush1.bf16.msra.mxu0 0
    %2547 = vmatprep.subr.bf16.mxu0 0
    %2548 = vmatpush1.bf16.msra.mxu0 0
    %2549 = vmatprep.subr.bf16.mxu0 0
    %2550 = vmatpush1.bf16.msra.mxu0 0
    %2551 = vmatprep.subr.bf16.mxu0 0
    %2552 = vmatpush1.bf16.msra.mxu0 0
    %2553 = vmatprep.subr.bf16.mxu0 0
    %2554 = vmatpush1.bf16.msra.mxu0 0
    %2555 = vmatprep.subr.bf16.mxu0 0
    %2556 = vmatpush1.bf16.msra.mxu0 0
    %2557 = vmatprep.subr.bf16.mxu0 0
    %2558 = vmatpush1.bf16.msra.mxu0 0
    %2559 = vmatprep.subr.bf16.mxu0 0
    %2560 = vmatpush1.bf16.msra.mxu0 0
    %2561 = vmatprep.subr.bf16.mxu0 0
    %2562 = vmatpush1.bf16.msra.mxu0 0
    %2563 = vmatprep.mubr.bf16.mxu0 0
    %2564 = vmatmul.mubr.bf16.gmra.mrb[0].mxu0 %v2526
    %v2565 = vpop.f32.mrb[0].mxu0
    %v2566 = vadd.f32 0.0, %v2565
    %v2567 = vpop.f32.mrb[0].mxu0
    %v2568 = vpop.f32.mrb[0].mxu0
    %v2569 = vpop.f32.mrb[0].mxu0
    %2570 = vdwg.mxu0
    %v2572 = vsel %vm2327, %v2419, 0
    %v2575 = vsel %vm2435, %v2427, 0
    %2577 = vmatprep.subr.bf16.mxu0 0
    %2578 = vmatpush1.bf16.msra.mxu0 %v2575
    %2579 = vmatprep.subr.bf16.mxu0 0
    %2580 = vmatpush1.bf16.msra.mxu0 0
    %2581 = vmatprep.subr.bf16.mxu0 0
    %2582 = vmatpush1.bf16.msra.mxu0 0
    %2583 = vmatprep.subr.bf16.mxu0 0
    %2584 = vmatpush1.bf16.msra.mxu0 0
    %2585 = vmatprep.subr.bf16.mxu0 0
    %2586 = vmatpush1.bf16.msra.mxu0 0
    %2587 = vmatprep.subr.bf16.mxu0 0
    %2588 = vmatpush1.bf16.msra.mxu0 0
    %2589 = vmatprep.subr.bf16.mxu0 0
    %2590 = vmatpush1.bf16.msra.mxu0 0
    %2591 = vmatprep.subr.bf16.mxu0 0
    %2592 = vmatpush1.bf16.msra.mxu0 0
    %2593 = vmatprep.subr.bf16.mxu0 0
    %2594 = vmatpush1.bf16.msra.mxu0 0
    %2595 = vmatprep.subr.bf16.mxu0 0
    %2596 = vmatpush1.bf16.msra.mxu0 0
    %2597 = vmatprep.subr.bf16.mxu0 0
    %2598 = vmatpush1.bf16.msra.mxu0 0
    %2599 = vmatprep.subr.bf16.mxu0 0
    %2600 = vmatpush1.bf16.msra.mxu0 0
    %2601 = vmatprep.subr.bf16.mxu0 0
    %2602 = vmatpush1.bf16.msra.mxu0 0
    %2603 = vmatprep.subr.bf16.mxu0 0
    %2604 = vmatpush1.bf16.msra.mxu0 0
    %2605 = vmatprep.subr.bf16.mxu0 0
    %2606 = vmatpush1.bf16.msra.mxu0 0
    %2607 = vmatprep.subr.bf16.mxu0 0
    %2608 = vmatpush1.bf16.msra.mxu0 0
    %2609 = vmatprep.mubr.bf16.mxu0 0
    %2610 = vmatmul.mubr.bf16.gmra.mrb[0].mxu0 %v2572
    %v2611 = vpop.f32.mrb[0].mxu0
    %v2612 = vadd.f32 0.0, %v2611
    %v2613 = vpop.f32.mrb[0].mxu0
    %v2614 = vpop.f32.mrb[0].mxu0
    %v2615 = vpop.f32.mrb[0].mxu0
    %2616 = vdwg.mxu0
    %v2618 = vsel %vm2327, %v2420, 0
    %v2621 = vsel %vm2435, %v2428, 0
    %2623 = vmatprep.subr.bf16.mxu0 0
    %2624 = vmatpush1.bf16.msra.mxu0 %v2621
    %2625 = vmatprep.subr.bf16.mxu0 0
    %2626 = vmatpush1.bf16.msra.mxu0 0
    %2627 = vmatprep.subr.bf16.mxu0 0
    %2628 = vmatpush1.bf16.msra.mxu0 0
    %2629 = vmatprep.subr.bf16.mxu0 0
    %2630 = vmatpush1.bf16.msra.mxu0 0
    %2631 = vmatprep.subr.bf16.mxu0 0
    %2632 = vmatpush1.bf16.msra.mxu0 0
    %2633 = vmatprep.subr.bf16.mxu0 0
    %2634 = vmatpush1.bf16.msra.mxu0 0
    %2635 = vmatprep.subr.bf16.mxu0 0
    %2636 = vmatpush1.bf16.msra.mxu0 0
    %2637 = vmatprep.subr.bf16.mxu0 0
    %2638 = vmatpush1.bf16.msra.mxu0 0
    %2639 = vmatprep.subr.bf16.mxu0 0
    %2640 = vmatpush1.bf16.msra.mxu0 0
    %2641 = vmatprep.subr.bf16.mxu0 0
    %2642 = vmatpush1.bf16.msra.mxu0 0
    %2643 = vmatprep.subr.bf16.mxu0 0
    %2644 = vmatpush1.bf16.msra.mxu0 0
    %2645 = vmatprep.subr.bf16.mxu0 0
    %2646 = vmatpush1.bf16.msra.mxu0 0
    %2647 = vmatprep.subr.bf16.mxu0 0
    %2648 = vmatpush1.bf16.msra.mxu0 0
    %2649 = vmatprep.subr.bf16.mxu0 0
    %2650 = vmatpush1.bf16.msra.mxu0 0
    %2651 = vmatprep.subr.bf16.mxu0 0
    %2652 = vmatpush1.bf16.msra.mxu0 0
    %2653 = vmatprep.subr.bf16.mxu0 0
    %2654 = vmatpush1.bf16.msra.mxu0 0
    %2655 = vmatprep.mubr.bf16.mxu0 0
    %2656 = vmatmul.mubr.bf16.gmra.mrb[0].mxu0 %v2618
    %v2657 = vpop.f32.mrb[0].mxu0
    %v2658 = vadd.f32 0.0, %v2657
    %v2659 = vpop.f32.mrb[0].mxu0
    %v2660 = vpop.f32.mrb[0].mxu0
    %v2661 = vpop.f32.mrb[0].mxu0
    %2662 = vdwg.mxu0
    %v2664 = vsel %vm2327, %v2421, 0
    %v2667 = vsel %vm2435, %v2429, 0
    %2669 = vmatprep.subr.bf16.mxu0 0
    %2670 = vmatpush1.bf16.msra.mxu0 %v2667
    %2671 = vmatprep.subr.bf16.mxu0 0
    %2672 = vmatpush1.bf16.msra.mxu0 0
    %2673 = vmatprep.subr.bf16.mxu0 0
    %2674 = vmatpush1.bf16.msra.mxu0 0
    %2675 = vmatprep.subr.bf16.mxu0 0
    %2676 = vmatpush1.bf16.msra.mxu0 0
    %2677 = vmatprep.subr.bf16.mxu0 0
    %2678 = vmatpush1.bf16.msra.mxu0 0
    %2679 = vmatprep.subr.bf16.mxu0 0
    %2680 = vmatpush1.bf16.msra.mxu0 0
    %2681 = vmatprep.subr.bf16.mxu0 0
    %2682 = vmatpush1.bf16.msra.mxu0 0
    %2683 = vmatprep.subr.bf16.mxu0 0
    %2684 = vmatpush1.bf16.msra.mxu0 0
    %2685 = vmatprep.subr.bf16.mxu0 0
    %2686 = vmatpush1.bf16.msra.mxu0 0
    %2687 = vmatprep.subr.bf16.mxu0 0
    %2688 = vmatpush1.bf16.msra.mxu0 0
    %2689 = vmatprep.subr.bf16.mxu0 0
    %2690 = vmatpush1.bf16.msra.mxu0 0
    %2691 = vmatprep.subr.bf16.mxu0 0
    %2692 = vmatpush1.bf16.msra.mxu0 0
    %2693 = vmatprep.subr.bf16.mxu0 0
    %2694 = vmatpush1.bf16.msra.mxu0 0
    %2695 = vmatprep.subr.bf16.mxu0 0
    %2696 = vmatpush1.bf16.msra.mxu0 0
    %2697 = vmatprep.subr.bf16.mxu0 0
    %2698 = vmatpush1.bf16.msra.mxu0 0
    %2699 = vmatprep.subr.bf16.mxu0 0
    %2700 = vmatpush1.bf16.msra.mxu0 0
    %2701 = vmatprep.mubr.bf16.mxu0 0
    %2702 = vmatmul.mubr.bf16.gmra.mrb[0].mxu0 %v2664
    %v2703 = vpop.f32.mrb[0].mxu0
    %v2704 = vadd.f32 0.0, %v2703
    %v2705 = vpop.f32.mrb[0].mxu0
    %v2706 = vpop.f32.mrb[0].mxu0
    %v2707 = vpop.f32.mrb[0].mxu0
    %2708 = vdwg.mxu0
    %v2710 = vsel %vm2327, %v2422, 0
    %v2713 = vsel %vm2435, %v2430, 0
    %2715 = vmatprep.subr.bf16.mxu0 0
    %2716 = vmatpush1.bf16.msra.mxu0 %v2713
    %2717 = vmatprep.subr.bf16.mxu0 0
    %2718 = vmatpush1.bf16.msra.mxu0 0
    %2719 = vmatprep.subr.bf16.mxu0 0
    %2720 = vmatpush1.bf16.msra.mxu0 0
    %2721 = vmatprep.subr.bf16.mxu0 0
    %2722 = vmatpush1.bf16.msra.mxu0 0
    %2723 = vmatprep.subr.bf16.mxu0 0
    %2724 = vmatpush1.bf16.msra.mxu0 0
    %2725 = vmatprep.subr.bf16.mxu0 0
    %2726 = vmatpush1.bf16.msra.mxu0 0
    %2727 = vmatprep.subr.bf16.mxu0 0
    %2728 = vmatpush1.bf16.msra.mxu0 0
    %2729 = vmatprep.subr.bf16.mxu0 0
    %2730 = vmatpush1.bf16.msra.mxu0 0
    %2731 = vmatprep.subr.bf16.mxu0 0
    %2732 = vmatpush1.bf16.msra.mxu0 0
    %2733 = vmatprep.subr.bf16.mxu0 0
    %2734 = vmatpush1.bf16.msra.mxu0 0
    %2735 = vmatprep.subr.bf16.mxu0 0
    %2736 = vmatpush1.bf16.msra.mxu0 0
    %2737 = vmatprep.subr.bf16.mxu0 0
    %2738 = vmatpush1.bf16.msra.mxu0 0
    %2739 = vmatprep.subr.bf16.mxu0 0
    %2740 = vmatpush1.bf16.msra.mxu0 0
    %2741 = vmatprep.subr.bf16.mxu0 0
    %2742 = vmatpush1.bf16.msra.mxu0 0
    %2743 = vmatprep.subr.bf16.mxu0 0
    %2744 = vmatpush1.bf16.msra.mxu0 0
    %2745 = vmatprep.subr.bf16.mxu0 0
    %2746 = vmatpush1.bf16.msra.mxu0 0
    %2747 = vmatprep.mubr.bf16.mxu0 0
    %2748 = vmatmul.mubr.bf16.gmra.mrb[0].mxu0 %v2710
    %v2749 = vpop.f32.mrb[0].mxu0
    %v2750 = vadd.f32 0.0, %v2749
    %v2751 = vpop.f32.mrb[0].mxu0
    %v2752 = vpop.f32.mrb[0].mxu0
    %v2753 = vpop.f32.mrb[0].mxu0
    %2754 = vdwg.mxu0
    %v2756 = vsel %vm2327, %v2423, 0
    %v2759 = vsel %vm2435, %v2431, 0
    %2761 = vmatprep.subr.bf16.mxu0 0
    %2762 = vmatpush1.bf16.msra.mxu0 %v2759
    %2763 = vmatprep.subr.bf16.mxu0 0
    %2764 = vmatpush1.bf16.msra.mxu0 0
    %2765 = vmatprep.subr.bf16.mxu0 0
    %2766 = vmatpush1.bf16.msra.mxu0 0
    %2767 = vmatprep.subr.bf16.mxu0 0
    %2768 = vmatpush1.bf16.msra.mxu0 0
    %2769 = vmatprep.subr.bf16.mxu0 0
    %2770 = vmatpush1.bf16.msra.mxu0 0
    %2771 = vmatprep.subr.bf16.mxu0 0
    %2772 = vmatpush1.bf16.msra.mxu0 0
    %2773 = vmatprep.subr.bf16.mxu0 0
    %2774 = vmatpush1.bf16.msra.mxu0 0
    %2775 = vmatprep.subr.bf16.mxu0 0
    %2776 = vmatpush1.bf16.msra.mxu0 0
    %2777 = vmatprep.subr.bf16.mxu0 0
    %2778 = vmatpush1.bf16.msra.mxu0 0
    %2779 = vmatprep.subr.bf16.mxu0 0
    %2780 = vmatpush1.bf16.msra.mxu0 0
    %2781 = vmatprep.subr.bf16.mxu0 0
    %2782 = vmatpush1.bf16.msra.mxu0 0
    %2783 = vmatprep.subr.bf16.mxu0 0
    %2784 = vmatpush1.bf16.msra.mxu0 0
    %2785 = vmatprep.subr.bf16.mxu0 0
    %2786 = vmatpush1.bf16.msra.mxu0 0
    %2787 = vmatprep.subr.bf16.mxu0 0
    %2788 = vmatpush1.bf16.msra.mxu0 0
    %2789 = vmatprep.subr.bf16.mxu0 0
    %2790 = vmatpush1.bf16.msra.mxu0 0
    %2791 = vmatprep.subr.bf16.mxu0 0
    %2792 = vmatpush1.bf16.msra.mxu0 0
    %2793 = vmatprep.mubr.bf16.mxu0 0
    %2794 = vmatmul.mubr.bf16.gmra.mrb[0].mxu0 %v2756
    %v2795 = vpop.f32.mrb[0].mxu0
    %v2796 = vadd.f32 0.0, %v2795
    %v2797 = vpop.f32.mrb[0].mxu0
    %v2798 = vpop.f32.mrb[0].mxu0
    %v2799 = vpop.f32.mrb[0].mxu0
    %2800 = vdwg.mxu0
    %2802 = vrot.lane.b32.xlu0 %v2520, 16
    %v2803 = vpop.permute.xlu0 %2802
    %2806 = vrot.lane.b32.xlu0 %v2566, 32
    %v2807 = vpop.permute.xlu0 %2806
    %2810 = vrot.lane.b32.xlu0 %v2612, 48
    %v2811 = vpop.permute.xlu0 %2810
    %2814 = vrot.lane.b32.xlu0 %v2658, 64
    %v2815 = vpop.permute.xlu0 %2814
    %2818 = vrot.lane.b32.xlu0 %v2704, 80
    %v2819 = vpop.permute.xlu0 %2818
    %2822 = vrot.lane.b32.xlu0 %v2750, 96
    %v2823 = vpop.permute.xlu0 %2822
    %2826 = vrot.lane.b32.xlu0 %v2796, 112
    %v2827 = vpop.permute.xlu0 %2826
    %v2829 = vsel %vm1958, %v2474, %v2803
    %vm2830 = vcmask 261120
    %v2831 = vsel %vm2830, %v2829, %v2807
    %vm2832 = vcmask 392192
    %v2833 = vsel %vm2832, %v2831, %v2811
    %v2834 = vsel %vm1152, %v2833, %v2815
    %vm2835 = vcmask 654336
    %v2836 = vsel %vm2835, %v2834, %v2819
    %vm2837 = vcmask 785408
    %v2838 = vsel %vm2837, %v2836, %v2823
    %vm2839 = vcmask 916480
    %v2840 = vsel %vm2839, %v2838, %v2827
    %2842 = vrot.lane.b32.xlu0 %v1822, 112
    %v2843 = vpop.permute.xlu0 %2842
    %2845 = vrot.lane.b32.xlu0 %v1822, 96
    %v2846 = vpop.permute.xlu0 %2845
    %2848 = vrot.lane.b32.xlu0 %v1822, 80
    %v2849 = vpop.permute.xlu0 %2848
    %2851 = vrot.lane.b32.xlu0 %v1822, 64
    %v2852 = vpop.permute.xlu0 %2851
    %2854 = vrot.lane.b32.xlu0 %v1822, 48
    %v2855 = vpop.permute.xlu0 %2854
    %2857 = vrot.lane.b32.xlu0 %v1822, 32
    %v2858 = vpop.permute.xlu0 %2857
    %2860 = vrot.lane.b32.xlu0 %v1822, 16
    %v2861 = vpop.permute.xlu0 %2860
    %v2863 = vmul.f32 %v1822, 0.25
    %v2864 = vmul.f32 %v2843, 0.25
    %v2865 = vmul.f32 %v2846, 0.25
    %v2866 = vmul.f32 %v2849, 0.25
    %v2867 = vmul.f32 %v2852, 0.25
    %v2868 = vmul.f32 %v2855, 0.25
    %v2869 = vmul.f32 %v2858, 0.25
    %v2870 = vmul.f32 %v2861, 0.25
    %2872 = vrot.lane.b32.xlu0 %v1824, 112
    %v2873 = vpop.permute.xlu0 %2872
    %2875 = vrot.lane.b32.xlu0 %v1824, 96
    %v2876 = vpop.permute.xlu0 %2875
    %2878 = vrot.lane.b32.xlu0 %v1824, 80
    %v2879 = vpop.permute.xlu0 %2878
    %2881 = vrot.lane.b32.xlu0 %v1824, 64
    %v2882 = vpop.permute.xlu0 %2881
    %2884 = vrot.lane.b32.xlu0 %v1824, 48
    %v2885 = vpop.permute.xlu0 %2884
    %2887 = vrot.lane.b32.xlu0 %v1824, 32
    %v2888 = vpop.permute.xlu0 %2887
    %2890 = vrot.lane.b32.xlu0 %v1824, 16
    %v2891 = vpop.permute.xlu0 %2890
    %2894 = vrot.lane.b32.xlu0 %v1863, 112
    %v2895 = vpop.permute.xlu0 %2894
    %2897 = vrot.lane.b32.xlu0 %v1863, 96
    %v2898 = vpop.permute.xlu0 %2897
    %2900 = vrot.lane.b32.xlu0 %v1863, 80
    %v2901 = vpop.permute.xlu0 %2900
    %2903 = vrot.lane.b32.xlu0 %v1863, 64
    %v2904 = vpop.permute.xlu0 %2903
    %2906 = vrot.lane.b32.xlu0 %v1863, 48
    %v2907 = vpop.permute.xlu0 %2906
    %2909 = vrot.lane.b32.xlu0 %v1863, 32
    %v2910 = vpop.permute.xlu0 %2909
    %2912 = vrot.lane.b32.xlu0 %v1863, 16
    %v2913 = vpop.permute.xlu0 %2912
    %v2915 = vpack.c.bf16 %v2863, %v2863
    %v2916 = vpack.c.bf16 %v2864, %v2864
    %v2917 = vpack.c.bf16 %v2865, %v2865
    %v2918 = vpack.c.bf16 %v2866, %v2866
    %v2919 = vpack.c.bf16 %v2867, %v2867
    %v2920 = vpack.c.bf16 %v2868, %v2868
    %v2921 = vpack.c.bf16 %v2869, %v2869
    %v2922 = vpack.c.bf16 %v2870, %v2870
    %v2923 = vpack.c.bf16 %v1824, %v1824
    %v2924 = vpack.c.bf16 %v2873, %v2873
    %v2925 = vpack.c.bf16 %v2876, %v2876
    %v2926 = vpack.c.bf16 %v2879, %v2879
    %v2927 = vpack.c.bf16 %v2882, %v2882
    %v2928 = vpack.c.bf16 %v2885, %v2885
    %v2929 = vpack.c.bf16 %v2888, %v2888
    %v2930 = vpack.c.bf16 %v2891, %v2891
    %v2932 = vsel %vm1958, %v2915, 0
    %v2935 = vsel %vm1958, %v2923, 0
    %2937 = vmatprep.subr.bf16.mxu0 0
    %2938 = vmatpush1.bf16.xpose.msra.mxu0 %v2935
    %2939 = vmatprep.subr.bf16.mxu0 0
    %2940 = vmatpush1.bf16.xpose.msra.mxu0 0
    %2941 = vmatprep.subr.bf16.mxu0 0
    %2942 = vmatpush1.bf16.xpose.msra.mxu0 0
    %2943 = vmatprep.subr.bf16.mxu0 0
    %2944 = vmatpush1.bf16.xpose.msra.mxu0 0
    %2945 = vmatprep.subr.bf16.mxu0 0
    %2946 = vmatpush1.bf16.xpose.msra.mxu0 0
    %2947 = vmatprep.subr.bf16.mxu0 0
    %2948 = vmatpush1.bf16.xpose.msra.mxu0 0
    %2949 = vmatprep.subr.bf16.mxu0 0
    %2950 = vmatpush1.bf16.xpose.msra.mxu0 0
    %2951 = vmatprep.subr.bf16.mxu0 0
    %2952 = vmatpush1.bf16.xpose.msra.mxu0 0
    %2953 = vmatprep.subr.bf16.mxu0 0
    %2954 = vmatpush1.bf16.xpose.msra.mxu0 0
    %2955 = vmatprep.subr.bf16.mxu0 0
    %2956 = vmatpush1.bf16.xpose.msra.mxu0 0
    %2957 = vmatprep.subr.bf16.mxu0 0
    %2958 = vmatpush1.bf16.xpose.msra.mxu0 0
    %2959 = vmatprep.subr.bf16.mxu0 0
    %2960 = vmatpush1.bf16.xpose.msra.mxu0 0
    %2961 = vmatprep.subr.bf16.mxu0 0
    %2962 = vmatpush1.bf16.xpose.msra.mxu0 0
    %2963 = vmatprep.subr.bf16.mxu0 0
    %2964 = vmatpush1.bf16.xpose.msra.mxu0 0
    %2965 = vmatprep.subr.bf16.mxu0 0
    %2966 = vmatpush1.bf16.xpose.msra.mxu0 0
    %2967 = vmatprep.subr.bf16.mxu0 0
    %2968 = vmatpush1.bf16.xpose.msra.mxu0 0
    %2969 = vmatprep.mubr.bf16.mxu0 0
    %2970 = vmatmul.mubr.bf16.gmra.mrb[0].mxu0 %v2932
    %v2971 = vpop.f32.mrb[0].mxu0
    %v2972 = vadd.f32 %v990, %v2971
    %v2973 = vpop.f32.mrb[0].mxu0
    %v2974 = vpop.f32.mrb[0].mxu0
    %v2975 = vpop.f32.mrb[0].mxu0
    %2976 = vdwg.mxu0
    %v2978 = vsel %vm1958, %v2916, 0
    %v2981 = vsel %vm1958, %v2924, 0
    %2983 = vmatprep.subr.bf16.mxu0 0
    %2984 = vmatpush1.bf16.xpose.msra.mxu0 %v2981
    %2985 = vmatprep.subr.bf16.mxu0 0
    %2986 = vmatpush1.bf16.xpose.msra.mxu0 0
    %2987 = vmatprep.subr.bf16.mxu0 0
    %2988 = vmatpush1.bf16.xpose.msra.mxu0 0
    %2989 = vmatprep.subr.bf16.mxu0 0
    %2990 = vmatpush1.bf16.xpose.msra.mxu0 0
    %2991 = vmatprep.subr.bf16.mxu0 0
    %2992 = vmatpush1.bf16.xpose.msra.mxu0 0
    %2993 = vmatprep.subr.bf16.mxu0 0
    %2994 = vmatpush1.bf16.xpose.msra.mxu0 0
    %2995 = vmatprep.subr.bf16.mxu0 0
    %2996 = vmatpush1.bf16.xpose.msra.mxu0 0
    %2997 = vmatprep.subr.bf16.mxu0 0
    %2998 = vmatpush1.bf16.xpose.msra.mxu0 0
    %2999 = vmatprep.subr.bf16.mxu0 0
    %3000 = vmatpush1.bf16.xpose.msra.mxu0 0
    %3001 = vmatprep.subr.bf16.mxu0 0
    %3002 = vmatpush1.bf16.xpose.msra.mxu0 0
    %3003 = vmatprep.subr.bf16.mxu0 0
    %3004 = vmatpush1.bf16.xpose.msra.mxu0 0
    %3005 = vmatprep.subr.bf16.mxu0 0
    %3006 = vmatpush1.bf16.xpose.msra.mxu0 0
    %3007 = vmatprep.subr.bf16.mxu0 0
    %3008 = vmatpush1.bf16.xpose.msra.mxu0 0
    %3009 = vmatprep.subr.bf16.mxu0 0
    %3010 = vmatpush1.bf16.xpose.msra.mxu0 0
    %3011 = vmatprep.subr.bf16.mxu0 0
    %3012 = vmatpush1.bf16.xpose.msra.mxu0 0
    %3013 = vmatprep.subr.bf16.mxu0 0
    %3014 = vmatpush1.bf16.xpose.msra.mxu0 0
    %3015 = vmatprep.mubr.bf16.mxu0 0
    %3016 = vmatmul.mubr.bf16.gmra.mrb[0].mxu0 %v2978
    %v3017 = vpop.f32.mrb[0].mxu0
    %v3018 = vadd.f32 %v990, %v3017
    %v3019 = vpop.f32.mrb[0].mxu0
    %v3020 = vpop.f32.mrb[0].mxu0
    %v3021 = vpop.f32.mrb[0].mxu0
    %3022 = vdwg.mxu0
    %v3024 = vsel %vm1958, %v2917, 0
    %v3027 = vsel %vm1958, %v2925, 0
    %3029 = vmatprep.subr.bf16.mxu0 0
    %3030 = vmatpush1.bf16.xpose.msra.mxu0 %v3027
    %3031 = vmatprep.subr.bf16.mxu0 0
    %3032 = vmatpush1.bf16.xpose.msra.mxu0 0
    %3033 = vmatprep.subr.bf16.mxu0 0
    %3034 = vmatpush1.bf16.xpose.msra.mxu0 0
    %3035 = vmatprep.subr.bf16.mxu0 0
    %3036 = vmatpush1.bf16.xpose.msra.mxu0 0
    %3037 = vmatprep.subr.bf16.mxu0 0
    %3038 = vmatpush1.bf16.xpose.msra.mxu0 0
    %3039 = vmatprep.subr.bf16.mxu0 0
    %3040 = vmatpush1.bf16.xpose.msra.mxu0 0
    %3041 = vmatprep.subr.bf16.mxu0 0
    %3042 = vmatpush1.bf16.xpose.msra.mxu0 0
    %3043 = vmatprep.subr.bf16.mxu0 0
    %3044 = vmatpush1.bf16.xpose.msra.mxu0 0
    %3045 = vmatprep.subr.bf16.mxu0 0
    %3046 = vmatpush1.bf16.xpose.msra.mxu0 0
    %3047 = vmatprep.subr.bf16.mxu0 0
    %3048 = vmatpush1.bf16.xpose.msra.mxu0 0
    %3049 = vmatprep.subr.bf16.mxu0 0
    %3050 = vmatpush1.bf16.xpose.msra.mxu0 0
    %3051 = vmatprep.subr.bf16.mxu0 0
    %3052 = vmatpush1.bf16.xpose.msra.mxu0 0
    %3053 = vmatprep.subr.bf16.mxu0 0
    %3054 = vmatpush1.bf16.xpose.msra.mxu0 0
    %3055 = vmatprep.subr.bf16.mxu0 0
    %3056 = vmatpush1.bf16.xpose.msra.mxu0 0
    %3057 = vmatprep.subr.bf16.mxu0 0
    %3058 = vmatpush1.bf16.xpose.msra.mxu0 0
    %3059 = vmatprep.subr.bf16.mxu0 0
    %3060 = vmatpush1.bf16.xpose.msra.mxu0 0
    %3061 = vmatprep.mubr.bf16.mxu0 0
    %3062 = vmatmul.mubr.bf16.gmra.mrb[0].mxu0 %v3024
    %v3063 = vpop.f32.mrb[0].mxu0
    %v3064 = vadd.f32 %v990, %v3063
    %v3065 = vpop.f32.mrb[0].mxu0
    %v3066 = vpop.f32.mrb[0].mxu0
    %v3067 = vpop.f32.mrb[0].mxu0
    %3068 = vdwg.mxu0
    %v3070 = vsel %vm1958, %v2918, 0
    %v3073 = vsel %vm1958, %v2926, 0
    %3075 = vmatprep.subr.bf16.mxu0 0
    %3076 = vmatpush1.bf16.xpose.msra.mxu0 %v3073
    %3077 = vmatprep.subr.bf16.mxu0 0
    %3078 = vmatpush1.bf16.xpose.msra.mxu0 0
    %3079 = vmatprep.subr.bf16.mxu0 0
    %3080 = vmatpush1.bf16.xpose.msra.mxu0 0
    %3081 = vmatprep.subr.bf16.mxu0 0
    %3082 = vmatpush1.bf16.xpose.msra.mxu0 0
    %3083 = vmatprep.subr.bf16.mxu0 0
    %3084 = vmatpush1.bf16.xpose.msra.mxu0 0
    %3085 = vmatprep.subr.bf16.mxu0 0
    %3086 = vmatpush1.bf16.xpose.msra.mxu0 0
    %3087 = vmatprep.subr.bf16.mxu0 0
    %3088 = vmatpush1.bf16.xpose.msra.mxu0 0
    %3089 = vmatprep.subr.bf16.mxu0 0
    %3090 = vmatpush1.bf16.xpose.msra.mxu0 0
    %3091 = vmatprep.subr.bf16.mxu0 0
    %3092 = vmatpush1.bf16.xpose.msra.mxu0 0
    %3093 = vmatprep.subr.bf16.mxu0 0
    %3094 = vmatpush1.bf16.xpose.msra.mxu0 0
    %3095 = vmatprep.subr.bf16.mxu0 0
    %3096 = vmatpush1.bf16.xpose.msra.mxu0 0
    %3097 = vmatprep.subr.bf16.mxu0 0
    %3098 = vmatpush1.bf16.xpose.msra.mxu0 0
    %3099 = vmatprep.subr.bf16.mxu0 0
    %3100 = vmatpush1.bf16.xpose.msra.mxu0 0
    %3101 = vmatprep.subr.bf16.mxu0 0
    %3102 = vmatpush1.bf16.xpose.msra.mxu0 0
    %3103 = vmatprep.subr.bf16.mxu0 0
    %3104 = vmatpush1.bf16.xpose.msra.mxu0 0
    %3105 = vmatprep.subr.bf16.mxu0 0
    %3106 = vmatpush1.bf16.xpose.msra.mxu0 0
    %3107 = vmatprep.mubr.bf16.mxu0 0
    %3108 = vmatmul.mubr.bf16.gmra.mrb[0].mxu0 %v3070
    %v3109 = vpop.f32.mrb[0].mxu0
    %v3110 = vadd.f32 %v990, %v3109
    %v3111 = vpop.f32.mrb[0].mxu0
    %v3112 = vpop.f32.mrb[0].mxu0
    %v3113 = vpop.f32.mrb[0].mxu0
    %3114 = vdwg.mxu0
    %v3116 = vsel %vm1958, %v2919, 0
    %v3119 = vsel %vm1958, %v2927, 0
    %3121 = vmatprep.subr.bf16.mxu0 0
    %3122 = vmatpush1.bf16.xpose.msra.mxu0 %v3119
    %3123 = vmatprep.subr.bf16.mxu0 0
    %3124 = vmatpush1.bf16.xpose.msra.mxu0 0
    %3125 = vmatprep.subr.bf16.mxu0 0
    %3126 = vmatpush1.bf16.xpose.msra.mxu0 0
    %3127 = vmatprep.subr.bf16.mxu0 0
    %3128 = vmatpush1.bf16.xpose.msra.mxu0 0
    %3129 = vmatprep.subr.bf16.mxu0 0
    %3130 = vmatpush1.bf16.xpose.msra.mxu0 0
    %3131 = vmatprep.subr.bf16.mxu0 0
    %3132 = vmatpush1.bf16.xpose.msra.mxu0 0
    %3133 = vmatprep.subr.bf16.mxu0 0
    %3134 = vmatpush1.bf16.xpose.msra.mxu0 0
    %3135 = vmatprep.subr.bf16.mxu0 0
    %3136 = vmatpush1.bf16.xpose.msra.mxu0 0
    %3137 = vmatprep.subr.bf16.mxu0 0
    %3138 = vmatpush1.bf16.xpose.msra.mxu0 0
    %3139 = vmatprep.subr.bf16.mxu0 0
    %3140 = vmatpush1.bf16.xpose.msra.mxu0 0
    %3141 = vmatprep.subr.bf16.mxu0 0
    %3142 = vmatpush1.bf16.xpose.msra.mxu0 0
    %3143 = vmatprep.subr.bf16.mxu0 0
    %3144 = vmatpush1.bf16.xpose.msra.mxu0 0
    %3145 = vmatprep.subr.bf16.mxu0 0
    %3146 = vmatpush1.bf16.xpose.msra.mxu0 0
    %3147 = vmatprep.subr.bf16.mxu0 0
    %3148 = vmatpush1.bf16.xpose.msra.mxu0 0
    %3149 = vmatprep.subr.bf16.mxu0 0
    %3150 = vmatpush1.bf16.xpose.msra.mxu0 0
    %3151 = vmatprep.subr.bf16.mxu0 0
    %3152 = vmatpush1.bf16.xpose.msra.mxu0 0
    %3153 = vmatprep.mubr.bf16.mxu0 0
    %3154 = vmatmul.mubr.bf16.gmra.mrb[0].mxu0 %v3116
    %v3155 = vpop.f32.mrb[0].mxu0
    %v3156 = vadd.f32 %v990, %v3155
    %v3157 = vpop.f32.mrb[0].mxu0
    %v3158 = vpop.f32.mrb[0].mxu0
    %v3159 = vpop.f32.mrb[0].mxu0
    %3160 = vdwg.mxu0
    %v3162 = vsel %vm1958, %v2920, 0
    %v3165 = vsel %vm1958, %v2928, 0
    %3167 = vmatprep.subr.bf16.mxu0 0
    %3168 = vmatpush1.bf16.xpose.msra.mxu0 %v3165
    %3169 = vmatprep.subr.bf16.mxu0 0
    %3170 = vmatpush1.bf16.xpose.msra.mxu0 0
    %3171 = vmatprep.subr.bf16.mxu0 0
    %3172 = vmatpush1.bf16.xpose.msra.mxu0 0
    %3173 = vmatprep.subr.bf16.mxu0 0
    %3174 = vmatpush1.bf16.xpose.msra.mxu0 0
    %3175 = vmatprep.subr.bf16.mxu0 0
    %3176 = vmatpush1.bf16.xpose.msra.mxu0 0
    %3177 = vmatprep.subr.bf16.mxu0 0
    %3178 = vmatpush1.bf16.xpose.msra.mxu0 0
    %3179 = vmatprep.subr.bf16.mxu0 0
    %3180 = vmatpush1.bf16.xpose.msra.mxu0 0
    %3181 = vmatprep.subr.bf16.mxu0 0
    %3182 = vmatpush1.bf16.xpose.msra.mxu0 0
    %3183 = vmatprep.subr.bf16.mxu0 0
    %3184 = vmatpush1.bf16.xpose.msra.mxu0 0
    %3185 = vmatprep.subr.bf16.mxu0 0
    %3186 = vmatpush1.bf16.xpose.msra.mxu0 0
    %3187 = vmatprep.subr.bf16.mxu0 0
    %3188 = vmatpush1.bf16.xpose.msra.mxu0 0
    %3189 = vmatprep.subr.bf16.mxu0 0
    %3190 = vmatpush1.bf16.xpose.msra.mxu0 0
    %3191 = vmatprep.subr.bf16.mxu0 0
    %3192 = vmatpush1.bf16.xpose.msra.mxu0 0
    %3193 = vmatprep.subr.bf16.mxu0 0
    %3194 = vmatpush1.bf16.xpose.msra.mxu0 0
    %3195 = vmatprep.subr.bf16.mxu0 0
    %3196 = vmatpush1.bf16.xpose.msra.mxu0 0
    %3197 = vmatprep.subr.bf16.mxu0 0
    %3198 = vmatpush1.bf16.xpose.msra.mxu0 0
    %3199 = vmatprep.mubr.bf16.mxu0 0
    %3200 = vmatmul.mubr.bf16.gmra.mrb[0].mxu0 %v3162
    %v3201 = vpop.f32.mrb[0].mxu0
    %v3202 = vadd.f32 %v990, %v3201
    %v3203 = vpop.f32.mrb[0].mxu0
    %v3204 = vpop.f32.mrb[0].mxu0
    %v3205 = vpop.f32.mrb[0].mxu0
    %3206 = vdwg.mxu0
    %v3208 = vsel %vm1958, %v2921, 0
    %v3211 = vsel %vm1958, %v2929, 0
    %3213 = vmatprep.subr.bf16.mxu0 0
    %3214 = vmatpush1.bf16.xpose.msra.mxu0 %v3211
    %3215 = vmatprep.subr.bf16.mxu0 0
    %3216 = vmatpush1.bf16.xpose.msra.mxu0 0
    %3217 = vmatprep.subr.bf16.mxu0 0
    %3218 = vmatpush1.bf16.xpose.msra.mxu0 0
    %3219 = vmatprep.subr.bf16.mxu0 0
    %3220 = vmatpush1.bf16.xpose.msra.mxu0 0
    %3221 = vmatprep.subr.bf16.mxu0 0
    %3222 = vmatpush1.bf16.xpose.msra.mxu0 0
    %3223 = vmatprep.subr.bf16.mxu0 0
    %3224 = vmatpush1.bf16.xpose.msra.mxu0 0
    %3225 = vmatprep.subr.bf16.mxu0 0
    %3226 = vmatpush1.bf16.xpose.msra.mxu0 0
    %3227 = vmatprep.subr.bf16.mxu0 0
    %3228 = vmatpush1.bf16.xpose.msra.mxu0 0
    %3229 = vmatprep.subr.bf16.mxu0 0
    %3230 = vmatpush1.bf16.xpose.msra.mxu0 0
    %3231 = vmatprep.subr.bf16.mxu0 0
    %3232 = vmatpush1.bf16.xpose.msra.mxu0 0
    %3233 = vmatprep.subr.bf16.mxu0 0
    %3234 = vmatpush1.bf16.xpose.msra.mxu0 0
    %3235 = vmatprep.subr.bf16.mxu0 0
    %3236 = vmatpush1.bf16.xpose.msra.mxu0 0
    %3237 = vmatprep.subr.bf16.mxu0 0
    %3238 = vmatpush1.bf16.xpose.msra.mxu0 0
    %3239 = vmatprep.subr.bf16.mxu0 0
    %3240 = vmatpush1.bf16.xpose.msra.mxu0 0
    %3241 = vmatprep.subr.bf16.mxu0 0
    %3242 = vmatpush1.bf16.xpose.msra.mxu0 0
    %3243 = vmatprep.subr.bf16.mxu0 0
    %3244 = vmatpush1.bf16.xpose.msra.mxu0 0
    %3245 = vmatprep.mubr.bf16.mxu0 0
    %3246 = vmatmul.mubr.bf16.gmra.mrb[0].mxu0 %v3208
    %v3247 = vpop.f32.mrb[0].mxu0
    %v3248 = vadd.f32 %v990, %v3247
    %v3249 = vpop.f32.mrb[0].mxu0
    %v3250 = vpop.f32.mrb[0].mxu0
    %v3251 = vpop.f32.mrb[0].mxu0
    %3252 = vdwg.mxu0
    %v3254 = vsel %vm1958, %v2922, 0
    %v3257 = vsel %vm1958, %v2930, 0
    %3259 = vmatprep.subr.bf16.mxu0 0
    %3260 = vmatpush1.bf16.xpose.msra.mxu0 %v3257
    %3261 = vmatprep.subr.bf16.mxu0 0
    %3262 = vmatpush1.bf16.xpose.msra.mxu0 0
    %3263 = vmatprep.subr.bf16.mxu0 0
    %3264 = vmatpush1.bf16.xpose.msra.mxu0 0
    %3265 = vmatprep.subr.bf16.mxu0 0
    %3266 = vmatpush1.bf16.xpose.msra.mxu0 0
    %3267 = vmatprep.subr.bf16.mxu0 0
    %3268 = vmatpush1.bf16.xpose.msra.mxu0 0
    %3269 = vmatprep.subr.bf16.mxu0 0
    %3270 = vmatpush1.bf16.xpose.msra.mxu0 0
    %3271 = vmatprep.subr.bf16.mxu0 0
    %3272 = vmatpush1.bf16.xpose.msra.mxu0 0
    %3273 = vmatprep.subr.bf16.mxu0 0
    %3274 = vmatpush1.bf16.xpose.msra.mxu0 0
    %3275 = vmatprep.subr.bf16.mxu0 0
    %3276 = vmatpush1.bf16.xpose.msra.mxu0 0
    %3277 = vmatprep.subr.bf16.mxu0 0
    %3278 = vmatpush1.bf16.xpose.msra.mxu0 0
    %3279 = vmatprep.subr.bf16.mxu0 0
    %3280 = vmatpush1.bf16.xpose.msra.mxu0 0
    %3281 = vmatprep.subr.bf16.mxu0 0
    %3282 = vmatpush1.bf16.xpose.msra.mxu0 0
    %3283 = vmatprep.subr.bf16.mxu0 0
    %3284 = vmatpush1.bf16.xpose.msra.mxu0 0
    %3285 = vmatprep.subr.bf16.mxu0 0
    %3286 = vmatpush1.bf16.xpose.msra.mxu0 0
    %3287 = vmatprep.subr.bf16.mxu0 0
    %3288 = vmatpush1.bf16.xpose.msra.mxu0 0
    %3289 = vmatprep.subr.bf16.mxu0 0
    %3290 = vmatpush1.bf16.xpose.msra.mxu0 0
    %3291 = vmatprep.mubr.bf16.mxu0 0
    %3292 = vmatmul.mubr.bf16.gmra.mrb[0].mxu0 %v3254
    %v3293 = vpop.f32.mrb[0].mxu0
    %v3294 = vadd.f32 %v990, %v3293
    %v3295 = vpop.f32.mrb[0].mxu0
    %v3296 = vpop.f32.mrb[0].mxu0
    %v3297 = vpop.f32.mrb[0].mxu0
    %3298 = vdwg.mxu0
    %v3299 = vsel %vm2327, %v2972, -inf
    %3300 = vmax.xlane.f32.xlu0 %v3299
    %v3301 = vpop.xlane.xlu0 %3300
    %v3302 = vsel %vm2327, %v3018, -inf
    %3303 = vmax.xlane.f32.xlu0 %v3302
    %v3304 = vpop.xlane.xlu0 %3303
    %v3305 = vsel %vm2327, %v3064, -inf
    %3306 = vmax.xlane.f32.xlu0 %v3305
    %v3307 = vpop.xlane.xlu0 %3306
    %v3308 = vsel %vm2327, %v3110, -inf
    %3309 = vmax.xlane.f32.xlu0 %v3308
    %v3310 = vpop.xlane.xlu0 %3309
    %v3311 = vsel %vm2327, %v3156, -inf
    %3312 = vmax.xlane.f32.xlu0 %v3311
    %v3313 = vpop.xlane.xlu0 %3312
    %v3314 = vsel %vm2327, %v3202, -inf
    %3315 = vmax.xlane.f32.xlu0 %v3314
    %v3316 = vpop.xlane.xlu0 %3315
    %v3317 = vsel %vm2327, %v3248, -inf
    %3318 = vmax.xlane.f32.xlu0 %v3317
    %v3319 = vpop.xlane.xlu0 %3318
    %v3320 = vsel %vm2327, %v3294, -inf
    %3321 = vmax.xlane.f32.xlu0 %v3320
    %v3322 = vpop.xlane.xlu0 %3321
    %v3323 = vsub.f32 %v2972, %v3301
    %v3324 = vsub.f32 %v3018, %v3304
    %v3325 = vsub.f32 %v3064, %v3307
    %v3326 = vsub.f32 %v3110, %v3310
    %v3327 = vsub.f32 %v3156, %v3313
    %v3328 = vsub.f32 %v3202, %v3316
    %v3329 = vsub.f32 %v3248, %v3319
    %v3330 = vsub.f32 %v3294, %v3322
    %v3331 = vmul.f32 %v3323, 1.442695
    %v3332 = vpow.pop %v3331
    %v3333 = vmul.f32 %v3324, 1.442695
    %v3334 = vpow.pop %v3333
    %v3335 = vmul.f32 %v3325, 1.442695
    %v3336 = vpow.pop %v3335
    %v3337 = vmul.f32 %v3326, 1.442695
    %v3338 = vpow.pop %v3337
    %v3339 = vmul.f32 %v3327, 1.442695
    %v3340 = vpow.pop %v3339
    %v3341 = vmul.f32 %v3328, 1.442695
    %v3342 = vpow.pop %v3341
    %v3343 = vmul.f32 %v3329, 1.442695
    %v3344 = vpow.pop %v3343
    %v3345 = vmul.f32 %v3330, 1.442695
    %v3346 = vpow.pop %v3345
    %v3347 = vsel %vm2327, %v3332, 0.0
    %3348 = vadd.xlane.f32.xlu0 %v3347
    %v3349 = vpop.xlane.xlu0 %3348
    %v3350 = vsel %vm2327, %v3334, 0.0
    %3351 = vadd.xlane.f32.xlu0 %v3350
    %v3352 = vpop.xlane.xlu0 %3351
    %v3353 = vsel %vm2327, %v3336, 0.0
    %3354 = vadd.xlane.f32.xlu0 %v3353
    %v3355 = vpop.xlane.xlu0 %3354
    %v3356 = vsel %vm2327, %v3338, 0.0
    %3357 = vadd.xlane.f32.xlu0 %v3356
    %v3358 = vpop.xlane.xlu0 %3357
    %v3359 = vsel %vm2327, %v3340, 0.0
    %3360 = vadd.xlane.f32.xlu0 %v3359
    %v3361 = vpop.xlane.xlu0 %3360
    %v3362 = vsel %vm2327, %v3342, 0.0
    %3363 = vadd.xlane.f32.xlu0 %v3362
    %v3364 = vpop.xlane.xlu0 %3363
    %v3365 = vsel %vm2327, %v3344, 0.0
    %3366 = vadd.xlane.f32.xlu0 %v3365
    %v3367 = vpop.xlane.xlu0 %3366
    %v3368 = vsel %vm2327, %v3346, 0.0
    %3369 = vadd.xlane.f32.xlu0 %v3368
    %v3370 = vpop.xlane.xlu0 %3369
    %v3371 = vrcp.pop %v3349
    %v3372 = vrcp.pop %v3352
    %v3373 = vrcp.pop %v3355
    %v3374 = vrcp.pop %v3358
    %v3375 = vrcp.pop %v3361
    %v3376 = vrcp.pop %v3364
    %v3377 = vrcp.pop %v3367
    %v3378 = vrcp.pop %v3370
    %v3379 = vmul.f32 %v3332, %v3371
    %v3380 = vmul.f32 %v3334, %v3372
    %v3381 = vmul.f32 %v3336, %v3373
    %v3382 = vmul.f32 %v3338, %v3374
    %v3383 = vmul.f32 %v3340, %v3375
    %v3384 = vmul.f32 %v3342, %v3376
    %v3385 = vmul.f32 %v3344, %v3377
    %v3386 = vmul.f32 %v3346, %v3378
    %v3387 = vpack.c.bf16 %v3379, %v3379
    %v3388 = vpack.c.bf16 %v3380, %v3380
    %v3389 = vpack.c.bf16 %v3381, %v3381
    %v3390 = vpack.c.bf16 %v3382, %v3382
    %v3391 = vpack.c.bf16 %v3383, %v3383
    %v3392 = vpack.c.bf16 %v3384, %v3384
    %v3393 = vpack.c.bf16 %v3385, %v3385
    %v3394 = vpack.c.bf16 %v3386, %v3386
    %v3395 = vpack.c.bf16 %v1863, %v1863
    %v3396 = vpack.c.bf16 %v2895, %v2895
    %v3397 = vpack.c.bf16 %v2898, %v2898
    %v3398 = vpack.c.bf16 %v2901, %v2901
    %v3399 = vpack.c.bf16 %v2904, %v2904
    %v3400 = vpack.c.bf16 %v2907, %v2907
    %v3401 = vpack.c.bf16 %v2910, %v2910
    %v3402 = vpack.c.bf16 %v2913, %v2913
    %v3404 = vsel %vm2327, %v3387, 0
    %v3407 = vsel %vm2435, %v3395, 0
    %3409 = vmatprep.subr.bf16.mxu0 0
    %3410 = vmatpush1.bf16.msra.mxu0 %v3407
    %3411 = vmatprep.subr.bf16.mxu0 0
    %3412 = vmatpush1.bf16.msra.mxu0 0
    %3413 = vmatprep.subr.bf16.mxu0 0
    %3414 = vmatpush1.bf16.msra.mxu0 0
    %3415 = vmatprep.subr.bf16.mxu0 0
    %3416 = vmatpush1.bf16.msra.mxu0 0
    %3417 = vmatprep.subr.bf16.mxu0 0
    %3418 = vmatpush1.bf16.msra.mxu0 0
    %3419 = vmatprep.subr.bf16.mxu0 0
    %3420 = vmatpush1.bf16.msra.mxu0 0
    %3421 = vmatprep.subr.bf16.mxu0 0
    %3422 = vmatpush1.bf16.msra.mxu0 0
    %3423 = vmatprep.subr.bf16.mxu0 0
    %3424 = vmatpush1.bf16.msra.mxu0 0
    %3425 = vmatprep.subr.bf16.mxu0 0
    %3426 = vmatpush1.bf16.msra.mxu0 0
    %3427 = vmatprep.subr.bf16.mxu0 0
    %3428 = vmatpush1.bf16.msra.mxu0 0
    %3429 = vmatprep.subr.bf16.mxu0 0
    %3430 = vmatpush1.bf16.msra.mxu0 0
    %3431 = vmatprep.subr.bf16.mxu0 0
    %3432 = vmatpush1.bf16.msra.mxu0 0
    %3433 = vmatprep.subr.bf16.mxu0 0
    %3434 = vmatpush1.bf16.msra.mxu0 0
    %3435 = vmatprep.subr.bf16.mxu0 0
    %3436 = vmatpush1.bf16.msra.mxu0 0
    %3437 = vmatprep.subr.bf16.mxu0 0
    %3438 = vmatpush1.bf16.msra.mxu0 0
    %3439 = vmatprep.subr.bf16.mxu0 0
    %3440 = vmatpush1.bf16.msra.mxu0 0
    %3441 = vmatprep.mubr.bf16.mxu0 0
    %3442 = vmatmul.mubr.bf16.gmra.mrb[0].mxu0 %v3404
    %v3443 = vpop.f32.mrb[0].mxu0
    %v3444 = vadd.f32 0.0, %v3443
    %v3445 = vpop.f32.mrb[0].mxu0
    %v3446 = vpop.f32.mrb[0].mxu0
    %v3447 = vpop.f32.mrb[0].mxu0
    %3448 = vdwg.mxu0
    %v3450 = vsel %vm2327, %v3388, 0
    %v3453 = vsel %vm2435, %v3396, 0
    %3455 = vmatprep.subr.bf16.mxu0 0
    %3456 = vmatpush1.bf16.msra.mxu0 %v3453
    %3457 = vmatprep.subr.bf16.mxu0 0
    %3458 = vmatpush1.bf16.msra.mxu0 0
    %3459 = vmatprep.subr.bf16.mxu0 0
    %3460 = vmatpush1.bf16.msra.mxu0 0
    %3461 = vmatprep.subr.bf16.mxu0 0
    %3462 = vmatpush1.bf16.msra.mxu0 0
    %3463 = vmatprep.subr.bf16.mxu0 0
    %3464 = vmatpush1.bf16.msra.mxu0 0
    %3465 = vmatprep.subr.bf16.mxu0 0
    %3466 = vmatpush1.bf16.msra.mxu0 0
    %3467 = vmatprep.subr.bf16.mxu0 0
    %3468 = vmatpush1.bf16.msra.mxu0 0
    %3469 = vmatprep.subr.bf16.mxu0 0
    %3470 = vmatpush1.bf16.msra.mxu0 0
    %3471 = vmatprep.subr.bf16.mxu0 0
    %3472 = vmatpush1.bf16.msra.mxu0 0
    %3473 = vmatprep.subr.bf16.mxu0 0
    %3474 = vmatpush1.bf16.msra.mxu0 0
    %3475 = vmatprep.subr.bf16.mxu0 0
    %3476 = vmatpush1.bf16.msra.mxu0 0
    %3477 = vmatprep.subr.bf16.mxu0 0
    %3478 = vmatpush1.bf16.msra.mxu0 0
    %3479 = vmatprep.subr.bf16.mxu0 0
    %3480 = vmatpush1.bf16.msra.mxu0 0
    %3481 = vmatprep.subr.bf16.mxu0 0
    %3482 = vmatpush1.bf16.msra.mxu0 0
    %3483 = vmatprep.subr.bf16.mxu0 0
    %3484 = vmatpush1.bf16.msra.mxu0 0
    %3485 = vmatprep.subr.bf16.mxu0 0
    %3486 = vmatpush1.bf16.msra.mxu0 0
    %3487 = vmatprep.mubr.bf16.mxu0 0
    %3488 = vmatmul.mubr.bf16.gmra.mrb[0].mxu0 %v3450
    %v3489 = vpop.f32.mrb[0].mxu0
    %v3490 = vadd.f32 0.0, %v3489
    %v3491 = vpop.f32.mrb[0].mxu0
    %v3492 = vpop.f32.mrb[0].mxu0
    %v3493 = vpop.f32.mrb[0].mxu0
    %3494 = vdwg.mxu0
    %v3496 = vsel %vm2327, %v3389, 0
    %v3499 = vsel %vm2435, %v3397, 0
    %3501 = vmatprep.subr.bf16.mxu0 0
    %3502 = vmatpush1.bf16.msra.mxu0 %v3499
    %3503 = vmatprep.subr.bf16.mxu0 0
    %3504 = vmatpush1.bf16.msra.mxu0 0
    %3505 = vmatprep.subr.bf16.mxu0 0
    %3506 = vmatpush1.bf16.msra.mxu0 0
    %3507 = vmatprep.subr.bf16.mxu0 0
    %3508 = vmatpush1.bf16.msra.mxu0 0
    %3509 = vmatprep.subr.bf16.mxu0 0
    %3510 = vmatpush1.bf16.msra.mxu0 0
    %3511 = vmatprep.subr.bf16.mxu0 0
    %3512 = vmatpush1.bf16.msra.mxu0 0
    %3513 = vmatprep.subr.bf16.mxu0 0
    %3514 = vmatpush1.bf16.msra.mxu0 0
    %3515 = vmatprep.subr.bf16.mxu0 0
    %3516 = vmatpush1.bf16.msra.mxu0 0
    %3517 = vmatprep.subr.bf16.mxu0 0
    %3518 = vmatpush1.bf16.msra.mxu0 0
    %3519 = vmatprep.subr.bf16.mxu0 0
    %3520 = vmatpush1.bf16.msra.mxu0 0
    %3521 = vmatprep.subr.bf16.mxu0 0
    %3522 = vmatpush1.bf16.msra.mxu0 0
    %3523 = vmatprep.subr.bf16.mxu0 0
    %3524 = vmatpush1.bf16.msra.mxu0 0
    %3525 = vmatprep.subr.bf16.mxu0 0
    %3526 = vmatpush1.bf16.msra.mxu0 0
    %3527 = vmatprep.subr.bf16.mxu0 0
    %3528 = vmatpush1.bf16.msra.mxu0 0
    %3529 = vmatprep.subr.bf16.mxu0 0
    %3530 = vmatpush1.bf16.msra.mxu0 0
    %3531 = vmatprep.subr.bf16.mxu0 0
    %3532 = vmatpush1.bf16.msra.mxu0 0
    %3533 = vmatprep.mubr.bf16.mxu0 0
    %3534 = vmatmul.mubr.bf16.gmra.mrb[0].mxu0 %v3496
    %v3535 = vpop.f32.mrb[0].mxu0
    %v3536 = vadd.f32 0.0, %v3535
    %v3537 = vpop.f32.mrb[0].mxu0
    %v3538 = vpop.f32.mrb[0].mxu0
    %v3539 = vpop.f32.mrb[0].mxu0
    %3540 = vdwg.mxu0
    %v3542 = vsel %vm2327, %v3390, 0
    %v3545 = vsel %vm2435, %v3398, 0
    %3547 = vmatprep.subr.bf16.mxu0 0
    %3548 = vmatpush1.bf16.msra.mxu0 %v3545
    %3549 = vmatprep.subr.bf16.mxu0 0
    %3550 = vmatpush1.bf16.msra.mxu0 0
    %3551 = vmatprep.subr.bf16.mxu0 0
    %3552 = vmatpush1.bf16.msra.mxu0 0
    %3553 = vmatprep.subr.bf16.mxu0 0
    %3554 = vmatpush1.bf16.msra.mxu0 0
    %3555 = vmatprep.subr.bf16.mxu0 0
    %3556 = vmatpush1.bf16.msra.mxu0 0
    %3557 = vmatprep.subr.bf16.mxu0 0
    %3558 = vmatpush1.bf16.msra.mxu0 0
    %3559 = vmatprep.subr.bf16.mxu0 0
    %3560 = vmatpush1.bf16.msra.mxu0 0
    %3561 = vmatprep.subr.bf16.mxu0 0
    %3562 = vmatpush1.bf16.msra.mxu0 0
    %3563 = vmatprep.subr.bf16.mxu0 0
    %3564 = vmatpush1.bf16.msra.mxu0 0
    %3565 = vmatprep.subr.bf16.mxu0 0
    %3566 = vmatpush1.bf16.msra.mxu0 0
    %3567 = vmatprep.subr.bf16.mxu0 0
    %3568 = vmatpush1.bf16.msra.mxu0 0
    %3569 = vmatprep.subr.bf16.mxu0 0
    %3570 = vmatpush1.bf16.msra.mxu0 0
    %3571 = vmatprep.subr.bf16.mxu0 0
    %3572 = vmatpush1.bf16.msra.mxu0 0
    %3573 = vmatprep.subr.bf16.mxu0 0
    %3574 = vmatpush1.bf16.msra.mxu0 0
    %3575 = vmatprep.subr.bf16.mxu0 0
    %3576 = vmatpush1.bf16.msra.mxu0 0
    %3577 = vmatprep.subr.bf16.mxu0 0
    %3578 = vmatpush1.bf16.msra.mxu0 0
    %3579 = vmatprep.mubr.bf16.mxu0 0
    %3580 = vmatmul.mubr.bf16.gmra.mrb[0].mxu0 %v3542
    %v3581 = vpop.f32.mrb[0].mxu0
    %v3582 = vadd.f32 0.0, %v3581
    %v3583 = vpop.f32.mrb[0].mxu0
    %v3584 = vpop.f32.mrb[0].mxu0
    %v3585 = vpop.f32.mrb[0].mxu0
    %3586 = vdwg.mxu0
    %v3588 = vsel %vm2327, %v3391, 0
    %v3591 = vsel %vm2435, %v3399, 0
    %3593 = vmatprep.subr.bf16.mxu0 0
    %3594 = vmatpush1.bf16.msra.mxu0 %v3591
    %3595 = vmatprep.subr.bf16.mxu0 0
    %3596 = vmatpush1.bf16.msra.mxu0 0
    %3597 = vmatprep.subr.bf16.mxu0 0
    %3598 = vmatpush1.bf16.msra.mxu0 0
    %3599 = vmatprep.subr.bf16.mxu0 0
    %3600 = vmatpush1.bf16.msra.mxu0 0
    %3601 = vmatprep.subr.bf16.mxu0 0
    %3602 = vmatpush1.bf16.msra.mxu0 0
    %3603 = vmatprep.subr.bf16.mxu0 0
    %3604 = vmatpush1.bf16.msra.mxu0 0
    %3605 = vmatprep.subr.bf16.mxu0 0
    %3606 = vmatpush1.bf16.msra.mxu0 0
    %3607 = vmatprep.subr.bf16.mxu0 0
    %3608 = vmatpush1.bf16.msra.mxu0 0
    %3609 = vmatprep.subr.bf16.mxu0 0
    %3610 = vmatpush1.bf16.msra.mxu0 0
    %3611 = vmatprep.subr.bf16.mxu0 0
    %3612 = vmatpush1.bf16.msra.mxu0 0
    %3613 = vmatprep.subr.bf16.mxu0 0
    %3614 = vmatpush1.bf16.msra.mxu0 0
    %3615 = vmatprep.subr.bf16.mxu0 0
    %3616 = vmatpush1.bf16.msra.mxu0 0
    %3617 = vmatprep.subr.bf16.mxu0 0
    %3618 = vmatpush1.bf16.msra.mxu0 0
    %3619 = vmatprep.subr.bf16.mxu0 0
    %3620 = vmatpush1.bf16.msra.mxu0 0
    %3621 = vmatprep.subr.bf16.mxu0 0
    %3622 = vmatpush1.bf16.msra.mxu0 0
    %3623 = vmatprep.subr.bf16.mxu0 0
    %3624 = vmatpush1.bf16.msra.mxu0 0
    %3625 = vmatprep.mubr.bf16.mxu0 0
    %3626 = vmatmul.mubr.bf16.gmra.mrb[0].mxu0 %v3588
    %v3627 = vpop.f32.mrb[0].mxu0
    %v3628 = vadd.f32 0.0, %v3627
    %v3629 = vpop.f32.mrb[0].mxu0
    %v3630 = vpop.f32.mrb[0].mxu0
    %v3631 = vpop.f32.mrb[0].mxu0
    %3632 = vdwg.mxu0
    %v3634 = vsel %vm2327, %v3392, 0
    %v3637 = vsel %vm2435, %v3400, 0
    %3639 = vmatprep.subr.bf16.mxu0 0
    %3640 = vmatpush1.bf16.msra.mxu0 %v3637
    %3641 = vmatprep.subr.bf16.mxu0 0
    %3642 = vmatpush1.bf16.msra.mxu0 0
    %3643 = vmatprep.subr.bf16.mxu0 0
    %3644 = vmatpush1.bf16.msra.mxu0 0
    %3645 = vmatprep.subr.bf16.mxu0 0
    %3646 = vmatpush1.bf16.msra.mxu0 0
    %3647 = vmatprep.subr.bf16.mxu0 0
    %3648 = vmatpush1.bf16.msra.mxu0 0
    %3649 = vmatprep.subr.bf16.mxu0 0
    %3650 = vmatpush1.bf16.msra.mxu0 0
    %3651 = vmatprep.subr.bf16.mxu0 0
    %3652 = vmatpush1.bf16.msra.mxu0 0
    %3653 = vmatprep.subr.bf16.mxu0 0
    %3654 = vmatpush1.bf16.msra.mxu0 0
    %3655 = vmatprep.subr.bf16.mxu0 0
    %3656 = vmatpush1.bf16.msra.mxu0 0
    %3657 = vmatprep.subr.bf16.mxu0 0
    %3658 = vmatpush1.bf16.msra.mxu0 0
    %3659 = vmatprep.subr.bf16.mxu0 0
    %3660 = vmatpush1.bf16.msra.mxu0 0
    %3661 = vmatprep.subr.bf16.mxu0 0
    %3662 = vmatpush1.bf16.msra.mxu0 0
    %3663 = vmatprep.subr.bf16.mxu0 0
    %3664 = vmatpush1.bf16.msra.mxu0 0
    %3665 = vmatprep.subr.bf16.mxu0 0
    %3666 = vmatpush1.bf16.msra.mxu0 0
    %3667 = vmatprep.subr.bf16.mxu0 0
    %3668 = vmatpush1.bf16.msra.mxu0 0
    %3669 = vmatprep.subr.bf16.mxu0 0
    %3670 = vmatpush1.bf16.msra.mxu0 0
    %3671 = vmatprep.mubr.bf16.mxu0 0
    %3672 = vmatmul.mubr.bf16.gmra.mrb[0].mxu0 %v3634
    %v3673 = vpop.f32.mrb[0].mxu0
    %v3674 = vadd.f32 0.0, %v3673
    %v3675 = vpop.f32.mrb[0].mxu0
    %v3676 = vpop.f32.mrb[0].mxu0
    %v3677 = vpop.f32.mrb[0].mxu0
    %3678 = vdwg.mxu0
    %v3680 = vsel %vm2327, %v3393, 0
    %v3683 = vsel %vm2435, %v3401, 0
    %3685 = vmatprep.subr.bf16.mxu0 0
    %3686 = vmatpush1.bf16.msra.mxu0 %v3683
    %3687 = vmatprep.subr.bf16.mxu0 0
    %3688 = vmatpush1.bf16.msra.mxu0 0
    %3689 = vmatprep.subr.bf16.mxu0 0
    %3690 = vmatpush1.bf16.msra.mxu0 0
    %3691 = vmatprep.subr.bf16.mxu0 0
    %3692 = vmatpush1.bf16.msra.mxu0 0
    %3693 = vmatprep.subr.bf16.mxu0 0
    %3694 = vmatpush1.bf16.msra.mxu0 0
    %3695 = vmatprep.subr.bf16.mxu0 0
    %3696 = vmatpush1.bf16.msra.mxu0 0
    %3697 = vmatprep.subr.bf16.mxu0 0
    %3698 = vmatpush1.bf16.msra.mxu0 0
    %3699 = vmatprep.subr.bf16.mxu0 0
    %3700 = vmatpush1.bf16.msra.mxu0 0
    %3701 = vmatprep.subr.bf16.mxu0 0
    %3702 = vmatpush1.bf16.msra.mxu0 0
    %3703 = vmatprep.subr.bf16.mxu0 0
    %3704 = vmatpush1.bf16.msra.mxu0 0
    %3705 = vmatprep.subr.bf16.mxu0 0
    %3706 = vmatpush1.bf16.msra.mxu0 0
    %3707 = vmatprep.subr.bf16.mxu0 0
    %3708 = vmatpush1.bf16.msra.mxu0 0
    %3709 = vmatprep.subr.bf16.mxu0 0
    %3710 = vmatpush1.bf16.msra.mxu0 0
    %3711 = vmatprep.subr.bf16.mxu0 0
    %3712 = vmatpush1.bf16.msra.mxu0 0
    %3713 = vmatprep.subr.bf16.mxu0 0
    %3714 = vmatpush1.bf16.msra.mxu0 0
    %3715 = vmatprep.subr.bf16.mxu0 0
    %3716 = vmatpush1.bf16.msra.mxu0 0
    %3717 = vmatprep.mubr.bf16.mxu0 0
    %3718 = vmatmul.mubr.bf16.gmra.mrb[0].mxu0 %v3680
    %v3719 = vpop.f32.mrb[0].mxu0
    %v3720 = vadd.f32 0.0, %v3719
    %v3721 = vpop.f32.mrb[0].mxu0
    %v3722 = vpop.f32.mrb[0].mxu0
    %v3723 = vpop.f32.mrb[0].mxu0
    %3724 = vdwg.mxu0
    %v3726 = vsel %vm2327, %v3394, 0
    %v3729 = vsel %vm2435, %v3402, 0
    %3731 = vmatprep.subr.bf16.mxu0 0
    %3732 = vmatpush1.bf16.msra.mxu0 %v3729
    %3733 = vmatprep.subr.bf16.mxu0 0
    %3734 = vmatpush1.bf16.msra.mxu0 0
    %3735 = vmatprep.subr.bf16.mxu0 0
    %3736 = vmatpush1.bf16.msra.mxu0 0
    %3737 = vmatprep.subr.bf16.mxu0 0
    %3738 = vmatpush1.bf16.msra.mxu0 0
    %3739 = vmatprep.subr.bf16.mxu0 0
    %3740 = vmatpush1.bf16.msra.mxu0 0
    %3741 = vmatprep.subr.bf16.mxu0 0
    %3742 = vmatpush1.bf16.msra.mxu0 0
    %3743 = vmatprep.subr.bf16.mxu0 0
    %3744 = vmatpush1.bf16.msra.mxu0 0
    %3745 = vmatprep.subr.bf16.mxu0 0
    %3746 = vmatpush1.bf16.msra.mxu0 0
    %3747 = vmatprep.subr.bf16.mxu0 0
    %3748 = vmatpush1.bf16.msra.mxu0 0
    %3749 = vmatprep.subr.bf16.mxu0 0
    %3750 = vmatpush1.bf16.msra.mxu0 0
    %3751 = vmatprep.subr.bf16.mxu0 0
    %3752 = vmatpush1.bf16.msra.mxu0 0
    %3753 = vmatprep.subr.bf16.mxu0 0
    %3754 = vmatpush1.bf16.msra.mxu0 0
    %3755 = vmatprep.subr.bf16.mxu0 0
    %3756 = vmatpush1.bf16.msra.mxu0 0
    %3757 = vmatprep.subr.bf16.mxu0 0
    %3758 = vmatpush1.bf16.msra.mxu0 0
    %3759 = vmatprep.subr.bf16.mxu0 0
    %3760 = vmatpush1.bf16.msra.mxu0 0
    %3761 = vmatprep.subr.bf16.mxu0 0
    %3762 = vmatpush1.bf16.msra.mxu0 0
    %3763 = vmatprep.mubr.bf16.mxu0 0
    %3764 = vmatmul.mubr.bf16.gmra.mrb[0].mxu0 %v3726
    %v3765 = vpop.f32.mrb[0].mxu0
    %v3766 = vadd.f32 0.0, %v3765
    %v3767 = vpop.f32.mrb[0].mxu0
    %v3768 = vpop.f32.mrb[0].mxu0
    %v3769 = vpop.f32.mrb[0].mxu0
    %3770 = vdwg.mxu0
    %3772 = vrot.lane.b32.xlu0 %v3490, 16
    %v3773 = vpop.permute.xlu0 %3772
    %3776 = vrot.lane.b32.xlu0 %v3536, 32
    %v3777 = vpop.permute.xlu0 %3776
    %3780 = vrot.lane.b32.xlu0 %v3582, 48
    %v3781 = vpop.permute.xlu0 %3780
    %3784 = vrot.lane.b32.xlu0 %v3628, 64
    %v3785 = vpop.permute.xlu0 %3784
    %3788 = vrot.lane.b32.xlu0 %v3674, 80
    %v3789 = vpop.permute.xlu0 %3788
    %3792 = vrot.lane.b32.xlu0 %v3720, 96
    %v3793 = vpop.permute.xlu0 %3792
    %3796 = vrot.lane.b32.xlu0 %v3766, 112
    %v3797 = vpop.permute.xlu0 %3796
    %v3799 = vsel %vm1958, %v3444, %v3773
    %v3800 = vsel %vm2830, %v3799, %v3777
    %v3801 = vsel %vm2832, %v3800, %v3781
    %v3802 = vsel %vm1152, %v3801, %v3785
    %v3803 = vsel %vm2835, %v3802, %v3789
    %v3804 = vsel %vm2837, %v3803, %v3793
    %v3805 = vsel %vm2839, %v3804, %v3797
    %v3806 = vpack.c.bf16 %v2840, %v2840
    %v3807 = vpack.c.bf16 %v3805, %v3805
    %v3810 = vlaneseq
    %v3811 = vshrl.u32 %v3810, 7
    %v3812 = vsub.s32 0, %v3811
    %v3813 = vrot.slane %v1306, %v3812
    %v3814 = vlaneseq
    %v3815 = vshrl.u32 %v3814, 7
    %v3816 = vsub.s32 0, %v3815
    %v3817 = vrot.slane %v1307, %v3816
    %v3836 = vunpack.c.l.b16 %v1274
    %v3837 = vunpack.c.l.b16 %v1275
    %v3838 = vunpack.c.l.b16 %v1276
    %v3839 = vunpack.c.l.b16 %v1277
    %v3840 = vunpack.c.l.b16 %v1278
    %v3841 = vunpack.c.l.b16 %v1279
    %v3842 = vunpack.c.l.b16 %v1280
    %v3843 = vunpack.c.l.b16 %v1281
    %v3844 = vunpack.c.l.b16 %v1282
    %v3845 = vunpack.c.l.b16 %v1283
    %v3846 = vunpack.c.l.b16 %v1284
    %v3847 = vunpack.c.l.b16 %v1285
    %v3848 = vunpack.c.l.b16 %v1286
    %v3849 = vunpack.c.l.b16 %v1287
    %v3850 = vunpack.c.l.b16 %v1288
    %v3851 = vunpack.c.l.b16 %v1289
    %v3852 = vpack.c.b16 %v3837, %v3836
    %v3853 = vpack.c.b16 %v3839, %v3838
    %v3854 = vpack.c.b16 %v3841, %v3840
    %v3855 = vpack.c.b16 %v3843, %v3842
    %v3856 = vpack.c.b16 %v3845, %v3844
    %v3857 = vpack.c.b16 %v3847, %v3846
    %v3858 = vpack.c.b16 %v3849, %v3848
    %v3859 = vpack.c.b16 %v3851, %v3850
    %3868 = vmatprep.subr.bf16.mxu0 0
    %3869 = vmatpush1.bf16.msra.mxu0 %v3852
    %3870 = vmatprep.subr.bf16.mxu0 0
    %3871 = vmatpush1.bf16.msra.mxu0 %v3853
    %3872 = vmatprep.subr.bf16.mxu0 0
    %3873 = vmatpush1.bf16.msra.mxu0 %v3854
    %3874 = vmatprep.subr.bf16.mxu0 0
    %3875 = vmatpush1.bf16.msra.mxu0 %v3855
    %3876 = vmatprep.subr.bf16.mxu0 0
    %3877 = vmatpush1.bf16.msra.mxu0 %v3856
    %3878 = vmatprep.subr.bf16.mxu0 0
    %3879 = vmatpush1.bf16.msra.mxu0 %v3857
    %3880 = vmatprep.subr.bf16.mxu0 0
    %3881 = vmatpush1.bf16.msra.mxu0 %v3858
    %3882 = vmatprep.subr.bf16.mxu0 0
    %3883 = vmatpush1.bf16.msra.mxu0 %v3859
    %3884 = vmatprep.subr.bf16.mxu0 0
    %3885 = vmatpush1.bf16.msra.mxu0 0
    %3886 = vmatprep.subr.bf16.mxu0 0
    %3887 = vmatpush1.bf16.msra.mxu0 0
    %3888 = vmatprep.subr.bf16.mxu0 0
    %3889 = vmatpush1.bf16.msra.mxu0 0
    %3890 = vmatprep.subr.bf16.mxu0 0
    %3891 = vmatpush1.bf16.msra.mxu0 0
    %3892 = vmatprep.subr.bf16.mxu0 0
    %3893 = vmatpush1.bf16.msra.mxu0 0
    %3894 = vmatprep.subr.bf16.mxu0 0
    %3895 = vmatpush1.bf16.msra.mxu0 0
    %3896 = vmatprep.subr.bf16.mxu0 0
    %3897 = vmatpush1.bf16.msra.mxu0 0
    %3898 = vmatprep.subr.bf16.mxu0 0
    %3899 = vmatpush1.bf16.msra.mxu0 0
    %3900 = vmatprep.mubr.bf16.mxu0 0
    %3901 = vmatmul.mubr.bf16.gmra.mrb[0].mxu0 %v3806
    %v3902 = vpop.f32.mrb[0].mxu0
    %v3903 = vadd.f32 %v3813, %v3902
    %v3904 = vpop.f32.mrb[0].mxu0
    %v3905 = vpop.f32.mrb[0].mxu0
    %v3906 = vpop.f32.mrb[0].mxu0
    %3907 = vdwg.mxu0
    %v3924 = vunpack.c.l.b16 %v1290
    %v3925 = vunpack.c.l.b16 %v1291
    %v3926 = vunpack.c.l.b16 %v1292
    %v3927 = vunpack.c.l.b16 %v1293
    %v3928 = vunpack.c.l.b16 %v1294
    %v3929 = vunpack.c.l.b16 %v1295
    %v3930 = vunpack.c.l.b16 %v1296
    %v3931 = vunpack.c.l.b16 %v1297
    %v3932 = vunpack.c.l.b16 %v1298
    %v3933 = vunpack.c.l.b16 %v1299
    %v3934 = vunpack.c.l.b16 %v1300
    %v3935 = vunpack.c.l.b16 %v1301
    %v3936 = vunpack.c.l.b16 %v1302
    %v3937 = vunpack.c.l.b16 %v1303
    %v3938 = vunpack.c.l.b16 %v1304
    %v3939 = vunpack.c.l.b16 %v1305
    %v3940 = vpack.c.b16 %v3925, %v3924
    %v3941 = vpack.c.b16 %v3927, %v3926
    %v3942 = vpack.c.b16 %v3929, %v3928
    %v3943 = vpack.c.b16 %v3931, %v3930
    %v3944 = vpack.c.b16 %v3933, %v3932
    %v3945 = vpack.c.b16 %v3935, %v3934
    %v3946 = vpack.c.b16 %v3937, %v3936
    %v3947 = vpack.c.b16 %v3939, %v3938
    %3956 = vmatprep.subr.bf16.mxu0 0
    %3957 = vmatpush1.bf16.msra.mxu0 %v3940
    %3958 = vmatprep.subr.bf16.mxu0 0
    %3959 = vmatpush1.bf16.msra.mxu0 %v3941
    %3960 = vmatprep.subr.bf16.mxu0 0
    %3961 = vmatpush1.bf16.msra.mxu0 %v3942
    %3962 = vmatprep.subr.bf16.mxu0 0
    %3963 = vmatpush1.bf16.msra.mxu0 %v3943
    %3964 = vmatprep.subr.bf16.mxu0 0
    %3965 = vmatpush1.bf16.msra.mxu0 %v3944
    %3966 = vmatprep.subr.bf16.mxu0 0
    %3967 = vmatpush1.bf16.msra.mxu0 %v3945
    %3968 = vmatprep.subr.bf16.mxu0 0
    %3969 = vmatpush1.bf16.msra.mxu0 %v3946
    %3970 = vmatprep.subr.bf16.mxu0 0
    %3971 = vmatpush1.bf16.msra.mxu0 %v3947
    %3972 = vmatprep.subr.bf16.mxu0 0
    %3973 = vmatpush1.bf16.msra.mxu0 0
    %3974 = vmatprep.subr.bf16.mxu0 0
    %3975 = vmatpush1.bf16.msra.mxu0 0
    %3976 = vmatprep.subr.bf16.mxu0 0
    %3977 = vmatpush1.bf16.msra.mxu0 0
    %3978 = vmatprep.subr.bf16.mxu0 0
    %3979 = vmatpush1.bf16.msra.mxu0 0
    %3980 = vmatprep.subr.bf16.mxu0 0
    %3981 = vmatpush1.bf16.msra.mxu0 0
    %3982 = vmatprep.subr.bf16.mxu0 0
    %3983 = vmatpush1.bf16.msra.mxu0 0
    %3984 = vmatprep.subr.bf16.mxu0 0
    %3985 = vmatpush1.bf16.msra.mxu0 0
    %3986 = vmatprep.subr.bf16.mxu0 0
    %3987 = vmatpush1.bf16.msra.mxu0 0
    %3988 = vmatprep.mubr.bf16.mxu0 0
    %3989 = vmatmul.mubr.bf16.gmra.mrb[0].mxu0 %v3807
    %v3990 = vpop.f32.mrb[0].mxu0
    %v3991 = vadd.f32 %v3817, %v3990
    %v3992 = vpop.f32.mrb[0].mxu0
    %v3993 = vpop.f32.mrb[0].mxu0
    %v3994 = vpop.f32.mrb[0].mxu0
    %3995 = vdwg.mxu0
    %v3996 = vadd.f32 %v1207, %v3903
    %v3997 = vadd.f32 %v978, %v3991
    %3998 = vadd.xlane.f32.xlu0 %v3996
    %v3999 = vpop.xlane.xlu0 %3998
    %4000 = vadd.xlane.f32.xlu0 %v3997
    %v4001 = vpop.xlane.xlu0 %4000
    %v4002 = vrcp.pop 128.0
    %v4003 = vmul.f32 %v3999, %v4002
    %v4004 = vmul.f32 %v4001, %v4002
    %v4005 = vsub.f32 %v3996, %v4003
    %v4006 = vsub.f32 %v3997, %v4004
    %v4007 = vmul.f32 %v4005, %v4005
    %v4008 = vmul.f32 %v4006, %v4006
    %4009 = vadd.xlane.f32.xlu0 %v4007
    %v4010 = vpop.xlane.xlu0 %4009
    %4011 = vadd.xlane.f32.xlu0 %v4008
    %v4012 = vpop.xlane.xlu0 %4011
    %v4013 = vmul.f32 %v4010, %v4002
    %v4014 = vmul.f32 %v4012, %v4002
    %v4015 = vadd.f32 %v4013, 1e-05
    %v4016 = vadd.f32 %v4014, 1e-05
    %v4017 = vrsqrt.pop %v4015
    %v4018 = vrsqrt.pop %v4016
    %v4019 = vmul.f32 %v4005, %v4017
    %v4020 = vmul.f32 %v4006, %v4018
    %v4023 = vlaneseq
    %v4024 = vshrl.u32 %v4023, 7
    %v4025 = vsub.s32 0, %v4024
    %v4026 = vrot.slane %v1408, %v4025
    %v4027 = vlaneseq
    %v4028 = vshrl.u32 %v4027, 7
    %v4029 = vsub.s32 0, %v4028
    %v4030 = vrot.slane %v1409, %v4029
    %v4033 = vmul.f32 %v4019, %v4026
    %v4034 = vmul.f32 %v4020, %v4030
    %v4037 = vlaneseq
    %v4038 = vshrl.u32 %v4037, 7
    %v4039 = vsub.s32 0, %v4038
    %v4040 = vrot.slane %v1410, %v4039
    %v4041 = vlaneseq
    %v4042 = vshrl.u32 %v4041, 7
    %v4043 = vsub.s32 0, %v4042
    %v4044 = vrot.slane %v1411, %v4043
    %v4047 = vadd.f32 %v4033, %v4040
    %v4048 = vadd.f32 %v4034, %v4044
    %v4049 = vpack.c.bf16 %v4047, %v4047
    %v4050 = vpack.c.bf16 %v4048, %v4048
    %v4053 = vlaneseq
    %v4054 = vshrl.u32 %v4053, 7
    %v4055 = vsub.s32 0, %v4054
    %v4056 = vrot.slane %v1340, %v4055
    %v4057 = vlaneseq
    %v4058 = vshrl.u32 %v4057, 7
    %v4059 = vsub.s32 1, %v4058
    %v4060 = vrot.slane %v1340, %v4059
    %v4061 = vlaneseq
    %v4062 = vshrl.u32 %v4061, 7
    %v4063 = vsub.s32 0, %v4062
    %v4064 = vrot.slane %v1341, %v4063
    %v4065 = vlaneseq
    %v4066 = vshrl.u32 %v4065, 7
    %v4067 = vsub.s32 1, %v4066
    %v4068 = vrot.slane %v1341, %v4067
    %v4089 = vunpack.c.l.b16 %v1308
    %v4090 = vunpack.c.h.b16 %v1308
    %v4091 = vunpack.c.l.b16 %v1309
    %v4092 = vunpack.c.h.b16 %v1309
    %v4093 = vunpack.c.l.b16 %v1310
    %v4094 = vunpack.c.h.b16 %v1310
    %v4095 = vunpack.c.l.b16 %v1311
    %v4096 = vunpack.c.h.b16 %v1311
    %v4097 = vunpack.c.l.b16 %v1312
    %v4098 = vunpack.c.h.b16 %v1312
    %v4099 = vunpack.c.l.b16 %v1313
    %v4100 = vunpack.c.h.b16 %v1313
    %v4101 = vunpack.c.l.b16 %v1314
    %v4102 = vunpack.c.h.b16 %v1314
    %v4103 = vunpack.c.l.b16 %v1315
    %v4104 = vunpack.c.h.b16 %v1315
    %v4105 = vunpack.c.l.b16 %v1316
    %v4106 = vunpack.c.h.b16 %v1316
    %v4107 = vunpack.c.l.b16 %v1317
    %v4108 = vunpack.c.h.b16 %v1317
    %v4109 = vunpack.c.l.b16 %v1318
    %v4110 = vunpack.c.h.b16 %v1318
    %v4111 = vunpack.c.l.b16 %v1319
    %v4112 = vunpack.c.h.b16 %v1319
    %v4113 = vunpack.c.l.b16 %v1320
    %v4114 = vunpack.c.h.b16 %v1320
    %v4115 = vunpack.c.l.b16 %v1321
    %v4116 = vunpack.c.h.b16 %v1321
    %v4117 = vunpack.c.l.b16 %v1322
    %v4118 = vunpack.c.h.b16 %v1322
    %v4119 = vunpack.c.l.b16 %v1323
    %v4120 = vunpack.c.h.b16 %v1323
    %v4121 = vpack.c.b16 %v4091, %v4089
    %v4122 = vpack.c.b16 %v4092, %v4090
    %v4123 = vpack.c.b16 %v4095, %v4093
    %v4124 = vpack.c.b16 %v4096, %v4094
    %v4125 = vpack.c.b16 %v4099, %v4097
    %v4126 = vpack.c.b16 %v4100, %v4098
    %v4127 = vpack.c.b16 %v4103, %v4101
    %v4128 = vpack.c.b16 %v4104, %v4102
    %v4129 = vpack.c.b16 %v4107, %v4105
    %v4130 = vpack.c.b16 %v4108, %v4106
    %v4131 = vpack.c.b16 %v4111, %v4109
    %v4132 = vpack.c.b16 %v4112, %v4110
    %v4133 = vpack.c.b16 %v4115, %v4113
    %v4134 = vpack.c.b16 %v4116, %v4114
    %v4135 = vpack.c.b16 %v4119, %v4117
    %v4136 = vpack.c.b16 %v4120, %v4118
    %4153 = vmatprep.subr.bf16.mxu0 %v4122
    %4154 = vmatpush1.bf16.msra.mxu0 %v4121
    %4155 = vmatprep.subr.bf16.mxu0 %v4124
    %4156 = vmatpush1.bf16.msra.mxu0 %v4123
    %4157 = vmatprep.subr.bf16.mxu0 %v4126
    %4158 = vmatpush1.bf16.msra.mxu0 %v4125
    %4159 = vmatprep.subr.bf16.mxu0 %v4128
    %4160 = vmatpush1.bf16.msra.mxu0 %v4127
    %4161 = vmatprep.subr.bf16.mxu0 %v4130
    %4162 = vmatpush1.bf16.msra.mxu0 %v4129
    %4163 = vmatprep.subr.bf16.mxu0 %v4132
    %4164 = vmatpush1.bf16.msra.mxu0 %v4131
    %4165 = vmatprep.subr.bf16.mxu0 %v4134
    %4166 = vmatpush1.bf16.msra.mxu0 %v4133
    %4167 = vmatprep.subr.bf16.mxu0 %v4136
    %4168 = vmatpush1.bf16.msra.mxu0 %v4135
    %4169 = vmatprep.subr.bf16.mxu0 0
    %4170 = vmatpush1.bf16.msra.mxu0 0
    %4171 = vmatprep.subr.bf16.mxu0 0
    %4172 = vmatpush1.bf16.msra.mxu0 0
    %4173 = vmatprep.subr.bf16.mxu0 0
    %4174 = vmatpush1.bf16.msra.mxu0 0
    %4175 = vmatprep.subr.bf16.mxu0 0
    %4176 = vmatpush1.bf16.msra.mxu0 0
    %4177 = vmatprep.subr.bf16.mxu0 0
    %4178 = vmatpush1.bf16.msra.mxu0 0
    %4179 = vmatprep.subr.bf16.mxu0 0
    %4180 = vmatpush1.bf16.msra.mxu0 0
    %4181 = vmatprep.subr.bf16.mxu0 0
    %4182 = vmatpush1.bf16.msra.mxu0 0
    %4183 = vmatprep.subr.bf16.mxu0 0
    %4184 = vmatpush1.bf16.msra.mxu0 0
    %4185 = vmatprep.mubr.bf16.mxu0 0
    %4186 = vmatmul.mubr.bf16.gmra.mrb[0].mxu0 %v4049
    %v4187 = vpop.f32.mrb[0].mxu0
    %v4188 = vadd.f32 %v4056, %v4187
    %v4189 = vpop.f32.mrb[0].mxu0
    %v4190 = vadd.f32 %v4060, %v4189
    %v4191 = vpop.f32.mrb[0].mxu0
    %v4192 = vpop.f32.mrb[0].mxu0
    %4193 = vdwg.mxu0
    %v4210 = vunpack.c.l.b16 %v1324
    %v4211 = vunpack.c.h.b16 %v1324
    %v4212 = vunpack.c.l.b16 %v1325
    %v4213 = vunpack.c.h.b16 %v1325
    %v4214 = vunpack.c.l.b16 %v1326
    %v4215 = vunpack.c.h.b16 %v1326
    %v4216 = vunpack.c.l.b16 %v1327
    %v4217 = vunpack.c.h.b16 %v1327
    %v4218 = vunpack.c.l.b16 %v1328
    %v4219 = vunpack.c.h.b16 %v1328
    %v4220 = vunpack.c.l.b16 %v1329
    %v4221 = vunpack.c.h.b16 %v1329
    %v4222 = vunpack.c.l.b16 %v1330
    %v4223 = vunpack.c.h.b16 %v1330
    %v4224 = vunpack.c.l.b16 %v1331
    %v4225 = vunpack.c.h.b16 %v1331
    %v4226 = vunpack.c.l.b16 %v1332
    %v4227 = vunpack.c.h.b16 %v1332
    %v4228 = vunpack.c.l.b16 %v1333
    %v4229 = vunpack.c.h.b16 %v1333
    %v4230 = vunpack.c.l.b16 %v1334
    %v4231 = vunpack.c.h.b16 %v1334
    %v4232 = vunpack.c.l.b16 %v1335
    %v4233 = vunpack.c.h.b16 %v1335
    %v4234 = vunpack.c.l.b16 %v1336
    %v4235 = vunpack.c.h.b16 %v1336
    %v4236 = vunpack.c.l.b16 %v1337
    %v4237 = vunpack.c.h.b16 %v1337
    %v4238 = vunpack.c.l.b16 %v1338
    %v4239 = vunpack.c.h.b16 %v1338
    %v4240 = vunpack.c.l.b16 %v1339
    %v4241 = vunpack.c.h.b16 %v1339
    %v4242 = vpack.c.b16 %v4212, %v4210
    %v4243 = vpack.c.b16 %v4213, %v4211
    %v4244 = vpack.c.b16 %v4216, %v4214
    %v4245 = vpack.c.b16 %v4217, %v4215
    %v4246 = vpack.c.b16 %v4220, %v4218
    %v4247 = vpack.c.b16 %v4221, %v4219
    %v4248 = vpack.c.b16 %v4224, %v4222
    %v4249 = vpack.c.b16 %v4225, %v4223
    %v4250 = vpack.c.b16 %v4228, %v4226
    %v4251 = vpack.c.b16 %v4229, %v4227
    %v4252 = vpack.c.b16 %v4232, %v4230
    %v4253 = vpack.c.b16 %v4233, %v4231
    %v4254 = vpack.c.b16 %v4236, %v4234
    %v4255 = vpack.c.b16 %v4237, %v4235
    %v4256 = vpack.c.b16 %v4240, %v4238
    %v4257 = vpack.c.b16 %v4241, %v4239
    %4274 = vmatprep.subr.bf16.mxu0 %v4243
    %4275 = vmatpush1.bf16.msra.mxu0 %v4242
    %4276 = vmatprep.subr.bf16.mxu0 %v4245
    %4277 = vmatpush1.bf16.msra.mxu0 %v4244
    %4278 = vmatprep.subr.bf16.mxu0 %v4247
    %4279 = vmatpush1.bf16.msra.mxu0 %v4246
    %4280 = vmatprep.subr.bf16.mxu0 %v4249
    %4281 = vmatpush1.bf16.msra.mxu0 %v4248
    %4282 = vmatprep.subr.bf16.mxu0 %v4251
    %4283 = vmatpush1.bf16.msra.mxu0 %v4250
    %4284 = vmatprep.subr.bf16.mxu0 %v4253
    %4285 = vmatpush1.bf16.msra.mxu0 %v4252
    %4286 = vmatprep.subr.bf16.mxu0 %v4255
    %4287 = vmatpush1.bf16.msra.mxu0 %v4254
    %4288 = vmatprep.subr.bf16.mxu0 %v4257
    %4289 = vmatpush1.bf16.msra.mxu0 %v4256
    %4290 = vmatprep.subr.bf16.mxu0 0
    %4291 = vmatpush1.bf16.msra.mxu0 0
    %4292 = vmatprep.subr.bf16.mxu0 0
    %4293 = vmatpush1.bf16.msra.mxu0 0
    %4294 = vmatprep.subr.bf16.mxu0 0
    %4295 = vmatpush1.bf16.msra.mxu0 0
    %4296 = vmatprep.subr.bf16.mxu0 0
    %4297 = vmatpush1.bf16.msra.mxu0 0
    %4298 = vmatprep.subr.bf16.mxu0 0
    %4299 = vmatpush1.bf16.msra.mxu0 0
    %4300 = vmatprep.subr.bf16.mxu0 0
    %4301 = vmatpush1.bf16.msra.mxu0 0
    %4302 = vmatprep.subr.bf16.mxu0 0
    %4303 = vmatpush1.bf16.msra.mxu0 0
    %4304 = vmatprep.subr.bf16.mxu0 0
    %4305 = vmatpush1.bf16.msra.mxu0 0
    %4306 = vmatprep.mubr.bf16.mxu0 0
    %4307 = vmatmul.mubr.bf16.gmra.mrb[0].mxu0 %v4050
    %v4308 = vpop.f32.mrb[0].mxu0
    %v4309 = vadd.f32 %v4064, %v4308
    %v4310 = vpop.f32.mrb[0].mxu0
    %v4311 = vadd.f32 %v4068, %v4310
    %v4312 = vpop.f32.mrb[0].mxu0
    %v4313 = vpop.f32.mrb[0].mxu0
    %4314 = vdwg.mxu0
    %v4315 = vmax.f32 %v4188, 0.0
    %v4316 = vmax.f32 %v4190, 0.0
    %v4317 = vmax.f32 %v4309, 0.0
    %v4318 = vmax.f32 %v4311, 0.0
    %v4319 = vpack.c.bf16 %v4315, %v4315
    %v4320 = vpack.c.bf16 %v4316, %v4316
    %v4321 = vpack.c.bf16 %v4317, %v4317
    %v4322 = vpack.c.bf16 %v4318, %v4318
    %v4325 = vlaneseq
    %v4326 = vshrl.u32 %v4325, 7
    %v4327 = vsub.s32 0, %v4326
    %v4328 = vrot.slane %v1406, %v4327
    %v4329 = vlaneseq
    %v4330 = vshrl.u32 %v4329, 7
    %v4331 = vsub.s32 0, %v4330
    %v4332 = vrot.slane %v1407, %v4331
    %v4367 = vunpack.c.l.b16 %v1342
    %v4368 = vunpack.c.l.b16 %v1343
    %v4369 = vunpack.c.l.b16 %v1344
    %v4370 = vunpack.c.l.b16 %v1345
    %v4371 = vunpack.c.l.b16 %v1346
    %v4372 = vunpack.c.l.b16 %v1347
    %v4373 = vunpack.c.l.b16 %v1348
    %v4374 = vunpack.c.l.b16 %v1349
    %v4375 = vunpack.c.l.b16 %v1350
    %v4376 = vunpack.c.l.b16 %v1351
    %v4377 = vunpack.c.l.b16 %v1352
    %v4378 = vunpack.c.l.b16 %v1353
    %v4379 = vunpack.c.l.b16 %v1354
    %v4380 = vunpack.c.l.b16 %v1355
    %v4381 = vunpack.c.l.b16 %v1356
    %v4382 = vunpack.c.l.b16 %v1357
    %v4383 = vunpack.c.l.b16 %v1358
    %v4384 = vunpack.c.l.b16 %v1359
    %v4385 = vunpack.c.l.b16 %v1360
    %v4386 = vunpack.c.l.b16 %v1361
    %v4387 = vunpack.c.l.b16 %v1362
    %v4388 = vunpack.c.l.b16 %v1363
    %v4389 = vunpack.c.l.b16 %v1364
    %v4390 = vunpack.c.l.b16 %v1365
    %v4391 = vunpack.c.l.b16 %v1366
    %v4392 = vunpack.c.l.b16 %v1367
    %v4393 = vunpack.c.l.b16 %v1368
    %v4394 = vunpack.c.l.b16 %v1369
    %v4395 = vunpack.c.l.b16 %v1370
    %v4396 = vunpack.c.l.b16 %v1371
    %v4397 = vunpack.c.l.b16 %v1372
    %v4398 = vunpack.c.l.b16 %v1373
    %v4399 = vpack.c.b16 %v4368, %v4367
    %v4400 = vpack.c.b16 %v4370, %v4369
    %v4401 = vpack.c.b16 %v4372, %v4371
    %v4402 = vpack.c.b16 %v4374, %v4373
    %v4403 = vpack.c.b16 %v4376, %v4375
    %v4404 = vpack.c.b16 %v4378, %v4377
    %v4405 = vpack.c.b16 %v4380, %v4379
    %v4406 = vpack.c.b16 %v4382, %v4381
    %v4407 = vpack.c.b16 %v4384, %v4383
    %v4408 = vpack.c.b16 %v4386, %v4385
    %v4409 = vpack.c.b16 %v4388, %v4387
    %v4410 = vpack.c.b16 %v4390, %v4389
    %v4411 = vpack.c.b16 %v4392, %v4391
    %v4412 = vpack.c.b16 %v4394, %v4393
    %v4413 = vpack.c.b16 %v4396, %v4395
    %v4414 = vpack.c.b16 %v4398, %v4397
    %4431 = vmatprep.subr.bf16.mxu0 0
    %4432 = vmatpush1.bf16.msra.mxu0 %v4399
    %4433 = vmatprep.subr.bf16.mxu0 0
    %4434 = vmatpush1.bf16.msra.mxu0 %v4400
    %4435 = vmatprep.subr.bf16.mxu0 0
    %4436 = vmatpush1.bf16.msra.mxu0 %v4401
    %4437 = vmatprep.subr.bf16.mxu0 0
    %4438 = vmatpush1.bf16.msra.mxu0 %v4402
    %4439 = vmatprep.subr.bf16.mxu0 0
    %4440 = vmatpush1.bf16.msra.mxu0 %v4403
    %4441 = vmatprep.subr.bf16.mxu0 0
    %4442 = vmatpush1.bf16.msra.mxu0 %v4404
    %4443 = vmatprep.subr.bf16.mxu0 0
    %4444 = vmatpush1.bf16.msra.mxu0 %v4405
    %4445 = vmatprep.subr.bf16.mxu0 0
    %4446 = vmatpush1.bf16.msra.mxu0 %v4406
    %4447 = vmatprep.subr.bf16.mxu0 0
    %4448 = vmatpush1.bf16.msra.mxu0 %v4407
    %4449 = vmatprep.subr.bf16.mxu0 0
    %4450 = vmatpush1.bf16.msra.mxu0 %v4408
    %4451 = vmatprep.subr.bf16.mxu0 0
    %4452 = vmatpush1.bf16.msra.mxu0 %v4409
    %4453 = vmatprep.subr.bf16.mxu0 0
    %4454 = vmatpush1.bf16.msra.mxu0 %v4410
    %4455 = vmatprep.subr.bf16.mxu0 0
    %4456 = vmatpush1.bf16.msra.mxu0 %v4411
    %4457 = vmatprep.subr.bf16.mxu0 0
    %4458 = vmatpush1.bf16.msra.mxu0 %v4412
    %4459 = vmatprep.subr.bf16.mxu0 0
    %4460 = vmatpush1.bf16.msra.mxu0 %v4413
    %4461 = vmatprep.subr.bf16.mxu0 0
    %4462 = vmatpush1.bf16.msra.mxu0 %v4414
    %4463 = vmatprep.mubr.bf16.mxu0 %v4320
    %4464 = vmatmul.mubr.bf16.gmra.mrb[0].mxu0 %v4319
    %v4465 = vpop.f32.mrb[0].mxu0
    %v4466 = vadd.f32 %v4328, %v4465
    %v4467 = vpop.f32.mrb[0].mxu0
    %v4468 = vpop.f32.mrb[0].mxu0
    %v4469 = vpop.f32.mrb[0].mxu0
    %4470 = vdwg.mxu0
    %v4503 = vunpack.c.l.b16 %v1374
    %v4504 = vunpack.c.l.b16 %v1375
    %v4505 = vunpack.c.l.b16 %v1376
    %v4506 = vunpack.c.l.b16 %v1377
    %v4507 = vunpack.c.l.b16 %v1378
    %v4508 = vunpack.c.l.b16 %v1379
    %v4509 = vunpack.c.l.b16 %v1380
    %v4510 = vunpack.c.l.b16 %v1381
    %v4511 = vunpack.c.l.b16 %v1382
    %v4512 = vunpack.c.l.b16 %v1383
    %v4513 = vunpack.c.l.b16 %v1384
    %v4514 = vunpack.c.l.b16 %v1385
    %v4515 = vunpack.c.l.b16 %v1386
    %v4516 = vunpack.c.l.b16 %v1387
    %v4517 = vunpack.c.l.b16 %v1388
    %v4518 = vunpack.c.l.b16 %v1389
    %v4519 = vunpack.c.l.b16 %v1390
    %v4520 = vunpack.c.l.b16 %v1391
    %v4521 = vunpack.c.l.b16 %v1392
    %v4522 = vunpack.c.l.b16 %v1393
    %v4523 = vunpack.c.l.b16 %v1394
    %v4524 = vunpack.c.l.b16 %v1395
    %v4525 = vunpack.c.l.b16 %v1396
    %v4526 = vunpack.c.l.b16 %v1397
    %v4527 = vunpack.c.l.b16 %v1398
    %v4528 = vunpack.c.l.b16 %v1399
    %v4529 = vunpack.c.l.b16 %v1400
    %v4530 = vunpack.c.l.b16 %v1401
    %v4531 = vunpack.c.l.b16 %v1402
    %v4532 = vunpack.c.l.b16 %v1403
    %v4533 = vunpack.c.l.b16 %v1404
    %v4534 = vunpack.c.l.b16 %v1405
    %v4535 = vpack.c.b16 %v4504, %v4503
    %v4536 = vpack.c.b16 %v4506, %v4505
    %v4537 = vpack.c.b16 %v4508, %v4507
    %v4538 = vpack.c.b16 %v4510, %v4509
    %v4539 = vpack.c.b16 %v4512, %v4511
    %v4540 = vpack.c.b16 %v4514, %v4513
    %v4541 = vpack.c.b16 %v4516, %v4515
    %v4542 = vpack.c.b16 %v4518, %v4517
    %v4543 = vpack.c.b16 %v4520, %v4519
    %v4544 = vpack.c.b16 %v4522, %v4521
    %v4545 = vpack.c.b16 %v4524, %v4523
    %v4546 = vpack.c.b16 %v4526, %v4525
    %v4547 = vpack.c.b16 %v4528, %v4527
    %v4548 = vpack.c.b16 %v4530, %v4529
    %v4549 = vpack.c.b16 %v4532, %v4531
    %v4550 = vpack.c.b16 %v4534, %v4533
    %4567 = vmatprep.subr.bf16.mxu0 0
    %4568 = vmatpush1.bf16.msra.mxu0 %v4535
    %4569 = vmatprep.subr.bf16.mxu0 0
    %4570 = vmatpush1.bf16.msra.mxu0 %v4536
    %4571 = vmatprep.subr.bf16.mxu0 0
    %4572 = vmatpush1.bf16.msra.mxu0 %v4537
    %4573 = vmatprep.subr.bf16.mxu0 0
    %4574 = vmatpush1.bf16.msra.mxu0 %v4538
    %4575 = vmatprep.subr.bf16.mxu0 0
    %4576 = vmatpush1.bf16.msra.mxu0 %v4539
    %4577 = vmatprep.subr.bf16.mxu0 0
    %4578 = vmatpush1.bf16.msra.mxu0 %v4540
    %4579 = vmatprep.subr.bf16.mxu0 0
    %4580 = vmatpush1.bf16.msra.mxu0 %v4541
    %4581 = vmatprep.subr.bf16.mxu0 0
    %4582 = vmatpush1.bf16.msra.mxu0 %v4542
    %4583 = vmatprep.subr.bf16.mxu0 0
    %4584 = vmatpush1.bf16.msra.mxu0 %v4543
    %4585 = vmatprep.subr.bf16.mxu0 0
    %4586 = vmatpush1.bf16.msra.mxu0 %v4544
    %4587 = vmatprep.subr.bf16.mxu0 0
    %4588 = vmatpush1.bf16.msra.mxu0 %v4545
    %4589 = vmatprep.subr.bf16.mxu0 0
    %4590 = vmatpush1.bf16.msra.mxu0 %v4546
    %4591 = vmatprep.subr.bf16.mxu0 0
    %4592 = vmatpush1.bf16.msra.mxu0 %v4547
    %4593 = vmatprep.subr.bf16.mxu0 0
    %4594 = vmatpush1.bf16.msra.mxu0 %v4548
    %4595 = vmatprep.subr.bf16.mxu0 0
    %4596 = vmatpush1.bf16.msra.mxu0 %v4549
    %4597 = vmatprep.subr.bf16.mxu0 0
    %4598 = vmatpush1.bf16.msra.mxu0 %v4550
    %4599 = vmatprep.mubr.bf16.mxu0 %v4322
    %4600 = vmatmul.mubr.bf16.gmra.mrb[0].mxu0 %v4321
    %v4601 = vpop.f32.mrb[0].mxu0
    %v4602 = vadd.f32 %v4332, %v4601
    %v4603 = vpop.f32.mrb[0].mxu0
    %v4604 = vpop.f32.mrb[0].mxu0
    %v4605 = vpop.f32.mrb[0].mxu0
    %4606 = vdwg.mxu0
    %v4607 = vadd.f32 %v4047, %v4466
    %v4608 = vadd.f32 %v4048, %v4602
    %4609 = vadd.xlane.f32.xlu0 %v4607
    %v4610 = vpop.xlane.xlu0 %4609
    %4611 = vadd.xlane.f32.xlu0 %v4608
    %v4612 = vpop.xlane.xlu0 %4611
    %v4613 = vmul.f32 %v4610, %v4002
    %v4614 = vmul.f32 %v4612, %v4002
    %v4615 = vsub.f32 %v4607, %v4613
    %v4616 = vsub.f32 %v4608, %v4614
    %v4617 = vmul.f32 %v4615, %v4615
    %v4618 = vmul.f32 %v4616, %v4616
    %4619 = vadd.xlane.f32.xlu0 %v4617
    %v4620 = vpop.xlane.xlu0 %4619
    %4621 = vadd.xlane.f32.xlu0 %v4618
    %v4622 = vpop.xlane.xlu0 %4621
    %v4623 = vmul.f32 %v4620, %v4002
    %v4624 = vmul.f32 %v4622, %v4002
    %v4625 = vadd.f32 %v4623, 1e-05
    %v4626 = vadd.f32 %v4624, 1e-05
    %v4627 = vrsqrt.pop %v4625
    %v4628 = vrsqrt.pop %v4626
    %v4629 = vmul.f32 %v4615, %v4627
    %v4630 = vmul.f32 %v4616, %v4628
    %v4633 = vlaneseq
    %v4634 = vshrl.u32 %v4633, 7
    %v4635 = vsub.s32 0, %v4634
    %v4636 = vrot.slane %v1412, %v4635
    %v4637 = vlaneseq
    %v4638 = vshrl.u32 %v4637, 7
    %v4639 = vsub.s32 0, %v4638
    %v4640 = vrot.slane %v1413, %v4639
    %v4643 = vmul.f32 %v4629, %v4636
    %v4644 = vmul.f32 %v4630, %v4640
    %v4647 = vlaneseq
    %v4648 = vshrl.u32 %v4647, 7
    %v4649 = vsub.s32 0, %v4648
    %v4650 = vrot.slane %v1414, %v4649
    %v4651 = vlaneseq
    %v4652 = vshrl.u32 %v4651, 7
    %v4653 = vsub.s32 0, %v4652
    %v4654 = vrot.slane %v1415, %v4653
    %v4657 = vadd.f32 %v4643, %v4650
    %v4658 = vadd.f32 %v4644, %v4654
    %s4659 = smul.u32 4, 2
    %s4660 = smul.u32 %s4659, 16
    %s4661 = smul.u32 %s4660, 3
    %s4662 = sshll.u32 %s4661, 4
    %4663 = dma.done [#allocation11], %s4662
    %s4664 = smul.u32 %s4660, 1
    %s4665 = sshll.u32 %s4664, 4
    %4666 = dma.done %s418, %s4665
    %s4667 = smul.u32 %s4660, 2
    %s4668 = sshll.u32 %s4667, 4
    %4669 = dma.done %s430, %s4668
    %s4670 = smul.u32 %s4659, 32
    %s4671 = smul.u32 %s4670, 1
    %s4672 = sshll.u32 %s4671, 4
    %4673 = dma.done %s735, %s4672
    %v4674 = vld [vmem:[#allocation2] sm:$0xff]
    %v4675 = vld [vmem:[#allocation2 + $0x8] sm:$0xff]
    %v4676 = vld [vmem:[#allocation2 + $0x10] sm:$0xff]
    %v4677 = vld [vmem:[#allocation2 + $0x18] sm:$0xff]
    %v4678 = vld [vmem:[#allocation2 + $0x20] sm:$0xff]
    %v4679 = vld [vmem:[#allocation2 + $0x28] sm:$0xff]
    %v4680 = vld [vmem:[#allocation2 + $0x30] sm:$0xff]
    %v4681 = vld [vmem:[#allocation2 + $0x38] sm:$0xff]
    %v4682 = vld [vmem:[#allocation2 + $0x40] sm:$0xff]
    %v4683 = vld [vmem:[#allocation2 + $0x48] sm:$0xff]
    %v4684 = vld [vmem:[#allocation2 + $0x50] sm:$0xff]
    %v4685 = vld [vmem:[#allocation2 + $0x58] sm:$0xff]
    %v4686 = vld [vmem:[#allocation2 + $0x60] sm:$0xff]
    %v4687 = vld [vmem:[#allocation2 + $0x68] sm:$0xff]
    %v4688 = vld [vmem:[#allocation2 + $0x70] sm:$0xff]
    %v4689 = vld [vmem:[#allocation2 + $0x78] sm:$0xff]
    %v4690 = vld [vmem:[#allocation2 + $0x80] sm:$0xff]
    %v4691 = vld [vmem:[#allocation2 + $0x88] sm:$0xff]
    %v4692 = vld [vmem:[#allocation2 + $0x90] sm:$0xff]
    %v4693 = vld [vmem:[#allocation2 + $0x98] sm:$0xff]
    %v4694 = vld [vmem:[#allocation2 + $0xa0] sm:$0xff]
    %v4695 = vld [vmem:[#allocation2 + $0xa8] sm:$0xff]
    %v4696 = vld [vmem:[#allocation2 + $0xb0] sm:$0xff]
    %v4697 = vld [vmem:[#allocation2 + $0xb8] sm:$0xff]
    %v4698 = vld [vmem:[#allocation2 + $0xc0] sm:$0xff]
    %v4699 = vld [vmem:[#allocation2 + $0xc8] sm:$0xff]
    %v4700 = vld [vmem:[#allocation2 + $0xd0] sm:$0xff]
    %v4701 = vld [vmem:[#allocation2 + $0xd8] sm:$0xff]
    %v4702 = vld [vmem:[#allocation2 + $0xe0] sm:$0xff]
    %v4703 = vld [vmem:[#allocation2 + $0xe8] sm:$0xff]
    %v4704 = vld [vmem:[#allocation2 + $0xf0] sm:$0xff]
    %v4705 = vld [vmem:[#allocation2 + $0xf8] sm:$0xff]
    %v4706 = vld [vmem:[#allocation2 + $0x100] sm:$0xff]
    %v4707 = vld [vmem:[#allocation2 + $0x108] sm:$0xff]
    %v4708 = vld [vmem:[#allocation2 + $0x110] sm:$0xff]
    %v4709 = vld [vmem:[#allocation2 + $0x118] sm:$0xff]
    %v4710 = vld [vmem:[#allocation2 + $0x120] sm:$0xff]
    %v4711 = vld [vmem:[#allocation2 + $0x128] sm:$0xff]
    %v4712 = vld [vmem:[#allocation2 + $0x130] sm:$0xff]
    %v4713 = vld [vmem:[#allocation2 + $0x138] sm:$0xff]
    %v4714 = vld [vmem:[#allocation2 + $0x140] sm:$0xff]
    %v4715 = vld [vmem:[#allocation2 + $0x148] sm:$0xff]
    %v4716 = vld [vmem:[#allocation2 + $0x150] sm:$0xff]
    %v4717 = vld [vmem:[#allocation2 + $0x158] sm:$0xff]
    %v4718 = vld [vmem:[#allocation2 + $0x160] sm:$0xff]
    %v4719 = vld [vmem:[#allocation2 + $0x168] sm:$0xff]
    %v4720 = vld [vmem:[#allocation2 + $0x170] sm:$0xff]
    %v4721 = vld [vmem:[#allocation2 + $0x178] sm:$0xff]
    %v4722 = vld [vmem:[#allocation30] sm:$0x7]
    %v4723 = vld [vmem:[#allocation30 + $0x3] sm:$0x7]
    %v4724 = vld [vmem:[#allocation3] sm:$0xff]
    %v4725 = vld [vmem:[#allocation3 + $0x8] sm:$0xff]
    %v4726 = vld [vmem:[#allocation3 + $0x10] sm:$0xff]
    %v4727 = vld [vmem:[#allocation3 + $0x18] sm:$0xff]
    %v4728 = vld [vmem:[#allocation3 + $0x20] sm:$0xff]
    %v4729 = vld [vmem:[#allocation3 + $0x28] sm:$0xff]
    %v4730 = vld [vmem:[#allocation3 + $0x30] sm:$0xff]
    %v4731 = vld [vmem:[#allocation3 + $0x38] sm:$0xff]
    %v4732 = vld [vmem:[#allocation3 + $0x40] sm:$0xff]
    %v4733 = vld [vmem:[#allocation3 + $0x48] sm:$0xff]
    %v4734 = vld [vmem:[#allocation3 + $0x50] sm:$0xff]
    %v4735 = vld [vmem:[#allocation3 + $0x58] sm:$0xff]
    %v4736 = vld [vmem:[#allocation3 + $0x60] sm:$0xff]
    %v4737 = vld [vmem:[#allocation3 + $0x68] sm:$0xff]
    %v4738 = vld [vmem:[#allocation3 + $0x70] sm:$0xff]
    %v4739 = vld [vmem:[#allocation3 + $0x78] sm:$0xff]
    %v4740 = vld [vmem:[%s39] sm:$0x1]
    %v4741 = vld [vmem:[%s39 + $0x1] sm:$0x1]
    %v4742 = vld [vmem:[#allocation4] sm:$0xff]
    %v4743 = vld [vmem:[#allocation4 + $0x8] sm:$0xff]
    %v4744 = vld [vmem:[#allocation4 + $0x10] sm:$0xff]
    %v4745 = vld [vmem:[#allocation4 + $0x18] sm:$0xff]
    %v4746 = vld [vmem:[#allocation4 + $0x20] sm:$0xff]
    %v4747 = vld [vmem:[#allocation4 + $0x28] sm:$0xff]
    %v4748 = vld [vmem:[#allocation4 + $0x30] sm:$0xff]
    %v4749 = vld [vmem:[#allocation4 + $0x38] sm:$0xff]
    %v4750 = vld [vmem:[#allocation4 + $0x40] sm:$0xff]
    %v4751 = vld [vmem:[#allocation4 + $0x48] sm:$0xff]
    %v4752 = vld [vmem:[#allocation4 + $0x50] sm:$0xff]
    %v4753 = vld [vmem:[#allocation4 + $0x58] sm:$0xff]
    %v4754 = vld [vmem:[#allocation4 + $0x60] sm:$0xff]
    %v4755 = vld [vmem:[#allocation4 + $0x68] sm:$0xff]
    %v4756 = vld [vmem:[#allocation4 + $0x70] sm:$0xff]
    %v4757 = vld [vmem:[#allocation4 + $0x78] sm:$0xff]
    %v4758 = vld [vmem:[#allocation4 + $0x80] sm:$0xff]
    %v4759 = vld [vmem:[#allocation4 + $0x88] sm:$0xff]
    %v4760 = vld [vmem:[#allocation4 + $0x90] sm:$0xff]
    %v4761 = vld [vmem:[#allocation4 + $0x98] sm:$0xff]
    %v4762 = vld [vmem:[#allocation4 + $0xa0] sm:$0xff]
    %v4763 = vld [vmem:[#allocation4 + $0xa8] sm:$0xff]
    %v4764 = vld [vmem:[#allocation4 + $0xb0] sm:$0xff]
    %v4765 = vld [vmem:[#allocation4 + $0xb8] sm:$0xff]
    %v4766 = vld [vmem:[#allocation4 + $0xc0] sm:$0xff]
    %v4767 = vld [vmem:[#allocation4 + $0xc8] sm:$0xff]
    %v4768 = vld [vmem:[#allocation4 + $0xd0] sm:$0xff]
    %v4769 = vld [vmem:[#allocation4 + $0xd8] sm:$0xff]
    %v4770 = vld [vmem:[#allocation4 + $0xe0] sm:$0xff]
    %v4771 = vld [vmem:[#allocation4 + $0xe8] sm:$0xff]
    %v4772 = vld [vmem:[#allocation4 + $0xf0] sm:$0xff]
    %v4773 = vld [vmem:[#allocation4 + $0xf8] sm:$0xff]
    %v4774 = vld [vmem:[#allocation32] sm:$0x3]
    %v4775 = vld [vmem:[#allocation32 + $0x2] sm:$0x3]
    %v4776 = vld [vmem:[#allocation5] sm:$0xff]
    %v4777 = vld [vmem:[#allocation5 + $0x8] sm:$0xff]
    %v4778 = vld [vmem:[#allocation5 + $0x10] sm:$0xff]
    %v4779 = vld [vmem:[#allocation5 + $0x18] sm:$0xff]
    %v4780 = vld [vmem:[#allocation5 + $0x20] sm:$0xff]
    %v4781 = vld [vmem:[#allocation5 + $0x28] sm:$0xff]
    %v4782 = vld [vmem:[#allocation5 + $0x30] sm:$0xff]
    %v4783 = vld [vmem:[#allocation5 + $0x38] sm:$0xff]
    %v4784 = vld [vmem:[#allocation5 + $0x40] sm:$0xff]
    %v4785 = vld [vmem:[#allocation5 + $0x48] sm:$0xff]
    %v4786 = vld [vmem:[#allocation5 + $0x50] sm:$0xff]
    %v4787 = vld [vmem:[#allocation5 + $0x58] sm:$0xff]
    %v4788 = vld [vmem:[#allocation5 + $0x60] sm:$0xff]
    %v4789 = vld [vmem:[#allocation5 + $0x68] sm:$0xff]
    %v4790 = vld [vmem:[#allocation5 + $0x70] sm:$0xff]
    %v4791 = vld [vmem:[#allocation5 + $0x78] sm:$0xff]
    %v4792 = vld [vmem:[#allocation5 + $0x80] sm:$0xff]
    %v4793 = vld [vmem:[#allocation5 + $0x88] sm:$0xff]
    %v4794 = vld [vmem:[#allocation5 + $0x90] sm:$0xff]
    %v4795 = vld [vmem:[#allocation5 + $0x98] sm:$0xff]
    %v4796 = vld [vmem:[#allocation5 + $0xa0] sm:$0xff]
    %v4797 = vld [vmem:[#allocation5 + $0xa8] sm:$0xff]
    %v4798 = vld [vmem:[#allocation5 + $0xb0] sm:$0xff]
    %v4799 = vld [vmem:[#allocation5 + $0xb8] sm:$0xff]
    %v4800 = vld [vmem:[#allocation5 + $0xc0] sm:$0xff]
    %v4801 = vld [vmem:[#allocation5 + $0xc8] sm:$0xff]
    %v4802 = vld [vmem:[#allocation5 + $0xd0] sm:$0xff]
    %v4803 = vld [vmem:[#allocation5 + $0xd8] sm:$0xff]
    %v4804 = vld [vmem:[#allocation5 + $0xe0] sm:$0xff]
    %v4805 = vld [vmem:[#allocation5 + $0xe8] sm:$0xff]
    %v4806 = vld [vmem:[#allocation5 + $0xf0] sm:$0xff]
    %v4807 = vld [vmem:[#allocation5 + $0xf8] sm:$0xff]
    %v4808 = vld [vmem:[%s43] sm:$0x1]
    %v4809 = vld [vmem:[%s43 + $0x1] sm:$0x1]
    %v4810 = vld [vmem:[%s45] sm:$0x1]
    %v4811 = vld [vmem:[%s45 + $0x1] sm:$0x1]
    %v4812 = vld [vmem:[%s47] sm:$0x1]
    %v4813 = vld [vmem:[%s47 + $0x1] sm:$0x1]
    %v4814 = vld [vmem:[%s49] sm:$0x1]
    %v4815 = vld [vmem:[%s49 + $0x1] sm:$0x1]
    %v4816 = vld [vmem:[%s51] sm:$0x1]
    %v4817 = vld [vmem:[%s51 + $0x1] sm:$0x1]
    %v4818 = vpack.c.bf16 %v4657, %v4657
    %v4819 = vpack.c.bf16 %v4658, %v4658
    %v4822 = vlaneseq
    %v4823 = vshrl.u32 %v4822, 7
    %v4824 = vsub.s32 0, %v4823
    %v4825 = vrot.slane %v4722, %v4824
    %v4826 = vlaneseq
    %v4827 = vshrl.u32 %v4826, 7
    %v4828 = vsub.s32 1, %v4827
    %v4829 = vrot.slane %v4722, %v4828
    %v4830 = vlaneseq
    %v4831 = vshrl.u32 %v4830, 7
    %v4832 = vsub.s32 2, %v4831
    %v4833 = vrot.slane %v4722, %v4832
    %v4834 = vlaneseq
    %v4835 = vshrl.u32 %v4834, 7
    %v4836 = vsub.s32 0, %v4835
    %v4837 = vrot.slane %v4723, %v4836
    %v4838 = vlaneseq
    %v4839 = vshrl.u32 %v4838, 7
    %v4840 = vsub.s32 1, %v4839
    %v4841 = vrot.slane %v4723, %v4840
    %v4842 = vlaneseq
    %v4843 = vshrl.u32 %v4842, 7
    %v4844 = vsub.s32 2, %v4843
    %v4845 = vrot.slane %v4723, %v4844
    %4852 = vmatprep.subr.bf16.mxu0 %v4675
    %4853 = vmatpush1.bf16.msra.mxu0 %v4674
    %4854 = vmatprep.subr.bf16.mxu0 %v4678
    %4855 = vmatpush1.bf16.msra.mxu0 %v4677
    %4856 = vmatprep.subr.bf16.mxu0 %v4681
    %4857 = vmatpush1.bf16.msra.mxu0 %v4680
    %4858 = vmatprep.subr.bf16.mxu0 %v4684
    %4859 = vmatpush1.bf16.msra.mxu0 %v4683
    %4860 = vmatprep.subr.bf16.mxu0 %v4687
    %4861 = vmatpush1.bf16.msra.mxu0 %v4686
    %4862 = vmatprep.subr.bf16.mxu0 %v4690
    %4863 = vmatpush1.bf16.msra.mxu0 %v4689
    %4864 = vmatprep.subr.bf16.mxu0 %v4693
    %4865 = vmatpush1.bf16.msra.mxu0 %v4692
    %4866 = vmatprep.subr.bf16.mxu0 %v4696
    %4867 = vmatpush1.bf16.msra.mxu0 %v4695
    %4868 = vmatprep.subr.bf16.mxu0 0
    %4869 = vmatpush1.bf16.msra.mxu0 0
    %4870 = vmatprep.subr.bf16.mxu0 0
    %4871 = vmatpush1.bf16.msra.mxu0 0
    %4872 = vmatprep.subr.bf16.mxu0 0
    %4873 = vmatpush1.bf16.msra.mxu0 0
    %4874 = vmatprep.subr.bf16.mxu0 0
    %4875 = vmatpush1.bf16.msra.mxu0 0
    %4876 = vmatprep.subr.bf16.mxu0 0
    %4877 = vmatpush1.bf16.msra.mxu0 0
    %4878 = vmatprep.subr.bf16.mxu0 0
    %4879 = vmatpush1.bf16.msra.mxu0 0
    %4880 = vmatprep.subr.bf16.mxu0 0
    %4881 = vmatpush1.bf16.msra.mxu0 0
    %4882 = vmatprep.subr.bf16.mxu0 0
    %4883 = vmatpush1.bf16.msra.mxu0 0
    %4884 = vmatprep.mubr.bf16.mxu0 0
    %4885 = vmatmul.mubr.bf16.gmra.mrb[0].mxu0 %v4818
    %v4886 = vpop.f32.mrb[0].mxu0
    %v4887 = vadd.f32 %v4825, %v4886
    %v4888 = vpop.f32.mrb[0].mxu0
    %v4889 = vadd.f32 %v4829, %v4888
    %v4890 = vpop.f32.mrb[0].mxu0
    %v4891 = vpop.f32.mrb[0].mxu0
    %4892 = vdwg.mxu0
    %4893 = vmatprep.subr.bf16.mxu0 0
    %4894 = vmatpush1.bf16.msra.mxu0 %v4676
    %4895 = vmatprep.subr.bf16.mxu0 0
    %4896 = vmatpush1.bf16.msra.mxu0 %v4679
    %4897 = vmatprep.subr.bf16.mxu0 0
    %4898 = vmatpush1.bf16.msra.mxu0 %v4682
    %4899 = vmatprep.subr.bf16.mxu0 0
    %4900 = vmatpush1.bf16.msra.mxu0 %v4685
    %4901 = vmatprep.subr.bf16.mxu0 0
    %4902 = vmatpush1.bf16.msra.mxu0 %v4688
    %4903 = vmatprep.subr.bf16.mxu0 0
    %4904 = vmatpush1.bf16.msra.mxu0 %v4691
    %4905 = vmatprep.subr.bf16.mxu0 0
    %4906 = vmatpush1.bf16.msra.mxu0 %v4694
    %4907 = vmatprep.subr.bf16.mxu0 0
    %4908 = vmatpush1.bf16.msra.mxu0 %v4697
    %4909 = vmatprep.subr.bf16.mxu0 0
    %4910 = vmatpush1.bf16.msra.mxu0 0
    %4911 = vmatprep.subr.bf16.mxu0 0
    %4912 = vmatpush1.bf16.msra.mxu0 0
    %4913 = vmatprep.subr.bf16.mxu0 0
    %4914 = vmatpush1.bf16.msra.mxu0 0
    %4915 = vmatprep.subr.bf16.mxu0 0
    %4916 = vmatpush1.bf16.msra.mxu0 0
    %4917 = vmatprep.subr.bf16.mxu0 0
    %4918 = vmatpush1.bf16.msra.mxu0 0
    %4919 = vmatprep.subr.bf16.mxu0 0
    %4920 = vmatpush1.bf16.msra.mxu0 0
    %4921 = vmatprep.subr.bf16.mxu0 0
    %4922 = vmatpush1.bf16.msra.mxu0 0
    %4923 = vmatprep.subr.bf16.mxu0 0
    %4924 = vmatpush1.bf16.msra.mxu0 0
    %4925 = vmatprep.mubr.bf16.mxu0 0
    %4926 = vmatmul.mubr.bf16.gmra.mrb[0].mxu0 %v4818
    %v4927 = vpop.f32.mrb[0].mxu0
    %v4928 = vadd.f32 %v4833, %v4927
    %v4929 = vpop.f32.mrb[0].mxu0
    %v4930 = vpop.f32.mrb[0].mxu0
    %v4931 = vpop.f32.mrb[0].mxu0
    %4932 = vdwg.mxu0
    %4933 = vmatprep.subr.bf16.mxu0 %v4699
    %4934 = vmatpush1.bf16.msra.mxu0 %v4698
    %4935 = vmatprep.subr.bf16.mxu0 %v4702
    %4936 = vmatpush1.bf16.msra.mxu0 %v4701
    %4937 = vmatprep.subr.bf16.mxu0 %v4705
    %4938 = vmatpush1.bf16.msra.mxu0 %v4704
    %4939 = vmatprep.subr.bf16.mxu0 %v4708
    %4940 = vmatpush1.bf16.msra.mxu0 %v4707
    %4941 = vmatprep.subr.bf16.mxu0 %v4711
    %4942 = vmatpush1.bf16.msra.mxu0 %v4710
    %4943 = vmatprep.subr.bf16.mxu0 %v4714
    %4944 = vmatpush1.bf16.msra.mxu0 %v4713
    %4945 = vmatprep.subr.bf16.mxu0 %v4717
    %4946 = vmatpush1.bf16.msra.mxu0 %v4716
    %4947 = vmatprep.subr.bf16.mxu0 %v4720
    %4948 = vmatpush1.bf16.msra.mxu0 %v4719
    %4949 = vmatprep.subr.bf16.mxu0 0
    %4950 = vmatpush1.bf16.msra.mxu0 0
    %4951 = vmatprep.subr.bf16.mxu0 0
    %4952 = vmatpush1.bf16.msra.mxu0 0
    %4953 = vmatprep.subr.bf16.mxu0 0
    %4954 = vmatpush1.bf16.msra.mxu0 0
    %4955 = vmatprep.subr.bf16.mxu0 0
    %4956 = vmatpush1.bf16.msra.mxu0 0
    %4957 = vmatprep.subr.bf16.mxu0 0
    %4958 = vmatpush1.bf16.msra.mxu0 0
    %4959 = vmatprep.subr.bf16.mxu0 0
    %4960 = vmatpush1.bf16.msra.mxu0 0
    %4961 = vmatprep.subr.bf16.mxu0 0
    %4962 = vmatpush1.bf16.msra.mxu0 0
    %4963 = vmatprep.subr.bf16.mxu0 0
    %4964 = vmatpush1.bf16.msra.mxu0 0
    %4965 = vmatprep.mubr.bf16.mxu0 0
    %4966 = vmatmul.mubr.bf16.gmra.mrb[0].mxu0 %v4819
    %v4967 = vpop.f32.mrb[0].mxu0
    %v4968 = vadd.f32 %v4837, %v4967
    %v4969 = vpop.f32.mrb[0].mxu0
    %v4970 = vadd.f32 %v4841, %v4969
    %v4971 = vpop.f32.mrb[0].mxu0
    %v4972 = vpop.f32.mrb[0].mxu0
    %4973 = vdwg.mxu0
    %4974 = vmatprep.subr.bf16.mxu0 0
    %4975 = vmatpush1.bf16.msra.mxu0 %v4700
    %4976 = vmatprep.subr.bf16.mxu0 0
    %4977 = vmatpush1.bf16.msra.mxu0 %v4703
    %4978 = vmatprep.subr.bf16.mxu0 0
    %4979 = vmatpush1.bf16.msra.mxu0 %v4706
    %4980 = vmatprep.subr.bf16.mxu0 0
    %4981 = vmatpush1.bf16.msra.mxu0 %v4709
    %4982 = vmatprep.subr.bf16.mxu0 0
    %4983 = vmatpush1.bf16.msra.mxu0 %v4712
    %4984 = vmatprep.subr.bf16.mxu0 0
    %4985 = vmatpush1.bf16.msra.mxu0 %v4715
    %4986 = vmatprep.subr.bf16.mxu0 0
    %4987 = vmatpush1.bf16.msra.mxu0 %v4718
    %4988 = vmatprep.subr.bf16.mxu0 0
    %4989 = vmatpush1.bf16.msra.mxu0 %v4721
    %4990 = vmatprep.subr.bf16.mxu0 0
    %4991 = vmatpush1.bf16.msra.mxu0 0
    %4992 = vmatprep.subr.bf16.mxu0 0
    %4993 = vmatpush1.bf16.msra.mxu0 0
    %4994 = vmatprep.subr.bf16.mxu0 0
    %4995 = vmatpush1.bf16.msra.mxu0 0
    %4996 = vmatprep.subr.bf16.mxu0 0
    %4997 = vmatpush1.bf16.msra.mxu0 0
    %4998 = vmatprep.subr.bf16.mxu0 0
    %4999 = vmatpush1.bf16.msra.mxu0 0
    %5000 = vmatprep.subr.bf16.mxu0 0
    %5001 = vmatpush1.bf16.msra.mxu0 0
    %5002 = vmatprep.subr.bf16.mxu0 0
    %5003 = vmatpush1.bf16.msra.mxu0 0
    %5004 = vmatprep.subr.bf16.mxu0 0
    %5005 = vmatpush1.bf16.msra.mxu0 0
    %5006 = vmatprep.mubr.bf16.mxu0 0
    %5007 = vmatmul.mubr.bf16.gmra.mrb[0].mxu0 %v4819
    %v5008 = vpop.f32.mrb[0].mxu0
    %v5009 = vadd.f32 %v4845, %v5008
    %v5010 = vpop.f32.mrb[0].mxu0
    %v5011 = vpop.f32.mrb[0].mxu0
    %v5012 = vpop.f32.mrb[0].mxu0
    %5013 = vdwg.mxu0
    %5015 = vrot.lane.b32.xlu0 %v4887, 112
    %v5016 = vpop.permute.xlu0 %5015
    %5018 = vrot.lane.b32.xlu0 %v4887, 96
    %v5019 = vpop.permute.xlu0 %5018
    %5021 = vrot.lane.b32.xlu0 %v4887, 80
    %v5022 = vpop.permute.xlu0 %5021
    %5024 = vrot.lane.b32.xlu0 %v4887, 64
    %v5025 = vpop.permute.xlu0 %5024
    %5027 = vrot.lane.b32.xlu0 %v4887, 48
    %v5028 = vpop.permute.xlu0 %5027
    %5030 = vrot.lane.b32.xlu0 %v4887, 32
    %v5031 = vpop.permute.xlu0 %5030
    %5033 = vrot.lane.b32.xlu0 %v4887, 16
    %v5034 = vpop.permute.xlu0 %5033
    %v5036 = vmul.f32 %v4887, 0.25
    %v5037 = vmul.f32 %v5016, 0.25
    %v5038 = vmul.f32 %v5019, 0.25
    %v5039 = vmul.f32 %v5022, 0.25
    %v5040 = vmul.f32 %v5025, 0.25
    %v5041 = vmul.f32 %v5028, 0.25
    %v5042 = vmul.f32 %v5031, 0.25
    %v5043 = vmul.f32 %v5034, 0.25
    %5045 = vrot.lane.b32.xlu0 %v4889, 112
    %v5046 = vpop.permute.xlu0 %5045
    %5048 = vrot.lane.b32.xlu0 %v4889, 96
    %v5049 = vpop.permute.xlu0 %5048
    %5051 = vrot.lane.b32.xlu0 %v4889, 80
    %v5052 = vpop.permute.xlu0 %5051
    %5054 = vrot.lane.b32.xlu0 %v4889, 64
    %v5055 = vpop.permute.xlu0 %5054
    %5057 = vrot.lane.b32.xlu0 %v4889, 48
    %v5058 = vpop.permute.xlu0 %5057
    %5060 = vrot.lane.b32.xlu0 %v4889, 32
    %v5061 = vpop.permute.xlu0 %5060
    %5063 = vrot.lane.b32.xlu0 %v4889, 16
    %v5064 = vpop.permute.xlu0 %5063
    %5067 = vrot.lane.b32.xlu0 %v4928, 112
    %v5068 = vpop.permute.xlu0 %5067
    %5070 = vrot.lane.b32.xlu0 %v4928, 96
    %v5071 = vpop.permute.xlu0 %5070
    %5073 = vrot.lane.b32.xlu0 %v4928, 80
    %v5074 = vpop.permute.xlu0 %5073
    %5076 = vrot.lane.b32.xlu0 %v4928, 64
    %v5077 = vpop.permute.xlu0 %5076
    %5079 = vrot.lane.b32.xlu0 %v4928, 48
    %v5080 = vpop.permute.xlu0 %5079
    %5082 = vrot.lane.b32.xlu0 %v4928, 32
    %v5083 = vpop.permute.xlu0 %5082
    %5085 = vrot.lane.b32.xlu0 %v4928, 16
    %v5086 = vpop.permute.xlu0 %5085
    %v5088 = vpack.c.bf16 %v5036, %v5036
    %v5089 = vpack.c.bf16 %v5037, %v5037
    %v5090 = vpack.c.bf16 %v5038, %v5038
    %v5091 = vpack.c.bf16 %v5039, %v5039
    %v5092 = vpack.c.bf16 %v5040, %v5040
    %v5093 = vpack.c.bf16 %v5041, %v5041
    %v5094 = vpack.c.bf16 %v5042, %v5042
    %v5095 = vpack.c.bf16 %v5043, %v5043
    %v5096 = vpack.c.bf16 %v4889, %v4889
    %v5097 = vpack.c.bf16 %v5046, %v5046
    %v5098 = vpack.c.bf16 %v5049, %v5049
    %v5099 = vpack.c.bf16 %v5052, %v5052
    %v5100 = vpack.c.bf16 %v5055, %v5055
    %v5101 = vpack.c.bf16 %v5058, %v5058
    %v5102 = vpack.c.bf16 %v5061, %v5061
    %v5103 = vpack.c.bf16 %v5064, %v5064
    %v5105 = vsel %vm1958, %v5088, 0
    %v5108 = vsel %vm1958, %v5096, 0
    %5110 = vmatprep.subr.bf16.mxu0 0
    %5111 = vmatpush1.bf16.xpose.msra.mxu0 %v5108
    %5112 = vmatprep.subr.bf16.mxu0 0
    %5113 = vmatpush1.bf16.xpose.msra.mxu0 0
    %5114 = vmatprep.subr.bf16.mxu0 0
    %5115 = vmatpush1.bf16.xpose.msra.mxu0 0
    %5116 = vmatprep.subr.bf16.mxu0 0
    %5117 = vmatpush1.bf16.xpose.msra.mxu0 0
    %5118 = vmatprep.subr.bf16.mxu0 0
    %5119 = vmatpush1.bf16.xpose.msra.mxu0 0
    %5120 = vmatprep.subr.bf16.mxu0 0
    %5121 = vmatpush1.bf16.xpose.msra.mxu0 0
    %5122 = vmatprep.subr.bf16.mxu0 0
    %5123 = vmatpush1.bf16.xpose.msra.mxu0 0
    %5124 = vmatprep.subr.bf16.mxu0 0
    %5125 = vmatpush1.bf16.xpose.msra.mxu0 0
    %5126 = vmatprep.subr.bf16.mxu0 0
    %5127 = vmatpush1.bf16.xpose.msra.mxu0 0
    %5128 = vmatprep.subr.bf16.mxu0 0
    %5129 = vmatpush1.bf16.xpose.msra.mxu0 0
    %5130 = vmatprep.subr.bf16.mxu0 0
    %5131 = vmatpush1.bf16.xpose.msra.mxu0 0
    %5132 = vmatprep.subr.bf16.mxu0 0
    %5133 = vmatpush1.bf16.xpose.msra.mxu0 0
    %5134 = vmatprep.subr.bf16.mxu0 0
    %5135 = vmatpush1.bf16.xpose.msra.mxu0 0
    %5136 = vmatprep.subr.bf16.mxu0 0
    %5137 = vmatpush1.bf16.xpose.msra.mxu0 0
    %5138 = vmatprep.subr.bf16.mxu0 0
    %5139 = vmatpush1.bf16.xpose.msra.mxu0 0
    %5140 = vmatprep.subr.bf16.mxu0 0
    %5141 = vmatpush1.bf16.xpose.msra.mxu0 0
    %5142 = vmatprep.mubr.bf16.mxu0 0
    %5143 = vmatmul.mubr.bf16.gmra.mrb[0].mxu0 %v5105
    %v5144 = vpop.f32.mrb[0].mxu0
    %v5145 = vadd.f32 %v990, %v5144
    %v5146 = vpop.f32.mrb[0].mxu0
    %v5147 = vpop.f32.mrb[0].mxu0
    %v5148 = vpop.f32.mrb[0].mxu0
    %5149 = vdwg.mxu0
    %v5151 = vsel %vm1958, %v5089, 0
    %v5154 = vsel %vm1958, %v5097, 0
    %5156 = vmatprep.subr.bf16.mxu0 0
    %5157 = vmatpush1.bf16.xpose.msra.mxu0 %v5154
    %5158 = vmatprep.subr.bf16.mxu0 0
    %5159 = vmatpush1.bf16.xpose.msra.mxu0 0
    %5160 = vmatprep.subr.bf16.mxu0 0
    %5161 = vmatpush1.bf16.xpose.msra.mxu0 0
    %5162 = vmatprep.subr.bf16.mxu0 0
    %5163 = vmatpush1.bf16.xpose.msra.mxu0 0
    %5164 = vmatprep.subr.bf16.mxu0 0
    %5165 = vmatpush1.bf16.xpose.msra.mxu0 0
    %5166 = vmatprep.subr.bf16.mxu0 0
    %5167 = vmatpush1.bf16.xpose.msra.mxu0 0
    %5168 = vmatprep.subr.bf16.mxu0 0
    %5169 = vmatpush1.bf16.xpose.msra.mxu0 0
    %5170 = vmatprep.subr.bf16.mxu0 0
    %5171 = vmatpush1.bf16.xpose.msra.mxu0 0
    %5172 = vmatprep.subr.bf16.mxu0 0
    %5173 = vmatpush1.bf16.xpose.msra.mxu0 0
    %5174 = vmatprep.subr.bf16.mxu0 0
    %5175 = vmatpush1.bf16.xpose.msra.mxu0 0
    %5176 = vmatprep.subr.bf16.mxu0 0
    %5177 = vmatpush1.bf16.xpose.msra.mxu0 0
    %5178 = vmatprep.subr.bf16.mxu0 0
    %5179 = vmatpush1.bf16.xpose.msra.mxu0 0
    %5180 = vmatprep.subr.bf16.mxu0 0
    %5181 = vmatpush1.bf16.xpose.msra.mxu0 0
    %5182 = vmatprep.subr.bf16.mxu0 0
    %5183 = vmatpush1.bf16.xpose.msra.mxu0 0
    %5184 = vmatprep.subr.bf16.mxu0 0
    %5185 = vmatpush1.bf16.xpose.msra.mxu0 0
    %5186 = vmatprep.subr.bf16.mxu0 0
    %5187 = vmatpush1.bf16.xpose.msra.mxu0 0
    %5188 = vmatprep.mubr.bf16.mxu0 0
    %5189 = vmatmul.mubr.bf16.gmra.mrb[0].mxu0 %v5151
    %v5190 = vpop.f32.mrb[0].mxu0
    %v5191 = vadd.f32 %v990, %v5190
    %v5192 = vpop.f32.mrb[0].mxu0
    %v5193 = vpop.f32.mrb[0].mxu0
    %v5194 = vpop.f32.mrb[0].mxu0
    %5195 = vdwg.mxu0
    %v5197 = vsel %vm1958, %v5090, 0
    %v5200 = vsel %vm1958, %v5098, 0
    %5202 = vmatprep.subr.bf16.mxu0 0
    %5203 = vmatpush1.bf16.xpose.msra.mxu0 %v5200
    %5204 = vmatprep.subr.bf16.mxu0 0
    %5205 = vmatpush1.bf16.xpose.msra.mxu0 0
    %5206 = vmatprep.subr.bf16.mxu0 0
    %5207 = vmatpush1.bf16.xpose.msra.mxu0 0
    %5208 = vmatprep.subr.bf16.mxu0 0
    %5209 = vmatpush1.bf16.xpose.msra.mxu0 0
    %5210 = vmatprep.subr.bf16.mxu0 0
    %5211 = vmatpush1.bf16.xpose.msra.mxu0 0
    %5212 = vmatprep.subr.bf16.mxu0 0
    %5213 = vmatpush1.bf16.xpose.msra.mxu0 0
    %5214 = vmatprep.subr.bf16.mxu0 0
    %5215 = vmatpush1.bf16.xpose.msra.mxu0 0
    %5216 = vmatprep.subr.bf16.mxu0 0
    %5217 = vmatpush1.bf16.xpose.msra.mxu0 0
    %5218 = vmatprep.subr.bf16.mxu0 0
    %5219 = vmatpush1.bf16.xpose.msra.mxu0 0
    %5220 = vmatprep.subr.bf16.mxu0 0
    %5221 = vmatpush1.bf16.xpose.msra.mxu0 0
    %5222 = vmatprep.subr.bf16.mxu0 0
    %5223 = vmatpush1.bf16.xpose.msra.mxu0 0
    %5224 = vmatprep.subr.bf16.mxu0 0
    %5225 = vmatpush1.bf16.xpose.msra.mxu0 0
    %5226 = vmatprep.subr.bf16.mxu0 0
    %5227 = vmatpush1.bf16.xpose.msra.mxu0 0
    %5228 = vmatprep.subr.bf16.mxu0 0
    %5229 = vmatpush1.bf16.xpose.msra.mxu0 0
    %5230 = vmatprep.subr.bf16.mxu0 0
    %5231 = vmatpush1.bf16.xpose.msra.mxu0 0
    %5232 = vmatprep.subr.bf16.mxu0 0
    %5233 = vmatpush1.bf16.xpose.msra.mxu0 0
    %5234 = vmatprep.mubr.bf16.mxu0 0
    %5235 = vmatmul.mubr.bf16.gmra.mrb[0].mxu0 %v5197
    %v5236 = vpop.f32.mrb[0].mxu0
    %v5237 = vadd.f32 %v990, %v5236
    %v5238 = vpop.f32.mrb[0].mxu0
    %v5239 = vpop.f32.mrb[0].mxu0
    %v5240 = vpop.f32.mrb[0].mxu0
    %5241 = vdwg.mxu0
    %v5243 = vsel %vm1958, %v5091, 0
    %v5246 = vsel %vm1958, %v5099, 0
    %5248 = vmatprep.subr.bf16.mxu0 0
    %5249 = vmatpush1.bf16.xpose.msra.mxu0 %v5246
    %5250 = vmatprep.subr.bf16.mxu0 0
    %5251 = vmatpush1.bf16.xpose.msra.mxu0 0
    %5252 = vmatprep.subr.bf16.mxu0 0
    %5253 = vmatpush1.bf16.xpose.msra.mxu0 0
    %5254 = vmatprep.subr.bf16.mxu0 0
    %5255 = vmatpush1.bf16.xpose.msra.mxu0 0
    %5256 = vmatprep.subr.bf16.mxu0 0
    %5257 = vmatpush1.bf16.xpose.msra.mxu0 0
    %5258 = vmatprep.subr.bf16.mxu0 0
    %5259 = vmatpush1.bf16.xpose.msra.mxu0 0
    %5260 = vmatprep.subr.bf16.mxu0 0
    %5261 = vmatpush1.bf16.xpose.msra.mxu0 0
    %5262 = vmatprep.subr.bf16.mxu0 0
    %5263 = vmatpush1.bf16.xpose.msra.mxu0 0
    %5264 = vmatprep.subr.bf16.mxu0 0
    %5265 = vmatpush1.bf16.xpose.msra.mxu0 0
    %5266 = vmatprep.subr.bf16.mxu0 0
    %5267 = vmatpush1.bf16.xpose.msra.mxu0 0
    %5268 = vmatprep.subr.bf16.mxu0 0
    %5269 = vmatpush1.bf16.xpose.msra.mxu0 0
    %5270 = vmatprep.subr.bf16.mxu0 0
    %5271 = vmatpush1.bf16.xpose.msra.mxu0 0
    %5272 = vmatprep.subr.bf16.mxu0 0
    %5273 = vmatpush1.bf16.xpose.msra.mxu0 0
    %5274 = vmatprep.subr.bf16.mxu0 0
    %5275 = vmatpush1.bf16.xpose.msra.mxu0 0
    %5276 = vmatprep.subr.bf16.mxu0 0
    %5277 = vmatpush1.bf16.xpose.msra.mxu0 0
    %5278 = vmatprep.subr.bf16.mxu0 0
    %5279 = vmatpush1.bf16.xpose.msra.mxu0 0
    %5280 = vmatprep.mubr.bf16.mxu0 0
    %5281 = vmatmul.mubr.bf16.gmra.mrb[0].mxu0 %v5243
    %v5282 = vpop.f32.mrb[0].mxu0
    %v5283 = vadd.f32 %v990, %v5282
    %v5284 = vpop.f32.mrb[0].mxu0
    %v5285 = vpop.f32.mrb[0].mxu0
    %v5286 = vpop.f32.mrb[0].mxu0
    %5287 = vdwg.mxu0
    %v5289 = vsel %vm1958, %v5092, 0
    %v5292 = vsel %vm1958, %v5100, 0
    %5294 = vmatprep.subr.bf16.mxu0 0
    %5295 = vmatpush1.bf16.xpose.msra.mxu0 %v5292
    %5296 = vmatprep.subr.bf16.mxu0 0
    %5297 = vmatpush1.bf16.xpose.msra.mxu0 0
    %5298 = vmatprep.subr.bf16.mxu0 0
    %5299 = vmatpush1.bf16.xpose.msra.mxu0 0
    %5300 = vmatprep.subr.bf16.mxu0 0
    %5301 = vmatpush1.bf16.xpose.msra.mxu0 0
    %5302 = vmatprep.subr.bf16.mxu0 0
    %5303 = vmatpush1.bf16.xpose.msra.mxu0 0
    %5304 = vmatprep.subr.bf16.mxu0 0
    %5305 = vmatpush1.bf16.xpose.msra.mxu0 0
    %5306 = vmatprep.subr.bf16.mxu0 0
    %5307 = vmatpush1.bf16.xpose.msra.mxu0 0
    %5308 = vmatprep.subr.bf16.mxu0 0
    %5309 = vmatpush1.bf16.xpose.msra.mxu0 0
    %5310 = vmatprep.subr.bf16.mxu0 0
    %5311 = vmatpush1.bf16.xpose.msra.mxu0 0
    %5312 = vmatprep.subr.bf16.mxu0 0
    %5313 = vmatpush1.bf16.xpose.msra.mxu0 0
    %5314 = vmatprep.subr.bf16.mxu0 0
    %5315 = vmatpush1.bf16.xpose.msra.mxu0 0
    %5316 = vmatprep.subr.bf16.mxu0 0
    %5317 = vmatpush1.bf16.xpose.msra.mxu0 0
    %5318 = vmatprep.subr.bf16.mxu0 0
    %5319 = vmatpush1.bf16.xpose.msra.mxu0 0
    %5320 = vmatprep.subr.bf16.mxu0 0
    %5321 = vmatpush1.bf16.xpose.msra.mxu0 0
    %5322 = vmatprep.subr.bf16.mxu0 0
    %5323 = vmatpush1.bf16.xpose.msra.mxu0 0
    %5324 = vmatprep.subr.bf16.mxu0 0
    %5325 = vmatpush1.bf16.xpose.msra.mxu0 0
    %5326 = vmatprep.mubr.bf16.mxu0 0
    %5327 = vmatmul.mubr.bf16.gmra.mrb[0].mxu0 %v5289
    %v5328 = vpop.f32.mrb[0].mxu0
    %v5329 = vadd.f32 %v990, %v5328
    %v5330 = vpop.f32.mrb[0].mxu0
    %v5331 = vpop.f32.mrb[0].mxu0
    %v5332 = vpop.f32.mrb[0].mxu0
    %5333 = vdwg.mxu0
    %v5335 = vsel %vm1958, %v5093, 0
    %v5338 = vsel %vm1958, %v5101, 0
    %5340 = vmatprep.subr.bf16.mxu0 0
    %5341 = vmatpush1.bf16.xpose.msra.mxu0 %v5338
    %5342 = vmatprep.subr.bf16.mxu0 0
    %5343 = vmatpush1.bf16.xpose.msra.mxu0 0
    %5344 = vmatprep.subr.bf16.mxu0 0
    %5345 = vmatpush1.bf16.xpose.msra.mxu0 0
    %5346 = vmatprep.subr.bf16.mxu0 0
    %5347 = vmatpush1.bf16.xpose.msra.mxu0 0
    %5348 = vmatprep.subr.bf16.mxu0 0
    %5349 = vmatpush1.bf16.xpose.msra.mxu0 0
    %5350 = vmatprep.subr.bf16.mxu0 0
    %5351 = vmatpush1.bf16.xpose.msra.mxu0 0
    %5352 = vmatprep.subr.bf16.mxu0 0
    %5353 = vmatpush1.bf16.xpose.msra.mxu0 0
    %5354 = vmatprep.subr.bf16.mxu0 0
    %5355 = vmatpush1.bf16.xpose.msra.mxu0 0
    %5356 = vmatprep.subr.bf16.mxu0 0
    %5357 = vmatpush1.bf16.xpose.msra.mxu0 0
    %5358 = vmatprep.subr.bf16.mxu0 0
    %5359 = vmatpush1.bf16.xpose.msra.mxu0 0
    %5360 = vmatprep.subr.bf16.mxu0 0
    %5361 = vmatpush1.bf16.xpose.msra.mxu0 0
    %5362 = vmatprep.subr.bf16.mxu0 0
    %5363 = vmatpush1.bf16.xpose.msra.mxu0 0
    %5364 = vmatprep.subr.bf16.mxu0 0
    %5365 = vmatpush1.bf16.xpose.msra.mxu0 0
    %5366 = vmatprep.subr.bf16.mxu0 0
    %5367 = vmatpush1.bf16.xpose.msra.mxu0 0
    %5368 = vmatprep.subr.bf16.mxu0 0
    %5369 = vmatpush1.bf16.xpose.msra.mxu0 0
    %5370 = vmatprep.subr.bf16.mxu0 0
    %5371 = vmatpush1.bf16.xpose.msra.mxu0 0
    %5372 = vmatprep.mubr.bf16.mxu0 0
    %5373 = vmatmul.mubr.bf16.gmra.mrb[0].mxu0 %v5335
    %v5374 = vpop.f32.mrb[0].mxu0
    %v5375 = vadd.f32 %v990, %v5374
    %v5376 = vpop.f32.mrb[0].mxu0
    %v5377 = vpop.f32.mrb[0].mxu0
    %v5378 = vpop.f32.mrb[0].mxu0
    %5379 = vdwg.mxu0
    %v5381 = vsel %vm1958, %v5094, 0
    %v5384 = vsel %vm1958, %v5102, 0
    %5386 = vmatprep.subr.bf16.mxu0 0
    %5387 = vmatpush1.bf16.xpose.msra.mxu0 %v5384
    %5388 = vmatprep.subr.bf16.mxu0 0
    %5389 = vmatpush1.bf16.xpose.msra.mxu0 0
    %5390 = vmatprep.subr.bf16.mxu0 0
    %5391 = vmatpush1.bf16.xpose.msra.mxu0 0
    %5392 = vmatprep.subr.bf16.mxu0 0
    %5393 = vmatpush1.bf16.xpose.msra.mxu0 0
    %5394 = vmatprep.subr.bf16.mxu0 0
    %5395 = vmatpush1.bf16.xpose.msra.mxu0 0
    %5396 = vmatprep.subr.bf16.mxu0 0
    %5397 = vmatpush1.bf16.xpose.msra.mxu0 0
    %5398 = vmatprep.subr.bf16.mxu0 0
    %5399 = vmatpush1.bf16.xpose.msra.mxu0 0
    %5400 = vmatprep.subr.bf16.mxu0 0
    %5401 = vmatpush1.bf16.xpose.msra.mxu0 0
    %5402 = vmatprep.subr.bf16.mxu0 0
    %5403 = vmatpush1.bf16.xpose.msra.mxu0 0
    %5404 = vmatprep.subr.bf16.mxu0 0
    %5405 = vmatpush1.bf16.xpose.msra.mxu0 0
    %5406 = vmatprep.subr.bf16.mxu0 0
    %5407 = vmatpush1.bf16.xpose.msra.mxu0 0
    %5408 = vmatprep.subr.bf16.mxu0 0
    %5409 = vmatpush1.bf16.xpose.msra.mxu0 0
    %5410 = vmatprep.subr.bf16.mxu0 0
    %5411 = vmatpush1.bf16.xpose.msra.mxu0 0
    %5412 = vmatprep.subr.bf16.mxu0 0
    %5413 = vmatpush1.bf16.xpose.msra.mxu0 0
    %5414 = vmatprep.subr.bf16.mxu0 0
    %5415 = vmatpush1.bf16.xpose.msra.mxu0 0
    %5416 = vmatprep.subr.bf16.mxu0 0
    %5417 = vmatpush1.bf16.xpose.msra.mxu0 0
    %5418 = vmatprep.mubr.bf16.mxu0 0
    %5419 = vmatmul.mubr.bf16.gmra.mrb[0].mxu0 %v5381
    %v5420 = vpop.f32.mrb[0].mxu0
    %v5421 = vadd.f32 %v990, %v5420
    %v5422 = vpop.f32.mrb[0].mxu0
    %v5423 = vpop.f32.mrb[0].mxu0
    %v5424 = vpop.f32.mrb[0].mxu0
    %5425 = vdwg.mxu0
    %v5427 = vsel %vm1958, %v5095, 0
    %v5430 = vsel %vm1958, %v5103, 0
    %5432 = vmatprep.subr.bf16.mxu0 0
    %5433 = vmatpush1.bf16.xpose.msra.mxu0 %v5430
    %5434 = vmatprep.subr.bf16.mxu0 0
    %5435 = vmatpush1.bf16.xpose.msra.mxu0 0
    %5436 = vmatprep.subr.bf16.mxu0 0
    %5437 = vmatpush1.bf16.xpose.msra.mxu0 0
    %5438 = vmatprep.subr.bf16.mxu0 0
    %5439 = vmatpush1.bf16.xpose.msra.mxu0 0
    %5440 = vmatprep.subr.bf16.mxu0 0
    %5441 = vmatpush1.bf16.xpose.msra.mxu0 0
    %5442 = vmatprep.subr.bf16.mxu0 0
    %5443 = vmatpush1.bf16.xpose.msra.mxu0 0
    %5444 = vmatprep.subr.bf16.mxu0 0
    %5445 = vmatpush1.bf16.xpose.msra.mxu0 0
    %5446 = vmatprep.subr.bf16.mxu0 0
    %5447 = vmatpush1.bf16.xpose.msra.mxu0 0
    %5448 = vmatprep.subr.bf16.mxu0 0
    %5449 = vmatpush1.bf16.xpose.msra.mxu0 0
    %5450 = vmatprep.subr.bf16.mxu0 0
    %5451 = vmatpush1.bf16.xpose.msra.mxu0 0
    %5452 = vmatprep.subr.bf16.mxu0 0
    %5453 = vmatpush1.bf16.xpose.msra.mxu0 0
    %5454 = vmatprep.subr.bf16.mxu0 0
    %5455 = vmatpush1.bf16.xpose.msra.mxu0 0
    %5456 = vmatprep.subr.bf16.mxu0 0
    %5457 = vmatpush1.bf16.xpose.msra.mxu0 0
    %5458 = vmatprep.subr.bf16.mxu0 0
    %5459 = vmatpush1.bf16.xpose.msra.mxu0 0
    %5460 = vmatprep.subr.bf16.mxu0 0
    %5461 = vmatpush1.bf16.xpose.msra.mxu0 0
    %5462 = vmatprep.subr.bf16.mxu0 0
    %5463 = vmatpush1.bf16.xpose.msra.mxu0 0
    %5464 = vmatprep.mubr.bf16.mxu0 0
    %5465 = vmatmul.mubr.bf16.gmra.mrb[0].mxu0 %v5427
    %v5466 = vpop.f32.mrb[0].mxu0
    %v5467 = vadd.f32 %v990, %v5466
    %v5468 = vpop.f32.mrb[0].mxu0
    %v5469 = vpop.f32.mrb[0].mxu0
    %v5470 = vpop.f32.mrb[0].mxu0
    %5471 = vdwg.mxu0
    %v5472 = vsel %vm2327, %v5145, -inf
    %5473 = vmax.xlane.f32.xlu0 %v5472
    %v5474 = vpop.xlane.xlu0 %5473
    %v5475 = vsel %vm2327, %v5191, -inf
    %5476 = vmax.xlane.f32.xlu0 %v5475
    %v5477 = vpop.xlane.xlu0 %5476
    %v5478 = vsel %vm2327, %v5237, -inf
    %5479 = vmax.xlane.f32.xlu0 %v5478
    %v5480 = vpop.xlane.xlu0 %5479
    %v5481 = vsel %vm2327, %v5283, -inf
    %5482 = vmax.xlane.f32.xlu0 %v5481
    %v5483 = vpop.xlane.xlu0 %5482
    %v5484 = vsel %vm2327, %v5329, -inf
    %5485 = vmax.xlane.f32.xlu0 %v5484
    %v5486 = vpop.xlane.xlu0 %5485
    %v5487 = vsel %vm2327, %v5375, -inf
    %5488 = vmax.xlane.f32.xlu0 %v5487
    %v5489 = vpop.xlane.xlu0 %5488
    %v5490 = vsel %vm2327, %v5421, -inf
    %5491 = vmax.xlane.f32.xlu0 %v5490
    %v5492 = vpop.xlane.xlu0 %5491
    %v5493 = vsel %vm2327, %v5467, -inf
    %5494 = vmax.xlane.f32.xlu0 %v5493
    %v5495 = vpop.xlane.xlu0 %5494
    %v5496 = vsub.f32 %v5145, %v5474
    %v5497 = vsub.f32 %v5191, %v5477
    %v5498 = vsub.f32 %v5237, %v5480
    %v5499 = vsub.f32 %v5283, %v5483
    %v5500 = vsub.f32 %v5329, %v5486
    %v5501 = vsub.f32 %v5375, %v5489
    %v5502 = vsub.f32 %v5421, %v5492
    %v5503 = vsub.f32 %v5467, %v5495
    %v5504 = vmul.f32 %v5496, 1.442695
    %v5505 = vpow.pop %v5504
    %v5506 = vmul.f32 %v5497, 1.442695
    %v5507 = vpow.pop %v5506
    %v5508 = vmul.f32 %v5498, 1.442695
    %v5509 = vpow.pop %v5508
    %v5510 = vmul.f32 %v5499, 1.442695
    %v5511 = vpow.pop %v5510
    %v5512 = vmul.f32 %v5500, 1.442695
    %v5513 = vpow.pop %v5512
    %v5514 = vmul.f32 %v5501, 1.442695
    %v5515 = vpow.pop %v5514
    %v5516 = vmul.f32 %v5502, 1.442695
    %v5517 = vpow.pop %v5516
    %v5518 = vmul.f32 %v5503, 1.442695
    %v5519 = vpow.pop %v5518
    %v5520 = vsel %vm2327, %v5505, 0.0
    %5521 = vadd.xlane.f32.xlu0 %v5520
    %v5522 = vpop.xlane.xlu0 %5521
    %v5523 = vsel %vm2327, %v5507, 0.0
    %5524 = vadd.xlane.f32.xlu0 %v5523
    %v5525 = vpop.xlane.xlu0 %5524
    %v5526 = vsel %vm2327, %v5509, 0.0
    %5527 = vadd.xlane.f32.xlu0 %v5526
    %v5528 = vpop.xlane.xlu0 %5527
    %v5529 = vsel %vm2327, %v5511, 0.0
    %5530 = vadd.xlane.f32.xlu0 %v5529
    %v5531 = vpop.xlane.xlu0 %5530
    %v5532 = vsel %vm2327, %v5513, 0.0
    %5533 = vadd.xlane.f32.xlu0 %v5532
    %v5534 = vpop.xlane.xlu0 %5533
    %v5535 = vsel %vm2327, %v5515, 0.0
    %5536 = vadd.xlane.f32.xlu0 %v5535
    %v5537 = vpop.xlane.xlu0 %5536
    %v5538 = vsel %vm2327, %v5517, 0.0
    %5539 = vadd.xlane.f32.xlu0 %v5538
    %v5540 = vpop.xlane.xlu0 %5539
    %v5541 = vsel %vm2327, %v5519, 0.0
    %5542 = vadd.xlane.f32.xlu0 %v5541
    %v5543 = vpop.xlane.xlu0 %5542
    %v5544 = vrcp.pop %v5522
    %v5545 = vrcp.pop %v5525
    %v5546 = vrcp.pop %v5528
    %v5547 = vrcp.pop %v5531
    %v5548 = vrcp.pop %v5534
    %v5549 = vrcp.pop %v5537
    %v5550 = vrcp.pop %v5540
    %v5551 = vrcp.pop %v5543
    %v5552 = vmul.f32 %v5505, %v5544
    %v5553 = vmul.f32 %v5507, %v5545
    %v5554 = vmul.f32 %v5509, %v5546
    %v5555 = vmul.f32 %v5511, %v5547
    %v5556 = vmul.f32 %v5513, %v5548
    %v5557 = vmul.f32 %v5515, %v5549
    %v5558 = vmul.f32 %v5517, %v5550
    %v5559 = vmul.f32 %v5519, %v5551
    %v5560 = vpack.c.bf16 %v5552, %v5552
    %v5561 = vpack.c.bf16 %v5553, %v5553
    %v5562 = vpack.c.bf16 %v5554, %v5554
    %v5563 = vpack.c.bf16 %v5555, %v5555
    %v5564 = vpack.c.bf16 %v5556, %v5556
    %v5565 = vpack.c.bf16 %v5557, %v5557
    %v5566 = vpack.c.bf16 %v5558, %v5558
    %v5567 = vpack.c.bf16 %v5559, %v5559
    %v5568 = vpack.c.bf16 %v4928, %v4928
    %v5569 = vpack.c.bf16 %v5068, %v5068
    %v5570 = vpack.c.bf16 %v5071, %v5071
    %v5571 = vpack.c.bf16 %v5074, %v5074
    %v5572 = vpack.c.bf16 %v5077, %v5077
    %v5573 = vpack.c.bf16 %v5080, %v5080
    %v5574 = vpack.c.bf16 %v5083, %v5083
    %v5575 = vpack.c.bf16 %v5086, %v5086
    %v5577 = vsel %vm2327, %v5560, 0
    %v5580 = vsel %vm2435, %v5568, 0
    %5582 = vmatprep.subr.bf16.mxu0 0
    %5583 = vmatpush1.bf16.msra.mxu0 %v5580
    %5584 = vmatprep.subr.bf16.mxu0 0
    %5585 = vmatpush1.bf16.msra.mxu0 0
    %5586 = vmatprep.subr.bf16.mxu0 0
    %5587 = vmatpush1.bf16.msra.mxu0 0
    %5588 = vmatprep.subr.bf16.mxu0 0
    %5589 = vmatpush1.bf16.msra.mxu0 0
    %5590 = vmatprep.subr.bf16.mxu0 0
    %5591 = vmatpush1.bf16.msra.mxu0 0
    %5592 = vmatprep.subr.bf16.mxu0 0
    %5593 = vmatpush1.bf16.msra.mxu0 0
    %5594 = vmatprep.subr.bf16.mxu0 0
    %5595 = vmatpush1.bf16.msra.mxu0 0
    %5596 = vmatprep.subr.bf16.mxu0 0
    %5597 = vmatpush1.bf16.msra.mxu0 0
    %5598 = vmatprep.subr.bf16.mxu0 0
    %5599 = vmatpush1.bf16.msra.mxu0 0
    %5600 = vmatprep.subr.bf16.mxu0 0
    %5601 = vmatpush1.bf16.msra.mxu0 0
    %5602 = vmatprep.subr.bf16.mxu0 0
    %5603 = vmatpush1.bf16.msra.mxu0 0
    %5604 = vmatprep.subr.bf16.mxu0 0
    %5605 = vmatpush1.bf16.msra.mxu0 0
    %5606 = vmatprep.subr.bf16.mxu0 0
    %5607 = vmatpush1.bf16.msra.mxu0 0
    %5608 = vmatprep.subr.bf16.mxu0 0
    %5609 = vmatpush1.bf16.msra.mxu0 0
    %5610 = vmatprep.subr.bf16.mxu0 0
    %5611 = vmatpush1.bf16.msra.mxu0 0
    %5612 = vmatprep.subr.bf16.mxu0 0
    %5613 = vmatpush1.bf16.msra.mxu0 0
    %5614 = vmatprep.mubr.bf16.mxu0 0
    %5615 = vmatmul.mubr.bf16.gmra.mrb[0].mxu0 %v5577
    %v5616 = vpop.f32.mrb[0].mxu0
    %v5617 = vadd.f32 0.0, %v5616
    %v5618 = vpop.f32.mrb[0].mxu0
    %v5619 = vpop.f32.mrb[0].mxu0
    %v5620 = vpop.f32.mrb[0].mxu0
    %5621 = vdwg.mxu0
    %v5623 = vsel %vm2327, %v5561, 0
    %v5626 = vsel %vm2435, %v5569, 0
    %5628 = vmatprep.subr.bf16.mxu0 0
    %5629 = vmatpush1.bf16.msra.mxu0 %v5626
    %5630 = vmatprep.subr.bf16.mxu0 0
    %5631 = vmatpush1.bf16.msra.mxu0 0
    %5632 = vmatprep.subr.bf16.mxu0 0
    %5633 = vmatpush1.bf16.msra.mxu0 0
    %5634 = vmatprep.subr.bf16.mxu0 0
    %5635 = vmatpush1.bf16.msra.mxu0 0
    %5636 = vmatprep.subr.bf16.mxu0 0
    %5637 = vmatpush1.bf16.msra.mxu0 0
    %5638 = vmatprep.subr.bf16.mxu0 0
    %5639 = vmatpush1.bf16.msra.mxu0 0
    %5640 = vmatprep.subr.bf16.mxu0 0
    %5641 = vmatpush1.bf16.msra.mxu0 0
    %5642 = vmatprep.subr.bf16.mxu0 0
    %5643 = vmatpush1.bf16.msra.mxu0 0
    %5644 = vmatprep.subr.bf16.mxu0 0
    %5645 = vmatpush1.bf16.msra.mxu0 0
    %5646 = vmatprep.subr.bf16.mxu0 0
    %5647 = vmatpush1.bf16.msra.mxu0 0
    %5648 = vmatprep.subr.bf16.mxu0 0
    %5649 = vmatpush1.bf16.msra.mxu0 0
    %5650 = vmatprep.subr.bf16.mxu0 0
    %5651 = vmatpush1.bf16.msra.mxu0 0
    %5652 = vmatprep.subr.bf16.mxu0 0
    %5653 = vmatpush1.bf16.msra.mxu0 0
    %5654 = vmatprep.subr.bf16.mxu0 0
    %5655 = vmatpush1.bf16.msra.mxu0 0
    %5656 = vmatprep.subr.bf16.mxu0 0
    %5657 = vmatpush1.bf16.msra.mxu0 0
    %5658 = vmatprep.subr.bf16.mxu0 0
    %5659 = vmatpush1.bf16.msra.mxu0 0
    %5660 = vmatprep.mubr.bf16.mxu0 0
    %5661 = vmatmul.mubr.bf16.gmra.mrb[0].mxu0 %v5623
    %v5662 = vpop.f32.mrb[0].mxu0
    %v5663 = vadd.f32 0.0, %v5662
    %v5664 = vpop.f32.mrb[0].mxu0
    %v5665 = vpop.f32.mrb[0].mxu0
    %v5666 = vpop.f32.mrb[0].mxu0
    %5667 = vdwg.mxu0
    %v5669 = vsel %vm2327, %v5562, 0
    %v5672 = vsel %vm2435, %v5570, 0
    %5674 = vmatprep.subr.bf16.mxu0 0
    %5675 = vmatpush1.bf16.msra.mxu0 %v5672
    %5676 = vmatprep.subr.bf16.mxu0 0
    %5677 = vmatpush1.bf16.msra.mxu0 0
    %5678 = vmatprep.subr.bf16.mxu0 0
    %5679 = vmatpush1.bf16.msra.mxu0 0
    %5680 = vmatprep.subr.bf16.mxu0 0
    %5681 = vmatpush1.bf16.msra.mxu0 0
    %5682 = vmatprep.subr.bf16.mxu0 0
    %5683 = vmatpush1.bf16.msra.mxu0 0
    %5684 = vmatprep.subr.bf16.mxu0 0
    %5685 = vmatpush1.bf16.msra.mxu0 0
    %5686 = vmatprep.subr.bf16.mxu0 0
    %5687 = vmatpush1.bf16.msra.mxu0 0
    %5688 = vmatprep.subr.bf16.mxu0 0
    %5689 = vmatpush1.bf16.msra.mxu0 0
    %5690 = vmatprep.subr.bf16.mxu0 0
    %5691 = vmatpush1.bf16.msra.mxu0 0
    %5692 = vmatprep.subr.bf16.mxu0 0
    %5693 = vmatpush1.bf16.msra.mxu0 0
    %5694 = vmatprep.subr.bf16.mxu0 0
    %5695 = vmatpush1.bf16.msra.mxu0 0
    %5696 = vmatprep.subr.bf16.mxu0 0
    %5697 = vmatpush1.bf16.msra.mxu0 0
    %5698 = vmatprep.subr.bf16.mxu0 0
    %5699 = vmatpush1.bf16.msra.mxu0 0
    %5700 = vmatprep.subr.bf16.mxu0 0
    %5701 = vmatpush1.bf16.msra.mxu0 0
    %5702 = vmatprep.subr.bf16.mxu0 0
    %5703 = vmatpush1.bf16.msra.mxu0 0
    %5704 = vmatprep.subr.bf16.mxu0 0
    %5705 = vmatpush1.bf16.msra.mxu0 0
    %5706 = vmatprep.mubr.bf16.mxu0 0
    %5707 = vmatmul.mubr.bf16.gmra.mrb[0].mxu0 %v5669
    %v5708 = vpop.f32.mrb[0].mxu0
    %v5709 = vadd.f32 0.0, %v5708
    %v5710 = vpop.f32.mrb[0].mxu0
    %v5711 = vpop.f32.mrb[0].mxu0
    %v5712 = vpop.f32.mrb[0].mxu0
    %5713 = vdwg.mxu0
    %v5715 = vsel %vm2327, %v5563, 0
    %v5718 = vsel %vm2435, %v5571, 0
    %5720 = vmatprep.subr.bf16.mxu0 0
    %5721 = vmatpush1.bf16.msra.mxu0 %v5718
    %5722 = vmatprep.subr.bf16.mxu0 0
    %5723 = vmatpush1.bf16.msra.mxu0 0
    %5724 = vmatprep.subr.bf16.mxu0 0
    %5725 = vmatpush1.bf16.msra.mxu0 0
    %5726 = vmatprep.subr.bf16.mxu0 0
    %5727 = vmatpush1.bf16.msra.mxu0 0
    %5728 = vmatprep.subr.bf16.mxu0 0
    %5729 = vmatpush1.bf16.msra.mxu0 0
    %5730 = vmatprep.subr.bf16.mxu0 0
    %5731 = vmatpush1.bf16.msra.mxu0 0
    %5732 = vmatprep.subr.bf16.mxu0 0
    %5733 = vmatpush1.bf16.msra.mxu0 0
    %5734 = vmatprep.subr.bf16.mxu0 0
    %5735 = vmatpush1.bf16.msra.mxu0 0
    %5736 = vmatprep.subr.bf16.mxu0 0
    %5737 = vmatpush1.bf16.msra.mxu0 0
    %5738 = vmatprep.subr.bf16.mxu0 0
    %5739 = vmatpush1.bf16.msra.mxu0 0
    %5740 = vmatprep.subr.bf16.mxu0 0
    %5741 = vmatpush1.bf16.msra.mxu0 0
    %5742 = vmatprep.subr.bf16.mxu0 0
    %5743 = vmatpush1.bf16.msra.mxu0 0
    %5744 = vmatprep.subr.bf16.mxu0 0
    %5745 = vmatpush1.bf16.msra.mxu0 0
    %5746 = vmatprep.subr.bf16.mxu0 0
    %5747 = vmatpush1.bf16.msra.mxu0 0
    %5748 = vmatprep.subr.bf16.mxu0 0
    %5749 = vmatpush1.bf16.msra.mxu0 0
    %5750 = vmatprep.subr.bf16.mxu0 0
    %5751 = vmatpush1.bf16.msra.mxu0 0
    %5752 = vmatprep.mubr.bf16.mxu0 0
    %5753 = vmatmul.mubr.bf16.gmra.mrb[0].mxu0 %v5715
    %v5754 = vpop.f32.mrb[0].mxu0
    %v5755 = vadd.f32 0.0, %v5754
    %v5756 = vpop.f32.mrb[0].mxu0
    %v5757 = vpop.f32.mrb[0].mxu0
    %v5758 = vpop.f32.mrb[0].mxu0
    %5759 = vdwg.mxu0
    %v5761 = vsel %vm2327, %v5564, 0
    %v5764 = vsel %vm2435, %v5572, 0
    %5766 = vmatprep.subr.bf16.mxu0 0
    %5767 = vmatpush1.bf16.msra.mxu0 %v5764
    %5768 = vmatprep.subr.bf16.mxu0 0
    %5769 = vmatpush1.bf16.msra.mxu0 0
    %5770 = vmatprep.subr.bf16.mxu0 0
    %5771 = vmatpush1.bf16.msra.mxu0 0
    %5772 = vmatprep.subr.bf16.mxu0 0
    %5773 = vmatpush1.bf16.msra.mxu0 0
    %5774 = vmatprep.subr.bf16.mxu0 0
    %5775 = vmatpush1.bf16.msra.mxu0 0
    %5776 = vmatprep.subr.bf16.mxu0 0
    %5777 = vmatpush1.bf16.msra.mxu0 0
    %5778 = vmatprep.subr.bf16.mxu0 0
    %5779 = vmatpush1.bf16.msra.mxu0 0
    %5780 = vmatprep.subr.bf16.mxu0 0
    %5781 = vmatpush1.bf16.msra.mxu0 0
    %5782 = vmatprep.subr.bf16.mxu0 0
    %5783 = vmatpush1.bf16.msra.mxu0 0
    %5784 = vmatprep.subr.bf16.mxu0 0
    %5785 = vmatpush1.bf16.msra.mxu0 0
    %5786 = vmatprep.subr.bf16.mxu0 0
    %5787 = vmatpush1.bf16.msra.mxu0 0
    %5788 = vmatprep.subr.bf16.mxu0 0
    %5789 = vmatpush1.bf16.msra.mxu0 0
    %5790 = vmatprep.subr.bf16.mxu0 0
    %5791 = vmatpush1.bf16.msra.mxu0 0
    %5792 = vmatprep.subr.bf16.mxu0 0
    %5793 = vmatpush1.bf16.msra.mxu0 0
    %5794 = vmatprep.subr.bf16.mxu0 0
    %5795 = vmatpush1.bf16.msra.mxu0 0
    %5796 = vmatprep.subr.bf16.mxu0 0
    %5797 = vmatpush1.bf16.msra.mxu0 0
    %5798 = vmatprep.mubr.bf16.mxu0 0
    %5799 = vmatmul.mubr.bf16.gmra.mrb[0].mxu0 %v5761
    %v5800 = vpop.f32.mrb[0].mxu0
    %v5801 = vadd.f32 0.0, %v5800
    %v5802 = vpop.f32.mrb[0].mxu0
    %v5803 = vpop.f32.mrb[0].mxu0
    %v5804 = vpop.f32.mrb[0].mxu0
    %5805 = vdwg.mxu0
    %v5807 = vsel %vm2327, %v5565, 0
    %v5810 = vsel %vm2435, %v5573, 0
    %5812 = vmatprep.subr.bf16.mxu0 0
    %5813 = vmatpush1.bf16.msra.mxu0 %v5810
    %5814 = vmatprep.subr.bf16.mxu0 0
    %5815 = vmatpush1.bf16.msra.mxu0 0
    %5816 = vmatprep.subr.bf16.mxu0 0
    %5817 = vmatpush1.bf16.msra.mxu0 0
    %5818 = vmatprep.subr.bf16.mxu0 0
    %5819 = vmatpush1.bf16.msra.mxu0 0
    %5820 = vmatprep.subr.bf16.mxu0 0
    %5821 = vmatpush1.bf16.msra.mxu0 0
    %5822 = vmatprep.subr.bf16.mxu0 0
    %5823 = vmatpush1.bf16.msra.mxu0 0
    %5824 = vmatprep.subr.bf16.mxu0 0
    %5825 = vmatpush1.bf16.msra.mxu0 0
    %5826 = vmatprep.subr.bf16.mxu0 0
    %5827 = vmatpush1.bf16.msra.mxu0 0
    %5828 = vmatprep.subr.bf16.mxu0 0
    %5829 = vmatpush1.bf16.msra.mxu0 0
    %5830 = vmatprep.subr.bf16.mxu0 0
    %5831 = vmatpush1.bf16.msra.mxu0 0
    %5832 = vmatprep.subr.bf16.mxu0 0
    %5833 = vmatpush1.bf16.msra.mxu0 0
    %5834 = vmatprep.subr.bf16.mxu0 0
    %5835 = vmatpush1.bf16.msra.mxu0 0
    %5836 = vmatprep.subr.bf16.mxu0 0
    %5837 = vmatpush1.bf16.msra.mxu0 0
    %5838 = vmatprep.subr.bf16.mxu0 0
    %5839 = vmatpush1.bf16.msra.mxu0 0
    %5840 = vmatprep.subr.bf16.mxu0 0
    %5841 = vmatpush1.bf16.msra.mxu0 0
    %5842 = vmatprep.subr.bf16.mxu0 0
    %5843 = vmatpush1.bf16.msra.mxu0 0
    %5844 = vmatprep.mubr.bf16.mxu0 0
    %5845 = vmatmul.mubr.bf16.gmra.mrb[0].mxu0 %v5807
    %v5846 = vpop.f32.mrb[0].mxu0
    %v5847 = vadd.f32 0.0, %v5846
    %v5848 = vpop.f32.mrb[0].mxu0
    %v5849 = vpop.f32.mrb[0].mxu0
    %v5850 = vpop.f32.mrb[0].mxu0
    %5851 = vdwg.mxu0
    %v5853 = vsel %vm2327, %v5566, 0
    %v5856 = vsel %vm2435, %v5574, 0
    %5858 = vmatprep.subr.bf16.mxu0 0
    %5859 = vmatpush1.bf16.msra.mxu0 %v5856
    %5860 = vmatprep.subr.bf16.mxu0 0
    %5861 = vmatpush1.bf16.msra.mxu0 0
    %5862 = vmatprep.subr.bf16.mxu0 0
    %5863 = vmatpush1.bf16.msra.mxu0 0
    %5864 = vmatprep.subr.bf16.mxu0 0
    %5865 = vmatpush1.bf16.msra.mxu0 0
    %5866 = vmatprep.subr.bf16.mxu0 0
    %5867 = vmatpush1.bf16.msra.mxu0 0
    %5868 = vmatprep.subr.bf16.mxu0 0
    %5869 = vmatpush1.bf16.msra.mxu0 0
    %5870 = vmatprep.subr.bf16.mxu0 0
    %5871 = vmatpush1.bf16.msra.mxu0 0
    %5872 = vmatprep.subr.bf16.mxu0 0
    %5873 = vmatpush1.bf16.msra.mxu0 0
    %5874 = vmatprep.subr.bf16.mxu0 0
    %5875 = vmatpush1.bf16.msra.mxu0 0
    %5876 = vmatprep.subr.bf16.mxu0 0
    %5877 = vmatpush1.bf16.msra.mxu0 0
    %5878 = vmatprep.subr.bf16.mxu0 0
    %5879 = vmatpush1.bf16.msra.mxu0 0
    %5880 = vmatprep.subr.bf16.mxu0 0
    %5881 = vmatpush1.bf16.msra.mxu0 0
    %5882 = vmatprep.subr.bf16.mxu0 0
    %5883 = vmatpush1.bf16.msra.mxu0 0
    %5884 = vmatprep.subr.bf16.mxu0 0
    %5885 = vmatpush1.bf16.msra.mxu0 0
    %5886 = vmatprep.subr.bf16.mxu0 0
    %5887 = vmatpush1.bf16.msra.mxu0 0
    %5888 = vmatprep.subr.bf16.mxu0 0
    %5889 = vmatpush1.bf16.msra.mxu0 0
    %5890 = vmatprep.mubr.bf16.mxu0 0
    %5891 = vmatmul.mubr.bf16.gmra.mrb[0].mxu0 %v5853
    %v5892 = vpop.f32.mrb[0].mxu0
    %v5893 = vadd.f32 0.0, %v5892
    %v5894 = vpop.f32.mrb[0].mxu0
    %v5895 = vpop.f32.mrb[0].mxu0
    %v5896 = vpop.f32.mrb[0].mxu0
    %5897 = vdwg.mxu0
    %v5899 = vsel %vm2327, %v5567, 0
    %v5902 = vsel %vm2435, %v5575, 0
    %5904 = vmatprep.subr.bf16.mxu0 0
    %5905 = vmatpush1.bf16.msra.mxu0 %v5902
    %5906 = vmatprep.subr.bf16.mxu0 0
    %5907 = vmatpush1.bf16.msra.mxu0 0
    %5908 = vmatprep.subr.bf16.mxu0 0
    %5909 = vmatpush1.bf16.msra.mxu0 0
    %5910 = vmatprep.subr.bf16.mxu0 0
    %5911 = vmatpush1.bf16.msra.mxu0 0
    %5912 = vmatprep.subr.bf16.mxu0 0
    %5913 = vmatpush1.bf16.msra.mxu0 0
    %5914 = vmatprep.subr.bf16.mxu0 0
    %5915 = vmatpush1.bf16.msra.mxu0 0
    %5916 = vmatprep.subr.bf16.mxu0 0
    %5917 = vmatpush1.bf16.msra.mxu0 0
    %5918 = vmatprep.subr.bf16.mxu0 0
    %5919 = vmatpush1.bf16.msra.mxu0 0
    %5920 = vmatprep.subr.bf16.mxu0 0
    %5921 = vmatpush1.bf16.msra.mxu0 0
    %5922 = vmatprep.subr.bf16.mxu0 0
    %5923 = vmatpush1.bf16.msra.mxu0 0
    %5924 = vmatprep.subr.bf16.mxu0 0
    %5925 = vmatpush1.bf16.msra.mxu0 0
    %5926 = vmatprep.subr.bf16.mxu0 0
    %5927 = vmatpush1.bf16.msra.mxu0 0
    %5928 = vmatprep.subr.bf16.mxu0 0
    %5929 = vmatpush1.bf16.msra.mxu0 0
    %5930 = vmatprep.subr.bf16.mxu0 0
    %5931 = vmatpush1.bf16.msra.mxu0 0
    %5932 = vmatprep.subr.bf16.mxu0 0
    %5933 = vmatpush1.bf16.msra.mxu0 0
    %5934 = vmatprep.subr.bf16.mxu0 0
    %5935 = vmatpush1.bf16.msra.mxu0 0
    %5936 = vmatprep.mubr.bf16.mxu0 0
    %5937 = vmatmul.mubr.bf16.gmra.mrb[0].mxu0 %v5899
    %v5938 = vpop.f32.mrb[0].mxu0
    %v5939 = vadd.f32 0.0, %v5938
    %v5940 = vpop.f32.mrb[0].mxu0
    %v5941 = vpop.f32.mrb[0].mxu0
    %v5942 = vpop.f32.mrb[0].mxu0
    %5943 = vdwg.mxu0
    %5945 = vrot.lane.b32.xlu0 %v5663, 16
    %v5946 = vpop.permute.xlu0 %5945
    %5949 = vrot.lane.b32.xlu0 %v5709, 32
    %v5950 = vpop.permute.xlu0 %5949
    %5953 = vrot.lane.b32.xlu0 %v5755, 48
    %v5954 = vpop.permute.xlu0 %5953
    %5957 = vrot.lane.b32.xlu0 %v5801, 64
    %v5958 = vpop.permute.xlu0 %5957
    %5961 = vrot.lane.b32.xlu0 %v5847, 80
    %v5962 = vpop.permute.xlu0 %5961
    %5965 = vrot.lane.b32.xlu0 %v5893, 96
    %v5966 = vpop.permute.xlu0 %5965
    %5969 = vrot.lane.b32.xlu0 %v5939, 112
    %v5970 = vpop.permute.xlu0 %5969
    %v5972 = vsel %vm1958, %v5617, %v5946
    %v5973 = vsel %vm2830, %v5972, %v5950
    %v5974 = vsel %vm2832, %v5973, %v5954
    %v5975 = vsel %vm1152, %v5974, %v5958
    %v5976 = vsel %vm2835, %v5975, %v5962
    %v5977 = vsel %vm2837, %v5976, %v5966
    %v5978 = vsel %vm2839, %v5977, %v5970
    %5980 = vrot.lane.b32.xlu0 %v4968, 112
    %v5981 = vpop.permute.xlu0 %5980
    %5983 = vrot.lane.b32.xlu0 %v4968, 96
    %v5984 = vpop.permute.xlu0 %5983
    %5986 = vrot.lane.b32.xlu0 %v4968, 80
    %v5987 = vpop.permute.xlu0 %5986
    %5989 = vrot.lane.b32.xlu0 %v4968, 64
    %v5990 = vpop.permute.xlu0 %5989
    %5992 = vrot.lane.b32.xlu0 %v4968, 48
    %v5993 = vpop.permute.xlu0 %5992
    %5995 = vrot.lane.b32.xlu0 %v4968, 32
    %v5996 = vpop.permute.xlu0 %5995
    %5998 = vrot.lane.b32.xlu0 %v4968, 16
    %v5999 = vpop.permute.xlu0 %5998
    %v6001 = vmul.f32 %v4968, 0.25
    %v6002 = vmul.f32 %v5981, 0.25
    %v6003 = vmul.f32 %v5984, 0.25
    %v6004 = vmul.f32 %v5987, 0.25
    %v6005 = vmul.f32 %v5990, 0.25
    %v6006 = vmul.f32 %v5993, 0.25
    %v6007 = vmul.f32 %v5996, 0.25
    %v6008 = vmul.f32 %v5999, 0.25
    %6010 = vrot.lane.b32.xlu0 %v4970, 112
    %v6011 = vpop.permute.xlu0 %6010
    %6013 = vrot.lane.b32.xlu0 %v4970, 96
    %v6014 = vpop.permute.xlu0 %6013
    %6016 = vrot.lane.b32.xlu0 %v4970, 80
    %v6017 = vpop.permute.xlu0 %6016
    %6019 = vrot.lane.b32.xlu0 %v4970, 64
    %v6020 = vpop.permute.xlu0 %6019
    %6022 = vrot.lane.b32.xlu0 %v4970, 48
    %v6023 = vpop.permute.xlu0 %6022
    %6025 = vrot.lane.b32.xlu0 %v4970, 32
    %v6026 = vpop.permute.xlu0 %6025
    %6028 = vrot.lane.b32.xlu0 %v4970, 16
    %v6029 = vpop.permute.xlu0 %6028
    %6032 = vrot.lane.b32.xlu0 %v5009, 112
    %v6033 = vpop.permute.xlu0 %6032
    %6035 = vrot.lane.b32.xlu0 %v5009, 96
    %v6036 = vpop.permute.xlu0 %6035
    %6038 = vrot.lane.b32.xlu0 %v5009, 80
    %v6039 = vpop.permute.xlu0 %6038
    %6041 = vrot.lane.b32.xlu0 %v5009, 64
    %v6042 = vpop.permute.xlu0 %6041
    %6044 = vrot.lane.b32.xlu0 %v5009, 48
    %v6045 = vpop.permute.xlu0 %6044
    %6047 = vrot.lane.b32.xlu0 %v5009, 32
    %v6048 = vpop.permute.xlu0 %6047
    %6050 = vrot.lane.b32.xlu0 %v5009, 16
    %v6051 = vpop.permute.xlu0 %6050
    %v6053 = vpack.c.bf16 %v6001, %v6001
    %v6054 = vpack.c.bf16 %v6002, %v6002
    %v6055 = vpack.c.bf16 %v6003, %v6003
    %v6056 = vpack.c.bf16 %v6004, %v6004
    %v6057 = vpack.c.bf16 %v6005, %v6005
    %v6058 = vpack.c.bf16 %v6006, %v6006
    %v6059 = vpack.c.bf16 %v6007, %v6007
    %v6060 = vpack.c.bf16 %v6008, %v6008
    %v6061 = vpack.c.bf16 %v4970, %v4970
    %v6062 = vpack.c.bf16 %v6011, %v6011
    %v6063 = vpack.c.bf16 %v6014, %v6014
    %v6064 = vpack.c.bf16 %v6017, %v6017
    %v6065 = vpack.c.bf16 %v6020, %v6020
    %v6066 = vpack.c.bf16 %v6023, %v6023
    %v6067 = vpack.c.bf16 %v6026, %v6026
    %v6068 = vpack.c.bf16 %v6029, %v6029
    %v6070 = vsel %vm1958, %v6053, 0
    %v6073 = vsel %vm1958, %v6061, 0
    %6075 = vmatprep.subr.bf16.mxu0 0
    %6076 = vmatpush1.bf16.xpose.msra.mxu0 %v6073
    %6077 = vmatprep.subr.bf16.mxu0 0
    %6078 = vmatpush1.bf16.xpose.msra.mxu0 0
    %6079 = vmatprep.subr.bf16.mxu0 0
    %6080 = vmatpush1.bf16.xpose.msra.mxu0 0
    %6081 = vmatprep.subr.bf16.mxu0 0
    %6082 = vmatpush1.bf16.xpose.msra.mxu0 0
    %6083 = vmatprep.subr.bf16.mxu0 0
    %6084 = vmatpush1.bf16.xpose.msra.mxu0 0
    %6085 = vmatprep.subr.bf16.mxu0 0
    %6086 = vmatpush1.bf16.xpose.msra.mxu0 0
    %6087 = vmatprep.subr.bf16.mxu0 0
    %6088 = vmatpush1.bf16.xpose.msra.mxu0 0
    %6089 = vmatprep.subr.bf16.mxu0 0
    %6090 = vmatpush1.bf16.xpose.msra.mxu0 0
    %6091 = vmatprep.subr.bf16.mxu0 0
    %6092 = vmatpush1.bf16.xpose.msra.mxu0 0
    %6093 = vmatprep.subr.bf16.mxu0 0
    %6094 = vmatpush1.bf16.xpose.msra.mxu0 0
    %6095 = vmatprep.subr.bf16.mxu0 0
    %6096 = vmatpush1.bf16.xpose.msra.mxu0 0
    %6097 = vmatprep.subr.bf16.mxu0 0
    %6098 = vmatpush1.bf16.xpose.msra.mxu0 0
    %6099 = vmatprep.subr.bf16.mxu0 0
    %6100 = vmatpush1.bf16.xpose.msra.mxu0 0
    %6101 = vmatprep.subr.bf16.mxu0 0
    %6102 = vmatpush1.bf16.xpose.msra.mxu0 0
    %6103 = vmatprep.subr.bf16.mxu0 0
    %6104 = vmatpush1.bf16.xpose.msra.mxu0 0
    %6105 = vmatprep.subr.bf16.mxu0 0
    %6106 = vmatpush1.bf16.xpose.msra.mxu0 0
    %6107 = vmatprep.mubr.bf16.mxu0 0
    %6108 = vmatmul.mubr.bf16.gmra.mrb[0].mxu0 %v6070
    %v6109 = vpop.f32.mrb[0].mxu0
    %v6110 = vadd.f32 %v990, %v6109
    %v6111 = vpop.f32.mrb[0].mxu0
    %v6112 = vpop.f32.mrb[0].mxu0
    %v6113 = vpop.f32.mrb[0].mxu0
    %6114 = vdwg.mxu0
    %v6116 = vsel %vm1958, %v6054, 0
    %v6119 = vsel %vm1958, %v6062, 0
    %6121 = vmatprep.subr.bf16.mxu0 0
    %6122 = vmatpush1.bf16.xpose.msra.mxu0 %v6119
    %6123 = vmatprep.subr.bf16.mxu0 0
    %6124 = vmatpush1.bf16.xpose.msra.mxu0 0
    %6125 = vmatprep.subr.bf16.mxu0 0
    %6126 = vmatpush1.bf16.xpose.msra.mxu0 0
    %6127 = vmatprep.subr.bf16.mxu0 0
    %6128 = vmatpush1.bf16.xpose.msra.mxu0 0
    %6129 = vmatprep.subr.bf16.mxu0 0
    %6130 = vmatpush1.bf16.xpose.msra.mxu0 0
    %6131 = vmatprep.subr.bf16.mxu0 0
    %6132 = vmatpush1.bf16.xpose.msra.mxu0 0
    %6133 = vmatprep.subr.bf16.mxu0 0
    %6134 = vmatpush1.bf16.xpose.msra.mxu0 0
    %6135 = vmatprep.subr.bf16.mxu0 0
    %6136 = vmatpush1.bf16.xpose.msra.mxu0 0
    %6137 = vmatprep.subr.bf16.mxu0 0
    %6138 = vmatpush1.bf16.xpose.msra.mxu0 0
    %6139 = vmatprep.subr.bf16.mxu0 0
    %6140 = vmatpush1.bf16.xpose.msra.mxu0 0
    %6141 = vmatprep.subr.bf16.mxu0 0
    %6142 = vmatpush1.bf16.xpose.msra.mxu0 0
    %6143 = vmatprep.subr.bf16.mxu0 0
    %6144 = vmatpush1.bf16.xpose.msra.mxu0 0
    %6145 = vmatprep.subr.bf16.mxu0 0
    %6146 = vmatpush1.bf16.xpose.msra.mxu0 0
    %6147 = vmatprep.subr.bf16.mxu0 0
    %6148 = vmatpush1.bf16.xpose.msra.mxu0 0
    %6149 = vmatprep.subr.bf16.mxu0 0
    %6150 = vmatpush1.bf16.xpose.msra.mxu0 0
    %6151 = vmatprep.subr.bf16.mxu0 0
    %6152 = vmatpush1.bf16.xpose.msra.mxu0 0
    %6153 = vmatprep.mubr.bf16.mxu0 0
    %6154 = vmatmul.mubr.bf16.gmra.mrb[0].mxu0 %v6116
    %v6155 = vpop.f32.mrb[0].mxu0
    %v6156 = vadd.f32 %v990, %v6155
    %v6157 = vpop.f32.mrb[0].mxu0
    %v6158 = vpop.f32.mrb[0].mxu0
    %v6159 = vpop.f32.mrb[0].mxu0
    %6160 = vdwg.mxu0
    %v6162 = vsel %vm1958, %v6055, 0
    %v6165 = vsel %vm1958, %v6063, 0
    %6167 = vmatprep.subr.bf16.mxu0 0
    %6168 = vmatpush1.bf16.xpose.msra.mxu0 %v6165
    %6169 = vmatprep.subr.bf16.mxu0 0
    %6170 = vmatpush1.bf16.xpose.msra.mxu0 0
    %6171 = vmatprep.subr.bf16.mxu0 0
    %6172 = vmatpush1.bf16.xpose.msra.mxu0 0
    %6173 = vmatprep.subr.bf16.mxu0 0
    %6174 = vmatpush1.bf16.xpose.msra.mxu0 0
    %6175 = vmatprep.subr.bf16.mxu0 0
    %6176 = vmatpush1.bf16.xpose.msra.mxu0 0
    %6177 = vmatprep.subr.bf16.mxu0 0
    %6178 = vmatpush1.bf16.xpose.msra.mxu0 0
    %6179 = vmatprep.subr.bf16.mxu0 0
    %6180 = vmatpush1.bf16.xpose.msra.mxu0 0
    %6181 = vmatprep.subr.bf16.mxu0 0
    %6182 = vmatpush1.bf16.xpose.msra.mxu0 0
    %6183 = vmatprep.subr.bf16.mxu0 0
    %6184 = vmatpush1.bf16.xpose.msra.mxu0 0
    %6185 = vmatprep.subr.bf16.mxu0 0
    %6186 = vmatpush1.bf16.xpose.msra.mxu0 0
    %6187 = vmatprep.subr.bf16.mxu0 0
    %6188 = vmatpush1.bf16.xpose.msra.mxu0 0
    %6189 = vmatprep.subr.bf16.mxu0 0
    %6190 = vmatpush1.bf16.xpose.msra.mxu0 0
    %6191 = vmatprep.subr.bf16.mxu0 0
    %6192 = vmatpush1.bf16.xpose.msra.mxu0 0
    %6193 = vmatprep.subr.bf16.mxu0 0
    %6194 = vmatpush1.bf16.xpose.msra.mxu0 0
    %6195 = vmatprep.subr.bf16.mxu0 0
    %6196 = vmatpush1.bf16.xpose.msra.mxu0 0
    %6197 = vmatprep.subr.bf16.mxu0 0
    %6198 = vmatpush1.bf16.xpose.msra.mxu0 0
    %6199 = vmatprep.mubr.bf16.mxu0 0
    %6200 = vmatmul.mubr.bf16.gmra.mrb[0].mxu0 %v6162
    %v6201 = vpop.f32.mrb[0].mxu0
    %v6202 = vadd.f32 %v990, %v6201
    %v6203 = vpop.f32.mrb[0].mxu0
    %v6204 = vpop.f32.mrb[0].mxu0
    %v6205 = vpop.f32.mrb[0].mxu0
    %6206 = vdwg.mxu0
    %v6208 = vsel %vm1958, %v6056, 0
    %v6211 = vsel %vm1958, %v6064, 0
    %6213 = vmatprep.subr.bf16.mxu0 0
    %6214 = vmatpush1.bf16.xpose.msra.mxu0 %v6211
    %6215 = vmatprep.subr.bf16.mxu0 0
    %6216 = vmatpush1.bf16.xpose.msra.mxu0 0
    %6217 = vmatprep.subr.bf16.mxu0 0
    %6218 = vmatpush1.bf16.xpose.msra.mxu0 0
    %6219 = vmatprep.subr.bf16.mxu0 0
    %6220 = vmatpush1.bf16.xpose.msra.mxu0 0
    %6221 = vmatprep.subr.bf16.mxu0 0
    %6222 = vmatpush1.bf16.xpose.msra.mxu0 0
    %6223 = vmatprep.subr.bf16.mxu0 0
    %6224 = vmatpush1.bf16.xpose.msra.mxu0 0
    %6225 = vmatprep.subr.bf16.mxu0 0
    %6226 = vmatpush1.bf16.xpose.msra.mxu0 0
    %6227 = vmatprep.subr.bf16.mxu0 0
    %6228 = vmatpush1.bf16.xpose.msra.mxu0 0
    %6229 = vmatprep.subr.bf16.mxu0 0
    %6230 = vmatpush1.bf16.xpose.msra.mxu0 0
    %6231 = vmatprep.subr.bf16.mxu0 0
    %6232 = vmatpush1.bf16.xpose.msra.mxu0 0
    %6233 = vmatprep.subr.bf16.mxu0 0
    %6234 = vmatpush1.bf16.xpose.msra.mxu0 0
    %6235 = vmatprep.subr.bf16.mxu0 0
    %6236 = vmatpush1.bf16.xpose.msra.mxu0 0
    %6237 = vmatprep.subr.bf16.mxu0 0
    %6238 = vmatpush1.bf16.xpose.msra.mxu0 0
    %6239 = vmatprep.subr.bf16.mxu0 0
    %6240 = vmatpush1.bf16.xpose.msra.mxu0 0
    %6241 = vmatprep.subr.bf16.mxu0 0
    %6242 = vmatpush1.bf16.xpose.msra.mxu0 0
    %6243 = vmatprep.subr.bf16.mxu0 0
    %6244 = vmatpush1.bf16.xpose.msra.mxu0 0
    %6245 = vmatprep.mubr.bf16.mxu0 0
    %6246 = vmatmul.mubr.bf16.gmra.mrb[0].mxu0 %v6208
    %v6247 = vpop.f32.mrb[0].mxu0
    %v6248 = vadd.f32 %v990, %v6247
    %v6249 = vpop.f32.mrb[0].mxu0
    %v6250 = vpop.f32.mrb[0].mxu0
    %v6251 = vpop.f32.mrb[0].mxu0
    %6252 = vdwg.mxu0
    %v6254 = vsel %vm1958, %v6057, 0
    %v6257 = vsel %vm1958, %v6065, 0
    %6259 = vmatprep.subr.bf16.mxu0 0
    %6260 = vmatpush1.bf16.xpose.msra.mxu0 %v6257
    %6261 = vmatprep.subr.bf16.mxu0 0
    %6262 = vmatpush1.bf16.xpose.msra.mxu0 0
    %6263 = vmatprep.subr.bf16.mxu0 0
    %6264 = vmatpush1.bf16.xpose.msra.mxu0 0
    %6265 = vmatprep.subr.bf16.mxu0 0
    %6266 = vmatpush1.bf16.xpose.msra.mxu0 0
    %6267 = vmatprep.subr.bf16.mxu0 0
    %6268 = vmatpush1.bf16.xpose.msra.mxu0 0
    %6269 = vmatprep.subr.bf16.mxu0 0
    %6270 = vmatpush1.bf16.xpose.msra.mxu0 0
    %6271 = vmatprep.subr.bf16.mxu0 0
    %6272 = vmatpush1.bf16.xpose.msra.mxu0 0
    %6273 = vmatprep.subr.bf16.mxu0 0
    %6274 = vmatpush1.bf16.xpose.msra.mxu0 0
    %6275 = vmatprep.subr.bf16.mxu0 0
    %6276 = vmatpush1.bf16.xpose.msra.mxu0 0
    %6277 = vmatprep.subr.bf16.mxu0 0
    %6278 = vmatpush1.bf16.xpose.msra.mxu0 0
    %6279 = vmatprep.subr.bf16.mxu0 0
    %6280 = vmatpush1.bf16.xpose.msra.mxu0 0
    %6281 = vmatprep.subr.bf16.mxu0 0
    %6282 = vmatpush1.bf16.xpose.msra.mxu0 0
    %6283 = vmatprep.subr.bf16.mxu0 0
    %6284 = vmatpush1.bf16.xpose.msra.mxu0 0
    %6285 = vmatprep.subr.bf16.mxu0 0
    %6286 = vmatpush1.bf16.xpose.msra.mxu0 0
    %6287 = vmatprep.subr.bf16.mxu0 0
    %6288 = vmatpush1.bf16.xpose.msra.mxu0 0
    %6289 = vmatprep.subr.bf16.mxu0 0
    %6290 = vmatpush1.bf16.xpose.msra.mxu0 0
    %6291 = vmatprep.mubr.bf16.mxu0 0
    %6292 = vmatmul.mubr.bf16.gmra.mrb[0].mxu0 %v6254
    %v6293 = vpop.f32.mrb[0].mxu0
    %v6294 = vadd.f32 %v990, %v6293
    %v6295 = vpop.f32.mrb[0].mxu0
    %v6296 = vpop.f32.mrb[0].mxu0
    %v6297 = vpop.f32.mrb[0].mxu0
    %6298 = vdwg.mxu0
    %v6300 = vsel %vm1958, %v6058, 0
    %v6303 = vsel %vm1958, %v6066, 0
    %6305 = vmatprep.subr.bf16.mxu0 0
    %6306 = vmatpush1.bf16.xpose.msra.mxu0 %v6303
    %6307 = vmatprep.subr.bf16.mxu0 0
    %6308 = vmatpush1.bf16.xpose.msra.mxu0 0
    %6309 = vmatprep.subr.bf16.mxu0 0
    %6310 = vmatpush1.bf16.xpose.msra.mxu0 0
    %6311 = vmatprep.subr.bf16.mxu0 0
    %6312 = vmatpush1.bf16.xpose.msra.mxu0 0
    %6313 = vmatprep.subr.bf16.mxu0 0
    %6314 = vmatpush1.bf16.xpose.msra.mxu0 0
    %6315 = vmatprep.subr.bf16.mxu0 0
    %6316 = vmatpush1.bf16.xpose.msra.mxu0 0
    %6317 = vmatprep.subr.bf16.mxu0 0
    %6318 = vmatpush1.bf16.xpose.msra.mxu0 0
    %6319 = vmatprep.subr.bf16.mxu0 0
    %6320 = vmatpush1.bf16.xpose.msra.mxu0 0
    %6321 = vmatprep.subr.bf16.mxu0 0
    %6322 = vmatpush1.bf16.xpose.msra.mxu0 0
    %6323 = vmatprep.subr.bf16.mxu0 0
    %6324 = vmatpush1.bf16.xpose.msra.mxu0 0
    %6325 = vmatprep.subr.bf16.mxu0 0
    %6326 = vmatpush1.bf16.xpose.msra.mxu0 0
    %6327 = vmatprep.subr.bf16.mxu0 0
    %6328 = vmatpush1.bf16.xpose.msra.mxu0 0
    %6329 = vmatprep.subr.bf16.mxu0 0
    %6330 = vmatpush1.bf16.xpose.msra.mxu0 0
    %6331 = vmatprep.subr.bf16.mxu0 0
    %6332 = vmatpush1.bf16.xpose.msra.mxu0 0
    %6333 = vmatprep.subr.bf16.mxu0 0
    %6334 = vmatpush1.bf16.xpose.msra.mxu0 0
    %6335 = vmatprep.subr.bf16.mxu0 0
    %6336 = vmatpush1.bf16.xpose.msra.mxu0 0
    %6337 = vmatprep.mubr.bf16.mxu0 0
    %6338 = vmatmul.mubr.bf16.gmra.mrb[0].mxu0 %v6300
    %v6339 = vpop.f32.mrb[0].mxu0
    %v6340 = vadd.f32 %v990, %v6339
    %v6341 = vpop.f32.mrb[0].mxu0
    %v6342 = vpop.f32.mrb[0].mxu0
    %v6343 = vpop.f32.mrb[0].mxu0
    %6344 = vdwg.mxu0
    %v6346 = vsel %vm1958, %v6059, 0
    %v6349 = vsel %vm1958, %v6067, 0
    %6351 = vmatprep.subr.bf16.mxu0 0
    %6352 = vmatpush1.bf16.xpose.msra.mxu0 %v6349
    %6353 = vmatprep.subr.bf16.mxu0 0
    %6354 = vmatpush1.bf16.xpose.msra.mxu0 0
    %6355 = vmatprep.subr.bf16.mxu0 0
    %6356 = vmatpush1.bf16.xpose.msra.mxu0 0
    %6357 = vmatprep.subr.bf16.mxu0 0
    %6358 = vmatpush1.bf16.xpose.msra.mxu0 0
    %6359 = vmatprep.subr.bf16.mxu0 0
    %6360 = vmatpush1.bf16.xpose.msra.mxu0 0
    %6361 = vmatprep.subr.bf16.mxu0 0
    %6362 = vmatpush1.bf16.xpose.msra.mxu0 0
    %6363 = vmatprep.subr.bf16.mxu0 0
    %6364 = vmatpush1.bf16.xpose.msra.mxu0 0
    %6365 = vmatprep.subr.bf16.mxu0 0
    %6366 = vmatpush1.bf16.xpose.msra.mxu0 0
    %6367 = vmatprep.subr.bf16.mxu0 0
    %6368 = vmatpush1.bf16.xpose.msra.mxu0 0
    %6369 = vmatprep.subr.bf16.mxu0 0
    %6370 = vmatpush1.bf16.xpose.msra.mxu0 0
    %6371 = vmatprep.subr.bf16.mxu0 0
    %6372 = vmatpush1.bf16.xpose.msra.mxu0 0
    %6373 = vmatprep.subr.bf16.mxu0 0
    %6374 = vmatpush1.bf16.xpose.msra.mxu0 0
    %6375 = vmatprep.subr.bf16.mxu0 0
    %6376 = vmatpush1.bf16.xpose.msra.mxu0 0
    %6377 = vmatprep.subr.bf16.mxu0 0
    %6378 = vmatpush1.bf16.xpose.msra.mxu0 0
    %6379 = vmatprep.subr.bf16.mxu0 0
    %6380 = vmatpush1.bf16.xpose.msra.mxu0 0
    %6381 = vmatprep.subr.bf16.mxu0 0
    %6382 = vmatpush1.bf16.xpose.msra.mxu0 0
    %6383 = vmatprep.mubr.bf16.mxu0 0
    %6384 = vmatmul.mubr.bf16.gmra.mrb[0].mxu0 %v6346
    %v6385 = vpop.f32.mrb[0].mxu0
    %v6386 = vadd.f32 %v990, %v6385
    %v6387 = vpop.f32.mrb[0].mxu0
    %v6388 = vpop.f32.mrb[0].mxu0
    %v6389 = vpop.f32.mrb[0].mxu0
    %6390 = vdwg.mxu0
    %v6392 = vsel %vm1958, %v6060, 0
    %v6395 = vsel %vm1958, %v6068, 0
    %6397 = vmatprep.subr.bf16.mxu0 0
    %6398 = vmatpush1.bf16.xpose.msra.mxu0 %v6395
    %6399 = vmatprep.subr.bf16.mxu0 0
    %6400 = vmatpush1.bf16.xpose.msra.mxu0 0
    %6401 = vmatprep.subr.bf16.mxu0 0
    %6402 = vmatpush1.bf16.xpose.msra.mxu0 0
    %6403 = vmatprep.subr.bf16.mxu0 0
    %6404 = vmatpush1.bf16.xpose.msra.mxu0 0
    %6405 = vmatprep.subr.bf16.mxu0 0
    %6406 = vmatpush1.bf16.xpose.msra.mxu0 0
    %6407 = vmatprep.subr.bf16.mxu0 0
    %6408 = vmatpush1.bf16.xpose.msra.mxu0 0
    %6409 = vmatprep.subr.bf16.mxu0 0
    %6410 = vmatpush1.bf16.xpose.msra.mxu0 0
    %6411 = vmatprep.subr.bf16.mxu0 0
    %6412 = vmatpush1.bf16.xpose.msra.mxu0 0
    %6413 = vmatprep.subr.bf16.mxu0 0
    %6414 = vmatpush1.bf16.xpose.msra.mxu0 0
    %6415 = vmatprep.subr.bf16.mxu0 0
    %6416 = vmatpush1.bf16.xpose.msra.mxu0 0
    %6417 = vmatprep.subr.bf16.mxu0 0
    %6418 = vmatpush1.bf16.xpose.msra.mxu0 0
    %6419 = vmatprep.subr.bf16.mxu0 0
    %6420 = vmatpush1.bf16.xpose.msra.mxu0 0
    %6421 = vmatprep.subr.bf16.mxu0 0
    %6422 = vmatpush1.bf16.xpose.msra.mxu0 0
    %6423 = vmatprep.subr.bf16.mxu0 0
    %6424 = vmatpush1.bf16.xpose.msra.mxu0 0
    %6425 = vmatprep.subr.bf16.mxu0 0
    %6426 = vmatpush1.bf16.xpose.msra.mxu0 0
    %6427 = vmatprep.subr.bf16.mxu0 0
    %6428 = vmatpush1.bf16.xpose.msra.mxu0 0
    %6429 = vmatprep.mubr.bf16.mxu0 0
    %6430 = vmatmul.mubr.bf16.gmra.mrb[0].mxu0 %v6392
    %v6431 = vpop.f32.mrb[0].mxu0
    %v6432 = vadd.f32 %v990, %v6431
    %v6433 = vpop.f32.mrb[0].mxu0
    %v6434 = vpop.f32.mrb[0].mxu0
    %v6435 = vpop.f32.mrb[0].mxu0
    %6436 = vdwg.mxu0
    %v6437 = vsel %vm2327, %v6110, -inf
    %6438 = vmax.xlane.f32.xlu0 %v6437
    %v6439 = vpop.xlane.xlu0 %6438
    %v6440 = vsel %vm2327, %v6156, -inf
    %6441 = vmax.xlane.f32.xlu0 %v6440
    %v6442 = vpop.xlane.xlu0 %6441
    %v6443 = vsel %vm2327, %v6202, -inf
    %6444 = vmax.xlane.f32.xlu0 %v6443
    %v6445 = vpop.xlane.xlu0 %6444
    %v6446 = vsel %vm2327, %v6248, -inf
    %6447 = vmax.xlane.f32.xlu0 %v6446
    %v6448 = vpop.xlane.xlu0 %6447
    %v6449 = vsel %vm2327, %v6294, -inf
    %6450 = vmax.xlane.f32.xlu0 %v6449
    %v6451 = vpop.xlane.xlu0 %6450
    %v6452 = vsel %vm2327, %v6340, -inf
    %6453 = vmax.xlane.f32.xlu0 %v6452
    %v6454 = vpop.xlane.xlu0 %6453
    %v6455 = vsel %vm2327, %v6386, -inf
    %6456 = vmax.xlane.f32.xlu0 %v6455
    %v6457 = vpop.xlane.xlu0 %6456
    %v6458 = vsel %vm2327, %v6432, -inf
    %6459 = vmax.xlane.f32.xlu0 %v6458
    %v6460 = vpop.xlane.xlu0 %6459
    %v6461 = vsub.f32 %v6110, %v6439
    %v6462 = vsub.f32 %v6156, %v6442
    %v6463 = vsub.f32 %v6202, %v6445
    %v6464 = vsub.f32 %v6248, %v6448
    %v6465 = vsub.f32 %v6294, %v6451
    %v6466 = vsub.f32 %v6340, %v6454
    %v6467 = vsub.f32 %v6386, %v6457
    %v6468 = vsub.f32 %v6432, %v6460
    %v6469 = vmul.f32 %v6461, 1.442695
    %v6470 = vpow.pop %v6469
    %v6471 = vmul.f32 %v6462, 1.442695
    %v6472 = vpow.pop %v6471
    %v6473 = vmul.f32 %v6463, 1.442695
    %v6474 = vpow.pop %v6473
    %v6475 = vmul.f32 %v6464, 1.442695
    %v6476 = vpow.pop %v6475
    %v6477 = vmul.f32 %v6465, 1.442695
    %v6478 = vpow.pop %v6477
    %v6479 = vmul.f32 %v6466, 1.442695
    %v6480 = vpow.pop %v6479
    %v6481 = vmul.f32 %v6467, 1.442695
    %v6482 = vpow.pop %v6481
    %v6483 = vmul.f32 %v6468, 1.442695
    %v6484 = vpow.pop %v6483
    %v6485 = vsel %vm2327, %v6470, 0.0
    %6486 = vadd.xlane.f32.xlu0 %v6485
    %v6487 = vpop.xlane.xlu0 %6486
    %v6488 = vsel %vm2327, %v6472, 0.0
    %6489 = vadd.xlane.f32.xlu0 %v6488
    %v6490 = vpop.xlane.xlu0 %6489
    %v6491 = vsel %vm2327, %v6474, 0.0
    %6492 = vadd.xlane.f32.xlu0 %v6491
    %v6493 = vpop.xlane.xlu0 %6492
    %v6494 = vsel %vm2327, %v6476, 0.0
    %6495 = vadd.xlane.f32.xlu0 %v6494
    %v6496 = vpop.xlane.xlu0 %6495
    %v6497 = vsel %vm2327, %v6478, 0.0
    %6498 = vadd.xlane.f32.xlu0 %v6497
    %v6499 = vpop.xlane.xlu0 %6498
    %v6500 = vsel %vm2327, %v6480, 0.0
    %6501 = vadd.xlane.f32.xlu0 %v6500
    %v6502 = vpop.xlane.xlu0 %6501
    %v6503 = vsel %vm2327, %v6482, 0.0
    %6504 = vadd.xlane.f32.xlu0 %v6503
    %v6505 = vpop.xlane.xlu0 %6504
    %v6506 = vsel %vm2327, %v6484, 0.0
    %6507 = vadd.xlane.f32.xlu0 %v6506
    %v6508 = vpop.xlane.xlu0 %6507
    %v6509 = vrcp.pop %v6487
    %v6510 = vrcp.pop %v6490
    %v6511 = vrcp.pop %v6493
    %v6512 = vrcp.pop %v6496
    %v6513 = vrcp.pop %v6499
    %v6514 = vrcp.pop %v6502
    %v6515 = vrcp.pop %v6505
    %v6516 = vrcp.pop %v6508
    %v6517 = vmul.f32 %v6470, %v6509
    %v6518 = vmul.f32 %v6472, %v6510
    %v6519 = vmul.f32 %v6474, %v6511
    %v6520 = vmul.f32 %v6476, %v6512
    %v6521 = vmul.f32 %v6478, %v6513
    %v6522 = vmul.f32 %v6480, %v6514
    %v6523 = vmul.f32 %v6482, %v6515
    %v6524 = vmul.f32 %v6484, %v6516
    %v6525 = vpack.c.bf16 %v6517, %v6517
    %v6526 = vpack.c.bf16 %v6518, %v6518
    %v6527 = vpack.c.bf16 %v6519, %v6519
    %v6528 = vpack.c.bf16 %v6520, %v6520
    %v6529 = vpack.c.bf16 %v6521, %v6521
    %v6530 = vpack.c.bf16 %v6522, %v6522
    %v6531 = vpack.c.bf16 %v6523, %v6523
    %v6532 = vpack.c.bf16 %v6524, %v6524
    %v6533 = vpack.c.bf16 %v5009, %v5009
    %v6534 = vpack.c.bf16 %v6033, %v6033
    %v6535 = vpack.c.bf16 %v6036, %v6036
    %v6536 = vpack.c.bf16 %v6039, %v6039
    %v6537 = vpack.c.bf16 %v6042, %v6042
    %v6538 = vpack.c.bf16 %v6045, %v6045
    %v6539 = vpack.c.bf16 %v6048, %v6048
    %v6540 = vpack.c.bf16 %v6051, %v6051
    %v6542 = vsel %vm2327, %v6525, 0
    %v6545 = vsel %vm2435, %v6533, 0
    %6547 = vmatprep.subr.bf16.mxu0 0
    %6548 = vmatpush1.bf16.msra.mxu0 %v6545
    %6549 = vmatprep.subr.bf16.mxu0 0
    %6550 = vmatpush1.bf16.msra.mxu0 0
    %6551 = vmatprep.subr.bf16.mxu0 0
    %6552 = vmatpush1.bf16.msra.mxu0 0
    %6553 = vmatprep.subr.bf16.mxu0 0
    %6554 = vmatpush1.bf16.msra.mxu0 0
    %6555 = vmatprep.subr.bf16.mxu0 0
    %6556 = vmatpush1.bf16.msra.mxu0 0
    %6557 = vmatprep.subr.bf16.mxu0 0
    %6558 = vmatpush1.bf16.msra.mxu0 0
    %6559 = vmatprep.subr.bf16.mxu0 0
    %6560 = vmatpush1.bf16.msra.mxu0 0
    %6561 = vmatprep.subr.bf16.mxu0 0
    %6562 = vmatpush1.bf16.msra.mxu0 0
    %6563 = vmatprep.subr.bf16.mxu0 0
    %6564 = vmatpush1.bf16.msra.mxu0 0
    %6565 = vmatprep.subr.bf16.mxu0 0
    %6566 = vmatpush1.bf16.msra.mxu0 0
    %6567 = vmatprep.subr.bf16.mxu0 0
    %6568 = vmatpush1.bf16.msra.mxu0 0
    %6569 = vmatprep.subr.bf16.mxu0 0
    %6570 = vmatpush1.bf16.msra.mxu0 0
    %6571 = vmatprep.subr.bf16.mxu0 0
    %6572 = vmatpush1.bf16.msra.mxu0 0
    %6573 = vmatprep.subr.bf16.mxu0 0
    %6574 = vmatpush1.bf16.msra.mxu0 0
    %6575 = vmatprep.subr.bf16.mxu0 0
    %6576 = vmatpush1.bf16.msra.mxu0 0
    %6577 = vmatprep.subr.bf16.mxu0 0
    %6578 = vmatpush1.bf16.msra.mxu0 0
    %6579 = vmatprep.mubr.bf16.mxu0 0
    %6580 = vmatmul.mubr.bf16.gmra.mrb[0].mxu0 %v6542
    %v6581 = vpop.f32.mrb[0].mxu0
    %v6582 = vadd.f32 0.0, %v6581
    %v6583 = vpop.f32.mrb[0].mxu0
    %v6584 = vpop.f32.mrb[0].mxu0
    %v6585 = vpop.f32.mrb[0].mxu0
    %6586 = vdwg.mxu0
    %v6588 = vsel %vm2327, %v6526, 0
    %v6591 = vsel %vm2435, %v6534, 0
    %6593 = vmatprep.subr.bf16.mxu0 0
    %6594 = vmatpush1.bf16.msra.mxu0 %v6591
    %6595 = vmatprep.subr.bf16.mxu0 0
    %6596 = vmatpush1.bf16.msra.mxu0 0
    %6597 = vmatprep.subr.bf16.mxu0 0
    %6598 = vmatpush1.bf16.msra.mxu0 0
    %6599 = vmatprep.subr.bf16.mxu0 0
    %6600 = vmatpush1.bf16.msra.mxu0 0
    %6601 = vmatprep.subr.bf16.mxu0 0
    %6602 = vmatpush1.bf16.msra.mxu0 0
    %6603 = vmatprep.subr.bf16.mxu0 0
    %6604 = vmatpush1.bf16.msra.mxu0 0
    %6605 = vmatprep.subr.bf16.mxu0 0
    %6606 = vmatpush1.bf16.msra.mxu0 0
    %6607 = vmatprep.subr.bf16.mxu0 0
    %6608 = vmatpush1.bf16.msra.mxu0 0
    %6609 = vmatprep.subr.bf16.mxu0 0
    %6610 = vmatpush1.bf16.msra.mxu0 0
    %6611 = vmatprep.subr.bf16.mxu0 0
    %6612 = vmatpush1.bf16.msra.mxu0 0
    %6613 = vmatprep.subr.bf16.mxu0 0
    %6614 = vmatpush1.bf16.msra.mxu0 0
    %6615 = vmatprep.subr.bf16.mxu0 0
    %6616 = vmatpush1.bf16.msra.mxu0 0
    %6617 = vmatprep.subr.bf16.mxu0 0
    %6618 = vmatpush1.bf16.msra.mxu0 0
    %6619 = vmatprep.subr.bf16.mxu0 0
    %6620 = vmatpush1.bf16.msra.mxu0 0
    %6621 = vmatprep.subr.bf16.mxu0 0
    %6622 = vmatpush1.bf16.msra.mxu0 0
    %6623 = vmatprep.subr.bf16.mxu0 0
    %6624 = vmatpush1.bf16.msra.mxu0 0
    %6625 = vmatprep.mubr.bf16.mxu0 0
    %6626 = vmatmul.mubr.bf16.gmra.mrb[0].mxu0 %v6588
    %v6627 = vpop.f32.mrb[0].mxu0
    %v6628 = vadd.f32 0.0, %v6627
    %v6629 = vpop.f32.mrb[0].mxu0
    %v6630 = vpop.f32.mrb[0].mxu0
    %v6631 = vpop.f32.mrb[0].mxu0
    %6632 = vdwg.mxu0
    %v6634 = vsel %vm2327, %v6527, 0
    %v6637 = vsel %vm2435, %v6535, 0
    %6639 = vmatprep.subr.bf16.mxu0 0
    %6640 = vmatpush1.bf16.msra.mxu0 %v6637
    %6641 = vmatprep.subr.bf16.mxu0 0
    %6642 = vmatpush1.bf16.msra.mxu0 0
    %6643 = vmatprep.subr.bf16.mxu0 0
    %6644 = vmatpush1.bf16.msra.mxu0 0
    %6645 = vmatprep.subr.bf16.mxu0 0
    %6646 = vmatpush1.bf16.msra.mxu0 0
    %6647 = vmatprep.subr.bf16.mxu0 0
    %6648 = vmatpush1.bf16.msra.mxu0 0
    %6649 = vmatprep.subr.bf16.mxu0 0
    %6650 = vmatpush1.bf16.msra.mxu0 0
    %6651 = vmatprep.subr.bf16.mxu0 0
    %6652 = vmatpush1.bf16.msra.mxu0 0
    %6653 = vmatprep.subr.bf16.mxu0 0
    %6654 = vmatpush1.bf16.msra.mxu0 0
    %6655 = vmatprep.subr.bf16.mxu0 0
    %6656 = vmatpush1.bf16.msra.mxu0 0
    %6657 = vmatprep.subr.bf16.mxu0 0
    %6658 = vmatpush1.bf16.msra.mxu0 0
    %6659 = vmatprep.subr.bf16.mxu0 0
    %6660 = vmatpush1.bf16.msra.mxu0 0
    %6661 = vmatprep.subr.bf16.mxu0 0
    %6662 = vmatpush1.bf16.msra.mxu0 0
    %6663 = vmatprep.subr.bf16.mxu0 0
    %6664 = vmatpush1.bf16.msra.mxu0 0
    %6665 = vmatprep.subr.bf16.mxu0 0
    %6666 = vmatpush1.bf16.msra.mxu0 0
    %6667 = vmatprep.subr.bf16.mxu0 0
    %6668 = vmatpush1.bf16.msra.mxu0 0
    %6669 = vmatprep.subr.bf16.mxu0 0
    %6670 = vmatpush1.bf16.msra.mxu0 0
    %6671 = vmatprep.mubr.bf16.mxu0 0
    %6672 = vmatmul.mubr.bf16.gmra.mrb[0].mxu0 %v6634
    %v6673 = vpop.f32.mrb[0].mxu0
    %v6674 = vadd.f32 0.0, %v6673
    %v6675 = vpop.f32.mrb[0].mxu0
    %v6676 = vpop.f32.mrb[0].mxu0
    %v6677 = vpop.f32.mrb[0].mxu0
    %6678 = vdwg.mxu0
    %v6680 = vsel %vm2327, %v6528, 0
    %v6683 = vsel %vm2435, %v6536, 0
    %6685 = vmatprep.subr.bf16.mxu0 0
    %6686 = vmatpush1.bf16.msra.mxu0 %v6683
    %6687 = vmatprep.subr.bf16.mxu0 0
    %6688 = vmatpush1.bf16.msra.mxu0 0
    %6689 = vmatprep.subr.bf16.mxu0 0
    %6690 = vmatpush1.bf16.msra.mxu0 0
    %6691 = vmatprep.subr.bf16.mxu0 0
    %6692 = vmatpush1.bf16.msra.mxu0 0
    %6693 = vmatprep.subr.bf16.mxu0 0
    %6694 = vmatpush1.bf16.msra.mxu0 0
    %6695 = vmatprep.subr.bf16.mxu0 0
    %6696 = vmatpush1.bf16.msra.mxu0 0
    %6697 = vmatprep.subr.bf16.mxu0 0
    %6698 = vmatpush1.bf16.msra.mxu0 0
    %6699 = vmatprep.subr.bf16.mxu0 0
    %6700 = vmatpush1.bf16.msra.mxu0 0
    %6701 = vmatprep.subr.bf16.mxu0 0
    %6702 = vmatpush1.bf16.msra.mxu0 0
    %6703 = vmatprep.subr.bf16.mxu0 0
    %6704 = vmatpush1.bf16.msra.mxu0 0
    %6705 = vmatprep.subr.bf16.mxu0 0
    %6706 = vmatpush1.bf16.msra.mxu0 0
    %6707 = vmatprep.subr.bf16.mxu0 0
    %6708 = vmatpush1.bf16.msra.mxu0 0
    %6709 = vmatprep.subr.bf16.mxu0 0
    %6710 = vmatpush1.bf16.msra.mxu0 0
    %6711 = vmatprep.subr.bf16.mxu0 0
    %6712 = vmatpush1.bf16.msra.mxu0 0
    %6713 = vmatprep.subr.bf16.mxu0 0
    %6714 = vmatpush1.bf16.msra.mxu0 0
    %6715 = vmatprep.subr.bf16.mxu0 0
    %6716 = vmatpush1.bf16.msra.mxu0 0
    %6717 = vmatprep.mubr.bf16.mxu0 0
    %6718 = vmatmul.mubr.bf16.gmra.mrb[0].mxu0 %v6680
    %v6719 = vpop.f32.mrb[0].mxu0
    %v6720 = vadd.f32 0.0, %v6719
    %v6721 = vpop.f32.mrb[0].mxu0
    %v6722 = vpop.f32.mrb[0].mxu0
    %v6723 = vpop.f32.mrb[0].mxu0
    %6724 = vdwg.mxu0
    %v6726 = vsel %vm2327, %v6529, 0
    %v6729 = vsel %vm2435, %v6537, 0
    %6731 = vmatprep.subr.bf16.mxu0 0
    %6732 = vmatpush1.bf16.msra.mxu0 %v6729
    %6733 = vmatprep.subr.bf16.mxu0 0
    %6734 = vmatpush1.bf16.msra.mxu0 0
    %6735 = vmatprep.subr.bf16.mxu0 0
    %6736 = vmatpush1.bf16.msra.mxu0 0
    %6737 = vmatprep.subr.bf16.mxu0 0
    %6738 = vmatpush1.bf16.msra.mxu0 0
    %6739 = vmatprep.subr.bf16.mxu0 0
    %6740 = vmatpush1.bf16.msra.mxu0 0
    %6741 = vmatprep.subr.bf16.mxu0 0
    %6742 = vmatpush1.bf16.msra.mxu0 0
    %6743 = vmatprep.subr.bf16.mxu0 0
    %6744 = vmatpush1.bf16.msra.mxu0 0
    %6745 = vmatprep.subr.bf16.mxu0 0
    %6746 = vmatpush1.bf16.msra.mxu0 0
    %6747 = vmatprep.subr.bf16.mxu0 0
    %6748 = vmatpush1.bf16.msra.mxu0 0
    %6749 = vmatprep.subr.bf16.mxu0 0
    %6750 = vmatpush1.bf16.msra.mxu0 0
    %6751 = vmatprep.subr.bf16.mxu0 0
    %6752 = vmatpush1.bf16.msra.mxu0 0
    %6753 = vmatprep.subr.bf16.mxu0 0
    %6754 = vmatpush1.bf16.msra.mxu0 0
    %6755 = vmatprep.subr.bf16.mxu0 0
    %6756 = vmatpush1.bf16.msra.mxu0 0
    %6757 = vmatprep.subr.bf16.mxu0 0
    %6758 = vmatpush1.bf16.msra.mxu0 0
    %6759 = vmatprep.subr.bf16.mxu0 0
    %6760 = vmatpush1.bf16.msra.mxu0 0
    %6761 = vmatprep.subr.bf16.mxu0 0
    %6762 = vmatpush1.bf16.msra.mxu0 0
    %6763 = vmatprep.mubr.bf16.mxu0 0
    %6764 = vmatmul.mubr.bf16.gmra.mrb[0].mxu0 %v6726
    %v6765 = vpop.f32.mrb[0].mxu0
    %v6766 = vadd.f32 0.0, %v6765
    %v6767 = vpop.f32.mrb[0].mxu0
    %v6768 = vpop.f32.mrb[0].mxu0
    %v6769 = vpop.f32.mrb[0].mxu0
    %6770 = vdwg.mxu0
    %v6772 = vsel %vm2327, %v6530, 0
    %v6775 = vsel %vm2435, %v6538, 0
    %6777 = vmatprep.subr.bf16.mxu0 0
    %6778 = vmatpush1.bf16.msra.mxu0 %v6775
    %6779 = vmatprep.subr.bf16.mxu0 0
    %6780 = vmatpush1.bf16.msra.mxu0 0
    %6781 = vmatprep.subr.bf16.mxu0 0
    %6782 = vmatpush1.bf16.msra.mxu0 0
    %6783 = vmatprep.subr.bf16.mxu0 0
    %6784 = vmatpush1.bf16.msra.mxu0 0
    %6785 = vmatprep.subr.bf16.mxu0 0
    %6786 = vmatpush1.bf16.msra.mxu0 0
    %6787 = vmatprep.subr.bf16.mxu0 0
    %6788 = vmatpush1.bf16.msra.mxu0 0
    %6789 = vmatprep.subr.bf16.mxu0 0
    %6790 = vmatpush1.bf16.msra.mxu0 0
    %6791 = vmatprep.subr.bf16.mxu0 0
    %6792 = vmatpush1.bf16.msra.mxu0 0
    %6793 = vmatprep.subr.bf16.mxu0 0
    %6794 = vmatpush1.bf16.msra.mxu0 0
    %6795 = vmatprep.subr.bf16.mxu0 0
    %6796 = vmatpush1.bf16.msra.mxu0 0
    %6797 = vmatprep.subr.bf16.mxu0 0
    %6798 = vmatpush1.bf16.msra.mxu0 0
    %6799 = vmatprep.subr.bf16.mxu0 0
    %6800 = vmatpush1.bf16.msra.mxu0 0
    %6801 = vmatprep.subr.bf16.mxu0 0
    %6802 = vmatpush1.bf16.msra.mxu0 0
    %6803 = vmatprep.subr.bf16.mxu0 0
    %6804 = vmatpush1.bf16.msra.mxu0 0
    %6805 = vmatprep.subr.bf16.mxu0 0
    %6806 = vmatpush1.bf16.msra.mxu0 0
    %6807 = vmatprep.subr.bf16.mxu0 0
    %6808 = vmatpush1.bf16.msra.mxu0 0
    %6809 = vmatprep.mubr.bf16.mxu0 0
    %6810 = vmatmul.mubr.bf16.gmra.mrb[0].mxu0 %v6772
    %v6811 = vpop.f32.mrb[0].mxu0
    %v6812 = vadd.f32 0.0, %v6811
    %v6813 = vpop.f32.mrb[0].mxu0
    %v6814 = vpop.f32.mrb[0].mxu0
    %v6815 = vpop.f32.mrb[0].mxu0
    %6816 = vdwg.mxu0
    %v6818 = vsel %vm2327, %v6531, 0
    %v6821 = vsel %vm2435, %v6539, 0
    %6823 = vmatprep.subr.bf16.mxu0 0
    %6824 = vmatpush1.bf16.msra.mxu0 %v6821
    %6825 = vmatprep.subr.bf16.mxu0 0
    %6826 = vmatpush1.bf16.msra.mxu0 0
    %6827 = vmatprep.subr.bf16.mxu0 0
    %6828 = vmatpush1.bf16.msra.mxu0 0
    %6829 = vmatprep.subr.bf16.mxu0 0
    %6830 = vmatpush1.bf16.msra.mxu0 0
    %6831 = vmatprep.subr.bf16.mxu0 0
    %6832 = vmatpush1.bf16.msra.mxu0 0
    %6833 = vmatprep.subr.bf16.mxu0 0
    %6834 = vmatpush1.bf16.msra.mxu0 0
    %6835 = vmatprep.subr.bf16.mxu0 0
    %6836 = vmatpush1.bf16.msra.mxu0 0
    %6837 = vmatprep.subr.bf16.mxu0 0
    %6838 = vmatpush1.bf16.msra.mxu0 0
    %6839 = vmatprep.subr.bf16.mxu0 0
    %6840 = vmatpush1.bf16.msra.mxu0 0
    %6841 = vmatprep.subr.bf16.mxu0 0
    %6842 = vmatpush1.bf16.msra.mxu0 0
    %6843 = vmatprep.subr.bf16.mxu0 0
    %6844 = vmatpush1.bf16.msra.mxu0 0
    %6845 = vmatprep.subr.bf16.mxu0 0
    %6846 = vmatpush1.bf16.msra.mxu0 0
    %6847 = vmatprep.subr.bf16.mxu0 0
    %6848 = vmatpush1.bf16.msra.mxu0 0
    %6849 = vmatprep.subr.bf16.mxu0 0
    %6850 = vmatpush1.bf16.msra.mxu0 0
    %6851 = vmatprep.subr.bf16.mxu0 0
    %6852 = vmatpush1.bf16.msra.mxu0 0
    %6853 = vmatprep.subr.bf16.mxu0 0
    %6854 = vmatpush1.bf16.msra.mxu0 0
    %6855 = vmatprep.mubr.bf16.mxu0 0
    %6856 = vmatmul.mubr.bf16.gmra.mrb[0].mxu0 %v6818
    %v6857 = vpop.f32.mrb[0].mxu0
    %v6858 = vadd.f32 0.0, %v6857
    %v6859 = vpop.f32.mrb[0].mxu0
    %v6860 = vpop.f32.mrb[0].mxu0
    %v6861 = vpop.f32.mrb[0].mxu0
    %6862 = vdwg.mxu0
    %v6864 = vsel %vm2327, %v6532, 0
    %v6867 = vsel %vm2435, %v6540, 0
    %6869 = vmatprep.subr.bf16.mxu0 0
    %6870 = vmatpush1.bf16.msra.mxu0 %v6867
    %6871 = vmatprep.subr.bf16.mxu0 0
    %6872 = vmatpush1.bf16.msra.mxu0 0
    %6873 = vmatprep.subr.bf16.mxu0 0
    %6874 = vmatpush1.bf16.msra.mxu0 0
    %6875 = vmatprep.subr.bf16.mxu0 0
    %6876 = vmatpush1.bf16.msra.mxu0 0
    %6877 = vmatprep.subr.bf16.mxu0 0
    %6878 = vmatpush1.bf16.msra.mxu0 0
    %6879 = vmatprep.subr.bf16.mxu0 0
    %6880 = vmatpush1.bf16.msra.mxu0 0
    %6881 = vmatprep.subr.bf16.mxu0 0
    %6882 = vmatpush1.bf16.msra.mxu0 0
    %6883 = vmatprep.subr.bf16.mxu0 0
    %6884 = vmatpush1.bf16.msra.mxu0 0
    %6885 = vmatprep.subr.bf16.mxu0 0
    %6886 = vmatpush1.bf16.msra.mxu0 0
    %6887 = vmatprep.subr.bf16.mxu0 0
    %6888 = vmatpush1.bf16.msra.mxu0 0
    %6889 = vmatprep.subr.bf16.mxu0 0
    %6890 = vmatpush1.bf16.msra.mxu0 0
    %6891 = vmatprep.subr.bf16.mxu0 0
    %6892 = vmatpush1.bf16.msra.mxu0 0
    %6893 = vmatprep.subr.bf16.mxu0 0
    %6894 = vmatpush1.bf16.msra.mxu0 0
    %6895 = vmatprep.subr.bf16.mxu0 0
    %6896 = vmatpush1.bf16.msra.mxu0 0
    %6897 = vmatprep.subr.bf16.mxu0 0
    %6898 = vmatpush1.bf16.msra.mxu0 0
    %6899 = vmatprep.subr.bf16.mxu0 0
    %6900 = vmatpush1.bf16.msra.mxu0 0
    %6901 = vmatprep.mubr.bf16.mxu0 0
    %6902 = vmatmul.mubr.bf16.gmra.mrb[0].mxu0 %v6864
    %v6903 = vpop.f32.mrb[0].mxu0
    %v6904 = vadd.f32 0.0, %v6903
    %v6905 = vpop.f32.mrb[0].mxu0
    %v6906 = vpop.f32.mrb[0].mxu0
    %v6907 = vpop.f32.mrb[0].mxu0
    %6908 = vdwg.mxu0
    %6910 = vrot.lane.b32.xlu0 %v6628, 16
    %v6911 = vpop.permute.xlu0 %6910
    %6914 = vrot.lane.b32.xlu0 %v6674, 32
    %v6915 = vpop.permute.xlu0 %6914
    %6918 = vrot.lane.b32.xlu0 %v6720, 48
    %v6919 = vpop.permute.xlu0 %6918
    %6922 = vrot.lane.b32.xlu0 %v6766, 64
    %v6923 = vpop.permute.xlu0 %6922
    %6926 = vrot.lane.b32.xlu0 %v6812, 80
    %v6927 = vpop.permute.xlu0 %6926
    %6930 = vrot.lane.b32.xlu0 %v6858, 96
    %v6931 = vpop.permute.xlu0 %6930
    %6934 = vrot.lane.b32.xlu0 %v6904, 112
    %v6935 = vpop.permute.xlu0 %6934
    %v6937 = vsel %vm1958, %v6582, %v6911
    %v6938 = vsel %vm2830, %v6937, %v6915
    %v6939 = vsel %vm2832, %v6938, %v6919
    %v6940 = vsel %vm1152, %v6939, %v6923
    %v6941 = vsel %vm2835, %v6940, %v6927
    %v6942 = vsel %vm2837, %v6941, %v6931
    %v6943 = vsel %vm2839, %v6942, %v6935
    %v6944 = vpack.c.bf16 %v5978, %v5978
    %v6945 = vpack.c.bf16 %v6943, %v6943
    %v6948 = vlaneseq
    %v6949 = vshrl.u32 %v6948, 7
    %v6950 = vsub.s32 0, %v6949
    %v6951 = vrot.slane %v4740, %v6950
    %v6952 = vlaneseq
    %v6953 = vshrl.u32 %v6952, 7
    %v6954 = vsub.s32 0, %v6953
    %v6955 = vrot.slane %v4741, %v6954
    %6958 = vmatprep.subr.bf16.mxu0 0
    %6959 = vmatpush1.bf16.msra.mxu0 %v4724
    %6960 = vmatprep.subr.bf16.mxu0 0
    %6961 = vmatpush1.bf16.msra.mxu0 %v4725
    %6962 = vmatprep.subr.bf16.mxu0 0
    %6963 = vmatpush1.bf16.msra.mxu0 %v4726
    %6964 = vmatprep.subr.bf16.mxu0 0
    %6965 = vmatpush1.bf16.msra.mxu0 %v4727
    %6966 = vmatprep.subr.bf16.mxu0 0
    %6967 = vmatpush1.bf16.msra.mxu0 %v4728
    %6968 = vmatprep.subr.bf16.mxu0 0
    %6969 = vmatpush1.bf16.msra.mxu0 %v4729
    %6970 = vmatprep.subr.bf16.mxu0 0
    %6971 = vmatpush1.bf16.msra.mxu0 %v4730
    %6972 = vmatprep.subr.bf16.mxu0 0
    %6973 = vmatpush1.bf16.msra.mxu0 %v4731
    %6974 = vmatprep.subr.bf16.mxu0 0
    %6975 = vmatpush1.bf16.msra.mxu0 0
    %6976 = vmatprep.subr.bf16.mxu0 0
    %6977 = vmatpush1.bf16.msra.mxu0 0
    %6978 = vmatprep.subr.bf16.mxu0 0
    %6979 = vmatpush1.bf16.msra.mxu0 0
    %6980 = vmatprep.subr.bf16.mxu0 0
    %6981 = vmatpush1.bf16.msra.mxu0 0
    %6982 = vmatprep.subr.bf16.mxu0 0
    %6983 = vmatpush1.bf16.msra.mxu0 0
    %6984 = vmatprep.subr.bf16.mxu0 0
    %6985 = vmatpush1.bf16.msra.mxu0 0
    %6986 = vmatprep.subr.bf16.mxu0 0
    %6987 = vmatpush1.bf16.msra.mxu0 0
    %6988 = vmatprep.subr.bf16.mxu0 0
    %6989 = vmatpush1.bf16.msra.mxu0 0
    %6990 = vmatprep.mubr.bf16.mxu0 0
    %6991 = vmatmul.mubr.bf16.gmra.mrb[0].mxu0 %v6944
    %v6992 = vpop.f32.mrb[0].mxu0
    %v6993 = vadd.f32 %v6951, %v6992
    %v6994 = vpop.f32.mrb[0].mxu0
    %v6995 = vpop.f32.mrb[0].mxu0
    %v6996 = vpop.f32.mrb[0].mxu0
    %6997 = vdwg.mxu0
    %6998 = vmatprep.subr.bf16.mxu0 0
    %6999 = vmatpush1.bf16.msra.mxu0 %v4732
    %7000 = vmatprep.subr.bf16.mxu0 0
    %7001 = vmatpush1.bf16.msra.mxu0 %v4733
    %7002 = vmatprep.subr.bf16.mxu0 0
    %7003 = vmatpush1.bf16.msra.mxu0 %v4734
    %7004 = vmatprep.subr.bf16.mxu0 0
    %7005 = vmatpush1.bf16.msra.mxu0 %v4735
    %7006 = vmatprep.subr.bf16.mxu0 0
    %7007 = vmatpush1.bf16.msra.mxu0 %v4736
    %7008 = vmatprep.subr.bf16.mxu0 0
    %7009 = vmatpush1.bf16.msra.mxu0 %v4737
    %7010 = vmatprep.subr.bf16.mxu0 0
    %7011 = vmatpush1.bf16.msra.mxu0 %v4738
    %7012 = vmatprep.subr.bf16.mxu0 0
    %7013 = vmatpush1.bf16.msra.mxu0 %v4739
    %7014 = vmatprep.subr.bf16.mxu0 0
    %7015 = vmatpush1.bf16.msra.mxu0 0
    %7016 = vmatprep.subr.bf16.mxu0 0
    %7017 = vmatpush1.bf16.msra.mxu0 0
    %7018 = vmatprep.subr.bf16.mxu0 0
    %7019 = vmatpush1.bf16.msra.mxu0 0
    %7020 = vmatprep.subr.bf16.mxu0 0
    %7021 = vmatpush1.bf16.msra.mxu0 0
    %7022 = vmatprep.subr.bf16.mxu0 0
    %7023 = vmatpush1.bf16.msra.mxu0 0
    %7024 = vmatprep.subr.bf16.mxu0 0
    %7025 = vmatpush1.bf16.msra.mxu0 0
    %7026 = vmatprep.subr.bf16.mxu0 0
    %7027 = vmatpush1.bf16.msra.mxu0 0
    %7028 = vmatprep.subr.bf16.mxu0 0
    %7029 = vmatpush1.bf16.msra.mxu0 0
    %7030 = vmatprep.mubr.bf16.mxu0 0
    %7031 = vmatmul.mubr.bf16.gmra.mrb[0].mxu0 %v6945
    %v7032 = vpop.f32.mrb[0].mxu0
    %v7033 = vadd.f32 %v6955, %v7032
    %v7034 = vpop.f32.mrb[0].mxu0
    %v7035 = vpop.f32.mrb[0].mxu0
    %v7036 = vpop.f32.mrb[0].mxu0
    %7037 = vdwg.mxu0
    %v7038 = vadd.f32 %v4657, %v6993
    %v7039 = vadd.f32 %v4658, %v7033
    %7040 = vadd.xlane.f32.xlu0 %v7038
    %v7041 = vpop.xlane.xlu0 %7040
    %7042 = vadd.xlane.f32.xlu0 %v7039
    %v7043 = vpop.xlane.xlu0 %7042
    %v7044 = vmul.f32 %v7041, %v4002
    %v7045 = vmul.f32 %v7043, %v4002
    %v7046 = vsub.f32 %v7038, %v7044
    %v7047 = vsub.f32 %v7039, %v7045
    %v7048 = vmul.f32 %v7046, %v7046
    %v7049 = vmul.f32 %v7047, %v7047
    %7050 = vadd.xlane.f32.xlu0 %v7048
    %v7051 = vpop.xlane.xlu0 %7050
    %7052 = vadd.xlane.f32.xlu0 %v7049
    %v7053 = vpop.xlane.xlu0 %7052
    %v7054 = vmul.f32 %v7051, %v4002
    %v7055 = vmul.f32 %v7053, %v4002
    %v7056 = vadd.f32 %v7054, 1e-05
    %v7057 = vadd.f32 %v7055, 1e-05
    %v7058 = vrsqrt.pop %v7056
    %v7059 = vrsqrt.pop %v7057
    %v7060 = vmul.f32 %v7046, %v7058
    %v7061 = vmul.f32 %v7047, %v7059
    %v7064 = vlaneseq
    %v7065 = vshrl.u32 %v7064, 7
    %v7066 = vsub.s32 0, %v7065
    %v7067 = vrot.slane %v4810, %v7066
    %v7068 = vlaneseq
    %v7069 = vshrl.u32 %v7068, 7
    %v7070 = vsub.s32 0, %v7069
    %v7071 = vrot.slane %v4811, %v7070
    %v7074 = vmul.f32 %v7060, %v7067
    %v7075 = vmul.f32 %v7061, %v7071
    %v7078 = vlaneseq
    %v7079 = vshrl.u32 %v7078, 7
    %v7080 = vsub.s32 0, %v7079
    %v7081 = vrot.slane %v4812, %v7080
    %v7082 = vlaneseq
    %v7083 = vshrl.u32 %v7082, 7
    %v7084 = vsub.s32 0, %v7083
    %v7085 = vrot.slane %v4813, %v7084
    %v7088 = vadd.f32 %v7074, %v7081
    %v7089 = vadd.f32 %v7075, %v7085
    %v7090 = vpack.c.bf16 %v7088, %v7088
    %v7091 = vpack.c.bf16 %v7089, %v7089
    %v7094 = vlaneseq
    %v7095 = vshrl.u32 %v7094, 7
    %v7096 = vsub.s32 0, %v7095
    %v7097 = vrot.slane %v4774, %v7096
    %v7098 = vlaneseq
    %v7099 = vshrl.u32 %v7098, 7
    %v7100 = vsub.s32 1, %v7099
    %v7101 = vrot.slane %v4774, %v7100
    %v7102 = vlaneseq
    %v7103 = vshrl.u32 %v7102, 7
    %v7104 = vsub.s32 0, %v7103
    %v7105 = vrot.slane %v4775, %v7104
    %v7106 = vlaneseq
    %v7107 = vshrl.u32 %v7106, 7
    %v7108 = vsub.s32 1, %v7107
    %v7109 = vrot.slane %v4775, %v7108
    %7114 = vmatprep.subr.bf16.mxu0 %v4743
    %7115 = vmatpush1.bf16.msra.mxu0 %v4742
    %7116 = vmatprep.subr.bf16.mxu0 %v4745
    %7117 = vmatpush1.bf16.msra.mxu0 %v4744
    %7118 = vmatprep.subr.bf16.mxu0 %v4747
    %7119 = vmatpush1.bf16.msra.mxu0 %v4746
    %7120 = vmatprep.subr.bf16.mxu0 %v4749
    %7121 = vmatpush1.bf16.msra.mxu0 %v4748
    %7122 = vmatprep.subr.bf16.mxu0 %v4751
    %7123 = vmatpush1.bf16.msra.mxu0 %v4750
    %7124 = vmatprep.subr.bf16.mxu0 %v4753
    %7125 = vmatpush1.bf16.msra.mxu0 %v4752
    %7126 = vmatprep.subr.bf16.mxu0 %v4755
    %7127 = vmatpush1.bf16.msra.mxu0 %v4754
    %7128 = vmatprep.subr.bf16.mxu0 %v4757
    %7129 = vmatpush1.bf16.msra.mxu0 %v4756
    %7130 = vmatprep.subr.bf16.mxu0 0
    %7131 = vmatpush1.bf16.msra.mxu0 0
    %7132 = vmatprep.subr.bf16.mxu0 0
    %7133 = vmatpush1.bf16.msra.mxu0 0
    %7134 = vmatprep.subr.bf16.mxu0 0
    %7135 = vmatpush1.bf16.msra.mxu0 0
    %7136 = vmatprep.subr.bf16.mxu0 0
    %7137 = vmatpush1.bf16.msra.mxu0 0
    %7138 = vmatprep.subr.bf16.mxu0 0
    %7139 = vmatpush1.bf16.msra.mxu0 0
    %7140 = vmatprep.subr.bf16.mxu0 0
    %7141 = vmatpush1.bf16.msra.mxu0 0
    %7142 = vmatprep.subr.bf16.mxu0 0
    %7143 = vmatpush1.bf16.msra.mxu0 0
    %7144 = vmatprep.subr.bf16.mxu0 0
    %7145 = vmatpush1.bf16.msra.mxu0 0
    %7146 = vmatprep.mubr.bf16.mxu0 0
    %7147 = vmatmul.mubr.bf16.gmra.mrb[0].mxu0 %v7090
    %v7148 = vpop.f32.mrb[0].mxu0
    %v7149 = vadd.f32 %v7097, %v7148
    %v7150 = vpop.f32.mrb[0].mxu0
    %v7151 = vadd.f32 %v7101, %v7150
    %v7152 = vpop.f32.mrb[0].mxu0
    %v7153 = vpop.f32.mrb[0].mxu0
    %7154 = vdwg.mxu0
    %7155 = vmatprep.subr.bf16.mxu0 %v4759
    %7156 = vmatpush1.bf16.msra.mxu0 %v4758
    %7157 = vmatprep.subr.bf16.mxu0 %v4761
    %7158 = vmatpush1.bf16.msra.mxu0 %v4760
    %7159 = vmatprep.subr.bf16.mxu0 %v4763
    %7160 = vmatpush1.bf16.msra.mxu0 %v4762
    %7161 = vmatprep.subr.bf16.mxu0 %v4765
    %7162 = vmatpush1.bf16.msra.mxu0 %v4764
    %7163 = vmatprep.subr.bf16.mxu0 %v4767
    %7164 = vmatpush1.bf16.msra.mxu0 %v4766
    %7165 = vmatprep.subr.bf16.mxu0 %v4769
    %7166 = vmatpush1.bf16.msra.mxu0 %v4768
    %7167 = vmatprep.subr.bf16.mxu0 %v4771
    %7168 = vmatpush1.bf16.msra.mxu0 %v4770
    %7169 = vmatprep.subr.bf16.mxu0 %v4773
    %7170 = vmatpush1.bf16.msra.mxu0 %v4772
    %7171 = vmatprep.subr.bf16.mxu0 0
    %7172 = vmatpush1.bf16.msra.mxu0 0
    %7173 = vmatprep.subr.bf16.mxu0 0
    %7174 = vmatpush1.bf16.msra.mxu0 0
    %7175 = vmatprep.subr.bf16.mxu0 0
    %7176 = vmatpush1.bf16.msra.mxu0 0
    %7177 = vmatprep.subr.bf16.mxu0 0
    %7178 = vmatpush1.bf16.msra.mxu0 0
    %7179 = vmatprep.subr.bf16.mxu0 0
    %7180 = vmatpush1.bf16.msra.mxu0 0
    %7181 = vmatprep.subr.bf16.mxu0 0
    %7182 = vmatpush1.bf16.msra.mxu0 0
    %7183 = vmatprep.subr.bf16.mxu0 0
    %7184 = vmatpush1.bf16.msra.mxu0 0
    %7185 = vmatprep.subr.bf16.mxu0 0
    %7186 = vmatpush1.bf16.msra.mxu0 0
    %7187 = vmatprep.mubr.bf16.mxu0 0
    %7188 = vmatmul.mubr.bf16.gmra.mrb[0].mxu0 %v7091
    %v7189 = vpop.f32.mrb[0].mxu0
    %v7190 = vadd.f32 %v7105, %v7189
    %v7191 = vpop.f32.mrb[0].mxu0
    %v7192 = vadd.f32 %v7109, %v7191
    %v7193 = vpop.f32.mrb[0].mxu0
    %v7194 = vpop.f32.mrb[0].mxu0
    %7195 = vdwg.mxu0
    %v7196 = vmax.f32 %v7149, 0.0
    %v7197 = vmax.f32 %v7151, 0.0
    %v7198 = vmax.f32 %v7190, 0.0
    %v7199 = vmax.f32 %v7192, 0.0
    %v7200 = vpack.c.bf16 %v7196, %v7196
    %v7201 = vpack.c.bf16 %v7197, %v7197
    %v7202 = vpack.c.bf16 %v7198, %v7198
    %v7203 = vpack.c.bf16 %v7199, %v7199
    %v7206 = vlaneseq
    %v7207 = vshrl.u32 %v7206, 7
    %v7208 = vsub.s32 0, %v7207
    %v7209 = vrot.slane %v4808, %v7208
    %v7210 = vlaneseq
    %v7211 = vshrl.u32 %v7210, 7
    %v7212 = vsub.s32 0, %v7211
    %v7213 = vrot.slane %v4809, %v7212
    %7216 = vmatprep.subr.bf16.mxu0 0
    %7217 = vmatpush1.bf16.msra.mxu0 %v4776
    %7218 = vmatprep.subr.bf16.mxu0 0
    %7219 = vmatpush1.bf16.msra.mxu0 %v4777
    %7220 = vmatprep.subr.bf16.mxu0 0
    %7221 = vmatpush1.bf16.msra.mxu0 %v4778
    %7222 = vmatprep.subr.bf16.mxu0 0
    %7223 = vmatpush1.bf16.msra.mxu0 %v4779
    %7224 = vmatprep.subr.bf16.mxu0 0
    %7225 = vmatpush1.bf16.msra.mxu0 %v4780
    %7226 = vmatprep.subr.bf16.mxu0 0
    %7227 = vmatpush1.bf16.msra.mxu0 %v4781
    %7228 = vmatprep.subr.bf16.mxu0 0
    %7229 = vmatpush1.bf16.msra.mxu0 %v4782
    %7230 = vmatprep.subr.bf16.mxu0 0
    %7231 = vmatpush1.bf16.msra.mxu0 %v4783
    %7232 = vmatprep.subr.bf16.mxu0 0
    %7233 = vmatpush1.bf16.msra.mxu0 %v4784
    %7234 = vmatprep.subr.bf16.mxu0 0
    %7235 = vmatpush1.bf16.msra.mxu0 %v4785
    %7236 = vmatprep.subr.bf16.mxu0 0
    %7237 = vmatpush1.bf16.msra.mxu0 %v4786
    %7238 = vmatprep.subr.bf16.mxu0 0
    %7239 = vmatpush1.bf16.msra.mxu0 %v4787
    %7240 = vmatprep.subr.bf16.mxu0 0
    %7241 = vmatpush1.bf16.msra.mxu0 %v4788
    %7242 = vmatprep.subr.bf16.mxu0 0
    %7243 = vmatpush1.bf16.msra.mxu0 %v4789
    %7244 = vmatprep.subr.bf16.mxu0 0
    %7245 = vmatpush1.bf16.msra.mxu0 %v4790
    %7246 = vmatprep.subr.bf16.mxu0 0
    %7247 = vmatpush1.bf16.msra.mxu0 %v4791
    %7248 = vmatprep.mubr.bf16.mxu0 %v7201
    %7249 = vmatmul.mubr.bf16.gmra.mrb[0].mxu0 %v7200
    %v7250 = vpop.f32.mrb[0].mxu0
    %v7251 = vadd.f32 %v7209, %v7250
    %v7252 = vpop.f32.mrb[0].mxu0
    %v7253 = vpop.f32.mrb[0].mxu0
    %v7254 = vpop.f32.mrb[0].mxu0
    %7255 = vdwg.mxu0
    %7256 = vmatprep.subr.bf16.mxu0 0
    %7257 = vmatpush1.bf16.msra.mxu0 %v4792
    %7258 = vmatprep.subr.bf16.mxu0 0
    %7259 = vmatpush1.bf16.msra.mxu0 %v4793
    %7260 = vmatprep.subr.bf16.mxu0 0
    %7261 = vmatpush1.bf16.msra.mxu0 %v4794
    %7262 = vmatprep.subr.bf16.mxu0 0
    %7263 = vmatpush1.bf16.msra.mxu0 %v4795
    %7264 = vmatprep.subr.bf16.mxu0 0
    %7265 = vmatpush1.bf16.msra.mxu0 %v4796
    %7266 = vmatprep.subr.bf16.mxu0 0
    %7267 = vmatpush1.bf16.msra.mxu0 %v4797
    %7268 = vmatprep.subr.bf16.mxu0 0
    %7269 = vmatpush1.bf16.msra.mxu0 %v4798
    %7270 = vmatprep.subr.bf16.mxu0 0
    %7271 = vmatpush1.bf16.msra.mxu0 %v4799
    %7272 = vmatprep.subr.bf16.mxu0 0
    %7273 = vmatpush1.bf16.msra.mxu0 %v4800
    %7274 = vmatprep.subr.bf16.mxu0 0
    %7275 = vmatpush1.bf16.msra.mxu0 %v4801
    %7276 = vmatprep.subr.bf16.mxu0 0
    %7277 = vmatpush1.bf16.msra.mxu0 %v4802
    %7278 = vmatprep.subr.bf16.mxu0 0
    %7279 = vmatpush1.bf16.msra.mxu0 %v4803
    %7280 = vmatprep.subr.bf16.mxu0 0
    %7281 = vmatpush1.bf16.msra.mxu0 %v4804
    %7282 = vmatprep.subr.bf16.mxu0 0
    %7283 = vmatpush1.bf16.msra.mxu0 %v4805
    %7284 = vmatprep.subr.bf16.mxu0 0
    %7285 = vmatpush1.bf16.msra.mxu0 %v4806
    %7286 = vmatprep.subr.bf16.mxu0 0
    %7287 = vmatpush1.bf16.msra.mxu0 %v4807
    %7288 = vmatprep.mubr.bf16.mxu0 %v7203
    %7289 = vmatmul.mubr.bf16.gmra.mrb[0].mxu0 %v7202
    %v7290 = vpop.f32.mrb[0].mxu0
    %v7291 = vadd.f32 %v7213, %v7290
    %v7292 = vpop.f32.mrb[0].mxu0
    %v7293 = vpop.f32.mrb[0].mxu0
    %v7294 = vpop.f32.mrb[0].mxu0
    %7295 = vdwg.mxu0
    %v7296 = vadd.f32 %v7088, %v7251
    %v7297 = vadd.f32 %v7089, %v7291
    %7298 = vadd.xlane.f32.xlu0 %v7296
    %v7299 = vpop.xlane.xlu0 %7298
    %7300 = vadd.xlane.f32.xlu0 %v7297
    %v7301 = vpop.xlane.xlu0 %7300
    %v7302 = vmul.f32 %v7299, %v4002
    %v7303 = vmul.f32 %v7301, %v4002
    %v7304 = vsub.f32 %v7296, %v7302
    %v7305 = vsub.f32 %v7297, %v7303
    %v7306 = vmul.f32 %v7304, %v7304
    %v7307 = vmul.f32 %v7305, %v7305
    %7308 = vadd.xlane.f32.xlu0 %v7306
    %v7309 = vpop.xlane.xlu0 %7308
    %7310 = vadd.xlane.f32.xlu0 %v7307
    %v7311 = vpop.xlane.xlu0 %7310
    %v7312 = vmul.f32 %v7309, %v4002
    %v7313 = vmul.f32 %v7311, %v4002
    %v7314 = vadd.f32 %v7312, 1e-05
    %v7315 = vadd.f32 %v7313, 1e-05
    %v7316 = vrsqrt.pop %v7314
    %v7317 = vrsqrt.pop %v7315
    %v7318 = vmul.f32 %v7304, %v7316
    %v7319 = vmul.f32 %v7305, %v7317
    %v7322 = vlaneseq
    %v7323 = vshrl.u32 %v7322, 7
    %v7324 = vsub.s32 0, %v7323
    %v7325 = vrot.slane %v4814, %v7324
    %v7326 = vlaneseq
    %v7327 = vshrl.u32 %v7326, 7
    %v7328 = vsub.s32 0, %v7327
    %v7329 = vrot.slane %v4815, %v7328
    %v7332 = vmul.f32 %v7318, %v7325
    %v7333 = vmul.f32 %v7319, %v7329
    %v7336 = vlaneseq
    %v7337 = vshrl.u32 %v7336, 7
    %v7338 = vsub.s32 0, %v7337
    %v7339 = vrot.slane %v4816, %v7338
    %v7340 = vlaneseq
    %v7341 = vshrl.u32 %v7340, 7
    %v7342 = vsub.s32 0, %v7341
    %v7343 = vrot.slane %v4817, %v7342
    %v7346 = vadd.f32 %v7332, %v7339
    %v7347 = vadd.f32 %v7333, %v7343
    %v7349 = vrot.slane %v7346, 4
    %v7351 = vsel %vm2435, %v7347, %v7349
    %s7352 = smul.u32 4, 16
    %s7353 = smul.u32 %s7352, 3
    %s7354 = sshll.u32 %s7353, 4
    %7355 = dma.done %s747, %s7354
    %s7356 = smul.u32 %s7352, 1
    %s7357 = sshll.u32 %s7356, 4
    %7358 = dma.done %s782, %s7357
    %v7359 = vpack.c.bf16 %v7349, %v7351
    %v7360 = vld [vmem:[#allocation6] sm:$0xff]
    %v7361 = vld [vmem:[#allocation6 + $0x8] sm:$0xff]
    %v7362 = vld [vmem:[#allocation6 + $0x10] sm:$0xff]
    %v7363 = vld [vmem:[#allocation6 + $0x18] sm:$0xff]
    %v7364 = vld [vmem:[#allocation6 + $0x20] sm:$0xff]
    %v7365 = vld [vmem:[#allocation6 + $0x28] sm:$0xff]
    %v7366 = vld [vmem:[#allocation6 + $0x30] sm:$0xff]
    %v7367 = vld [vmem:[#allocation6 + $0x38] sm:$0xff]
    %v7368 = vld [vmem:[#allocation6 + $0x40] sm:$0xff]
    %v7369 = vld [vmem:[#allocation6 + $0x48] sm:$0xff]
    %v7370 = vld [vmem:[#allocation6 + $0x50] sm:$0xff]
    %v7371 = vld [vmem:[#allocation6 + $0x58] sm:$0xff]
    %v7372 = vld [vmem:[#allocation6 + $0x60] sm:$0xff]
    %v7373 = vld [vmem:[#allocation6 + $0x68] sm:$0xff]
    %v7374 = vld [vmem:[#allocation6 + $0x70] sm:$0xff]
    %v7375 = vld [vmem:[#allocation6 + $0x78] sm:$0xff]
    %v7376 = vld [vmem:[#allocation6 + $0x80] sm:$0xff]
    %v7377 = vld [vmem:[#allocation6 + $0x88] sm:$0xff]
    %v7378 = vld [vmem:[#allocation6 + $0x90] sm:$0xff]
    %v7379 = vld [vmem:[#allocation6 + $0x98] sm:$0xff]
    %v7380 = vld [vmem:[#allocation6 + $0xa0] sm:$0xff]
    %v7381 = vld [vmem:[#allocation6 + $0xa8] sm:$0xff]
    %v7382 = vld [vmem:[#allocation6 + $0xb0] sm:$0xff]
    %v7383 = vld [vmem:[#allocation6 + $0xb8] sm:$0xff]
    %v7384 = vld [vmem:[#allocation33] sm:$0x7]
    %v7386 = vlaneseq
    %v7387 = vshrl.u32 %v7386, 7
    %v7388 = vsub.s32 0, %v7387
    %v7389 = vrot.slane %v7384, %v7388
    %v7390 = vlaneseq
    %v7391 = vshrl.u32 %v7390, 7
    %v7392 = vsub.s32 1, %v7391
    %v7393 = vrot.slane %v7384, %v7392
    %v7394 = vlaneseq
    %v7395 = vshrl.u32 %v7394, 7
    %v7396 = vsub.s32 2, %v7395
    %v7397 = vrot.slane %v7384, %v7396
    %7401 = vmatprep.subr.bf16.mxu0 %v7361
    %7402 = vmatpush1.bf16.msra.mxu0 %v7360
    %7403 = vmatprep.subr.bf16.mxu0 %v7364
    %7404 = vmatpush1.bf16.msra.mxu0 %v7363
    %7405 = vmatprep.subr.bf16.mxu0 %v7367
    %7406 = vmatpush1.bf16.msra.mxu0 %v7366
    %7407 = vmatprep.subr.bf16.mxu0 %v7370
    %7408 = vmatpush1.bf16.msra.mxu0 %v7369
    %7409 = vmatprep.subr.bf16.mxu0 %v7373
    %7410 = vmatpush1.bf16.msra.mxu0 %v7372
    %7411 = vmatprep.subr.bf16.mxu0 %v7376
    %7412 = vmatpush1.bf16.msra.mxu0 %v7375
    %7413 = vmatprep.subr.bf16.mxu0 %v7379
    %7414 = vmatpush1.bf16.msra.mxu0 %v7378
    %7415 = vmatprep.subr.bf16.mxu0 %v7382
    %7416 = vmatpush1.bf16.msra.mxu0 %v7381
    %7417 = vmatprep.subr.bf16.mxu0 0
    %7418 = vmatpush1.bf16.msra.mxu0 0
    %7419 = vmatprep.subr.bf16.mxu0 0
    %7420 = vmatpush1.bf16.msra.mxu0 0
    %7421 = vmatprep.subr.bf16.mxu0 0
    %7422 = vmatpush1.bf16.msra.mxu0 0
    %7423 = vmatprep.subr.bf16.mxu0 0
    %7424 = vmatpush1.bf16.msra.mxu0 0
    %7425 = vmatprep.subr.bf16.mxu0 0
    %7426 = vmatpush1.bf16.msra.mxu0 0
    %7427 = vmatprep.subr.bf16.mxu0 0
    %7428 = vmatpush1.bf16.msra.mxu0 0
    %7429 = vmatprep.subr.bf16.mxu0 0
    %7430 = vmatpush1.bf16.msra.mxu0 0
    %7431 = vmatprep.subr.bf16.mxu0 0
    %7432 = vmatpush1.bf16.msra.mxu0 0
    %7433 = vmatprep.mubr.bf16.mxu0 0
    %7434 = vmatmul.mubr.bf16.gmra.mrb[0].mxu0 %v7359
    %v7435 = vpop.f32.mrb[0].mxu0
    %v7436 = vadd.f32 %v7389, %v7435
    %v7437 = vpop.f32.mrb[0].mxu0
    %v7438 = vadd.f32 %v7393, %v7437
    %v7439 = vpop.f32.mrb[0].mxu0
    %v7440 = vadd.f32 %v7389, %v7439
    %v7441 = vpop.f32.mrb[0].mxu0
    %v7442 = vadd.f32 %v7393, %v7441
    %7443 = vdwg.mxu0
    %7444 = vmatprep.subr.bf16.mxu0 0
    %7445 = vmatpush1.bf16.msra.mxu0 %v7362
    %7446 = vmatprep.subr.bf16.mxu0 0
    %7447 = vmatpush1.bf16.msra.mxu0 %v7365
    %7448 = vmatprep.subr.bf16.mxu0 0
    %7449 = vmatpush1.bf16.msra.mxu0 %v7368
    %7450 = vmatprep.subr.bf16.mxu0 0
    %7451 = vmatpush1.bf16.msra.mxu0 %v7371
    %7452 = vmatprep.subr.bf16.mxu0 0
    %7453 = vmatpush1.bf16.msra.mxu0 %v7374
    %7454 = vmatprep.subr.bf16.mxu0 0
    %7455 = vmatpush1.bf16.msra.mxu0 %v7377
    %7456 = vmatprep.subr.bf16.mxu0 0
    %7457 = vmatpush1.bf16.msra.mxu0 %v7380
    %7458 = vmatprep.subr.bf16.mxu0 0
    %7459 = vmatpush1.bf16.msra.mxu0 %v7383
    %7460 = vmatprep.subr.bf16.mxu0 0
    %7461 = vmatpush1.bf16.msra.mxu0 0
    %7462 = vmatprep.subr.bf16.mxu0 0
    %7463 = vmatpush1.bf16.msra.mxu0 0
    %7464 = vmatprep.subr.bf16.mxu0 0
    %7465 = vmatpush1.bf16.msra.mxu0 0
    %7466 = vmatprep.subr.bf16.mxu0 0
    %7467 = vmatpush1.bf16.msra.mxu0 0
    %7468 = vmatprep.subr.bf16.mxu0 0
    %7469 = vmatpush1.bf16.msra.mxu0 0
    %7470 = vmatprep.subr.bf16.mxu0 0
    %7471 = vmatpush1.bf16.msra.mxu0 0
    %7472 = vmatprep.subr.bf16.mxu0 0
    %7473 = vmatpush1.bf16.msra.mxu0 0
    %7474 = vmatprep.subr.bf16.mxu0 0
    %7475 = vmatpush1.bf16.msra.mxu0 0
    %7476 = vmatprep.mubr.bf16.mxu0 0
    %7477 = vmatmul.mubr.bf16.gmra.mrb[0].mxu0 %v7359
    %v7478 = vpop.f32.mrb[0].mxu0
    %v7479 = vadd.f32 %v7397, %v7478
    %v7480 = vpop.f32.mrb[0].mxu0
    %v7481 = vpop.f32.mrb[0].mxu0
    %v7482 = vadd.f32 %v7397, %v7481
    %v7483 = vpop.f32.mrb[0].mxu0
    %7484 = vdwg.mxu0
    %7487 = vrot.lane.b32.xlu0 %v7436, 112
    %v7488 = vpop.permute.xlu0 %7487
    %7489 = vrot.lane.b32.xlu0 %v7440, 112
    %v7490 = vpop.permute.xlu0 %7489
    %7493 = vrot.lane.b32.xlu0 %v7436, 96
    %v7494 = vpop.permute.xlu0 %7493
    %7495 = vrot.lane.b32.xlu0 %v7440, 96
    %v7496 = vpop.permute.xlu0 %7495
    %7499 = vrot.lane.b32.xlu0 %v7436, 80
    %v7500 = vpop.permute.xlu0 %7499
    %7501 = vrot.lane.b32.xlu0 %v7440, 80
    %v7502 = vpop.permute.xlu0 %7501
    %7505 = vrot.lane.b32.xlu0 %v7436, 64
    %v7506 = vpop.permute.xlu0 %7505
    %7507 = vrot.lane.b32.xlu0 %v7440, 64
    %v7508 = vpop.permute.xlu0 %7507
    %7511 = vrot.lane.b32.xlu0 %v7436, 48
    %v7512 = vpop.permute.xlu0 %7511
    %7513 = vrot.lane.b32.xlu0 %v7440, 48
    %v7514 = vpop.permute.xlu0 %7513
    %7517 = vrot.lane.b32.xlu0 %v7436, 32
    %v7518 = vpop.permute.xlu0 %7517
    %7519 = vrot.lane.b32.xlu0 %v7440, 32
    %v7520 = vpop.permute.xlu0 %7519
    %7523 = vrot.lane.b32.xlu0 %v7436, 16
    %v7524 = vpop.permute.xlu0 %7523
    %7525 = vrot.lane.b32.xlu0 %v7440, 16
    %v7526 = vpop.permute.xlu0 %7525
    %v7529 = vmul.f32 %v7436, 0.25
    %v7530 = vmul.f32 %v7440, 0.25
    %v7531 = vmul.f32 %v7488, 0.25
    %v7532 = vmul.f32 %v7490, 0.25
    %v7533 = vmul.f32 %v7494, 0.25
    %v7534 = vmul.f32 %v7496, 0.25
    %v7535 = vmul.f32 %v7500, 0.25
    %v7536 = vmul.f32 %v7502, 0.25
    %v7537 = vmul.f32 %v7506, 0.25
    %v7538 = vmul.f32 %v7508, 0.25
    %v7539 = vmul.f32 %v7512, 0.25
    %v7540 = vmul.f32 %v7514, 0.25
    %v7541 = vmul.f32 %v7518, 0.25
    %v7542 = vmul.f32 %v7520, 0.25
    %v7543 = vmul.f32 %v7524, 0.25
    %v7544 = vmul.f32 %v7526, 0.25
    %7547 = vrot.lane.b32.xlu0 %v7438, 112
    %v7548 = vpop.permute.xlu0 %7547
    %7549 = vrot.lane.b32.xlu0 %v7442, 112
    %v7550 = vpop.permute.xlu0 %7549
    %7553 = vrot.lane.b32.xlu0 %v7438, 96
    %v7554 = vpop.permute.xlu0 %7553
    %7555 = vrot.lane.b32.xlu0 %v7442, 96
    %v7556 = vpop.permute.xlu0 %7555
    %7559 = vrot.lane.b32.xlu0 %v7438, 80
    %v7560 = vpop.permute.xlu0 %7559
    %7561 = vrot.lane.b32.xlu0 %v7442, 80
    %v7562 = vpop.permute.xlu0 %7561
    %7565 = vrot.lane.b32.xlu0 %v7438, 64
    %v7566 = vpop.permute.xlu0 %7565
    %7567 = vrot.lane.b32.xlu0 %v7442, 64
    %v7568 = vpop.permute.xlu0 %7567
    %7571 = vrot.lane.b32.xlu0 %v7438, 48
    %v7572 = vpop.permute.xlu0 %7571
    %7573 = vrot.lane.b32.xlu0 %v7442, 48
    %v7574 = vpop.permute.xlu0 %7573
    %7577 = vrot.lane.b32.xlu0 %v7438, 32
    %v7578 = vpop.permute.xlu0 %7577
    %7579 = vrot.lane.b32.xlu0 %v7442, 32
    %v7580 = vpop.permute.xlu0 %7579
    %7583 = vrot.lane.b32.xlu0 %v7438, 16
    %v7584 = vpop.permute.xlu0 %7583
    %7585 = vrot.lane.b32.xlu0 %v7442, 16
    %v7586 = vpop.permute.xlu0 %7585
    %7591 = vrot.lane.b32.xlu0 %v7479, 112
    %v7592 = vpop.permute.xlu0 %7591
    %7593 = vrot.lane.b32.xlu0 %v7482, 112
    %v7594 = vpop.permute.xlu0 %7593
    %7597 = vrot.lane.b32.xlu0 %v7479, 96
    %v7598 = vpop.permute.xlu0 %7597
    %7599 = vrot.lane.b32.xlu0 %v7482, 96
    %v7600 = vpop.permute.xlu0 %7599
    %7603 = vrot.lane.b32.xlu0 %v7479, 80
    %v7604 = vpop.permute.xlu0 %7603
    %7605 = vrot.lane.b32.xlu0 %v7482, 80
    %v7606 = vpop.permute.xlu0 %7605
    %7609 = vrot.lane.b32.xlu0 %v7479, 64
    %v7610 = vpop.permute.xlu0 %7609
    %7611 = vrot.lane.b32.xlu0 %v7482, 64
    %v7612 = vpop.permute.xlu0 %7611
    %7615 = vrot.lane.b32.xlu0 %v7479, 48
    %v7616 = vpop.permute.xlu0 %7615
    %7617 = vrot.lane.b32.xlu0 %v7482, 48
    %v7618 = vpop.permute.xlu0 %7617
    %7621 = vrot.lane.b32.xlu0 %v7479, 32
    %v7622 = vpop.permute.xlu0 %7621
    %7623 = vrot.lane.b32.xlu0 %v7482, 32
    %v7624 = vpop.permute.xlu0 %7623
    %7627 = vrot.lane.b32.xlu0 %v7479, 16
    %v7628 = vpop.permute.xlu0 %7627
    %7629 = vrot.lane.b32.xlu0 %v7482, 16
    %v7630 = vpop.permute.xlu0 %7629
    %v7633 = vpack.c.bf16 %v7530, %v7529
    %v7634 = vpack.c.bf16 %v7532, %v7531
    %v7635 = vpack.c.bf16 %v7534, %v7533
    %v7636 = vpack.c.bf16 %v7536, %v7535
    %v7637 = vpack.c.bf16 %v7538, %v7537
    %v7638 = vpack.c.bf16 %v7540, %v7539
    %v7639 = vpack.c.bf16 %v7542, %v7541
    %v7640 = vpack.c.bf16 %v7544, %v7543
    %v7641 = vpack.c.bf16 %v7442, %v7438
    %v7642 = vpack.c.bf16 %v7550, %v7548
    %v7643 = vpack.c.bf16 %v7556, %v7554
    %v7644 = vpack.c.bf16 %v7562, %v7560
    %v7645 = vpack.c.bf16 %v7568, %v7566
    %v7646 = vpack.c.bf16 %v7574, %v7572
    %v7647 = vpack.c.bf16 %v7580, %v7578
    %v7648 = vpack.c.bf16 %v7586, %v7584
    %v7650 = vsel %vm1958, %v7633, 0
    %v7653 = vsel %vm1958, %v7641, 0
    %7655 = vmatprep.subr.bf16.mxu0 0
    %7656 = vmatpush1.bf16.xpose.msra.mxu0 %v7653
    %7657 = vmatprep.subr.bf16.mxu0 0
    %7658 = vmatpush1.bf16.xpose.msra.mxu0 0
    %7659 = vmatprep.subr.bf16.mxu0 0
    %7660 = vmatpush1.bf16.xpose.msra.mxu0 0
    %7661 = vmatprep.subr.bf16.mxu0 0
    %7662 = vmatpush1.bf16.xpose.msra.mxu0 0
    %7663 = vmatprep.subr.bf16.mxu0 0
    %7664 = vmatpush1.bf16.xpose.msra.mxu0 0
    %7665 = vmatprep.subr.bf16.mxu0 0
    %7666 = vmatpush1.bf16.xpose.msra.mxu0 0
    %7667 = vmatprep.subr.bf16.mxu0 0
    %7668 = vmatpush1.bf16.xpose.msra.mxu0 0
    %7669 = vmatprep.subr.bf16.mxu0 0
    %7670 = vmatpush1.bf16.xpose.msra.mxu0 0
    %7671 = vmatprep.subr.bf16.mxu0 0
    %7672 = vmatpush1.bf16.xpose.msra.mxu0 0
    %7673 = vmatprep.subr.bf16.mxu0 0
    %7674 = vmatpush1.bf16.xpose.msra.mxu0 0
    %7675 = vmatprep.subr.bf16.mxu0 0
    %7676 = vmatpush1.bf16.xpose.msra.mxu0 0
    %7677 = vmatprep.subr.bf16.mxu0 0
    %7678 = vmatpush1.bf16.xpose.msra.mxu0 0
    %7679 = vmatprep.subr.bf16.mxu0 0
    %7680 = vmatpush1.bf16.xpose.msra.mxu0 0
    %7681 = vmatprep.subr.bf16.mxu0 0
    %7682 = vmatpush1.bf16.xpose.msra.mxu0 0
    %7683 = vmatprep.subr.bf16.mxu0 0
    %7684 = vmatpush1.bf16.xpose.msra.mxu0 0
    %7685 = vmatprep.subr.bf16.mxu0 0
    %7686 = vmatpush1.bf16.xpose.msra.mxu0 0
    %7687 = vmatprep.mubr.bf16.mxu0 0
    %7688 = vmatmul.mubr.bf16.gmra.mrb[0].mxu0 %v7650
    %v7689 = vpop.f32.mrb[0].mxu0
    %v7690 = vadd.f32 %v997, %v7689
    %v7691 = vpop.f32.mrb[0].mxu0
    %v7692 = vpop.f32.mrb[0].mxu0
    %v7693 = vadd.f32 %v998, %v7692
    %v7694 = vpop.f32.mrb[0].mxu0
    %7695 = vdwg.mxu0
    %v7697 = vsel %vm1958, %v7634, 0
    %v7700 = vsel %vm1958, %v7642, 0
    %7702 = vmatprep.subr.bf16.mxu0 0
    %7703 = vmatpush1.bf16.xpose.msra.mxu0 %v7700
    %7704 = vmatprep.subr.bf16.mxu0 0
    %7705 = vmatpush1.bf16.xpose.msra.mxu0 0
    %7706 = vmatprep.subr.bf16.mxu0 0
    %7707 = vmatpush1.bf16.xpose.msra.mxu0 0
    %7708 = vmatprep.subr.bf16.mxu0 0
    %7709 = vmatpush1.bf16.xpose.msra.mxu0 0
    %7710 = vmatprep.subr.bf16.mxu0 0
    %7711 = vmatpush1.bf16.xpose.msra.mxu0 0
    %7712 = vmatprep.subr.bf16.mxu0 0
    %7713 = vmatpush1.bf16.xpose.msra.mxu0 0
    %7714 = vmatprep.subr.bf16.mxu0 0
    %7715 = vmatpush1.bf16.xpose.msra.mxu0 0
    %7716 = vmatprep.subr.bf16.mxu0 0
    %7717 = vmatpush1.bf16.xpose.msra.mxu0 0
    %7718 = vmatprep.subr.bf16.mxu0 0
    %7719 = vmatpush1.bf16.xpose.msra.mxu0 0
    %7720 = vmatprep.subr.bf16.mxu0 0
    %7721 = vmatpush1.bf16.xpose.msra.mxu0 0
    %7722 = vmatprep.subr.bf16.mxu0 0
    %7723 = vmatpush1.bf16.xpose.msra.mxu0 0
    %7724 = vmatprep.subr.bf16.mxu0 0
    %7725 = vmatpush1.bf16.xpose.msra.mxu0 0
    %7726 = vmatprep.subr.bf16.mxu0 0
    %7727 = vmatpush1.bf16.xpose.msra.mxu0 0
    %7728 = vmatprep.subr.bf16.mxu0 0
    %7729 = vmatpush1.bf16.xpose.msra.mxu0 0
    %7730 = vmatprep.subr.bf16.mxu0 0
    %7731 = vmatpush1.bf16.xpose.msra.mxu0 0
    %7732 = vmatprep.subr.bf16.mxu0 0
    %7733 = vmatpush1.bf16.xpose.msra.mxu0 0
    %7734 = vmatprep.mubr.bf16.mxu0 0
    %7735 = vmatmul.mubr.bf16.gmra.mrb[0].mxu0 %v7697
    %v7736 = vpop.f32.mrb[0].mxu0
    %v7737 = vadd.f32 %v997, %v7736
    %v7738 = vpop.f32.mrb[0].mxu0
    %v7739 = vpop.f32.mrb[0].mxu0
    %v7740 = vadd.f32 %v998, %v7739
    %v7741 = vpop.f32.mrb[0].mxu0
    %7742 = vdwg.mxu0
    %v7744 = vsel %vm1958, %v7635, 0
    %v7747 = vsel %vm1958, %v7643, 0
    %7749 = vmatprep.subr.bf16.mxu0 0
    %7750 = vmatpush1.bf16.xpose.msra.mxu0 %v7747
    %7751 = vmatprep.subr.bf16.mxu0 0
    %7752 = vmatpush1.bf16.xpose.msra.mxu0 0
    %7753 = vmatprep.subr.bf16.mxu0 0
    %7754 = vmatpush1.bf16.xpose.msra.mxu0 0
    %7755 = vmatprep.subr.bf16.mxu0 0
    %7756 = vmatpush1.bf16.xpose.msra.mxu0 0
    %7757 = vmatprep.subr.bf16.mxu0 0
    %7758 = vmatpush1.bf16.xpose.msra.mxu0 0
    %7759 = vmatprep.subr.bf16.mxu0 0
    %7760 = vmatpush1.bf16.xpose.msra.mxu0 0
    %7761 = vmatprep.subr.bf16.mxu0 0
    %7762 = vmatpush1.bf16.xpose.msra.mxu0 0
    %7763 = vmatprep.subr.bf16.mxu0 0
    %7764 = vmatpush1.bf16.xpose.msra.mxu0 0
    %7765 = vmatprep.subr.bf16.mxu0 0
    %7766 = vmatpush1.bf16.xpose.msra.mxu0 0
    %7767 = vmatprep.subr.bf16.mxu0 0
    %7768 = vmatpush1.bf16.xpose.msra.mxu0 0
    %7769 = vmatprep.subr.bf16.mxu0 0
    %7770 = vmatpush1.bf16.xpose.msra.mxu0 0
    %7771 = vmatprep.subr.bf16.mxu0 0
    %7772 = vmatpush1.bf16.xpose.msra.mxu0 0
    %7773 = vmatprep.subr.bf16.mxu0 0
    %7774 = vmatpush1.bf16.xpose.msra.mxu0 0
    %7775 = vmatprep.subr.bf16.mxu0 0
    %7776 = vmatpush1.bf16.xpose.msra.mxu0 0
    %7777 = vmatprep.subr.bf16.mxu0 0
    %7778 = vmatpush1.bf16.xpose.msra.mxu0 0
    %7779 = vmatprep.subr.bf16.mxu0 0
    %7780 = vmatpush1.bf16.xpose.msra.mxu0 0
    %7781 = vmatprep.mubr.bf16.mxu0 0
    %7782 = vmatmul.mubr.bf16.gmra.mrb[0].mxu0 %v7744
    %v7783 = vpop.f32.mrb[0].mxu0
    %v7784 = vadd.f32 %v997, %v7783
    %v7785 = vpop.f32.mrb[0].mxu0
    %v7786 = vpop.f32.mrb[0].mxu0
    %v7787 = vadd.f32 %v998, %v7786
    %v7788 = vpop.f32.mrb[0].mxu0
    %7789 = vdwg.mxu0
    %v7791 = vsel %vm1958, %v7636, 0
    %v7794 = vsel %vm1958, %v7644, 0
    %7796 = vmatprep.subr.bf16.mxu0 0
    %7797 = vmatpush1.bf16.xpose.msra.mxu0 %v7794
    %7798 = vmatprep.subr.bf16.mxu0 0
    %7799 = vmatpush1.bf16.xpose.msra.mxu0 0
    %7800 = vmatprep.subr.bf16.mxu0 0
    %7801 = vmatpush1.bf16.xpose.msra.mxu0 0
    %7802 = vmatprep.subr.bf16.mxu0 0
    %7803 = vmatpush1.bf16.xpose.msra.mxu0 0
    %7804 = vmatprep.subr.bf16.mxu0 0
    %7805 = vmatpush1.bf16.xpose.msra.mxu0 0
    %7806 = vmatprep.subr.bf16.mxu0 0
    %7807 = vmatpush1.bf16.xpose.msra.mxu0 0
    %7808 = vmatprep.subr.bf16.mxu0 0
    %7809 = vmatpush1.bf16.xpose.msra.mxu0 0
    %7810 = vmatprep.subr.bf16.mxu0 0
    %7811 = vmatpush1.bf16.xpose.msra.mxu0 0
    %7812 = vmatprep.subr.bf16.mxu0 0
    %7813 = vmatpush1.bf16.xpose.msra.mxu0 0
    %7814 = vmatprep.subr.bf16.mxu0 0
    %7815 = vmatpush1.bf16.xpose.msra.mxu0 0
    %7816 = vmatprep.subr.bf16.mxu0 0
    %7817 = vmatpush1.bf16.xpose.msra.mxu0 0
    %7818 = vmatprep.subr.bf16.mxu0 0
    %7819 = vmatpush1.bf16.xpose.msra.mxu0 0
    %7820 = vmatprep.subr.bf16.mxu0 0
    %7821 = vmatpush1.bf16.xpose.msra.mxu0 0
    %7822 = vmatprep.subr.bf16.mxu0 0
    %7823 = vmatpush1.bf16.xpose.msra.mxu0 0
    %7824 = vmatprep.subr.bf16.mxu0 0
    %7825 = vmatpush1.bf16.xpose.msra.mxu0 0
    %7826 = vmatprep.subr.bf16.mxu0 0
    %7827 = vmatpush1.bf16.xpose.msra.mxu0 0
    %7828 = vmatprep.mubr.bf16.mxu0 0
    %7829 = vmatmul.mubr.bf16.gmra.mrb[0].mxu0 %v7791
    %v7830 = vpop.f32.mrb[0].mxu0
    %v7831 = vadd.f32 %v997, %v7830
    %v7832 = vpop.f32.mrb[0].mxu0
    %v7833 = vpop.f32.mrb[0].mxu0
    %v7834 = vadd.f32 %v998, %v7833
    %v7835 = vpop.f32.mrb[0].mxu0
    %7836 = vdwg.mxu0
    %v7838 = vsel %vm1958, %v7637, 0
    %v7841 = vsel %vm1958, %v7645, 0
    %7843 = vmatprep.subr.bf16.mxu0 0
    %7844 = vmatpush1.bf16.xpose.msra.mxu0 %v7841
    %7845 = vmatprep.subr.bf16.mxu0 0
    %7846 = vmatpush1.bf16.xpose.msra.mxu0 0
    %7847 = vmatprep.subr.bf16.mxu0 0
    %7848 = vmatpush1.bf16.xpose.msra.mxu0 0
    %7849 = vmatprep.subr.bf16.mxu0 0
    %7850 = vmatpush1.bf16.xpose.msra.mxu0 0
    %7851 = vmatprep.subr.bf16.mxu0 0
    %7852 = vmatpush1.bf16.xpose.msra.mxu0 0
    %7853 = vmatprep.subr.bf16.mxu0 0
    %7854 = vmatpush1.bf16.xpose.msra.mxu0 0
    %7855 = vmatprep.subr.bf16.mxu0 0
    %7856 = vmatpush1.bf16.xpose.msra.mxu0 0
    %7857 = vmatprep.subr.bf16.mxu0 0
    %7858 = vmatpush1.bf16.xpose.msra.mxu0 0
    %7859 = vmatprep.subr.bf16.mxu0 0
    %7860 = vmatpush1.bf16.xpose.msra.mxu0 0
    %7861 = vmatprep.subr.bf16.mxu0 0
    %7862 = vmatpush1.bf16.xpose.msra.mxu0 0
    %7863 = vmatprep.subr.bf16.mxu0 0
    %7864 = vmatpush1.bf16.xpose.msra.mxu0 0
    %7865 = vmatprep.subr.bf16.mxu0 0
    %7866 = vmatpush1.bf16.xpose.msra.mxu0 0
    %7867 = vmatprep.subr.bf16.mxu0 0
    %7868 = vmatpush1.bf16.xpose.msra.mxu0 0
    %7869 = vmatprep.subr.bf16.mxu0 0
    %7870 = vmatpush1.bf16.xpose.msra.mxu0 0
    %7871 = vmatprep.subr.bf16.mxu0 0
    %7872 = vmatpush1.bf16.xpose.msra.mxu0 0
    %7873 = vmatprep.subr.bf16.mxu0 0
    %7874 = vmatpush1.bf16.xpose.msra.mxu0 0
    %7875 = vmatprep.mubr.bf16.mxu0 0
    %7876 = vmatmul.mubr.bf16.gmra.mrb[0].mxu0 %v7838
    %v7877 = vpop.f32.mrb[0].mxu0
    %v7878 = vadd.f32 %v997, %v7877
    %v7879 = vpop.f32.mrb[0].mxu0
    %v7880 = vpop.f32.mrb[0].mxu0
    %v7881 = vadd.f32 %v998, %v7880
    %v7882 = vpop.f32.mrb[0].mxu0
    %7883 = vdwg.mxu0
    %v7885 = vsel %vm1958, %v7638, 0
    %v7888 = vsel %vm1958, %v7646, 0
    %7890 = vmatprep.subr.bf16.mxu0 0
    %7891 = vmatpush1.bf16.xpose.msra.mxu0 %v7888
    %7892 = vmatprep.subr.bf16.mxu0 0
    %7893 = vmatpush1.bf16.xpose.msra.mxu0 0
    %7894 = vmatprep.subr.bf16.mxu0 0
    %7895 = vmatpush1.bf16.xpose.msra.mxu0 0
    %7896 = vmatprep.subr.bf16.mxu0 0
    %7897 = vmatpush1.bf16.xpose.msra.mxu0 0
    %7898 = vmatprep.subr.bf16.mxu0 0
    %7899 = vmatpush1.bf16.xpose.msra.mxu0 0
    %7900 = vmatprep.subr.bf16.mxu0 0
    %7901 = vmatpush1.bf16.xpose.msra.mxu0 0
    %7902 = vmatprep.subr.bf16.mxu0 0
    %7903 = vmatpush1.bf16.xpose.msra.mxu0 0
    %7904 = vmatprep.subr.bf16.mxu0 0
    %7905 = vmatpush1.bf16.xpose.msra.mxu0 0
    %7906 = vmatprep.subr.bf16.mxu0 0
    %7907 = vmatpush1.bf16.xpose.msra.mxu0 0
    %7908 = vmatprep.subr.bf16.mxu0 0
    %7909 = vmatpush1.bf16.xpose.msra.mxu0 0
    %7910 = vmatprep.subr.bf16.mxu0 0
    %7911 = vmatpush1.bf16.xpose.msra.mxu0 0
    %7912 = vmatprep.subr.bf16.mxu0 0
    %7913 = vmatpush1.bf16.xpose.msra.mxu0 0
    %7914 = vmatprep.subr.bf16.mxu0 0
    %7915 = vmatpush1.bf16.xpose.msra.mxu0 0
    %7916 = vmatprep.subr.bf16.mxu0 0
    %7917 = vmatpush1.bf16.xpose.msra.mxu0 0
    %7918 = vmatprep.subr.bf16.mxu0 0
    %7919 = vmatpush1.bf16.xpose.msra.mxu0 0
    %7920 = vmatprep.subr.bf16.mxu0 0
    %7921 = vmatpush1.bf16.xpose.msra.mxu0 0
    %7922 = vmatprep.mubr.bf16.mxu0 0
    %7923 = vmatmul.mubr.bf16.gmra.mrb[0].mxu0 %v7885
    %v7924 = vpop.f32.mrb[0].mxu0
    %v7925 = vadd.f32 %v997, %v7924
    %v7926 = vpop.f32.mrb[0].mxu0
    %v7927 = vpop.f32.mrb[0].mxu0
    %v7928 = vadd.f32 %v998, %v7927
    %v7929 = vpop.f32.mrb[0].mxu0
    %7930 = vdwg.mxu0
    %v7932 = vsel %vm1958, %v7639, 0
    %v7935 = vsel %vm1958, %v7647, 0
    %7937 = vmatprep.subr.bf16.mxu0 0
    %7938 = vmatpush1.bf16.xpose.msra.mxu0 %v7935
    %7939 = vmatprep.subr.bf16.mxu0 0
    %7940 = vmatpush1.bf16.xpose.msra.mxu0 0
    %7941 = vmatprep.subr.bf16.mxu0 0
    %7942 = vmatpush1.bf16.xpose.msra.mxu0 0
    %7943 = vmatprep.subr.bf16.mxu0 0
    %7944 = vmatpush1.bf16.xpose.msra.mxu0 0
    %7945 = vmatprep.subr.bf16.mxu0 0
    %7946 = vmatpush1.bf16.xpose.msra.mxu0 0
    %7947 = vmatprep.subr.bf16.mxu0 0
    %7948 = vmatpush1.bf16.xpose.msra.mxu0 0
    %7949 = vmatprep.subr.bf16.mxu0 0
    %7950 = vmatpush1.bf16.xpose.msra.mxu0 0
    %7951 = vmatprep.subr.bf16.mxu0 0
    %7952 = vmatpush1.bf16.xpose.msra.mxu0 0
    %7953 = vmatprep.subr.bf16.mxu0 0
    %7954 = vmatpush1.bf16.xpose.msra.mxu0 0
    %7955 = vmatprep.subr.bf16.mxu0 0
    %7956 = vmatpush1.bf16.xpose.msra.mxu0 0
    %7957 = vmatprep.subr.bf16.mxu0 0
    %7958 = vmatpush1.bf16.xpose.msra.mxu0 0
    %7959 = vmatprep.subr.bf16.mxu0 0
    %7960 = vmatpush1.bf16.xpose.msra.mxu0 0
    %7961 = vmatprep.subr.bf16.mxu0 0
    %7962 = vmatpush1.bf16.xpose.msra.mxu0 0
    %7963 = vmatprep.subr.bf16.mxu0 0
    %7964 = vmatpush1.bf16.xpose.msra.mxu0 0
    %7965 = vmatprep.subr.bf16.mxu0 0
    %7966 = vmatpush1.bf16.xpose.msra.mxu0 0
    %7967 = vmatprep.subr.bf16.mxu0 0
    %7968 = vmatpush1.bf16.xpose.msra.mxu0 0
    %7969 = vmatprep.mubr.bf16.mxu0 0
    %7970 = vmatmul.mubr.bf16.gmra.mrb[0].mxu0 %v7932
    %v7971 = vpop.f32.mrb[0].mxu0
    %v7972 = vadd.f32 %v997, %v7971
    %v7973 = vpop.f32.mrb[0].mxu0
    %v7974 = vpop.f32.mrb[0].mxu0
    %v7975 = vadd.f32 %v998, %v7974
    %v7976 = vpop.f32.mrb[0].mxu0
    %7977 = vdwg.mxu0
    %v7979 = vsel %vm1958, %v7640, 0
    %v7982 = vsel %vm1958, %v7648, 0
    %7984 = vmatprep.subr.bf16.mxu0 0
    %7985 = vmatpush1.bf16.xpose.msra.mxu0 %v7982
    %7986 = vmatprep.subr.bf16.mxu0 0
    %7987 = vmatpush1.bf16.xpose.msra.mxu0 0
    %7988 = vmatprep.subr.bf16.mxu0 0
    %7989 = vmatpush1.bf16.xpose.msra.mxu0 0
    %7990 = vmatprep.subr.bf16.mxu0 0
    %7991 = vmatpush1.bf16.xpose.msra.mxu0 0
    %7992 = vmatprep.subr.bf16.mxu0 0
    %7993 = vmatpush1.bf16.xpose.msra.mxu0 0
    %7994 = vmatprep.subr.bf16.mxu0 0
    %7995 = vmatpush1.bf16.xpose.msra.mxu0 0
    %7996 = vmatprep.subr.bf16.mxu0 0
    %7997 = vmatpush1.bf16.xpose.msra.mxu0 0
    %7998 = vmatprep.subr.bf16.mxu0 0
    %7999 = vmatpush1.bf16.xpose.msra.mxu0 0
    %8000 = vmatprep.subr.bf16.mxu0 0
    %8001 = vmatpush1.bf16.xpose.msra.mxu0 0
    %8002 = vmatprep.subr.bf16.mxu0 0
    %8003 = vmatpush1.bf16.xpose.msra.mxu0 0
    %8004 = vmatprep.subr.bf16.mxu0 0
    %8005 = vmatpush1.bf16.xpose.msra.mxu0 0
    %8006 = vmatprep.subr.bf16.mxu0 0
    %8007 = vmatpush1.bf16.xpose.msra.mxu0 0
    %8008 = vmatprep.subr.bf16.mxu0 0
    %8009 = vmatpush1.bf16.xpose.msra.mxu0 0
    %8010 = vmatprep.subr.bf16.mxu0 0
    %8011 = vmatpush1.bf16.xpose.msra.mxu0 0
    %8012 = vmatprep.subr.bf16.mxu0 0
    %8013 = vmatpush1.bf16.xpose.msra.mxu0 0
    %8014 = vmatprep.subr.bf16.mxu0 0
    %8015 = vmatpush1.bf16.xpose.msra.mxu0 0
    %8016 = vmatprep.mubr.bf16.mxu0 0
    %8017 = vmatmul.mubr.bf16.gmra.mrb[0].mxu0 %v7979
    %v8018 = vpop.f32.mrb[0].mxu0
    %v8019 = vadd.f32 %v997, %v8018
    %v8020 = vpop.f32.mrb[0].mxu0
    %v8021 = vpop.f32.mrb[0].mxu0
    %v8022 = vadd.f32 %v998, %v8021
    %v8023 = vpop.f32.mrb[0].mxu0
    %8024 = vdwg.mxu0
    %vm8025 = vcmask 97280
    %v8026 = vsel %vm8025, %v7690, -inf
    %8027 = vmax.xlane.f32.xlu0 %v8026
    %v8028 = vpop.xlane.xlu0 %8027
    %vm8029 = vcmask 93184
    %v8030 = vsel %vm8029, %v7693, -inf
    %8031 = vmax.xlane.f32.xlu0 %v8030
    %v8032 = vpop.xlane.xlu0 %8031
    %v8033 = vsel %vm8025, %v7737, -inf
    %8034 = vmax.xlane.f32.xlu0 %v8033
    %v8035 = vpop.xlane.xlu0 %8034
    %v8036 = vsel %vm8029, %v7740, -inf
    %8037 = vmax.xlane.f32.xlu0 %v8036
    %v8038 = vpop.xlane.xlu0 %8037
    %v8039 = vsel %vm8025, %v7784, -inf
    %8040 = vmax.xlane.f32.xlu0 %v8039
    %v8041 = vpop.xlane.xlu0 %8040
    %v8042 = vsel %vm8029, %v7787, -inf
    %8043 = vmax.xlane.f32.xlu0 %v8042
    %v8044 = vpop.xlane.xlu0 %8043
    %v8045 = vsel %vm8025, %v7831, -inf
    %8046 = vmax.xlane.f32.xlu0 %v8045
    %v8047 = vpop.xlane.xlu0 %8046
    %v8048 = vsel %vm8029, %v7834, -inf
    %8049 = vmax.xlane.f32.xlu0 %v8048
    %v8050 = vpop.xlane.xlu0 %8049
    %v8051 = vsel %vm8025, %v7878, -inf
    %8052 = vmax.xlane.f32.xlu0 %v8051
    %v8053 = vpop.xlane.xlu0 %8052
    %v8054 = vsel %vm8029, %v7881, -inf
    %8055 = vmax.xlane.f32.xlu0 %v8054
    %v8056 = vpop.xlane.xlu0 %8055
    %v8057 = vsel %vm8025, %v7925, -inf
    %8058 = vmax.xlane.f32.xlu0 %v8057
    %v8059 = vpop.xlane.xlu0 %8058
    %v8060 = vsel %vm8029, %v7928, -inf
    %8061 = vmax.xlane.f32.xlu0 %v8060
    %v8062 = vpop.xlane.xlu0 %8061
    %v8063 = vsel %vm8025, %v7972, -inf
    %8064 = vmax.xlane.f32.xlu0 %v8063
    %v8065 = vpop.xlane.xlu0 %8064
    %v8066 = vsel %vm8029, %v7975, -inf
    %8067 = vmax.xlane.f32.xlu0 %v8066
    %v8068 = vpop.xlane.xlu0 %8067
    %v8069 = vsel %vm8025, %v8019, -inf
    %8070 = vmax.xlane.f32.xlu0 %v8069
    %v8071 = vpop.xlane.xlu0 %8070
    %v8072 = vsel %vm8029, %v8022, -inf
    %8073 = vmax.xlane.f32.xlu0 %v8072
    %v8074 = vpop.xlane.xlu0 %8073
    %v8075 = vsub.f32 %v7690, %v8028
    %v8076 = vsub.f32 %v7693, %v8032
    %v8077 = vsub.f32 %v7737, %v8035
    %v8078 = vsub.f32 %v7740, %v8038
    %v8079 = vsub.f32 %v7784, %v8041
    %v8080 = vsub.f32 %v7787, %v8044
    %v8081 = vsub.f32 %v7831, %v8047
    %v8082 = vsub.f32 %v7834, %v8050
    %v8083 = vsub.f32 %v7878, %v8053
    %v8084 = vsub.f32 %v7881, %v8056
    %v8085 = vsub.f32 %v7925, %v8059
    %v8086 = vsub.f32 %v7928, %v8062
    %v8087 = vsub.f32 %v7972, %v8065
    %v8088 = vsub.f32 %v7975, %v8068
    %v8089 = vsub.f32 %v8019, %v8071
    %v8090 = vsub.f32 %v8022, %v8074
    %v8091 = vmul.f32 %v8075, 1.442695
    %v8092 = vpow.pop %v8091
    %v8093 = vmul.f32 %v8076, 1.442695
    %v8094 = vpow.pop %v8093
    %v8095 = vmul.f32 %v8077, 1.442695
    %v8096 = vpow.pop %v8095
    %v8097 = vmul.f32 %v8078, 1.442695
    %v8098 = vpow.pop %v8097
    %v8099 = vmul.f32 %v8079, 1.442695
    %v8100 = vpow.pop %v8099
    %v8101 = vmul.f32 %v8080, 1.442695
    %v8102 = vpow.pop %v8101
    %v8103 = vmul.f32 %v8081, 1.442695
    %v8104 = vpow.pop %v8103
    %v8105 = vmul.f32 %v8082, 1.442695
    %v8106 = vpow.pop %v8105
    %v8107 = vmul.f32 %v8083, 1.442695
    %v8108 = vpow.pop %v8107
    %v8109 = vmul.f32 %v8084, 1.442695
    %v8110 = vpow.pop %v8109
    %v8111 = vmul.f32 %v8085, 1.442695
    %v8112 = vpow.pop %v8111
    %v8113 = vmul.f32 %v8086, 1.442695
    %v8114 = vpow.pop %v8113
    %v8115 = vmul.f32 %v8087, 1.442695
    %v8116 = vpow.pop %v8115
    %v8117 = vmul.f32 %v8088, 1.442695
    %v8118 = vpow.pop %v8117
    %v8119 = vmul.f32 %v8089, 1.442695
    %v8120 = vpow.pop %v8119
    %v8121 = vmul.f32 %v8090, 1.442695
    %v8122 = vpow.pop %v8121
    %v8123 = vsel %vm8025, %v8092, 0.0
    %8124 = vadd.xlane.f32.xlu0 %v8123
    %v8125 = vpop.xlane.xlu0 %8124
    %v8126 = vsel %vm8029, %v8094, 0.0
    %8127 = vadd.xlane.f32.xlu0 %v8126
    %v8128 = vpop.xlane.xlu0 %8127
    %v8129 = vsel %vm8025, %v8096, 0.0
    %8130 = vadd.xlane.f32.xlu0 %v8129
    %v8131 = vpop.xlane.xlu0 %8130
    %v8132 = vsel %vm8029, %v8098, 0.0
    %8133 = vadd.xlane.f32.xlu0 %v8132
    %v8134 = vpop.xlane.xlu0 %8133
    %v8135 = vsel %vm8025, %v8100, 0.0
    %8136 = vadd.xlane.f32.xlu0 %v8135
    %v8137 = vpop.xlane.xlu0 %8136
    %v8138 = vsel %vm8029, %v8102, 0.0
    %8139 = vadd.xlane.f32.xlu0 %v8138
    %v8140 = vpop.xlane.xlu0 %8139
    %v8141 = vsel %vm8025, %v8104, 0.0
    %8142 = vadd.xlane.f32.xlu0 %v8141
    %v8143 = vpop.xlane.xlu0 %8142
    %v8144 = vsel %vm8029, %v8106, 0.0
    %8145 = vadd.xlane.f32.xlu0 %v8144
    %v8146 = vpop.xlane.xlu0 %8145
    %v8147 = vsel %vm8025, %v8108, 0.0
    %8148 = vadd.xlane.f32.xlu0 %v8147
    %v8149 = vpop.xlane.xlu0 %8148
    %v8150 = vsel %vm8029, %v8110, 0.0
    %8151 = vadd.xlane.f32.xlu0 %v8150
    %v8152 = vpop.xlane.xlu0 %8151
    %v8153 = vsel %vm8025, %v8112, 0.0
    %8154 = vadd.xlane.f32.xlu0 %v8153
    %v8155 = vpop.xlane.xlu0 %8154
    %v8156 = vsel %vm8029, %v8114, 0.0
    %8157 = vadd.xlane.f32.xlu0 %v8156
    %v8158 = vpop.xlane.xlu0 %8157
    %v8159 = vsel %vm8025, %v8116, 0.0
    %8160 = vadd.xlane.f32.xlu0 %v8159
    %v8161 = vpop.xlane.xlu0 %8160
    %v8162 = vsel %vm8029, %v8118, 0.0
    %8163 = vadd.xlane.f32.xlu0 %v8162
    %v8164 = vpop.xlane.xlu0 %8163
    %v8165 = vsel %vm8025, %v8120, 0.0
    %8166 = vadd.xlane.f32.xlu0 %v8165
    %v8167 = vpop.xlane.xlu0 %8166
    %v8168 = vsel %vm8029, %v8122, 0.0
    %8169 = vadd.xlane.f32.xlu0 %v8168
    %v8170 = vpop.xlane.xlu0 %8169
    %v8171 = vrcp.pop %v8125
    %v8172 = vrcp.pop %v8128
    %v8173 = vrcp.pop %v8131
    %v8174 = vrcp.pop %v8134
    %v8175 = vrcp.pop %v8137
    %v8176 = vrcp.pop %v8140
    %v8177 = vrcp.pop %v8143
    %v8178 = vrcp.pop %v8146
    %v8179 = vrcp.pop %v8149
    %v8180 = vrcp.pop %v8152
    %v8181 = vrcp.pop %v8155
    %v8182 = vrcp.pop %v8158
    %v8183 = vrcp.pop %v8161
    %v8184 = vrcp.pop %v8164
    %v8185 = vrcp.pop %v8167
    %v8186 = vrcp.pop %v8170
    %v8187 = vmul.f32 %v8092, %v8171
    %v8188 = vmul.f32 %v8094, %v8172
    %v8189 = vmul.f32 %v8096, %v8173
    %v8190 = vmul.f32 %v8098, %v8174
    %v8191 = vmul.f32 %v8100, %v8175
    %v8192 = vmul.f32 %v8102, %v8176
    %v8193 = vmul.f32 %v8104, %v8177
    %v8194 = vmul.f32 %v8106, %v8178
    %v8195 = vmul.f32 %v8108, %v8179
    %v8196 = vmul.f32 %v8110, %v8180
    %v8197 = vmul.f32 %v8112, %v8181
    %v8198 = vmul.f32 %v8114, %v8182
    %v8199 = vmul.f32 %v8116, %v8183
    %v8200 = vmul.f32 %v8118, %v8184
    %v8201 = vmul.f32 %v8120, %v8185
    %v8202 = vmul.f32 %v8122, %v8186
    %v8203 = vpack.c.bf16 %v8188, %v8187
    %v8204 = vpack.c.bf16 %v8190, %v8189
    %v8205 = vpack.c.bf16 %v8192, %v8191
    %v8206 = vpack.c.bf16 %v8194, %v8193
    %v8207 = vpack.c.bf16 %v8196, %v8195
    %v8208 = vpack.c.bf16 %v8198, %v8197
    %v8209 = vpack.c.bf16 %v8200, %v8199
    %v8210 = vpack.c.bf16 %v8202, %v8201
    %v8211 = vpack.c.bf16 %v7482, %v7479
    %v8212 = vpack.c.bf16 %v7594, %v7592
    %v8213 = vpack.c.bf16 %v7600, %v7598
    %v8214 = vpack.c.bf16 %v7606, %v7604
    %v8215 = vpack.c.bf16 %v7612, %v7610
    %v8216 = vpack.c.bf16 %v7618, %v7616
    %v8217 = vpack.c.bf16 %v7624, %v7622
    %v8218 = vpack.c.bf16 %v7630, %v7628
    %v8220 = vsel %vm8025, %v8203, 0
    %vm8222 = vcmask 1045504
    %v8224 = vsel %vm8222, %v8211, 0
    %8226 = vmatprep.subr.bf16.mxu0 0
    %8227 = vmatpush1.bf16.msra.mxu0 %v8224
    %8228 = vmatprep.subr.bf16.mxu0 0
    %8229 = vmatpush1.bf16.msra.mxu0 0
    %8230 = vmatprep.subr.bf16.mxu0 0
    %8231 = vmatpush1.bf16.msra.mxu0 0
    %8232 = vmatprep.subr.bf16.mxu0 0
    %8233 = vmatpush1.bf16.msra.mxu0 0
    %8234 = vmatprep.subr.bf16.mxu0 0
    %8235 = vmatpush1.bf16.msra.mxu0 0
    %8236 = vmatprep.subr.bf16.mxu0 0
    %8237 = vmatpush1.bf16.msra.mxu0 0
    %8238 = vmatprep.subr.bf16.mxu0 0
    %8239 = vmatpush1.bf16.msra.mxu0 0
    %8240 = vmatprep.subr.bf16.mxu0 0
    %8241 = vmatpush1.bf16.msra.mxu0 0
    %8242 = vmatprep.subr.bf16.mxu0 0
    %8243 = vmatpush1.bf16.msra.mxu0 0
    %8244 = vmatprep.subr.bf16.mxu0 0
    %8245 = vmatpush1.bf16.msra.mxu0 0
    %8246 = vmatprep.subr.bf16.mxu0 0
    %8247 = vmatpush1.bf16.msra.mxu0 0
    %8248 = vmatprep.subr.bf16.mxu0 0
    %8249 = vmatpush1.bf16.msra.mxu0 0
    %8250 = vmatprep.subr.bf16.mxu0 0
    %8251 = vmatpush1.bf16.msra.mxu0 0
    %8252 = vmatprep.subr.bf16.mxu0 0
    %8253 = vmatpush1.bf16.msra.mxu0 0
    %8254 = vmatprep.subr.bf16.mxu0 0
    %8255 = vmatpush1.bf16.msra.mxu0 0
    %8256 = vmatprep.subr.bf16.mxu0 0
    %8257 = vmatpush1.bf16.msra.mxu0 0
    %8258 = vmatprep.mubr.bf16.mxu0 0
    %8259 = vmatmul.mubr.bf16.gmra.mrb[0].mxu0 %v8220
    %v8260 = vpop.f32.mrb[0].mxu0
    %v8261 = vadd.f32 0.0, %v8260
    %v8262 = vpop.f32.mrb[0].mxu0
    %v8263 = vpop.f32.mrb[0].mxu0
    %v8264 = vadd.f32 0.0, %v8263
    %v8265 = vpop.f32.mrb[0].mxu0
    %8266 = vdwg.mxu0
    %v8268 = vsel %vm8025, %v8204, 0
    %v8271 = vsel %vm8222, %v8212, 0
    %8273 = vmatprep.subr.bf16.mxu0 0
    %8274 = vmatpush1.bf16.msra.mxu0 %v8271
    %8275 = vmatprep.subr.bf16.mxu0 0
    %8276 = vmatpush1.bf16.msra.mxu0 0
    %8277 = vmatprep.subr.bf16.mxu0 0
    %8278 = vmatpush1.bf16.msra.mxu0 0
    %8279 = vmatprep.subr.bf16.mxu0 0
    %8280 = vmatpush1.bf16.msra.mxu0 0
    %8281 = vmatprep.subr.bf16.mxu0 0
    %8282 = vmatpush1.bf16.msra.mxu0 0
    %8283 = vmatprep.subr.bf16.mxu0 0
    %8284 = vmatpush1.bf16.msra.mxu0 0
    %8285 = vmatprep.subr.bf16.mxu0 0
    %8286 = vmatpush1.bf16.msra.mxu0 0
    %8287 = vmatprep.subr.bf16.mxu0 0
    %8288 = vmatpush1.bf16.msra.mxu0 0
    %8289 = vmatprep.subr.bf16.mxu0 0
    %8290 = vmatpush1.bf16.msra.mxu0 0
    %8291 = vmatprep.subr.bf16.mxu0 0
    %8292 = vmatpush1.bf16.msra.mxu0 0
    %8293 = vmatprep.subr.bf16.mxu0 0
    %8294 = vmatpush1.bf16.msra.mxu0 0
    %8295 = vmatprep.subr.bf16.mxu0 0
    %8296 = vmatpush1.bf16.msra.mxu0 0
    %8297 = vmatprep.subr.bf16.mxu0 0
    %8298 = vmatpush1.bf16.msra.mxu0 0
    %8299 = vmatprep.subr.bf16.mxu0 0
    %8300 = vmatpush1.bf16.msra.mxu0 0
    %8301 = vmatprep.subr.bf16.mxu0 0
    %8302 = vmatpush1.bf16.msra.mxu0 0
    %8303 = vmatprep.subr.bf16.mxu0 0
    %8304 = vmatpush1.bf16.msra.mxu0 0
    %8305 = vmatprep.mubr.bf16.mxu0 0
    %8306 = vmatmul.mubr.bf16.gmra.mrb[0].mxu0 %v8268
    %v8307 = vpop.f32.mrb[0].mxu0
    %v8308 = vadd.f32 0.0, %v8307
    %v8309 = vpop.f32.mrb[0].mxu0
    %v8310 = vpop.f32.mrb[0].mxu0
    %v8311 = vadd.f32 0.0, %v8310
    %v8312 = vpop.f32.mrb[0].mxu0
    %8313 = vdwg.mxu0
    %v8315 = vsel %vm8025, %v8205, 0
    %v8318 = vsel %vm8222, %v8213, 0
    %8320 = vmatprep.subr.bf16.mxu0 0
    %8321 = vmatpush1.bf16.msra.mxu0 %v8318
    %8322 = vmatprep.subr.bf16.mxu0 0
    %8323 = vmatpush1.bf16.msra.mxu0 0
    %8324 = vmatprep.subr.bf16.mxu0 0
    %8325 = vmatpush1.bf16.msra.mxu0 0
    %8326 = vmatprep.subr.bf16.mxu0 0
    %8327 = vmatpush1.bf16.msra.mxu0 0
    %8328 = vmatprep.subr.bf16.mxu0 0
    %8329 = vmatpush1.bf16.msra.mxu0 0
    %8330 = vmatprep.subr.bf16.mxu0 0
    %8331 = vmatpush1.bf16.msra.mxu0 0
    %8332 = vmatprep.subr.bf16.mxu0 0
    %8333 = vmatpush1.bf16.msra.mxu0 0
    %8334 = vmatprep.subr.bf16.mxu0 0
    %8335 = vmatpush1.bf16.msra.mxu0 0
    %8336 = vmatprep.subr.bf16.mxu0 0
    %8337 = vmatpush1.bf16.msra.mxu0 0
    %8338 = vmatprep.subr.bf16.mxu0 0
    %8339 = vmatpush1.bf16.msra.mxu0 0
    %8340 = vmatprep.subr.bf16.mxu0 0
    %8341 = vmatpush1.bf16.msra.mxu0 0
    %8342 = vmatprep.subr.bf16.mxu0 0
    %8343 = vmatpush1.bf16.msra.mxu0 0
    %8344 = vmatprep.subr.bf16.mxu0 0
    %8345 = vmatpush1.bf16.msra.mxu0 0
    %8346 = vmatprep.subr.bf16.mxu0 0
    %8347 = vmatpush1.bf16.msra.mxu0 0
    %8348 = vmatprep.subr.bf16.mxu0 0
    %8349 = vmatpush1.bf16.msra.mxu0 0
    %8350 = vmatprep.subr.bf16.mxu0 0
    %8351 = vmatpush1.bf16.msra.mxu0 0
    %8352 = vmatprep.mubr.bf16.mxu0 0
    %8353 = vmatmul.mubr.bf16.gmra.mrb[0].mxu0 %v8315
    %v8354 = vpop.f32.mrb[0].mxu0
    %v8355 = vadd.f32 0.0, %v8354
    %v8356 = vpop.f32.mrb[0].mxu0
    %v8357 = vpop.f32.mrb[0].mxu0
    %v8358 = vadd.f32 0.0, %v8357
    %v8359 = vpop.f32.mrb[0].mxu0
    %8360 = vdwg.mxu0
    %v8362 = vsel %vm8025, %v8206, 0
    %v8365 = vsel %vm8222, %v8214, 0
    %8367 = vmatprep.subr.bf16.mxu0 0
    %8368 = vmatpush1.bf16.msra.mxu0 %v8365
    %8369 = vmatprep.subr.bf16.mxu0 0
    %8370 = vmatpush1.bf16.msra.mxu0 0
    %8371 = vmatprep.subr.bf16.mxu0 0
    %8372 = vmatpush1.bf16.msra.mxu0 0
    %8373 = vmatprep.subr.bf16.mxu0 0
    %8374 = vmatpush1.bf16.msra.mxu0 0
    %8375 = vmatprep.subr.bf16.mxu0 0
    %8376 = vmatpush1.bf16.msra.mxu0 0
    %8377 = vmatprep.subr.bf16.mxu0 0
    %8378 = vmatpush1.bf16.msra.mxu0 0
    %8379 = vmatprep.subr.bf16.mxu0 0
    %8380 = vmatpush1.bf16.msra.mxu0 0
    %8381 = vmatprep.subr.bf16.mxu0 0
    %8382 = vmatpush1.bf16.msra.mxu0 0
    %8383 = vmatprep.subr.bf16.mxu0 0
    %8384 = vmatpush1.bf16.msra.mxu0 0
    %8385 = vmatprep.subr.bf16.mxu0 0
    %8386 = vmatpush1.bf16.msra.mxu0 0
    %8387 = vmatprep.subr.bf16.mxu0 0
    %8388 = vmatpush1.bf16.msra.mxu0 0
    %8389 = vmatprep.subr.bf16.mxu0 0
    %8390 = vmatpush1.bf16.msra.mxu0 0
    %8391 = vmatprep.subr.bf16.mxu0 0
    %8392 = vmatpush1.bf16.msra.mxu0 0
    %8393 = vmatprep.subr.bf16.mxu0 0
    %8394 = vmatpush1.bf16.msra.mxu0 0
    %8395 = vmatprep.subr.bf16.mxu0 0
    %8396 = vmatpush1.bf16.msra.mxu0 0
    %8397 = vmatprep.subr.bf16.mxu0 0
    %8398 = vmatpush1.bf16.msra.mxu0 0
    %8399 = vmatprep.mubr.bf16.mxu0 0
    %8400 = vmatmul.mubr.bf16.gmra.mrb[0].mxu0 %v8362
    %v8401 = vpop.f32.mrb[0].mxu0
    %v8402 = vadd.f32 0.0, %v8401
    %v8403 = vpop.f32.mrb[0].mxu0
    %v8404 = vpop.f32.mrb[0].mxu0
    %v8405 = vadd.f32 0.0, %v8404
    %v8406 = vpop.f32.mrb[0].mxu0
    %8407 = vdwg.mxu0
    %v8409 = vsel %vm8025, %v8207, 0
    %v8412 = vsel %vm8222, %v8215, 0
    %8414 = vmatprep.subr.bf16.mxu0 0
    %8415 = vmatpush1.bf16.msra.mxu0 %v8412
    %8416 = vmatprep.subr.bf16.mxu0 0
    %8417 = vmatpush1.bf16.msra.mxu0 0
    %8418 = vmatprep.subr.bf16.mxu0 0
    %8419 = vmatpush1.bf16.msra.mxu0 0
    %8420 = vmatprep.subr.bf16.mxu0 0
    %8421 = vmatpush1.bf16.msra.mxu0 0
    %8422 = vmatprep.subr.bf16.mxu0 0
    %8423 = vmatpush1.bf16.msra.mxu0 0
    %8424 = vmatprep.subr.bf16.mxu0 0
    %8425 = vmatpush1.bf16.msra.mxu0 0
    %8426 = vmatprep.subr.bf16.mxu0 0
    %8427 = vmatpush1.bf16.msra.mxu0 0
    %8428 = vmatprep.subr.bf16.mxu0 0
    %8429 = vmatpush1.bf16.msra.mxu0 0
    %8430 = vmatprep.subr.bf16.mxu0 0
    %8431 = vmatpush1.bf16.msra.mxu0 0
    %8432 = vmatprep.subr.bf16.mxu0 0
    %8433 = vmatpush1.bf16.msra.mxu0 0
    %8434 = vmatprep.subr.bf16.mxu0 0
    %8435 = vmatpush1.bf16.msra.mxu0 0
    %8436 = vmatprep.subr.bf16.mxu0 0
    %8437 = vmatpush1.bf16.msra.mxu0 0
    %8438 = vmatprep.subr.bf16.mxu0 0
    %8439 = vmatpush1.bf16.msra.mxu0 0
    %8440 = vmatprep.subr.bf16.mxu0 0
    %8441 = vmatpush1.bf16.msra.mxu0 0
    %8442 = vmatprep.subr.bf16.mxu0 0
    %8443 = vmatpush1.bf16.msra.mxu0 0
    %8444 = vmatprep.subr.bf16.mxu0 0
    %8445 = vmatpush1.bf16.msra.mxu0 0
    %8446 = vmatprep.mubr.bf16.mxu0 0
    %8447 = vmatmul.mubr.bf16.gmra.mrb[0].mxu0 %v8409
    %v8448 = vpop.f32.mrb[0].mxu0
    %v8449 = vadd.f32 0.0, %v8448
    %v8450 = vpop.f32.mrb[0].mxu0
    %v8451 = vpop.f32.mrb[0].mxu0
    %v8452 = vadd.f32 0.0, %v8451
    %v8453 = vpop.f32.mrb[0].mxu0
    %8454 = vdwg.mxu0
    %v8456 = vsel %vm8025, %v8208, 0
    %v8459 = vsel %vm8222, %v8216, 0
    %8461 = vmatprep.subr.bf16.mxu0 0
    %8462 = vmatpush1.bf16.msra.mxu0 %v8459
    %8463 = vmatprep.subr.bf16.mxu0 0
    %8464 = vmatpush1.bf16.msra.mxu0 0
    %8465 = vmatprep.subr.bf16.mxu0 0
    %8466 = vmatpush1.bf16.msra.mxu0 0
    %8467 = vmatprep.subr.bf16.mxu0 0
    %8468 = vmatpush1.bf16.msra.mxu0 0
    %8469 = vmatprep.subr.bf16.mxu0 0
    %8470 = vmatpush1.bf16.msra.mxu0 0
    %8471 = vmatprep.subr.bf16.mxu0 0
    %8472 = vmatpush1.bf16.msra.mxu0 0
    %8473 = vmatprep.subr.bf16.mxu0 0
    %8474 = vmatpush1.bf16.msra.mxu0 0
    %8475 = vmatprep.subr.bf16.mxu0 0
    %8476 = vmatpush1.bf16.msra.mxu0 0
    %8477 = vmatprep.subr.bf16.mxu0 0
    %8478 = vmatpush1.bf16.msra.mxu0 0
    %8479 = vmatprep.subr.bf16.mxu0 0
    %8480 = vmatpush1.bf16.msra.mxu0 0
    %8481 = vmatprep.subr.bf16.mxu0 0
    %8482 = vmatpush1.bf16.msra.mxu0 0
    %8483 = vmatprep.subr.bf16.mxu0 0
    %8484 = vmatpush1.bf16.msra.mxu0 0
    %8485 = vmatprep.subr.bf16.mxu0 0
    %8486 = vmatpush1.bf16.msra.mxu0 0
    %8487 = vmatprep.subr.bf16.mxu0 0
    %8488 = vmatpush1.bf16.msra.mxu0 0
    %8489 = vmatprep.subr.bf16.mxu0 0
    %8490 = vmatpush1.bf16.msra.mxu0 0
    %8491 = vmatprep.subr.bf16.mxu0 0
    %8492 = vmatpush1.bf16.msra.mxu0 0
    %8493 = vmatprep.mubr.bf16.mxu0 0
    %8494 = vmatmul.mubr.bf16.gmra.mrb[0].mxu0 %v8456
    %v8495 = vpop.f32.mrb[0].mxu0
    %v8496 = vadd.f32 0.0, %v8495
    %v8497 = vpop.f32.mrb[0].mxu0
    %v8498 = vpop.f32.mrb[0].mxu0
    %v8499 = vadd.f32 0.0, %v8498
    %v8500 = vpop.f32.mrb[0].mxu0
    %8501 = vdwg.mxu0
    %v8503 = vsel %vm8025, %v8209, 0
    %v8506 = vsel %vm8222, %v8217, 0
    %8508 = vmatprep.subr.bf16.mxu0 0
    %8509 = vmatpush1.bf16.msra.mxu0 %v8506
    %8510 = vmatprep.subr.bf16.mxu0 0
    %8511 = vmatpush1.bf16.msra.mxu0 0
    %8512 = vmatprep.subr.bf16.mxu0 0
    %8513 = vmatpush1.bf16.msra.mxu0 0
    %8514 = vmatprep.subr.bf16.mxu0 0
    %8515 = vmatpush1.bf16.msra.mxu0 0
    %8516 = vmatprep.subr.bf16.mxu0 0
    %8517 = vmatpush1.bf16.msra.mxu0 0
    %8518 = vmatprep.subr.bf16.mxu0 0
    %8519 = vmatpush1.bf16.msra.mxu0 0
    %8520 = vmatprep.subr.bf16.mxu0 0
    %8521 = vmatpush1.bf16.msra.mxu0 0
    %8522 = vmatprep.subr.bf16.mxu0 0
    %8523 = vmatpush1.bf16.msra.mxu0 0
    %8524 = vmatprep.subr.bf16.mxu0 0
    %8525 = vmatpush1.bf16.msra.mxu0 0
    %8526 = vmatprep.subr.bf16.mxu0 0
    %8527 = vmatpush1.bf16.msra.mxu0 0
    %8528 = vmatprep.subr.bf16.mxu0 0
    %8529 = vmatpush1.bf16.msra.mxu0 0
    %8530 = vmatprep.subr.bf16.mxu0 0
    %8531 = vmatpush1.bf16.msra.mxu0 0
    %8532 = vmatprep.subr.bf16.mxu0 0
    %8533 = vmatpush1.bf16.msra.mxu0 0
    %8534 = vmatprep.subr.bf16.mxu0 0
    %8535 = vmatpush1.bf16.msra.mxu0 0
    %8536 = vmatprep.subr.bf16.mxu0 0
    %8537 = vmatpush1.bf16.msra.mxu0 0
    %8538 = vmatprep.subr.bf16.mxu0 0
    %8539 = vmatpush1.bf16.msra.mxu0 0
    %8540 = vmatprep.mubr.bf16.mxu0 0
    %8541 = vmatmul.mubr.bf16.gmra.mrb[0].mxu0 %v8503
    %v8542 = vpop.f32.mrb[0].mxu0
    %v8543 = vadd.f32 0.0, %v8542
    %v8544 = vpop.f32.mrb[0].mxu0
    %v8545 = vpop.f32.mrb[0].mxu0
    %v8546 = vadd.f32 0.0, %v8545
    %v8547 = vpop.f32.mrb[0].mxu0
    %8548 = vdwg.mxu0
    %v8550 = vsel %vm8025, %v8210, 0
    %v8553 = vsel %vm8222, %v8218, 0
    %8555 = vmatprep.subr.bf16.mxu0 0
    %8556 = vmatpush1.bf16.msra.mxu0 %v8553
    %8557 = vmatprep.subr.bf16.mxu0 0
    %8558 = vmatpush1.bf16.msra.mxu0 0
    %8559 = vmatprep.subr.bf16.mxu0 0
    %8560 = vmatpush1.bf16.msra.mxu0 0
    %8561 = vmatprep.subr.bf16.mxu0 0
    %8562 = vmatpush1.bf16.msra.mxu0 0
    %8563 = vmatprep.subr.bf16.mxu0 0
    %8564 = vmatpush1.bf16.msra.mxu0 0
    %8565 = vmatprep.subr.bf16.mxu0 0
    %8566 = vmatpush1.bf16.msra.mxu0 0
    %8567 = vmatprep.subr.bf16.mxu0 0
    %8568 = vmatpush1.bf16.msra.mxu0 0
    %8569 = vmatprep.subr.bf16.mxu0 0
    %8570 = vmatpush1.bf16.msra.mxu0 0
    %8571 = vmatprep.subr.bf16.mxu0 0
    %8572 = vmatpush1.bf16.msra.mxu0 0
    %8573 = vmatprep.subr.bf16.mxu0 0
    %8574 = vmatpush1.bf16.msra.mxu0 0
    %8575 = vmatprep.subr.bf16.mxu0 0
    %8576 = vmatpush1.bf16.msra.mxu0 0
    %8577 = vmatprep.subr.bf16.mxu0 0
    %8578 = vmatpush1.bf16.msra.mxu0 0
    %8579 = vmatprep.subr.bf16.mxu0 0
    %8580 = vmatpush1.bf16.msra.mxu0 0
    %8581 = vmatprep.subr.bf16.mxu0 0
    %8582 = vmatpush1.bf16.msra.mxu0 0
    %8583 = vmatprep.subr.bf16.mxu0 0
    %8584 = vmatpush1.bf16.msra.mxu0 0
    %8585 = vmatprep.subr.bf16.mxu0 0
    %8586 = vmatpush1.bf16.msra.mxu0 0
    %8587 = vmatprep.mubr.bf16.mxu0 0
    %8588 = vmatmul.mubr.bf16.gmra.mrb[0].mxu0 %v8550
    %v8589 = vpop.f32.mrb[0].mxu0
    %v8590 = vadd.f32 0.0, %v8589
    %v8591 = vpop.f32.mrb[0].mxu0
    %v8592 = vpop.f32.mrb[0].mxu0
    %v8593 = vadd.f32 0.0, %v8592
    %v8594 = vpop.f32.mrb[0].mxu0
    %8595 = vdwg.mxu0
    %8598 = vrot.lane.b32.xlu0 %v8308, 16
    %v8599 = vpop.permute.xlu0 %8598
    %8600 = vrot.lane.b32.xlu0 %v8311, 16
    %v8601 = vpop.permute.xlu0 %8600
    %8606 = vrot.lane.b32.xlu0 %v8355, 32
    %v8607 = vpop.permute.xlu0 %8606
    %8608 = vrot.lane.b32.xlu0 %v8358, 32
    %v8609 = vpop.permute.xlu0 %8608
    %8614 = vrot.lane.b32.xlu0 %v8402, 48
    %v8615 = vpop.permute.xlu0 %8614
    %8616 = vrot.lane.b32.xlu0 %v8405, 48
    %v8617 = vpop.permute.xlu0 %8616
    %8622 = vrot.lane.b32.xlu0 %v8449, 64
    %v8623 = vpop.permute.xlu0 %8622
    %8624 = vrot.lane.b32.xlu0 %v8452, 64
    %v8625 = vpop.permute.xlu0 %8624
    %8630 = vrot.lane.b32.xlu0 %v8496, 80
    %v8631 = vpop.permute.xlu0 %8630
    %8632 = vrot.lane.b32.xlu0 %v8499, 80
    %v8633 = vpop.permute.xlu0 %8632
    %8638 = vrot.lane.b32.xlu0 %v8543, 96
    %v8639 = vpop.permute.xlu0 %8638
    %8640 = vrot.lane.b32.xlu0 %v8546, 96
    %v8641 = vpop.permute.xlu0 %8640
    %8646 = vrot.lane.b32.xlu0 %v8590, 112
    %v8647 = vpop.permute.xlu0 %8646
    %8648 = vrot.lane.b32.xlu0 %v8593, 112
    %v8649 = vpop.permute.xlu0 %8648
    %v8652 = vsel %vm1958, %v8261, %v8599
    %v8653 = vsel %vm1958, %v8264, %v8601
    %v8654 = vsel %vm2830, %v8652, %v8607
    %v8655 = vsel %vm2830, %v8653, %v8609
    %v8656 = vsel %vm2832, %v8654, %v8615
    %v8657 = vsel %vm2832, %v8655, %v8617
    %v8658 = vsel %vm1152, %v8656, %v8623
    %v8659 = vsel %vm1152, %v8657, %v8625
    %v8660 = vsel %vm2835, %v8658, %v8631
    %v8661 = vsel %vm2835, %v8659, %v8633
    %v8662 = vsel %vm2837, %v8660, %v8639
    %v8663 = vsel %vm2837, %v8661, %v8641
    %v8664 = vsel %vm2839, %v8662, %v8647
    %v8665 = vsel %vm2839, %v8663, %v8649
    %v8666 = vpack.c.bf16 %v8665, %v8664
    %v8667 = vld [vmem:[#allocation7] sm:$0xff]
    %v8668 = vld [vmem:[#allocation7 + $0x8] sm:$0xff]
    %v8669 = vld [vmem:[#allocation7 + $0x10] sm:$0xff]
    %v8670 = vld [vmem:[#allocation7 + $0x18] sm:$0xff]
    %v8671 = vld [vmem:[#allocation7 + $0x20] sm:$0xff]
    %v8672 = vld [vmem:[#allocation7 + $0x28] sm:$0xff]
    %v8673 = vld [vmem:[#allocation7 + $0x30] sm:$0xff]
    %v8674 = vld [vmem:[#allocation7 + $0x38] sm:$0xff]
    %v8675 = vld [vmem:[#allocation35] sm:$0x1]
    %v8677 = vlaneseq
    %v8678 = vshrl.u32 %v8677, 7
    %v8679 = vsub.s32 0, %v8678
    %v8680 = vrot.slane %v8675, %v8679
    %8682 = vmatprep.subr.bf16.mxu0 0
    %8683 = vmatpush1.bf16.msra.mxu0 %v8667
    %8684 = vmatprep.subr.bf16.mxu0 0
    %8685 = vmatpush1.bf16.msra.mxu0 %v8668
    %8686 = vmatprep.subr.bf16.mxu0 0
    %8687 = vmatpush1.bf16.msra.mxu0 %v8669
    %8688 = vmatprep.subr.bf16.mxu0 0
    %8689 = vmatpush1.bf16.msra.mxu0 %v8670
    %8690 = vmatprep.subr.bf16.mxu0 0
    %8691 = vmatpush1.bf16.msra.mxu0 %v8671
    %8692 = vmatprep.subr.bf16.mxu0 0
    %8693 = vmatpush1.bf16.msra.mxu0 %v8672
    %8694 = vmatprep.subr.bf16.mxu0 0
    %8695 = vmatpush1.bf16.msra.mxu0 %v8673
    %8696 = vmatprep.subr.bf16.mxu0 0
    %8697 = vmatpush1.bf16.msra.mxu0 %v8674
    %8698 = vmatprep.subr.bf16.mxu0 0
    %8699 = vmatpush1.bf16.msra.mxu0 0
    %8700 = vmatprep.subr.bf16.mxu0 0
    %8701 = vmatpush1.bf16.msra.mxu0 0
    %8702 = vmatprep.subr.bf16.mxu0 0
    %8703 = vmatpush1.bf16.msra.mxu0 0
    %8704 = vmatprep.subr.bf16.mxu0 0
    %8705 = vmatpush1.bf16.msra.mxu0 0
    %8706 = vmatprep.subr.bf16.mxu0 0
    %8707 = vmatpush1.bf16.msra.mxu0 0
    %8708 = vmatprep.subr.bf16.mxu0 0
    %8709 = vmatpush1.bf16.msra.mxu0 0
    %8710 = vmatprep.subr.bf16.mxu0 0
    %8711 = vmatpush1.bf16.msra.mxu0 0
    %8712 = vmatprep.subr.bf16.mxu0 0
    %8713 = vmatpush1.bf16.msra.mxu0 0
    %8714 = vmatprep.mubr.bf16.mxu0 0
    %8715 = vmatmul.mubr.bf16.gmra.mrb[0].mxu0 %v8666
    %v8716 = vpop.f32.mrb[0].mxu0
    %v8717 = vadd.f32 %v8680, %v8716
    %v8718 = vpop.f32.mrb[0].mxu0
    %v8719 = vpop.f32.mrb[0].mxu0
    %v8720 = vadd.f32 %v8680, %v8719
    %v8721 = vpop.f32.mrb[0].mxu0
    %8722 = vdwg.mxu0
    %s8723 = smul.u32 4, 48
    %s8724 = smul.u32 %s8723, 1
    %s8725 = sshll.u32 %s8724, 4
    %8726 = dma.done %s794, %s8725
    %s8727 = smul.u32 4, 8
    %s8728 = smul.u32 %s8727, 1
    %s8729 = sshll.u32 %s8728, 4
    %8730 = dma.done %s883, %s8729
    %s8731 = smul.u32 4, 4
    %s8732 = smul.u32 %s8731, 1
    %s8733 = sshll.u32 %s8732, 4
    %8734 = dma.done %s932, %s8733
    %v8736 = vrot.slane %v8717, 4
    %v8738 = vpack.c.bf16 %v8717, %v8717
    %v8739 = vpack.c.bf16 %v8736, %v8736
    %v8740 = vpack.c.bf16 %v8720, %v8720
    %v8741 = vld [vmem:[#allocation8] sm:$0xff]
    %v8742 = vld [vmem:[#allocation8 + $0x8] sm:$0xff]
    %v8743 = vld [vmem:[#allocation8 + $0x10] sm:$0xff]
    %v8744 = vld [vmem:[#allocation8 + $0x18] sm:$0xff]
    %v8745 = vld [vmem:[#allocation8 + $0x20] sm:$0xff]
    %v8746 = vld [vmem:[#allocation8 + $0x28] sm:$0xff]
    %v8747 = vld [vmem:[#allocation8 + $0x30] sm:$0xff]
    %v8748 = vld [vmem:[#allocation8 + $0x38] sm:$0xff]
    %v8749 = vld [vmem:[#allocation8 + $0x40] sm:$0xff]
    %v8750 = vld [vmem:[#allocation8 + $0x48] sm:$0xff]
    %v8751 = vld [vmem:[#allocation8 + $0x50] sm:$0xff]
    %v8752 = vld [vmem:[#allocation8 + $0x58] sm:$0xff]
    %v8753 = vld [vmem:[#allocation8 + $0x60] sm:$0xff]
    %v8754 = vld [vmem:[#allocation8 + $0x68] sm:$0xff]
    %v8755 = vld [vmem:[#allocation8 + $0x70] sm:$0xff]
    %v8756 = vld [vmem:[#allocation8 + $0x78] sm:$0xff]
    %v8757 = vld [vmem:[#allocation8 + $0x80] sm:$0xff]
    %v8758 = vld [vmem:[#allocation8 + $0x88] sm:$0xff]
    %v8759 = vld [vmem:[#allocation8 + $0x90] sm:$0xff]
    %v8760 = vld [vmem:[#allocation8 + $0x98] sm:$0xff]
    %v8761 = vld [vmem:[#allocation8 + $0xa0] sm:$0xff]
    %v8762 = vld [vmem:[#allocation8 + $0xa8] sm:$0xff]
    %v8763 = vld [vmem:[#allocation8 + $0xb0] sm:$0xff]
    %v8764 = vld [vmem:[#allocation8 + $0xb8] sm:$0xff]
    %v8765 = vld [vmem:[#allocation36] sm:$0x1]
    %v8767 = vlaneseq
    %v8768 = vshrl.u32 %v8767, 7
    %v8769 = vsub.s32 0, %v8768
    %v8770 = vrot.slane %v8765, %v8769
    %8772 = vmatprep.subr.bf16.mxu0 0
    %8773 = vmatpush1.bf16.msra.mxu0 %v8741
    %8774 = vmatprep.subr.bf16.mxu0 0
    %8775 = vmatpush1.bf16.msra.mxu0 %v8742
    %8776 = vmatprep.subr.bf16.mxu0 0
    %8777 = vmatpush1.bf16.msra.mxu0 %v8743
    %8778 = vmatprep.subr.bf16.mxu0 0
    %8779 = vmatpush1.bf16.msra.mxu0 %v8744
    %8780 = vmatprep.subr.bf16.mxu0 0
    %8781 = vmatpush1.bf16.msra.mxu0 %v8745
    %8782 = vmatprep.subr.bf16.mxu0 0
    %8783 = vmatpush1.bf16.msra.mxu0 %v8746
    %8784 = vmatprep.subr.bf16.mxu0 0
    %8785 = vmatpush1.bf16.msra.mxu0 %v8747
    %8786 = vmatprep.subr.bf16.mxu0 0
    %8787 = vmatpush1.bf16.msra.mxu0 %v8748
    %8788 = vmatprep.subr.bf16.mxu0 0
    %8789 = vmatpush1.bf16.msra.mxu0 %v8749
    %8790 = vmatprep.subr.bf16.mxu0 0
    %8791 = vmatpush1.bf16.msra.mxu0 %v8750
    %8792 = vmatprep.subr.bf16.mxu0 0
    %8793 = vmatpush1.bf16.msra.mxu0 %v8751
    %8794 = vmatprep.subr.bf16.mxu0 0
    %8795 = vmatpush1.bf16.msra.mxu0 %v8752
    %8796 = vmatprep.subr.bf16.mxu0 0
    %8797 = vmatpush1.bf16.msra.mxu0 %v8753
    %8798 = vmatprep.subr.bf16.mxu0 0
    %8799 = vmatpush1.bf16.msra.mxu0 %v8754
    %8800 = vmatprep.subr.bf16.mxu0 0
    %8801 = vmatpush1.bf16.msra.mxu0 %v8755
    %8802 = vmatprep.subr.bf16.mxu0 0
    %8803 = vmatpush1.bf16.msra.mxu0 %v8756
    %8804 = vmatprep.mubr.bf16.mxu0 %v8739
    %8805 = vmatmul.mubr.bf16.gmra.mrb[0].mxu0 %v8738
    %v8806 = vpop.f32.mrb[0].mxu0
    %v8807 = vadd.f32 %v8770, %v8806
    %v8808 = vpop.f32.mrb[0].mxu0
    %v8809 = vpop.f32.mrb[0].mxu0
    %v8810 = vpop.f32.mrb[0].mxu0
    %8811 = vdwg.mxu0
    %8812 = vmatprep.subr.bf16.mxu0 0
    %8813 = vmatpush1.bf16.msra.mxu0 %v8757
    %8814 = vmatprep.subr.bf16.mxu0 0
    %8815 = vmatpush1.bf16.msra.mxu0 %v8758
    %8816 = vmatprep.subr.bf16.mxu0 0
    %8817 = vmatpush1.bf16.msra.mxu0 %v8759
    %8818 = vmatprep.subr.bf16.mxu0 0
    %8819 = vmatpush1.bf16.msra.mxu0 %v8760
    %8820 = vmatprep.subr.bf16.mxu0 0
    %8821 = vmatpush1.bf16.msra.mxu0 %v8761
    %8822 = vmatprep.subr.bf16.mxu0 0
    %8823 = vmatpush1.bf16.msra.mxu0 %v8762
    %8824 = vmatprep.subr.bf16.mxu0 0
    %8825 = vmatpush1.bf16.msra.mxu0 %v8763
    %8826 = vmatprep.subr.bf16.mxu0 0
    %8827 = vmatpush1.bf16.msra.mxu0 %v8764
    %8828 = vmatprep.subr.bf16.mxu0 0
    %8829 = vmatpush1.bf16.msra.mxu0 0
    %8830 = vmatprep.subr.bf16.mxu0 0
    %8831 = vmatpush1.bf16.msra.mxu0 0
    %8832 = vmatprep.subr.bf16.mxu0 0
    %8833 = vmatpush1.bf16.msra.mxu0 0
    %8834 = vmatprep.subr.bf16.mxu0 0
    %8835 = vmatpush1.bf16.msra.mxu0 0
    %8836 = vmatprep.subr.bf16.mxu0 0
    %8837 = vmatpush1.bf16.msra.mxu0 0
    %8838 = vmatprep.subr.bf16.mxu0 0
    %8839 = vmatpush1.bf16.msra.mxu0 0
    %8840 = vmatprep.subr.bf16.mxu0 0
    %8841 = vmatpush1.bf16.msra.mxu0 0
    %8842 = vmatprep.subr.bf16.mxu0 0
    %8843 = vmatpush1.bf16.msra.mxu0 0
    %8844 = vmatprep.mubr.bf16.mxu0 0
    %8845 = vmatmul.mubr.bf16.gmra.mrb[0].mxu0 %v8740
    %v8846 = vpop.f32.mrb[0].mxu0
    %v8847 = vadd.f32 %v8807, %v8846
    %v8848 = vpop.f32.mrb[0].mxu0
    %v8849 = vpop.f32.mrb[0].mxu0
    %v8850 = vpop.f32.mrb[0].mxu0
    %8851 = vdwg.mxu0
    %v8852 = vpack.c.bf16 %v8847, %v8847
    %v8853 = vld [vmem:[#allocation9] sm:$0xff]
    %v8854 = vld [vmem:[#allocation9 + $0x8] sm:$0xff]
    %v8855 = vld [vmem:[#allocation9 + $0x10] sm:$0xff]
    %v8856 = vld [vmem:[#allocation9 + $0x18] sm:$0xff]
    %v8857 = vld [vmem:[#allocation38] sm:$0x1]
    %v8859 = vlaneseq
    %v8860 = vshrl.u32 %v8859, 7
    %v8861 = vsub.s32 0, %v8860
    %v8862 = vrot.slane %v8857, %v8861
    %v8865 = vsel %vm1152, %v8852, 0
    %8867 = vmatprep.subr.bf16.mxu0 0
    %8868 = vmatpush1.bf16.msra.mxu0 %v8853
    %8869 = vmatprep.subr.bf16.mxu0 0
    %8870 = vmatpush1.bf16.msra.mxu0 %v8854
    %8871 = vmatprep.subr.bf16.mxu0 0
    %8872 = vmatpush1.bf16.msra.mxu0 %v8855
    %8873 = vmatprep.subr.bf16.mxu0 0
    %8874 = vmatpush1.bf16.msra.mxu0 %v8856
    %8875 = vmatprep.subr.bf16.mxu0 0
    %8876 = vmatpush1.bf16.msra.mxu0 0
    %8877 = vmatprep.subr.bf16.mxu0 0
    %8878 = vmatpush1.bf16.msra.mxu0 0
    %8879 = vmatprep.subr.bf16.mxu0 0
    %8880 = vmatpush1.bf16.msra.mxu0 0
    %8881 = vmatprep.subr.bf16.mxu0 0
    %8882 = vmatpush1.bf16.msra.mxu0 0
    %8883 = vmatprep.subr.bf16.mxu0 0
    %8884 = vmatpush1.bf16.msra.mxu0 0
    %8885 = vmatprep.subr.bf16.mxu0 0
    %8886 = vmatpush1.bf16.msra.mxu0 0
    %8887 = vmatprep.subr.bf16.mxu0 0
    %8888 = vmatpush1.bf16.msra.mxu0 0
    %8889 = vmatprep.subr.bf16.mxu0 0
    %8890 = vmatpush1.bf16.msra.mxu0 0
    %8891 = vmatprep.subr.bf16.mxu0 0
    %8892 = vmatpush1.bf16.msra.mxu0 0
    %8893 = vmatprep.subr.bf16.mxu0 0
    %8894 = vmatpush1.bf16.msra.mxu0 0
    %8895 = vmatprep.subr.bf16.mxu0 0
    %8896 = vmatpush1.bf16.msra.mxu0 0
    %8897 = vmatprep.subr.bf16.mxu0 0
    %8898 = vmatpush1.bf16.msra.mxu0 0
    %8899 = vmatprep.mubr.bf16.mxu0 0
    %8900 = vmatmul.mubr.bf16.gmra.mrb[0].mxu0 %v8865
    %v8901 = vpop.f32.mrb[0].mxu0
    %v8902 = vadd.f32 %v8862, %v8901
    %v8903 = vpop.f32.mrb[0].mxu0
    %v8904 = vpop.f32.mrb[0].mxu0
    %v8905 = vpop.f32.mrb[0].mxu0
    %8906 = vdwg.mxu0
    %v8907 = vmax.f32 %v8902, 0.0
    %v8908 = vpack.c.bf16 %v8907, %v8907
    %v8909 = vld [vmem:[#allocation10] sm:$0xff]
    %v8910 = vld [vmem:[#allocation10 + $0x8] sm:$0xff]
    %v8911 = vld [vmem:[#allocation39] sm:$0x1]
    %v8913 = vlaneseq
    %v8914 = vshrl.u32 %v8913, 7
    %v8915 = vsub.s32 0, %v8914
    %v8916 = vrot.slane %v8911, %v8915
    %v8919 = vsel %vm2830, %v8908, 0
    %8921 = vmatprep.subr.bf16.mxu0 0
    %8922 = vmatpush1.bf16.msra.mxu0 %v8909
    %8923 = vmatprep.subr.bf16.mxu0 0
    %8924 = vmatpush1.bf16.msra.mxu0 %v8910
    %8925 = vmatprep.subr.bf16.mxu0 0
    %8926 = vmatpush1.bf16.msra.mxu0 0
    %8927 = vmatprep.subr.bf16.mxu0 0
    %8928 = vmatpush1.bf16.msra.mxu0 0
    %8929 = vmatprep.subr.bf16.mxu0 0
    %8930 = vmatpush1.bf16.msra.mxu0 0
    %8931 = vmatprep.subr.bf16.mxu0 0
    %8932 = vmatpush1.bf16.msra.mxu0 0
    %8933 = vmatprep.subr.bf16.mxu0 0
    %8934 = vmatpush1.bf16.msra.mxu0 0
    %8935 = vmatprep.subr.bf16.mxu0 0
    %8936 = vmatpush1.bf16.msra.mxu0 0
    %8937 = vmatprep.subr.bf16.mxu0 0
    %8938 = vmatpush1.bf16.msra.mxu0 0
    %8939 = vmatprep.subr.bf16.mxu0 0
    %8940 = vmatpush1.bf16.msra.mxu0 0
    %8941 = vmatprep.subr.bf16.mxu0 0
    %8942 = vmatpush1.bf16.msra.mxu0 0
    %8943 = vmatprep.subr.bf16.mxu0 0
    %8944 = vmatpush1.bf16.msra.mxu0 0
    %8945 = vmatprep.subr.bf16.mxu0 0
    %8946 = vmatpush1.bf16.msra.mxu0 0
    %8947 = vmatprep.subr.bf16.mxu0 0
    %8948 = vmatpush1.bf16.msra.mxu0 0
    %8949 = vmatprep.subr.bf16.mxu0 0
    %8950 = vmatpush1.bf16.msra.mxu0 0
    %8951 = vmatprep.subr.bf16.mxu0 0
    %8952 = vmatpush1.bf16.msra.mxu0 0
    %8953 = vmatprep.mubr.bf16.mxu0 0
    %8954 = vmatmul.mubr.bf16.gmra.mrb[0].mxu0 %v8919
    %v8955 = vpop.f32.mrb[0].mxu0
    %v8956 = vadd.f32 %v8916, %v8955
    %v8957 = vpop.f32.mrb[0].mxu0
    %v8958 = vpop.f32.mrb[0].mxu0
    %v8959 = vpop.f32.mrb[0].mxu0
    %8960 = vdwg.mxu0
    %8961 = vrot.lane.b32.xlu0 %v1201, 2
    %v8962 = vpop.permute.xlu0 %8961
    %v8964 = vrot.slane %v1201, 4
    %8965 = vrot.lane.b32.xlu0 %v8964, 3
    %v8966 = vpop.permute.xlu0 %8965
    %vm8968 = vcmask 15360
    %v8969 = vsel %vm8968, %v8956, %v8962
    %vm8970 = vcmask 23552
    %v8971 = vsel %vm8970, %v8969, %v8966
    %vm8972 = vcmask 27648
    %8973 = vst.msk [vmem:[%s81] sm:$0xf] %vm8972, %v8971
    // Predicated region
    $region349: #{forward.1} parent=1 // pred_check
      _
    $region350: #{forward.1} parent=1 // pred_check_branch
      %8975 = sbr.rel (0) target = $region352
    $region351: #{forward.1} parent=1 // pred_region
      _
    $region352: #{forward.1} parent=1 // pred_fallthru
      _
    // Predicated region
    $region353: #{forward.1} parent=1 // pred_check
      _
    $region354: #{forward.1} parent=1 // pred_check_branch
      %8977 = sbr.rel (0) target = $region356
    $region355: #{forward.1} parent=1 // pred_region
      _
    $region356: #{forward.1} parent=1 // pred_fallthru
      _
    %8978 = vsyncpa [#allocation14], 1
    %8979 = vsyncpa [#allocation16], 1
    %8980 = vsyncpa [#allocation19], 1
    %8981 = vsyncpa [#allocation22], 1
    %8982 = vsyncpa [#allocation25], 1
    %8983 = vsyncpa [#allocation28], 1
    %8984 = vsyncpa [#allocation31], 1
    %8985 = vsyncpa [#allocation34], 1
    %8986 = vsyncpa [#allocation37], 1
    %8987 = vsyncpa [#allocation40], 1
  %8988 = vsyncmov [#allocation11]
  %s8989 = vpop.sfrf %8988
  %p8990 = scmp.eq.s32.totalorder %s8989, 0
  %p8991 = pneg %p8990
  %8993 = shalt.err (%p8991)
  %s8994 = scalar_lea.sflag [#allocation11], 1
  %8995 = vsyncmov %s8994
  %s8996 = vpop.sfrf %8995
  %p8997 = scmp.eq.s32.totalorder %s8996, 0
  %p8998 = pneg %p8997
  %9000 = shalt.err (%p8998)
  %s9001 = scalar_lea.sflag [#allocation11], 2
  %9002 = vsyncmov %s9001
  %s9003 = vpop.sfrf %9002
  %p9004 = scmp.eq.s32.totalorder %s9003, 0
  %p9005 = pneg %p9004
  %9007 = shalt.err (%p9005)
  %s9008 = scalar_lea.sflag [#allocation11], 3
  %9009 = vsyncmov %s9008
  %s9010 = vpop.sfrf %9009
  %p9011 = scmp.eq.s32.totalorder %s9010, 0
  %p9012 = pneg %p9011
  %9014 = shalt.err (%p9012)
  %s9015 = scalar_lea.sflag [#allocation11], 4
  %9016 = vsyncmov %s9015
  %s9017 = vpop.sfrf %9016
  %p9018 = scmp.eq.s32.totalorder %s9017, 0
  %p9019 = pneg %p9018
  %9021 = shalt.err (%p9019)
  %s9022 = scalar_lea.sflag [#allocation11], 5
  %9023 = vsyncmov %s9022
  %s9024 = vpop.sfrf %9023
  %p9025 = scmp.eq.s32.totalorder %s9024, 0
  %p9026 = pneg %p9025
  %9028 = shalt.err (%p9026)
  %s9029 = scalar_lea.sflag [#allocation11], 6
  %9030 = vsyncmov %s9029
  %s9031 = vpop.sfrf %9030
  %p9032 = scmp.eq.s32.totalorder %s9031, 0
  %p9033 = pneg %p9032
  %9035 = shalt.err (%p9033)
  %s9036 = scalar_lea.sflag [#allocation11], 7
  %9037 = vsyncmov %s9036
  %s9038 = vpop.sfrf %9037
  %p9039 = scmp.eq.s32.totalorder %s9038, 0
  %p9040 = pneg %p9039
  %9042 = shalt.err (%p9040)
  %s9043 = scalar_lea.sflag [#allocation11], 8
  %9044 = vsyncmov %s9043
  %s9045 = vpop.sfrf %9044
  %p9046 = scmp.eq.s32.totalorder %s9045, 0
  %p9047 = pneg %p9046
  %9049 = shalt.err (%p9047)

</llo_original>
